<compile_context>
chip_gen: v6e
topology: v6e:2x2x1
jax: 0.10.0
libtpu: 0.0.40
codegen_flags: <defaults>
</compile_context>

<pallas_src>
import functools
import math

import jax
import jax.numpy as jnp
from jax.experimental import pallas as pl
from jax.experimental.pallas import tpu as pltpu

# ----------------------------- config ---------------------------------------
HIDDEN = 512
INTER = 1024
LAYERS = 6
HEADS = 8
HEAD_DIM = HIDDEN // HEADS
VOCAB = 30522
MAX_POS = 512
TYPE_VOCAB = 2
NUM_LABELS = 2
LN_EPS = 1e-12
INIT_RANGE = 0.02
MASK_NEG = -1e9  # safe large-negative additive mask (HF/Flax style), no NaNs

VMEM_LIMIT = 48 * 1024 * 1024  # fits v7x's 64 MiB physical VMEM with headroom
_PARAMS_1D = pltpu.CompilerParams(
    dimension_semantics=("parallel",), vmem_limit_bytes=VMEM_LIMIT)


def _row_tile(n):
    """Largest 8-aligned row tile that divides n AND leaves >=2 grid steps
    (so both v7x TensorCores get work even at small batch)."""
    for tm in (512, 256, 128, 64, 32, 16, 8):
        if n % tm == 0 and n // tm >= 2:
            return tm
    return n


# ----------------------------- kernels --------------------------------------
def _dense_kernel(x_ref, w_ref, b_ref, o_ref):
    x = x_ref[...].astype(jnp.bfloat16)                 # bf16 into the MXU
    acc = jnp.dot(x, w_ref[...], preferred_element_type=jnp.float32)
    o_ref[...] = (acc + b_ref[...]).astype(o_ref.dtype)  # f32 epilogue


def dense(x, w, b, out_dtype=jnp.float32):
    """x: [N, K], w: [K, F] bf16 (torch W.T), b: [F] f32 -> [N, F] out_dtype."""
    n, k = x.shape
    f = w.shape[1]
    tm = _row_tile(n)
    return pl.pallas_call(
        _dense_kernel,
        out_shape=jax.ShapeDtypeStruct((n, f), out_dtype),
        grid=(n // tm,),
        in_specs=[
            pl.BlockSpec((tm, k), lambda i: (i, 0)),
            pl.BlockSpec((k, f), lambda i: (0, 0)),
            pl.BlockSpec((1, f), lambda i: (0, 0)),
        ],
        out_specs=pl.BlockSpec((tm, f), lambda i: (i, 0)),
        compiler_params=_PARAMS_1D,
    )(x, w, b.reshape(1, f))


def _dense_add_ln_kernel(x_ref, w_ref, b_ref, r_ref, g_ref, bt_ref, o_ref, *,
                         eps):
    x = x_ref[...].astype(jnp.bfloat16)                 # no-op if already bf16
    acc = jnp.dot(x, w_ref[...], preferred_element_type=jnp.float32)
    y = acc + b_ref[...] + r_ref[...]                   # bias + residual, f32
    mu = jnp.mean(y, axis=-1, keepdims=True)
    var = jnp.mean(jnp.square(y - mu), axis=-1, keepdims=True)
    inv = jax.lax.rsqrt(var + eps)
    o_ref[...] = (y - mu) * inv * g_ref[...] + bt_ref[...]


def dense_add_ln(x, w, b, residual, gamma, beta, eps=LN_EPS):
    """LayerNorm(x @ w + b + residual). x: [N, K] (bf16 ok), residual f32."""
    n, k = x.shape
    h = w.shape[1]
    tm = _row_tile(n)
    kern = functools.partial(_dense_add_ln_kernel, eps=eps)
    return pl.pallas_call(
        kern,
        out_shape=jax.ShapeDtypeStruct((n, h), jnp.float32),
        grid=(n // tm,),
        in_specs=[
            pl.BlockSpec((tm, k), lambda i: (i, 0)),
            pl.BlockSpec((k, h), lambda i: (0, 0)),
            pl.BlockSpec((1, h), lambda i: (0, 0)),
            pl.BlockSpec((tm, h), lambda i: (i, 0)),
            pl.BlockSpec((1, h), lambda i: (0, 0)),
            pl.BlockSpec((1, h), lambda i: (0, 0)),
        ],
        out_specs=pl.BlockSpec((tm, h), lambda i: (i, 0)),
        compiler_params=_PARAMS_1D,
    )(x, w, b.reshape(1, h), residual, gamma.reshape(1, h), beta.reshape(1, h))


def _ffn_ln_kernel(x_ref, wi_ref, bi_ref, wo_ref, bo_ref, g_ref, bt_ref,
                   o_ref, *, eps):
    # Fused BertIntermediate + BertOutput: dense -> exact GELU -> dense
    # -> +bias +residual -> LayerNorm.  The [tm, INTER] intermediate stays
    # on-chip (never written to HBM).
    x = x_ref[...]                                       # (tm, H) f32 residual
    a = jnp.dot(x.astype(jnp.bfloat16), wi_ref[...],
                preferred_element_type=jnp.float32) + bi_ref[...]
    a = 0.5 * a * (1.0 + jax.lax.erf(a * (1.0 / math.sqrt(2.0))))  # HF 'gelu'
    y = jnp.dot(a.astype(jnp.bfloat16), wo_ref[...],
                preferred_element_type=jnp.float32) + bo_ref[...] + x
    mu = jnp.mean(y, axis=-1, keepdims=True)
    var = jnp.mean(jnp.square(y - mu), axis=-1, keepdims=True)
    inv = jax.lax.rsqrt(var + eps)
    o_ref[...] = (y - mu) * inv * g_ref[...] + bt_ref[...]


def ffn_ln(x, wi, bi, wo, bo, gamma, beta, eps=LN_EPS):
    """LayerNorm(gelu(x@wi+bi) @ wo + bo + x).  x: [N, H] f32."""
    n, h = x.shape
    tm = _row_tile(n)
    kern = functools.partial(_ffn_ln_kernel, eps=eps)
    return pl.pallas_call(
        kern,
        out_shape=jax.ShapeDtypeStruct((n, h), jnp.float32),
        grid=(n // tm,),
        in_specs=[
            pl.BlockSpec((tm, h), lambda i: (i, 0)),
            pl.BlockSpec((h, INTER), lambda i: (0, 0)),
            pl.BlockSpec((1, INTER), lambda i: (0, 0)),
            pl.BlockSpec((INTER, h), lambda i: (0, 0)),
            pl.BlockSpec((1, h), lambda i: (0, 0)),
            pl.BlockSpec((1, h), lambda i: (0, 0)),
            pl.BlockSpec((1, h), lambda i: (0, 0)),
        ],
        out_specs=pl.BlockSpec((tm, h), lambda i: (i, 0)),
        compiler_params=_PARAMS_1D,
    )(x, wi, bi.reshape(1, INTER), wo, bo.reshape(1, h),
      gamma.reshape(1, h), beta.reshape(1, h))


def _layernorm_kernel(x_ref, g_ref, b_ref, o_ref, *, eps):
    y = x_ref[...]
    mu = jnp.mean(y, axis=-1, keepdims=True)
    var = jnp.mean(jnp.square(y - mu), axis=-1, keepdims=True)
    inv = jax.lax.rsqrt(var + eps)
    o_ref[...] = (y - mu) * inv * g_ref[...] + b_ref[...]


def layernorm(x, gamma, beta, eps=LN_EPS):
    """Embedding LayerNorm over last dim; x: [N, H] f32 (no residual)."""
    n, h = x.shape
    tm = _row_tile(n)
    kern = functools.partial(_layernorm_kernel, eps=eps)
    return pl.pallas_call(
        kern,
        out_shape=jax.ShapeDtypeStruct((n, h), jnp.float32),
        grid=(n // tm,),
        in_specs=[
            pl.BlockSpec((tm, h), lambda i: (i, 0)),
            pl.BlockSpec((1, h), lambda i: (0, 0)),
            pl.BlockSpec((1, h), lambda i: (0, 0)),
        ],
        out_specs=pl.BlockSpec((tm, h), lambda i: (i, 0)),
        compiler_params=_PARAMS_1D,
    )(x, gamma.reshape(1, h), beta.reshape(1, h))


def _attention_kernel(q_ref, k_ref, v_ref, m_ref, o_ref):
    # One batch element (all 8 heads) per grid step.
    # q/k/v blocks: (1, S, HIDDEN) bf16 sliced straight out of the fused qkv
    # buffer (Q already scaled by 1/sqrt(head_dim) at init).  mask: (1, 1, S).
    mask = m_ref[0]                                      # (1, S) f32 additive
    outs = []
    for h in range(HEADS):                               # static unroll
        lo, hi = h * HEAD_DIM, (h + 1) * HEAD_DIM
        qh = q_ref[0, :, lo:hi]                          # (S, Dh) bf16
        kh = k_ref[0, :, lo:hi]
        vh = v_ref[0, :, lo:hi]
        s = jax.lax.dot_general(qh, kh, (((1,), (1,)), ((), ())),
                                preferred_element_type=jnp.float32)
        s = s + mask                                     # broadcast key mask
        s = s - jnp.max(s, axis=-1, keepdims=True)       # stable softmax, f32
        p = jnp.exp(s)
        p = p / jnp.sum(p, axis=-1, keepdims=True)       # exact normalization
        # p cast to bf16 before p@v (standard practice; small deviation vs f32)
        outs.append(jnp.dot(p.astype(jnp.bfloat16), vh,
                            preferred_element_type=jnp.float32))
    # heads merged in-register -> one dense 512-lane store, no XLA transpose
    o_ref[0] = jnp.concatenate(outs, axis=-1).astype(o_ref.dtype)


def attention(qkv, add_mask):
    """qkv: [B, S, 3*HIDDEN] bf16 (columns = Q|K|V, Q pre-scaled);
    add_mask: [B, 1, S] additive f32.  Returns merged context [B, S, HIDDEN]."""
    b, s, _ = qkv.shape
    # TODO(synk): for S >= 512 switch to a flash-style (q-tile, kv-tile) grid
    # with online softmax, tiled for v7x's 64 MiB VMEM (q<=256 x kv=256).
    return pl.pallas_call(
        _attention_kernel,
        out_shape=jax.ShapeDtypeStruct((b, s, HIDDEN), jnp.bfloat16),
        grid=(b,),
        in_specs=[
            pl.BlockSpec((1, s, HIDDEN), lambda i: (i, 0, 0)),   # Q columns
            pl.BlockSpec((1, s, HIDDEN), lambda i: (i, 0, 1)),   # K columns
            pl.BlockSpec((1, s, HIDDEN), lambda i: (i, 0, 2)),   # V columns
            pl.BlockSpec((1, 1, s), lambda i: (i, 0, 0)),
        ],
        out_specs=pl.BlockSpec((1, s, HIDDEN), lambda i: (i, 0, 0)),
        compiler_params=_PARAMS_1D,
    )(qkv, qkv, qkv, add_mask)


# ----------------------------- parameters -----------------------------------
def init_params(key):
    ctr = [key]

    def nxt():
        ctr[0], sub = jax.random.split(ctr[0])
        return sub

    def w(kin, kout, dtype=jnp.bfloat16):  # Linear weight, [in, out] == torch W.T
        return (jax.random.normal(nxt(), (kin, kout), jnp.float32)
                * INIT_RANGE).astype(dtype)

    def emb(n, d):
        return jax.random.normal(nxt(), (n, d), jnp.float32) * INIT_RANGE

    params = {
        "word_emb": emb(VOCAB, HIDDEN),
        "pos_emb": emb(MAX_POS, HIDDEN),
        "type_emb": emb(TYPE_VOCAB, HIDDEN),
        "emb_ln_g": jnp.ones((HIDDEN,), jnp.float32),
        "emb_ln_b": jnp.zeros((HIDDEN,), jnp.float32),
        "layers": [],
        # pooler / classifier run in plain JAX -> keep f32
        "pool_w": w(HIDDEN, HIDDEN, jnp.float32),
        "pool_b": jnp.zeros((HIDDEN,), jnp.float32),
        "cls_w": w(HIDDEN, NUM_LABELS, jnp.float32),
        "cls_b": jnp.zeros((NUM_LABELS,), jnp.float32),
    }
    scale = 1.0 / math.sqrt(HEAD_DIM)
    for _ in range(LAYERS):
        # fused QKV projection: [H, 3H] weight, [3H] bias.  The softmax scale
        # 1/sqrt(Dh) is folded into the Q columns (and Q bias) -> free at run.
        w_qkv = jax.random.normal(nxt(), (HIDDEN, 3 * HIDDEN),
                                  jnp.float32) * INIT_RANGE
        w_qkv = w_qkv.at[:, :HIDDEN].multiply(scale)
        b_qkv = jnp.zeros((3 * HIDDEN,), jnp.float32)
        b_qkv = b_qkv.at[:HIDDEN].multiply(scale)
        params["layers"].append({
            "w_qkv": w_qkv.astype(jnp.bfloat16),
            "b_qkv": b_qkv,
            "wo": w(HIDDEN, HIDDEN), "bo": jnp.zeros((HIDDEN,), jnp.float32),
            "ln1_g": jnp.ones((HIDDEN,), jnp.float32),
            "ln1_b": jnp.zeros((HIDDEN,), jnp.float32),
            "wi": w(HIDDEN, INTER), "bi": jnp.zeros((INTER,), jnp.float32),
            "wo2": w(INTER, HIDDEN), "bo2": jnp.zeros((HIDDEN,), jnp.float32),
            "ln2_g": jnp.ones((HIDDEN,), jnp.float32),
            "ln2_b": jnp.zeros((HIDDEN,), jnp.float32),
        })
    return params


# ----------------------------- forward --------------------------------------
def bert_forward(params, input_ids, attention_mask, token_type_ids):
    B, S = input_ids.shape
    pos_ids = jnp.arange(S, dtype=jnp.int32)

    # Embedding gathers (glue, plain JAX), then LayerNorm kernel (no residual).
    emb = (jnp.take(params["word_emb"], input_ids, axis=0)
           + jnp.take(params["pos_emb"], pos_ids, axis=0)[None, :, :]
           + jnp.take(params["type_emb"], token_type_ids, axis=0))
    h = emb.reshape(B * S, HIDDEN).astype(jnp.float32)
    h = layernorm(h, params["emb_ln_g"], params["emb_ln_b"])

    # HF extended attention mask, kept tiny: [B, 1, S]; broadcast in-kernel.
    # Safe large-negative (not finfo.min) to avoid -inf/NaN in the softmax.
    add_mask = ((1.0 - attention_mask.astype(jnp.float32)) * MASK_NEG)[:, None, :]

    for lp in params["layers"]:
        # fused Q/K/V projection -> bf16 activation, fed to attention via
        # column-block BlockSpecs (no split / transpose in XLA)
        qkv = dense(h, lp["w_qkv"], lp["b_qkv"], out_dtype=jnp.bfloat16)
        ctx = attention(qkv.reshape(B, S, 3 * HIDDEN), add_mask)  # [B,S,H] bf16
        # attention-output dense fused with residual-add + LayerNorm
        h = dense_add_ln(ctx.reshape(B * S, HIDDEN), lp["wo"], lp["bo"],
                         h, lp["ln1_g"], lp["ln1_b"])
        # fused FFN: dense + GELU + dense + residual + LayerNorm (one kernel)
        h = ffn_ln(h, lp["wi"], lp["bi"], lp["wo2"], lp["bo2"],
                   lp["ln2_g"], lp["ln2_b"])

    # BertPooler + classifier: tiny, lane-sparse -> plain JAX (f32).
    h = h.reshape(B, S, HIDDEN)
    cls = h[:, 0, :]
    pooled = jnp.tanh(cls @ params["pool_w"] + params["pool_b"])
    logits = pooled @ params["cls_w"] + params["cls_b"]        # [B, num_labels]
    return logits


# ----------------------------- main ------------------------------------------
if __name__ == "__main__":
    root = jax.random.PRNGKey(0)
    k_params, k_ids = jax.random.split(root)

    params = init_params(k_params)

    B, S = 2, 8
    input_ids = jax.random.randint(k_ids, (B, S), 0, VOCAB, dtype=jnp.int32)
    attention_mask = jnp.ones((B, S), dtype=jnp.int32)
    token_type_ids = jnp.zeros((B, S), dtype=jnp.int32)

    logits = jax.jit(bert_forward)(params, input_ids, attention_mask,
                                   token_type_ids)
    jax.block_until_ready(logits)
    assert logits.shape == (B, NUM_LABELS) and logits.dtype == jnp.float32
    print("KERNEL_OK")
</pallas_src>

<mosaic_0001>
module attributes {stable_mosaic.version = 11 : i64} {
  func.func @_dense_kernel(%arg0: i32, %arg1: memref<8x512xf32, #tpu.memory_space<vmem>>, %arg2: memref<512x1536xbf16, #tpu.memory_space<vmem>>, %arg3: memref<1x1536xf32, #tpu.memory_space<vmem>>, %arg4: memref<8x1536xbf16, #tpu.memory_space<vmem>>) attributes {dimension_semantics = [#tpu.dimension_semantics<parallel>], iteration_bounds = array<i64: 2>, scalar_prefetch = 0 : i64, scratch_operands = 0 : i64, tpu.core_type = #tpu.core_type<tc>, window_params = [{transform_indices = @transform_0, window_bounds = array<i64: 8, 512>}, {pipeline_mode = #tpu.pipeline_mode<synchronous>, transform_indices = @transform_1, window_bounds = array<i64: 512, 1536>}, {pipeline_mode = #tpu.pipeline_mode<synchronous>, transform_indices = @transform_2, window_bounds = array<i64: 1, 1536>}, {transform_indices = @transform_3, window_bounds = array<i64: 8, 1536>}]} {
    %c0 = arith.constant 0 : index
    %c0_0 = arith.constant 0 : index
    %0 = vector.load %arg1[%c0, %c0_0] : memref<8x512xf32, #tpu.memory_space<vmem>>, vector<8x512xf32>
    %1 = arith.truncf %0 : vector<8x512xf32> to vector<8x512xbf16>
    %c0_1 = arith.constant 0 : index
    %c0_2 = arith.constant 0 : index
    %2 = vector.load %arg2[%c0_1, %c0_2] : memref<512x1536xbf16, #tpu.memory_space<vmem>>, vector<512x1536xbf16>
    %cst = arith.constant dense<0.000000e+00> : vector<8x1536xf32>
    %3 = tpu.matmul %1, %2, %cst {dimension_numbers = #tpu.dot_dimension_numbers<[1], [0], [0], [1], [0, 0, 1, 1], [], []>} : vector<8x512xbf16>, vector<512x1536xbf16>, vector<8x1536xf32> -> vector<8x1536xf32>
    %c0_3 = arith.constant 0 : index
    %c0_4 = arith.constant 0 : index
    %4 = vector.load %arg3[%c0_3, %c0_4] : memref<1x1536xf32, #tpu.memory_space<vmem>>, vector<1x1536xf32>
    %5 = vector.broadcast %4 : vector<1x1536xf32> to vector<8x1536xf32>
    %6 = arith.addf %3, %5 : vector<8x1536xf32>
    %7 = arith.truncf %6 : vector<8x1536xf32> to vector<8x1536xbf16>
    %c0_5 = arith.constant 0 : index
    %c0_6 = arith.constant 0 : index
    %8 = vector.load %arg4[%c0_5, %c0_6] : memref<8x1536xbf16, #tpu.memory_space<vmem>>, vector<8x1536xbf16>
    tpu.vector_store %arg4[%c0_5, %c0_6], %7 {strides = array<i32>} : memref<8x1536xbf16, #tpu.memory_space<vmem>>, vector<8x1536xbf16>,
    return
  }
  func.func @transform_0(%arg0: i32) -> (i32, i32) {
    %c0_i32 = arith.constant 0 : i32
    %c0_i32_0 = arith.constant 0 : i32
    return %arg0, %c0_i32 : i32, i32
  }
  func.func @transform_1(%arg0: i32) -> (i32, i32) {
    %c0_i32 = arith.constant 0 : i32
    %c0_i32_0 = arith.constant 0 : i32
    %c0_i32_1 = arith.constant 0 : i32
    return %c0_i32, %c0_i32_0 : i32, i32
  }
  func.func @transform_2(%arg0: i32) -> (i32, i32) {
    %c0_i32 = arith.constant 0 : i32
    %c0_i32_0 = arith.constant 0 : i32
    %c0_i32_1 = arith.constant 0 : i32
    return %c0_i32, %c0_i32_0 : i32, i32
  }
  func.func @transform_3(%arg0: i32) -> (i32, i32) {
    %c0_i32 = arith.constant 0 : i32
    %c0_i32_0 = arith.constant 0 : i32
    return %arg0, %c0_i32 : i32, i32
  }
}

module attributes {stable_mosaic.version = 11 : i64} {
  func.func @_layernorm_kernel(%arg0: i32, %arg1: memref<8x512xf32, #tpu.memory_space<vmem>>, %arg2: memref<1x512xf32, #tpu.memory_space<vmem>>, %arg3: memref<1x512xf32, #tpu.memory_space<vmem>>, %arg4: memref<8x512xf32, #tpu.memory_space<vmem>>) attributes {dimension_semantics = [#tpu.dimension_semantics<parallel>], iteration_bounds = array<i64: 2>, scalar_prefetch = 0 : i64, scratch_operands = 0 : i64, tpu.core_type = #tpu.core_type<tc>, window_params = [{transform_indices = @transform_0, window_bounds = array<i64: 8, 512>}, {pipeline_mode = #tpu.pipeline_mode<synchronous>, transform_indices = @transform_1, window_bounds = array<i64: 1, 512>}, {pipeline_mode = #tpu.pipeline_mode<synchronous>, transform_indices = @transform_2, window_bounds = array<i64: 1, 512>}, {transform_indices = @transform_3, window_bounds = array<i64: 8, 512>}]} {
    %c0 = arith.constant 0 : index
    %c0_0 = arith.constant 0 : index
    %0 = vector.load %arg1[%c0, %c0_0] : memref<8x512xf32, #tpu.memory_space<vmem>>, vector<8x512xf32>
    %cst = arith.constant dense<0.000000e+00> : vector<8xf32>
    %1 = vector.multi_reduction <add>, %0, %cst [1] : vector<8x512xf32> to vector<8xf32>
    %2 = vector.shape_cast %1 : vector<8xf32> to vector<8x1xf32>
    %cst_1 = arith.constant 5.120000e+02 : f32
    %3 = vector.broadcast %cst_1 : f32 to vector<8x1xf32>
    %4 = arith.divf %2, %3 : vector<8x1xf32>
    %5 = vector.broadcast %4 : vector<8x1xf32> to vector<8x512xf32>
    %6 = arith.subf %0, %5 : vector<8x512xf32>
    %7 = arith.mulf %6, %6 : vector<8x512xf32>
    %cst_2 = arith.constant dense<0.000000e+00> : vector<8xf32>
    %8 = vector.multi_reduction <add>, %7, %cst_2 [1] : vector<8x512xf32> to vector<8xf32>
    %9 = vector.shape_cast %8 : vector<8xf32> to vector<8x1xf32>
    %cst_3 = arith.constant 5.120000e+02 : f32
    %10 = vector.broadcast %cst_3 : f32 to vector<8x1xf32>
    %11 = arith.divf %9, %10 : vector<8x1xf32>
    %cst_4 = arith.constant 9.99999996E-13 : f32
    %12 = vector.broadcast %cst_4 : f32 to vector<8x1xf32>
    %13 = arith.addf %11, %12 : vector<8x1xf32>
    %14 = math.rsqrt %13 : vector<8x1xf32>
    %15 = vector.broadcast %4 : vector<8x1xf32> to vector<8x512xf32>
    %16 = arith.subf %0, %15 : vector<8x512xf32>
    %17 = vector.broadcast %14 : vector<8x1xf32> to vector<8x512xf32>
    %18 = arith.mulf %16, %17 : vector<8x512xf32>
    %c0_5 = arith.constant 0 : index
    %c0_6 = arith.constant 0 : index
    %19 = vector.load %arg2[%c0_5, %c0_6] : memref<1x512xf32, #tpu.memory_space<vmem>>, vector<1x512xf32>
    %20 = vector.broadcast %19 : vector<1x512xf32> to vector<8x512xf32>
    %21 = arith.mulf %18, %20 : vector<8x512xf32>
    %c0_7 = arith.constant 0 : index
    %c0_8 = arith.constant 0 : index
    %22 = vector.load %arg3[%c0_7, %c0_8] : memref<1x512xf32, #tpu.memory_space<vmem>>, vector<1x512xf32>
    %23 = vector.broadcast %22 : vector<1x512xf32> to vector<8x512xf32>
    %24 = arith.addf %21, %23 : vector<8x512xf32>
    %c0_9 = arith.constant 0 : index
    %c0_10 = arith.constant 0 : index
    %25 = vector.load %arg4[%c0_9, %c0_10] : memref<8x512xf32, #tpu.memory_space<vmem>>, vector<8x512xf32>
    tpu.vector_store %arg4[%c0_9, %c0_10], %24 {strides = array<i32>} : memref<8x512xf32, #tpu.memory_space<vmem>>, vector<8x512xf32>,
    return
  }
  func.func @transform_0(%arg0: i32) -> (i32, i32) {
    %c0_i32 = arith.constant 0 : i32
    %c0_i32_0 = arith.constant 0 : i32
    return %arg0, %c0_i32 : i32, i32
  }
  func.func @transform_1(%arg0: i32) -> (i32, i32) {
    %c0_i32 = arith.constant 0 : i32
    %c0_i32_0 = arith.constant 0 : i32
    %c0_i32_1 = arith.constant 0 : i32
    return %c0_i32, %c0_i32_0 : i32, i32
  }
  func.func @transform_2(%arg0: i32) -> (i32, i32) {
    %c0_i32 = arith.constant 0 : i32
    %c0_i32_0 = arith.constant 0 : i32
    %c0_i32_1 = arith.constant 0 : i32
    return %c0_i32, %c0_i32_0 : i32, i32
  }
  func.func @transform_3(%arg0: i32) -> (i32, i32) {
    %c0_i32 = arith.constant 0 : i32
    %c0_i32_0 = arith.constant 0 : i32
    return %arg0, %c0_i32 : i32, i32
  }
}

module attributes {stable_mosaic.version = 11 : i64} {
  func.func @_attention_kernel(%arg0: i32, %arg1: memref<1x8x512xbf16, #tpu.memory_space<vmem>>, %arg2: memref<1x8x512xbf16, #tpu.memory_space<vmem>>, %arg3: memref<1x8x512xbf16, #tpu.memory_space<vmem>>, %arg4: memref<1x1x8xf32, #tpu.memory_space<vmem>>, %arg5: memref<1x8x512xbf16, #tpu.memory_space<vmem>>) attributes {dimension_semantics = [#tpu.dimension_semantics<parallel>], iteration_bounds = array<i64: 2>, scalar_prefetch = 0 : i64, scratch_operands = 0 : i64, tpu.core_type = #tpu.core_type<tc>, window_params = [{transform_indices = @transform_0, window_bounds = array<i64: 1, 8, 512>}, {transform_indices = @transform_1, window_bounds = array<i64: 1, 8, 512>}, {transform_indices = @transform_2, window_bounds = array<i64: 1, 8, 512>}, {transform_indices = @transform_3, window_bounds = array<i64: 1, 1, 8>}, {transform_indices = @transform_4, window_bounds = array<i64: 1, 8, 512>}]} {
    %c0 = arith.constant 0 : index
    %c0_0 = arith.constant 0 : index
    %c0_1 = arith.constant 0 : index
    %0 = vector.load %arg4[%c0, %c0_0, %c0_1] : memref<1x1x8xf32, #tpu.memory_space<vmem>>, vector<1x1x8xf32>
    %1 = vector.shape_cast %0 : vector<1x1x8xf32> to vector<1x8xf32>
    %c0_2 = arith.constant 0 : index
    %c0_3 = arith.constant 0 : index
    %c0_4 = arith.constant 0 : index
    %2 = vector.load %arg1[%c0_2, %c0_3, %c0_4] : memref<1x8x512xbf16, #tpu.memory_space<vmem>>, vector<1x8x64xbf16>
    %3 = vector.shape_cast %2 : vector<1x8x64xbf16> to vector<8x64xbf16>
    %c0_5 = arith.constant 0 : index
    %c0_6 = arith.constant 0 : index
    %c0_7 = arith.constant 0 : index
    %4 = vector.load %arg2[%c0_5, %c0_6, %c0_7] : memref<1x8x512xbf16, #tpu.memory_space<vmem>>, vector<1x8x64xbf16>
    %5 = vector.shape_cast %4 : vector<1x8x64xbf16> to vector<8x64xbf16>
    %c0_8 = arith.constant 0 : index
    %c0_9 = arith.constant 0 : index
    %c0_10 = arith.constant 0 : index
    %6 = vector.load %arg3[%c0_8, %c0_9, %c0_10] : memref<1x8x512xbf16, #tpu.memory_space<vmem>>, vector<1x8x64xbf16>
    %7 = vector.shape_cast %6 : vector<1x8x64xbf16> to vector<8x64xbf16>
    %cst = arith.constant dense<0.000000e+00> : vector<8x8xf32>
    %8 = tpu.matmul %3, %5, %cst {dimension_numbers = #tpu.dot_dimension_numbers<[1], [1], [0], [0], [0, 0, 1, 0], [], []>} : vector<8x64xbf16>, vector<8x64xbf16>, vector<8x8xf32> -> vector<8x8xf32>
    %9 = vector.broadcast %1 : vector<1x8xf32> to vector<8x8xf32>
    %10 = arith.addf %8, %9 : vector<8x8xf32>
    %cst_11 = arith.constant dense<0xFF800000> : vector<8xf32>
    %11 = vector.multi_reduction <maximumf>, %10, %cst_11 [1] : vector<8x8xf32> to vector<8xf32>
    %12 = vector.shape_cast %11 : vector<8xf32> to vector<8x1xf32>
    %13 = vector.broadcast %12 : vector<8x1xf32> to vector<8x8xf32>
    %14 = arith.subf %10, %13 : vector<8x8xf32>
    %15 = math.exp %14 : vector<8x8xf32>
    %cst_12 = arith.constant dense<0.000000e+00> : vector<8xf32>
    %16 = vector.multi_reduction <add>, %15, %cst_12 [1] : vector<8x8xf32> to vector<8xf32>
    %17 = vector.shape_cast %16 : vector<8xf32> to vector<8x1xf32>
    %18 = vector.broadcast %17 : vector<8x1xf32> to vector<8x8xf32>
    %19 = arith.divf %15, %18 : vector<8x8xf32>
    %20 = arith.truncf %19 : vector<8x8xf32> to vector<8x8xbf16>
    %cst_13 = arith.constant dense<0.000000e+00> : vector<8x64xf32>
    %21 = tpu.matmul %20, %7, %cst_13 {dimension_numbers = #tpu.dot_dimension_numbers<[1], [0], [0], [1], [0, 0, 1, 1], [], []>} : vector<8x8xbf16>, vector<8x64xbf16>, vector<8x64xf32> -> vector<8x64xf32>
    %c0_14 = arith.constant 0 : index
    %c0_15 = arith.constant 0 : index
    %c64 = arith.constant 64 : index
    %22 = vector.load %arg1[%c0_14, %c0_15, %c64] : memref<1x8x512xbf16, #tpu.memory_space<vmem>>, vector<1x8x64xbf16>
    %23 = vector.shape_cast %22 : vector<1x8x64xbf16> to vector<8x64xbf16>
    %c0_16 = arith.constant 0 : index
    %c0_17 = arith.constant 0 : index
    %c64_18 = arith.constant 64 : index
    %24 = vector.load %arg2[%c0_16, %c0_17, %c64_18] : memref<1x8x512xbf16, #tpu.memory_space<vmem>>, vector<1x8x64xbf16>
    %25 = vector.shape_cast %24 : vector<1x8x64xbf16> to vector<8x64xbf16>
    %c0_19 = arith.constant 0 : index
    %c0_20 = arith.constant 0 : index
    %c64_21 = arith.constant 64 : index
    %26 = vector.load %arg3[%c0_19, %c0_20, %c64_21] : memref<1x8x512xbf16, #tpu.memory_space<vmem>>, vector<1x8x64xbf16>
    %27 = vector.shape_cast %26 : vector<1x8x64xbf16> to vector<8x64xbf16>
    %cst_22 = arith.constant dense<0.000000e+00> : vector<8x8xf32>
    %28 = tpu.matmul %23, %25, %cst_22 {dimension_numbers = #tpu.dot_dimension_numbers<[1], [1], [0], [0], [0, 0, 1, 0], [], []>} : vector<8x64xbf16>, vector<8x64xbf16>, vector<8x8xf32> -> vector<8x8xf32>
    %29 = vector.broadcast %1 : vector<1x8xf32> to vector<8x8xf32>
    %30 = arith.addf %28, %29 : vector<8x8xf32>
    %cst_23 = arith.constant dense<0xFF800000> : vector<8xf32>
    %31 = vector.multi_reduction <maximumf>, %30, %cst_23 [1] : vector<8x8xf32> to vector<8xf32>
    %32 = vector.shape_cast %31 : vector<8xf32> to vector<8x1xf32>
    %33 = vector.broadcast %32 : vector<8x1xf32> to vector<8x8xf32>
    %34 = arith.subf %30, %33 : vector<8x8xf32>
    %35 = math.exp %34 : vector<8x8xf32>
    %cst_24 = arith.constant dense<0.000000e+00> : vector<8xf32>
    %36 = vector.multi_reduction <add>, %35, %cst_24 [1] : vector<8x8xf32> to vector<8xf32>
    %37 = vector.shape_cast %36 : vector<8xf32> to vector<8x1xf32>
    %38 = vector.broadcast %37 : vector<8x1xf32> to vector<8x8xf32>
    %39 = arith.divf %35, %38 : vector<8x8xf32>
    %40 = arith.truncf %39 : vector<8x8xf32> to vector<8x8xbf16>
    %cst_25 = arith.constant dense<0.000000e+00> : vector<8x64xf32>
    %41 = tpu.matmul %40, %27, %cst_25 {dimension_numbers = #tpu.dot_dimension_numbers<[1], [0], [0], [1], [0, 0, 1, 1], [], []>} : vector<8x8xbf16>, vector<8x64xbf16>, vector<8x64xf32> -> vector<8x64xf32>
    %c0_26 = arith.constant 0 : index
    %c0_27 = arith.constant 0 : index
    %c128 = arith.constant 128 : index
    %42 = vector.load %arg1[%c0_26, %c0_27, %c128] : memref<1x8x512xbf16, #tpu.memory_space<vmem>>, vector<1x8x64xbf16>
    %43 = vector.shape_cast %42 : vector<1x8x64xbf16> to vector<8x64xbf16>
    %c0_28 = arith.constant 0 : index
    %c0_29 = arith.constant 0 : index
    %c128_30 = arith.constant 128 : index
    %44 = vector.load %arg2[%c0_28, %c0_29, %c128_30] : memref<1x8x512xbf16, #tpu.memory_space<vmem>>, vector<1x8x64xbf16>
    %45 = vector.shape_cast %44 : vector<1x8x64xbf16> to vector<8x64xbf16>
    %c0_31 = arith.constant 0 : index
    %c0_32 = arith.constant 0 : index
    %c128_33 = arith.constant 128 : index
    %46 = vector.load %arg3[%c0_31, %c0_32, %c128_33] : memref<1x8x512xbf16, #tpu.memory_space<vmem>>, vector<1x8x64xbf16>
    %47 = vector.shape_cast %46 : vector<1x8x64xbf16> to vector<8x64xbf16>
    %cst_34 = arith.constant dense<0.000000e+00> : vector<8x8xf32>
    %48 = tpu.matmul %43, %45, %cst_34 {dimension_numbers = #tpu.dot_dimension_numbers<[1], [1], [0], [0], [0, 0, 1, 0], [], []>} : vector<8x64xbf16>, vector<8x64xbf16>, vector<8x8xf32> -> vector<8x8xf32>
    %49 = vector.broadcast %1 : vector<1x8xf32> to vector<8x8xf32>
    %50 = arith.addf %48, %49 : vector<8x8xf32>
    %cst_35 = arith.constant dense<0xFF800000> : vector<8xf32>
    %51 = vector.multi_reduction <maximumf>, %50, %cst_35 [1] : vector<8x8xf32> to vector<8xf32>
    %52 = vector.shape_cast %51 : vector<8xf32> to vector<8x1xf32>
    %53 = vector.broadcast %52 : vector<8x1xf32> to vector<8x8xf32>
    %54 = arith.subf %50, %53 : vector<8x8xf32>
    %55 = math.exp %54 : vector<8x8xf32>
    %cst_36 = arith.constant dense<0.000000e+00> : vector<8xf32>
    %56 = vector.multi_reduction <add>, %55, %cst_36 [1] : vector<8x8xf32> to vector<8xf32>
    %57 = vector.shape_cast %56 : vector<8xf32> to vector<8x1xf32>
    %58 = vector.broadcast %57 : vector<8x1xf32> to vector<8x8xf32>
    %59 = arith.divf %55, %58 : vector<8x8xf32>
    %60 = arith.truncf %59 : vector<8x8xf32> to vector<8x8xbf16>
    %cst_37 = arith.constant dense<0.000000e+00> : vector<8x64xf32>
    %61 = tpu.matmul %60, %47, %cst_37 {dimension_numbers = #tpu.dot_dimension_numbers<[1], [0], [0], [1], [0, 0, 1, 1], [], []>} : vector<8x8xbf16>, vector<8x64xbf16>, vector<8x64xf32> -> vector<8x64xf32>
    %c0_38 = arith.constant 0 : index
    %c0_39 = arith.constant 0 : index
    %c192 = arith.constant 192 : index
    %62 = vector.load %arg1[%c0_38, %c0_39, %c192] : memref<1x8x512xbf16, #tpu.memory_space<vmem>>, vector<1x8x64xbf16>
    %63 = vector.shape_cast %62 : vector<1x8x64xbf16> to vector<8x64xbf16>
    %c0_40 = arith.constant 0 : index
    %c0_41 = arith.constant 0 : index
    %c192_42 = arith.constant 192 : index
    %64 = vector.load %arg2[%c0_40, %c0_41, %c192_42] : memref<1x8x512xbf16, #tpu.memory_space<vmem>>, vector<1x8x64xbf16>
    %65 = vector.shape_cast %64 : vector<1x8x64xbf16> to vector<8x64xbf16>
    %c0_43 = arith.constant 0 : index
    %c0_44 = arith.constant 0 : index
    %c192_45 = arith.constant 192 : index
    %66 = vector.load %arg3[%c0_43, %c0_44, %c192_45] : memref<1x8x512xbf16, #tpu.memory_space<vmem>>, vector<1x8x64xbf16>
    %67 = vector.shape_cast %66 : vector<1x8x64xbf16> to vector<8x64xbf16>
    %cst_46 = arith.constant dense<0.000000e+00> : vector<8x8xf32>
    %68 = tpu.matmul %63, %65, %cst_46 {dimension_numbers = #tpu.dot_dimension_numbers<[1], [1], [0], [0], [0, 0, 1, 0], [], []>} : vector<8x64xbf16>, vector<8x64xbf16>, vector<8x8xf32> -> vector<8x8xf32>
    %69 = vector.broadcast %1 : vector<1x8xf32> to vector<8x8xf32>
    %70 = arith.addf %68, %69 : vector<8x8xf32>
    %cst_47 = arith.constant dense<0xFF800000> : vector<8xf32>
    %71 = vector.multi_reduction <maximumf>, %70, %cst_47 [1] : vector<8x8xf32> to vector<8xf32>
    %72 = vector.shape_cast %71 : vector<8xf32> to vector<8x1xf32>
    %73 = vector.broadcast %72 : vector<8x1xf32> to vector<8x8xf32>
    %74 = arith.subf %70, %73 : vector<8x8xf32>
    %75 = math.exp %74 : vector<8x8xf32>
    %cst_48 = arith.constant dense<0.000000e+00> : vector<8xf32>
    %76 = vector.multi_reduction <add>, %75, %cst_48 [1] : vector<8x8xf32> to vector<8xf32>
    %77 = vector.shape_cast %76 : vector<8xf32> to vector<8x1xf32>
    %78 = vector.broadcast %77 : vector<8x1xf32> to vector<8x8xf32>
    %79 = arith.divf %75, %78 : vector<8x8xf32>
    %80 = arith.truncf %79 : vector<8x8xf32> to vector<8x8xbf16>
    %cst_49 = arith.constant dense<0.000000e+00> : vector<8x64xf32>
    %81 = tpu.matmul %80, %67, %cst_49 {dimension_numbers = #tpu.dot_dimension_numbers<[1], [0], [0], [1], [0, 0, 1, 1], [], []>} : vector<8x8xbf16>, vector<8x64xbf16>, vector<8x64xf32> -> vector<8x64xf32>
    %c0_50 = arith.constant 0 : index
    %c0_51 = arith.constant 0 : index
    %c256 = arith.constant 256 : index
    %82 = vector.load %arg1[%c0_50, %c0_51, %c256] : memref<1x8x512xbf16, #tpu.memory_space<vmem>>, vector<1x8x64xbf16>
    %83 = vector.shape_cast %82 : vector<1x8x64xbf16> to vector<8x64xbf16>
    %c0_52 = arith.constant 0 : index
    %c0_53 = arith.constant 0 : index
    %c256_54 = arith.constant 256 : index
    %84 = vector.load %arg2[%c0_52, %c0_53, %c256_54] : memref<1x8x512xbf16, #tpu.memory_space<vmem>>, vector<1x8x64xbf16>
    %85 = vector.shape_cast %84 : vector<1x8x64xbf16> to vector<8x64xbf16>
    %c0_55 = arith.constant 0 : index
    %c0_56 = arith.constant 0 : index
    %c256_57 = arith.constant 256 : index
    %86 = vector.load %arg3[%c0_55, %c0_56, %c256_57] : memref<1x8x512xbf16, #tpu.memory_space<vmem>>, vector<1x8x64xbf16>
    %87 = vector.shape_cast %86 : vector<1x8x64xbf16> to vector<8x64xbf16>
    %cst_58 = arith.constant dense<0.000000e+00> : vector<8x8xf32>
    %88 = tpu.matmul %83, %85, %cst_58 {dimension_numbers = #tpu.dot_dimension_numbers<[1], [1], [0], [0], [0, 0, 1, 0], [], []>} : vector<8x64xbf16>, vector<8x64xbf16>, vector<8x8xf32> -> vector<8x8xf32>
    %89 = vector.broadcast %1 : vector<1x8xf32> to vector<8x8xf32>
    %90 = arith.addf %88, %89 : vector<8x8xf32>
    %cst_59 = arith.constant dense<0xFF800000> : vector<8xf32>
    %91 = vector.multi_reduction <maximumf>, %90, %cst_59 [1] : vector<8x8xf32> to vector<8xf32>
    %92 = vector.shape_cast %91 : vector<8xf32> to vector<8x1xf32>
    %93 = vector.broadcast %92 : vector<8x1xf32> to vector<8x8xf32>
    %94 = arith.subf %90, %93 : vector<8x8xf32>
    %95 = math.exp %94 : vector<8x8xf32>
    %cst_60 = arith.constant dense<0.000000e+00> : vector<8xf32>
    %96 = vector.multi_reduction <add>, %95, %cst_60 [1] : vector<8x8xf32> to vector<8xf32>
    %97 = vector.shape_cast %96 : vector<8xf32> to vector<8x1xf32>
    %98 = vector.broadcast %97 : vector<8x1xf32> to vector<8x8xf32>
    %99 = arith.divf %95, %98 : vector<8x8xf32>
    %100 = arith.truncf %99 : vector<8x8xf32> to vector<8x8xbf16>
    %cst_61 = arith.constant dense<0.000000e+00> : vector<8x64xf32>
    %101 = tpu.matmul %100, %87, %cst_61 {dimension_numbers = #tpu.dot_dimension_numbers<[1], [0], [0], [1], [0, 0, 1, 1], [], []>} : vector<8x8xbf16>, vector<8x64xbf16>, vector<8x64xf32> -> vector<8x64xf32>
    %c0_62 = arith.constant 0 : index
    %c0_63 = arith.constant 0 : index
    %c320 = arith.constant 320 : index
    %102 = vector.load %arg1[%c0_62, %c0_63, %c320] : memref<1x8x512xbf16, #tpu.memory_space<vmem>>, vector<1x8x64xbf16>
    %103 = vector.shape_cast %102 : vector<1x8x64xbf16> to vector<8x64xbf16>
    %c0_64 = arith.constant 0 : index
    %c0_65 = arith.constant 0 : index
    %c320_66 = arith.constant 320 : index
    %104 = vector.load %arg2[%c0_64, %c0_65, %c320_66] : memref<1x8x512xbf16, #tpu.memory_space<vmem>>, vector<1x8x64xbf16>
    %105 = vector.shape_cast %104 : vector<1x8x64xbf16> to vector<8x64xbf16>
    %c0_67 = arith.constant 0 : index
    %c0_68 = arith.constant 0 : index
    %c320_69 = arith.constant 320 : index
    %106 = vector.load %arg3[%c0_67, %c0_68, %c320_69] : memref<1x8x512xbf16, #tpu.memory_space<vmem>>, vector<1x8x64xbf16>
    %107 = vector.shape_cast %106 : vector<1x8x64xbf16> to vector<8x64xbf16>
    %cst_70 = arith.constant dense<0.000000e+00> : vector<8x8xf32>
    %108 = tpu.matmul %103, %105, %cst_70 {dimension_numbers = #tpu.dot_dimension_numbers<[1], [1], [0], [0], [0, 0, 1, 0], [], []>} : vector<8x64xbf16>, vector<8x64xbf16>, vector<8x8xf32> -> vector<8x8xf32>
    %109 = vector.broadcast %1 : vector<1x8xf32> to vector<8x8xf32>
    %110 = arith.addf %108, %109 : vector<8x8xf32>
    %cst_71 = arith.constant dense<0xFF800000> : vector<8xf32>
    %111 = vector.multi_reduction <maximumf>, %110, %cst_71 [1] : vector<8x8xf32> to vector<8xf32>
    %112 = vector.shape_cast %111 : vector<8xf32> to vector<8x1xf32>
    %113 = vector.broadcast %112 : vector<8x1xf32> to vector<8x8xf32>
    %114 = arith.subf %110, %113 : vector<8x8xf32>
    %115 = math.exp %114 : vector<8x8xf32>
    %cst_72 = arith.constant dense<0.000000e+00> : vector<8xf32>
    %116 = vector.multi_reduction <add>, %115, %cst_72 [1] : vector<8x8xf32> to vector<8xf32>
    %117 = vector.shape_cast %116 : vector<8xf32> to vector<8x1xf32>
    %118 = vector.broadcast %117 : vector<8x1xf32> to vector<8x8xf32>
    %119 = arith.divf %115, %118 : vector<8x8xf32>
    %120 = arith.truncf %119 : vector<8x8xf32> to vector<8x8xbf16>
    %cst_73 = arith.constant dense<0.000000e+00> : vector<8x64xf32>
    %121 = tpu.matmul %120, %107, %cst_73 {dimension_numbers = #tpu.dot_dimension_numbers<[1], [0], [0], [1], [0, 0, 1, 1], [], []>} : vector<8x8xbf16>, vector<8x64xbf16>, vector<8x64xf32> -> vector<8x64xf32>
    %c0_74 = arith.constant 0 : index
    %c0_75 = arith.constant 0 : index
    %c384 = arith.constant 384 : index
    %122 = vector.load %arg1[%c0_74, %c0_75, %c384] : memref<1x8x512xbf16, #tpu.memory_space<vmem>>, vector<1x8x64xbf16>
    %123 = vector.shape_cast %122 : vector<1x8x64xbf16> to vector<8x64xbf16>
    %c0_76 = arith.constant 0 : index
    %c0_77 = arith.constant 0 : index
    %c384_78 = arith.constant 384 : index
    %124 = vector.load %arg2[%c0_76, %c0_77, %c384_78] : memref<1x8x512xbf16, #tpu.memory_space<vmem>>, vector<1x8x64xbf16>
    %125 = vector.shape_cast %124 : vector<1x8x64xbf16> to vector<8x64xbf16>
    %c0_79 = arith.constant 0 : index
    %c0_80 = arith.constant 0 : index
    %c384_81 = arith.constant 384 : index
    %126 = vector.load %arg3[%c0_79, %c0_80, %c384_81] : memref<1x8x512xbf16, #tpu.memory_space<vmem>>, vector<1x8x64xbf16>
    %127 = vector.shape_cast %126 : vector<1x8x64xbf16> to vector<8x64xbf16>
    %cst_82 = arith.constant dense<0.000000e+00> : vector<8x8xf32>
    %128 = tpu.matmul %123, %125, %cst_82 {dimension_numbers = #tpu.dot_dimension_numbers<[1], [1], [0], [0], [0, 0, 1, 0], [], []>} : vector<8x64xbf16>, vector<8x64xbf16>, vector<8x8xf32> -> vector<8x8xf32>
    %129 = vector.broadcast %1 : vector<1x8xf32> to vector<8x8xf32>
    %130 = arith.addf %128, %129 : vector<8x8xf32>
    %cst_83 = arith.constant dense<0xFF800000> : vector<8xf32>
    %131 = vector.multi_reduction <maximumf>, %130, %cst_83 [1] : vector<8x8xf32> to vector<8xf32>
    %132 = vector.shape_cast %131 : vector<8xf32> to vector<8x1xf32>
    %133 = vector.broadcast %132 : vector<8x1xf32> to vector<8x8xf32>
    %134 = arith.subf %130, %133 : vector<8x8xf32>
    %135 = math.exp %134 : vector<8x8xf32>
    %cst_84 = arith.constant dense<0.000000e+00> : vector<8xf32>
    %136 = vector.multi_reduction <add>, %135, %cst_84 [1] : vector<8x8xf32> to vector<8xf32>
    %137 = vector.shape_cast %136 : vector<8xf32> to vector<8x1xf32>
    %138 = vector.broadcast %137 : vector<8x1xf32> to vector<8x8xf32>
    %139 = arith.divf %135, %138 : vector<8x8xf32>
    %140 = arith.truncf %139 : vector<8x8xf32> to vector<8x8xbf16>
    %cst_85 = arith.constant dense<0.000000e+00> : vector<8x64xf32>
    %141 = tpu.matmul %140, %127, %cst_85 {dimension_numbers = #tpu.dot_dimension_numbers<[1], [0], [0], [1], [0, 0, 1, 1], [], []>} : vector<8x8xbf16>, vector<8x64xbf16>, vector<8x64xf32> -> vector<8x64xf32>
    %c0_86 = arith.constant 0 : index
    %c0_87 = arith.constant 0 : index
    %c448 = arith.constant 448 : index
    %142 = vector.load %arg1[%c0_86, %c0_87, %c448] : memref<1x8x512xbf16, #tpu.memory_space<vmem>>, vector<1x8x64xbf16>
    %143 = vector.shape_cast %142 : vector<1x8x64xbf16> to vector<8x64xbf16>
    %c0_88 = arith.constant 0 : index
    %c0_89 = arith.constant 0 : index
    %c448_90 = arith.constant 448 : index
    %144 = vector.load %arg2[%c0_88, %c0_89, %c448_90] : memref<1x8x512xbf16, #tpu.memory_space<vmem>>, vector<1x8x64xbf16>
    %145 = vector.shape_cast %144 : vector<1x8x64xbf16> to vector<8x64xbf16>
    %c0_91 = arith.constant 0 : index
    %c0_92 = arith.constant 0 : index
    %c448_93 = arith.constant 448 : index
    %146 = vector.load %arg3[%c0_91, %c0_92, %c448_93] : memref<1x8x512xbf16, #tpu.memory_space<vmem>>, vector<1x8x64xbf16>
    %147 = vector.shape_cast %146 : vector<1x8x64xbf16> to vector<8x64xbf16>
    %cst_94 = arith.constant dense<0.000000e+00> : vector<8x8xf32>
    %148 = tpu.matmul %143, %145, %cst_94 {dimension_numbers = #tpu.dot_dimension_numbers<[1], [1], [0], [0], [0, 0, 1, 0], [], []>} : vector<8x64xbf16>, vector<8x64xbf16>, vector<8x8xf32> -> vector<8x8xf32>
    %149 = vector.broadcast %1 : vector<1x8xf32> to vector<8x8xf32>
    %150 = arith.addf %148, %149 : vector<8x8xf32>
    %cst_95 = arith.constant dense<0xFF800000> : vector<8xf32>
    %151 = vector.multi_reduction <maximumf>, %150, %cst_95 [1] : vector<8x8xf32> to vector<8xf32>
    %152 = vector.shape_cast %151 : vector<8xf32> to vector<8x1xf32>
    %153 = vector.broadcast %152 : vector<8x1xf32> to vector<8x8xf32>
    %154 = arith.subf %150, %153 : vector<8x8xf32>
    %155 = math.exp %154 : vector<8x8xf32>
    %cst_96 = arith.constant dense<0.000000e+00> : vector<8xf32>
    %156 = vector.multi_reduction <add>, %155, %cst_96 [1] : vector<8x8xf32> to vector<8xf32>
    %157 = vector.shape_cast %156 : vector<8xf32> to vector<8x1xf32>
    %158 = vector.broadcast %157 : vector<8x1xf32> to vector<8x8xf32>
    %159 = arith.divf %155, %158 : vector<8x8xf32>
    %160 = arith.truncf %159 : vector<8x8xf32> to vector<8x8xbf16>
    %cst_97 = arith.constant dense<0.000000e+00> : vector<8x64xf32>
    %161 = tpu.matmul %160, %147, %cst_97 {dimension_numbers = #tpu.dot_dimension_numbers<[1], [0], [0], [1], [0, 0, 1, 1], [], []>} : vector<8x8xbf16>, vector<8x64xbf16>, vector<8x64xf32> -> vector<8x64xf32>
    %162 = tpu.concatenate %21, %41, %61, %81, %101, %121, %141, %161 in 1 : vector<8x64xf32>, vector<8x64xf32>, vector<8x64xf32>, vector<8x64xf32>, vector<8x64xf32>, vector<8x64xf32>, vector<8x64xf32>, vector<8x64xf32> -> vector<8x512xf32>
    %163 = arith.truncf %162 : vector<8x512xf32> to vector<8x512xbf16>
    %c0_98 = arith.constant 0 : index
    %c0_99 = arith.constant 0 : index
    %c0_100 = arith.constant 0 : index
    %164 = vector.load %arg5[%c0_98, %c0_99, %c0_100] : memref<1x8x512xbf16, #tpu.memory_space<vmem>>, vector<1x8x512xbf16>
    %165 = vector.shape_cast %164 : vector<1x8x512xbf16> to vector<8x512xbf16>
    %166 = vector.shape_cast %163 : vector<8x512xbf16> to vector<1x8x512xbf16>
    tpu.vector_store %arg5[%c0_98, %c0_99, %c0_100], %166 {strides = array<i32>} : memref<1x8x512xbf16, #tpu.memory_space<vmem>>, vector<1x8x512xbf16>,
    return
  }
  func.func @transform_0(%arg0: i32) -> (i32, i32, i32) {
    %c0_i32 = arith.constant 0 : i32
    %c0_i32_0 = arith.constant 0 : i32
    %c0_i32_1 = arith.constant 0 : i32
    return %arg0, %c0_i32, %c0_i32_0 : i32, i32, i32
  }
  func.func @transform_1(%arg0: i32) -> (i32, i32, i32) {
    %c0_i32 = arith.constant 0 : i32
    %c1_i32 = arith.constant 1 : i32
    %c0_i32_0 = arith.constant 0 : i32
    return %arg0, %c0_i32, %c1_i32 : i32, i32, i32
  }
  func.func @transform_2(%arg0: i32) -> (i32, i32, i32) {
    %c0_i32 = arith.constant 0 : i32
    %c2_i32 = arith.constant 2 : i32
    %c0_i32_0 = arith.constant 0 : i32
    return %arg0, %c0_i32, %c2_i32 : i32, i32, i32
  }
  func.func @transform_3(%arg0: i32) -> (i32, i32, i32) {
    %c0_i32 = arith.constant 0 : i32
    %c0_i32_0 = arith.constant 0 : i32
    %c0_i32_1 = arith.constant 0 : i32
    return %arg0, %c0_i32, %c0_i32_0 : i32, i32, i32
  }
  func.func @transform_4(%arg0: i32) -> (i32, i32, i32) {
    %c0_i32 = arith.constant 0 : i32
    %c0_i32_0 = arith.constant 0 : i32
    %c0_i32_1 = arith.constant 0 : i32
    return %arg0, %c0_i32, %c0_i32_0 : i32, i32, i32
  }
}

module attributes {stable_mosaic.version = 11 : i64} {
  func.func @_dense_add_ln_kernel(%arg0: i32, %arg1: memref<8x512xbf16, #tpu.memory_space<vmem>>, %arg2: memref<512x512xbf16, #tpu.memory_space<vmem>>, %arg3: memref<1x512xf32, #tpu.memory_space<vmem>>, %arg4: memref<8x512xf32, #tpu.memory_space<vmem>>, %arg5: memref<1x512xf32, #tpu.memory_space<vmem>>, %arg6: memref<1x512xf32, #tpu.memory_space<vmem>>, %arg7: memref<8x512xf32, #tpu.memory_space<vmem>>) attributes {dimension_semantics = [#tpu.dimension_semantics<parallel>], iteration_bounds = array<i64: 2>, scalar_prefetch = 0 : i64, scratch_operands = 0 : i64, tpu.core_type = #tpu.core_type<tc>, window_params = [{transform_indices = @transform_0, window_bounds = array<i64: 8, 512>}, {pipeline_mode = #tpu.pipeline_mode<synchronous>, transform_indices = @transform_1, window_bounds = array<i64: 512, 512>}, {pipeline_mode = #tpu.pipeline_mode<synchronous>, transform_indices = @transform_2, window_bounds = array<i64: 1, 512>}, {transform_indices = @transform_3, window_bounds = array<i64: 8, 512>}, {pipeline_mode = #tpu.pipeline_mode<synchronous>, transform_indices = @transform_4, window_bounds = array<i64: 1, 512>}, {pipeline_mode = #tpu.pipeline_mode<synchronous>, transform_indices = @transform_5, window_bounds = array<i64: 1, 512>}, {transform_indices = @transform_6, window_bounds = array<i64: 8, 512>}]} {
    %c0 = arith.constant 0 : index
    %c0_0 = arith.constant 0 : index
    %0 = vector.load %arg1[%c0, %c0_0] : memref<8x512xbf16, #tpu.memory_space<vmem>>, vector<8x512xbf16>
    %c0_1 = arith.constant 0 : index
    %c0_2 = arith.constant 0 : index
    %1 = vector.load %arg2[%c0_1, %c0_2] : memref<512x512xbf16, #tpu.memory_space<vmem>>, vector<512x512xbf16>
    %cst = arith.constant dense<0.000000e+00> : vector<8x512xf32>
    %2 = tpu.matmul %0, %1, %cst {dimension_numbers = #tpu.dot_dimension_numbers<[1], [0], [0], [1], [0, 0, 1, 1], [], []>} : vector<8x512xbf16>, vector<512x512xbf16>, vector<8x512xf32> -> vector<8x512xf32>
    %c0_3 = arith.constant 0 : index
    %c0_4 = arith.constant 0 : index
    %3 = vector.load %arg3[%c0_3, %c0_4] : memref<1x512xf32, #tpu.memory_space<vmem>>, vector<1x512xf32>
    %4 = vector.broadcast %3 : vector<1x512xf32> to vector<8x512xf32>
    %5 = arith.addf %2, %4 : vector<8x512xf32>
    %c0_5 = arith.constant 0 : index
    %c0_6 = arith.constant 0 : index
    %6 = vector.load %arg4[%c0_5, %c0_6] : memref<8x512xf32, #tpu.memory_space<vmem>>, vector<8x512xf32>
    %7 = arith.addf %5, %6 : vector<8x512xf32>
    %cst_7 = arith.constant dense<0.000000e+00> : vector<8xf32>
    %8 = vector.multi_reduction <add>, %7, %cst_7 [1] : vector<8x512xf32> to vector<8xf32>
    %9 = vector.shape_cast %8 : vector<8xf32> to vector<8x1xf32>
    %cst_8 = arith.constant 5.120000e+02 : f32
    %10 = vector.broadcast %cst_8 : f32 to vector<8x1xf32>
    %11 = arith.divf %9, %10 : vector<8x1xf32>
    %12 = vector.broadcast %11 : vector<8x1xf32> to vector<8x512xf32>
    %13 = arith.subf %7, %12 : vector<8x512xf32>
    %14 = arith.mulf %13, %13 : vector<8x512xf32>
    %cst_9 = arith.constant dense<0.000000e+00> : vector<8xf32>
    %15 = vector.multi_reduction <add>, %14, %cst_9 [1] : vector<8x512xf32> to vector<8xf32>
    %16 = vector.shape_cast %15 : vector<8xf32> to vector<8x1xf32>
    %cst_10 = arith.constant 5.120000e+02 : f32
    %17 = vector.broadcast %cst_10 : f32 to vector<8x1xf32>
    %18 = arith.divf %16, %17 : vector<8x1xf32>
    %cst_11 = arith.constant 9.99999996E-13 : f32
    %19 = vector.broadcast %cst_11 : f32 to vector<8x1xf32>
    %20 = arith.addf %18, %19 : vector<8x1xf32>
    %21 = math.rsqrt %20 : vector<8x1xf32>
    %22 = vector.broadcast %11 : vector<8x1xf32> to vector<8x512xf32>
    %23 = arith.subf %7, %22 : vector<8x512xf32>
    %24 = vector.broadcast %21 : vector<8x1xf32> to vector<8x512xf32>
    %25 = arith.mulf %23, %24 : vector<8x512xf32>
    %c0_12 = arith.constant 0 : index
    %c0_13 = arith.constant 0 : index
    %26 = vector.load %arg5[%c0_12, %c0_13] : memref<1x512xf32, #tpu.memory_space<vmem>>, vector<1x512xf32>
    %27 = vector.broadcast %26 : vector<1x512xf32> to vector<8x512xf32>
    %28 = arith.mulf %25, %27 : vector<8x512xf32>
    %c0_14 = arith.constant 0 : index
    %c0_15 = arith.constant 0 : index
    %29 = vector.load %arg6[%c0_14, %c0_15] : memref<1x512xf32, #tpu.memory_space<vmem>>, vector<1x512xf32>
    %30 = vector.broadcast %29 : vector<1x512xf32> to vector<8x512xf32>
    %31 = arith.addf %28, %30 : vector<8x512xf32>
    %c0_16 = arith.constant 0 : index
    %c0_17 = arith.constant 0 : index
    %32 = vector.load %arg7[%c0_16, %c0_17] : memref<8x512xf32, #tpu.memory_space<vmem>>, vector<8x512xf32>
    tpu.vector_store %arg7[%c0_16, %c0_17], %31 {strides = array<i32>} : memref<8x512xf32, #tpu.memory_space<vmem>>, vector<8x512xf32>,
    return
  }
  func.func @transform_0(%arg0: i32) -> (i32, i32) {
    %c0_i32 = arith.constant 0 : i32
    %c0_i32_0 = arith.constant 0 : i32
    return %arg0, %c0_i32 : i32, i32
  }
  func.func @transform_1(%arg0: i32) -> (i32, i32) {
    %c0_i32 = arith.constant 0 : i32
    %c0_i32_0 = arith.constant 0 : i32
    %c0_i32_1 = arith.constant 0 : i32
    return %c0_i32, %c0_i32_0 : i32, i32
  }
  func.func @transform_2(%arg0: i32) -> (i32, i32) {
    %c0_i32 = arith.constant 0 : i32
    %c0_i32_0 = arith.constant 0 : i32
    %c0_i32_1 = arith.constant 0 : i32
    return %c0_i32, %c0_i32_0 : i32, i32
  }
  func.func @transform_3(%arg0: i32) -> (i32, i32) {
    %c0_i32 = arith.constant 0 : i32
    %c0_i32_0 = arith.constant 0 : i32
    return %arg0, %c0_i32 : i32, i32
  }
  func.func @transform_4(%arg0: i32) -> (i32, i32) {
    %c0_i32 = arith.constant 0 : i32
    %c0_i32_0 = arith.constant 0 : i32
    %c0_i32_1 = arith.constant 0 : i32
    return %c0_i32, %c0_i32_0 : i32, i32
  }
  func.func @transform_5(%arg0: i32) -> (i32, i32) {
    %c0_i32 = arith.constant 0 : i32
    %c0_i32_0 = arith.constant 0 : i32
    %c0_i32_1 = arith.constant 0 : i32
    return %c0_i32, %c0_i32_0 : i32, i32
  }
  func.func @transform_6(%arg0: i32) -> (i32, i32) {
    %c0_i32 = arith.constant 0 : i32
    %c0_i32_0 = arith.constant 0 : i32
    return %arg0, %c0_i32 : i32, i32
  }
}

module attributes {stable_mosaic.version = 11 : i64} {
  func.func @_ffn_ln_kernel(%arg0: i32, %arg1: memref<8x512xf32, #tpu.memory_space<vmem>>, %arg2: memref<512x1024xbf16, #tpu.memory_space<vmem>>, %arg3: memref<1x1024xf32, #tpu.memory_space<vmem>>, %arg4: memref<1024x512xbf16, #tpu.memory_space<vmem>>, %arg5: memref<1x512xf32, #tpu.memory_space<vmem>>, %arg6: memref<1x512xf32, #tpu.memory_space<vmem>>, %arg7: memref<1x512xf32, #tpu.memory_space<vmem>>, %arg8: memref<8x512xf32, #tpu.memory_space<vmem>>) attributes {dimension_semantics = [#tpu.dimension_semantics<parallel>], iteration_bounds = array<i64: 2>, scalar_prefetch = 0 : i64, scratch_operands = 0 : i64, tpu.core_type = #tpu.core_type<tc>, window_params = [{transform_indices = @transform_0, window_bounds = array<i64: 8, 512>}, {pipeline_mode = #tpu.pipeline_mode<synchronous>, transform_indices = @transform_1, window_bounds = array<i64: 512, 1024>}, {pipeline_mode = #tpu.pipeline_mode<synchronous>, transform_indices = @transform_2, window_bounds = array<i64: 1, 1024>}, {pipeline_mode = #tpu.pipeline_mode<synchronous>, transform_indices = @transform_3, window_bounds = array<i64: 1024, 512>}, {pipeline_mode = #tpu.pipeline_mode<synchronous>, transform_indices = @transform_4, window_bounds = array<i64: 1, 512>}, {pipeline_mode = #tpu.pipeline_mode<synchronous>, transform_indices = @transform_5, window_bounds = array<i64: 1, 512>}, {pipeline_mode = #tpu.pipeline_mode<synchronous>, transform_indices = @transform_6, window_bounds = array<i64: 1, 512>}, {transform_indices = @transform_7, window_bounds = array<i64: 8, 512>}]} {
    %c0 = arith.constant 0 : index
    %c0_0 = arith.constant 0 : index
    %0 = vector.load %arg1[%c0, %c0_0] : memref<8x512xf32, #tpu.memory_space<vmem>>, vector<8x512xf32>
    %1 = arith.truncf %0 : vector<8x512xf32> to vector<8x512xbf16>
    %c0_1 = arith.constant 0 : index
    %c0_2 = arith.constant 0 : index
    %2 = vector.load %arg2[%c0_1, %c0_2] : memref<512x1024xbf16, #tpu.memory_space<vmem>>, vector<512x1024xbf16>
    %cst = arith.constant dense<0.000000e+00> : vector<8x1024xf32>
    %3 = tpu.matmul %1, %2, %cst {dimension_numbers = #tpu.dot_dimension_numbers<[1], [0], [0], [1], [0, 0, 1, 1], [], []>} : vector<8x512xbf16>, vector<512x1024xbf16>, vector<8x1024xf32> -> vector<8x1024xf32>
    %c0_3 = arith.constant 0 : index
    %c0_4 = arith.constant 0 : index
    %4 = vector.load %arg3[%c0_3, %c0_4] : memref<1x1024xf32, #tpu.memory_space<vmem>>, vector<1x1024xf32>
    %5 = vector.broadcast %4 : vector<1x1024xf32> to vector<8x1024xf32>
    %6 = arith.addf %3, %5 : vector<8x1024xf32>
    %cst_5 = arith.constant 5.000000e-01 : f32
    %7 = vector.broadcast %cst_5 : f32 to vector<8x1024xf32>
    %8 = arith.mulf %7, %6 : vector<8x1024xf32>
    %cst_6 = arith.constant 0.707106769 : f32
    %9 = vector.broadcast %cst_6 : f32 to vector<8x1024xf32>
    %10 = arith.mulf %6, %9 : vector<8x1024xf32>
    %11 = math.erf %10 : vector<8x1024xf32>
    %cst_7 = arith.constant 1.000000e+00 : f32
    %12 = vector.broadcast %cst_7 : f32 to vector<8x1024xf32>
    %13 = arith.addf %12, %11 : vector<8x1024xf32>
    %14 = arith.mulf %8, %13 : vector<8x1024xf32>
    %15 = arith.truncf %14 : vector<8x1024xf32> to vector<8x1024xbf16>
    %c0_8 = arith.constant 0 : index
    %c0_9 = arith.constant 0 : index
    %16 = vector.load %arg4[%c0_8, %c0_9] : memref<1024x512xbf16, #tpu.memory_space<vmem>>, vector<1024x512xbf16>
    %cst_10 = arith.constant dense<0.000000e+00> : vector<8x512xf32>
    %17 = tpu.matmul %15, %16, %cst_10 {dimension_numbers = #tpu.dot_dimension_numbers<[1], [0], [0], [1], [0, 0, 1, 1], [], []>} : vector<8x1024xbf16>, vector<1024x512xbf16>, vector<8x512xf32> -> vector<8x512xf32>
    %c0_11 = arith.constant 0 : index
    %c0_12 = arith.constant 0 : index
    %18 = vector.load %arg5[%c0_11, %c0_12] : memref<1x512xf32, #tpu.memory_space<vmem>>, vector<1x512xf32>
    %19 = vector.broadcast %18 : vector<1x512xf32> to vector<8x512xf32>
    %20 = arith.addf %17, %19 : vector<8x512xf32>
    %21 = arith.addf %20, %0 : vector<8x512xf32>
    %cst_13 = arith.constant dense<0.000000e+00> : vector<8xf32>
    %22 = vector.multi_reduction <add>, %21, %cst_13 [1] : vector<8x512xf32> to vector<8xf32>
    %23 = vector.shape_cast %22 : vector<8xf32> to vector<8x1xf32>
    %cst_14 = arith.constant 5.120000e+02 : f32
    %24 = vector.broadcast %cst_14 : f32 to vector<8x1xf32>
    %25 = arith.divf %23, %24 : vector<8x1xf32>
    %26 = vector.broadcast %25 : vector<8x1xf32> to vector<8x512xf32>
    %27 = arith.subf %21, %26 : vector<8x512xf32>
    %28 = arith.mulf %27, %27 : vector<8x512xf32>
    %cst_15 = arith.constant dense<0.000000e+00> : vector<8xf32>
    %29 = vector.multi_reduction <add>, %28, %cst_15 [1] : vector<8x512xf32> to vector<8xf32>
    %30 = vector.shape_cast %29 : vector<8xf32> to vector<8x1xf32>
    %cst_16 = arith.constant 5.120000e+02 : f32
    %31 = vector.broadcast %cst_16 : f32 to vector<8x1xf32>
    %32 = arith.divf %30, %31 : vector<8x1xf32>
    %cst_17 = arith.constant 9.99999996E-13 : f32
    %33 = vector.broadcast %cst_17 : f32 to vector<8x1xf32>
    %34 = arith.addf %32, %33 : vector<8x1xf32>
    %35 = math.rsqrt %34 : vector<8x1xf32>
    %36 = vector.broadcast %25 : vector<8x1xf32> to vector<8x512xf32>
    %37 = arith.subf %21, %36 : vector<8x512xf32>
    %38 = vector.broadcast %35 : vector<8x1xf32> to vector<8x512xf32>
    %39 = arith.mulf %37, %38 : vector<8x512xf32>
    %c0_18 = arith.constant 0 : index
    %c0_19 = arith.constant 0 : index
    %40 = vector.load %arg6[%c0_18, %c0_19] : memref<1x512xf32, #tpu.memory_space<vmem>>, vector<1x512xf32>
    %41 = vector.broadcast %40 : vector<1x512xf32> to vector<8x512xf32>
    %42 = arith.mulf %39, %41 : vector<8x512xf32>
    %c0_20 = arith.constant 0 : index
    %c0_21 = arith.constant 0 : index
    %43 = vector.load %arg7[%c0_20, %c0_21] : memref<1x512xf32, #tpu.memory_space<vmem>>, vector<1x512xf32>
    %44 = vector.broadcast %43 : vector<1x512xf32> to vector<8x512xf32>
    %45 = arith.addf %42, %44 : vector<8x512xf32>
    %c0_22 = arith.constant 0 : index
    %c0_23 = arith.constant 0 : index
    %46 = vector.load %arg8[%c0_22, %c0_23] : memref<8x512xf32, #tpu.memory_space<vmem>>, vector<8x512xf32>
    tpu.vector_store %arg8[%c0_22, %c0_23], %45 {strides = array<i32>} : memref<8x512xf32, #tpu.memory_space<vmem>>, vector<8x512xf32>,
    return
  }
  func.func @transform_0(%arg0: i32) -> (i32, i32) {
    %c0_i32 = arith.constant 0 : i32
    %c0_i32_0 = arith.constant 0 : i32
    return %arg0, %c0_i32 : i32, i32
  }
  func.func @transform_1(%arg0: i32) -> (i32, i32) {
    %c0_i32 = arith.constant 0 : i32
    %c0_i32_0 = arith.constant 0 : i32
    %c0_i32_1 = arith.constant 0 : i32
    return %c0_i32, %c0_i32_0 : i32, i32
  }
  func.func @transform_2(%arg0: i32) -> (i32, i32) {
    %c0_i32 = arith.constant 0 : i32
    %c0_i32_0 = arith.constant 0 : i32
    %c0_i32_1 = arith.constant 0 : i32
    return %c0_i32, %c0_i32_0 : i32, i32
  }
  func.func @transform_3(%arg0: i32) -> (i32, i32) {
    %c0_i32 = arith.constant 0 : i32
    %c0_i32_0 = arith.constant 0 : i32
    %c0_i32_1 = arith.constant 0 : i32
    return %c0_i32, %c0_i32_0 : i32, i32
  }
  func.func @transform_4(%arg0: i32) -> (i32, i32) {
    %c0_i32 = arith.constant 0 : i32
    %c0_i32_0 = arith.constant 0 : i32
    %c0_i32_1 = arith.constant 0 : i32
    return %c0_i32, %c0_i32_0 : i32, i32
  }
  func.func @transform_5(%arg0: i32) -> (i32, i32) {
    %c0_i32 = arith.constant 0 : i32
    %c0_i32_0 = arith.constant 0 : i32
    %c0_i32_1 = arith.constant 0 : i32
    return %c0_i32, %c0_i32_0 : i32, i32
  }
  func.func @transform_6(%arg0: i32) -> (i32, i32) {
    %c0_i32 = arith.constant 0 : i32
    %c0_i32_0 = arith.constant 0 : i32
    %c0_i32_1 = arith.constant 0 : i32
    return %c0_i32, %c0_i32_0 : i32, i32
  }
  func.func @transform_7(%arg0: i32) -> (i32, i32) {
    %c0_i32 = arith.constant 0 : i32
    %c0_i32_0 = arith.constant 0 : i32
    return %arg0, %c0_i32 : i32, i32
  }
}

</mosaic_0001>

<llo_original>
// kernel: bert_forward.25
$region0: #{bert_forward.25}
  #allocation0 [shape = 'u32[]', space=smem, size = 0x4, offset = 0x4, fixed_abs, tag = 'smem constant byte address 0x4 - core index']
  #allocation1 [shape = 'u32[144,128]{1,0:T(1,128)}', space=vmem, size = 0x12000, scoped, tag = 'internal scratch']
  %s0 = inlined_call_operand.vmem [shape: f32[16,512], index: 0, kind: input, shape index: {}]
  %s1 = inlined_call_operand.hbm [shape: f32[1,512], index: 1, kind: input, shape index: {}]
  %s2 = inlined_call_operand.hbm [shape: f32[1,512], index: 2, kind: input, shape index: {}]
  %s3 = inlined_call_operand.vmem [shape: f32[16,512], index: 3, kind: output, shape index: {}]
  %s4 = sld [smem:[#allocation0]]
  $region53: #{bert_forward.25} parent=0
    _
  %s6 = ssub.s32 1, %s4
  %s7 = scalar_select 0, %s6, %s4
  $region1: #{bert_forward.25} parent=0
    #allocation2 [shape = 'u8[2048]{0}', space=vmem, size = 0x800, scoped, tag = 'input window, operand 1, single buffered']
    #allocation3 [shape = 's32[2]{0}', space=sflag, size = 0x8, scoped, tag = 'scoped memory for bert_forward.25']
    #allocation4 [shape = 'u8[2048]{0}', space=vmem, size = 0x800, scoped, tag = 'input window, operand 2, single buffered']
    #allocation5 [shape = 's32[1]{0}', space=sflag, size = 0x4, scoped, tag = 'scoped memory for bert_forward.25']
    %8 = vsyncpa [#allocation3], 0
    %9 = vsyncpa [#allocation5], 0
    loop: start=0, step=1, limit=4
    $region2: #{bert_forward.25} parent=1 // loop_pre_header
      _
    $region3: #{bert_forward.25} parent=1 // loop_header
      %s11 = sphi 0, %s15
      %p12 = scmp.ge.s32.totalorder %s11, 4
      %s21 = sphi 0, %s23
      %s24 = sphi 0, %s21
      %s25 = sphi 0, %s24
      %s41 = sphi 0, %s25
      %s45 = sphi 0, %s45
      %s47 = sphi 0, %s45
      %s48 = sphi 0, %s47
      %s62 = sphi 0, %s48
      %s66 = sphi 0, %s66
      %s68 = sphi 0, %s66
      %s69 = sphi 0, %s68
      %s83 = sphi 0, %s69
      %s89 = sphi 0, %s91
      %s92 = sphi 0, %s89
      %s93 = sphi 0, %s92
      %s109 = sphi 0, %s93
    $region4: #{bert_forward.25} parent=1 // loop_header_branch
      %14 = sbr.rel (%p12) target = $region8
    $region5: #{bert_forward.25} parent=1 // loop_body
      %s16 = ssub.s32 %s11, 1
      %s17 = ssub.s32 %s11, 2
      %s18 = sadd.s32 %s11, 1
      %s19 = ssub.s32 %s11, %s18
      %p20 = scmp.eq.s32.totalorder %s19, 0
      %s22 = sadd.s32 %s21, 1
      %s23 = scalar_select %p20, %s21, %s22
      %p26 = pneg %p20
      %p27 = scmp.eq.s32.totalorder %s11, 1
      %p28 = por %p26, %p27
      %p29 = scmp.ne.s32.totalorder %s21, %s24
      %p30 = scmp.eq.s32.totalorder %s11, 0
      %p31 = por %p29, %p30
      %p32 = scmp.ne.s32.totalorder %s21, %s24
      %p33 = scmp.eq.s32.totalorder %s16, 1
      %p34 = por %p32, %p33
      %p35 = scmp.ne.s32.totalorder %s24, %s25
      %p36 = scmp.eq.s32.totalorder %s16, 0
      %p37 = por %p35, %p36
      %p38 = scmp.ne.s32.totalorder %s24, %s25
      %p39 = scmp.eq.s32.totalorder %s17, 1
      %p40 = por %p38, %p39
      %p42 = scmp.ne.s32.totalorder %s25, %s41
      %p43 = scmp.eq.s32.totalorder %s17, 0
      %p44 = por %p42, %p43
      %s46 = sadd.s32 %s45, 1
      %p49 = scmp.eq.s32.totalorder %s11, 1
      %p50 = scmp.ne.s32.totalorder %s45, %s47
      %p51 = scmp.eq.s32.totalorder %s11, 0
      %p52 = por %p50, %p51
      %p53 = scmp.ne.s32.totalorder %s45, %s47
      %p54 = scmp.eq.s32.totalorder %s16, 1
      %p55 = por %p53, %p54
      %p56 = scmp.ne.s32.totalorder %s47, %s48
      %p57 = scmp.eq.s32.totalorder %s16, 0
      %p58 = por %p56, %p57
      %p59 = scmp.ne.s32.totalorder %s47, %s48
      %p60 = scmp.eq.s32.totalorder %s17, 1
      %p61 = por %p59, %p60
      %p63 = scmp.ne.s32.totalorder %s48, %s62
      %p64 = scmp.eq.s32.totalorder %s17, 0
      %p65 = por %p63, %p64
      %s67 = sadd.s32 %s66, 1
      %p70 = scmp.eq.s32.totalorder %s11, 1
      %p71 = scmp.ne.s32.totalorder %s66, %s68
      %p72 = scmp.eq.s32.totalorder %s11, 0
      %p73 = por %p71, %p72
      %p74 = scmp.ne.s32.totalorder %s66, %s68
      %p75 = scmp.eq.s32.totalorder %s16, 1
      %p76 = por %p74, %p75
      %p77 = scmp.ne.s32.totalorder %s68, %s69
      %p78 = scmp.eq.s32.totalorder %s16, 0
      %p79 = por %p77, %p78
      %p80 = scmp.ne.s32.totalorder %s68, %s69
      %p81 = scmp.eq.s32.totalorder %s17, 1
      %p82 = por %p80, %p81
      %p84 = scmp.ne.s32.totalorder %s69, %s83
      %p85 = scmp.eq.s32.totalorder %s17, 0
      %p86 = por %p84, %p85
      %s87 = ssub.s32 %s11, %s18
      %p88 = scmp.eq.s32.totalorder %s87, 0
      %s90 = sadd.s32 %s89, 1
      %s91 = scalar_select %p88, %s89, %s90
      %p94 = pneg %p88
      %p95 = scmp.eq.s32.totalorder %s11, 1
      %p96 = por %p94, %p95
      %p97 = scmp.ne.s32.totalorder %s89, %s92
      %p98 = scmp.eq.s32.totalorder %s11, 0
      %p99 = por %p97, %p98
      %p100 = scmp.ne.s32.totalorder %s89, %s92
      %p101 = scmp.eq.s32.totalorder %s16, 1
      %p102 = por %p100, %p101
      %p103 = scmp.ne.s32.totalorder %s92, %s93
      %p104 = scmp.eq.s32.totalorder %s16, 0
      %p105 = por %p103, %p104
      %p106 = scmp.ne.s32.totalorder %s92, %s93
      %p107 = scmp.eq.s32.totalorder %s17, 1
      %p108 = por %p106, %p107
      %p110 = scmp.ne.s32.totalorder %s93, %s109
      %p111 = scmp.eq.s32.totalorder %s17, 0
      %p112 = por %p110, %p111
      %p113 = scmp.le.s32.totalorder 1, %s11
      %p114 = scmp.lt.s32.totalorder %s11, 3
      %p115 = pnand %p113, %p114
      %p116 = pneg %p115
      // Predicated region
      $region9: #{bert_forward.25} parent=5 // pred_check
        _
      $region10: #{bert_forward.25} parent=5 // pred_check_branch
        %118 = sbr.rel (%p115) target = $region12
      $region11: #{bert_forward.25} parent=5 // pred_region
        %s119 = ssub.s32 %s11, 1
        // Predicated region
        $region13: #{bert_forward.25} parent=11 // pred_check
          %p120 = pneg %p58
        $region14: #{bert_forward.25} parent=11 // pred_check_branch
          %122 = sbr.rel (%p120) target = $region16
        $region15: #{bert_forward.25} parent=11 // pred_region
          %s124 = ssub.s32 64, 64
          %125 = vsyncadd [#allocation3], %s124
          %s127 = sshll.u32 [#allocation2], 4
          %s128 = int_to_ptr.vmem [resolvable:$true] %s127
          %130 = dma.hbm_to_vmem [thread:$0]  %s1, 64, %s128, [#allocation3]
        $region16: #{bert_forward.25} parent=11 // pred_fallthru
          _
        // Predicated region
        $region17: #{bert_forward.25} parent=11 // pred_check
          %p131 = pneg %p79
        $region18: #{bert_forward.25} parent=11 // pred_check_branch
          %133 = sbr.rel (%p131) target = $region20
        $region19: #{bert_forward.25} parent=11 // pred_region
          %s135 = ssub.s32 64, 64
          %136 = vsyncadd [#allocation5], %s135
          %s138 = sshll.u32 [#allocation4], 4
          %s139 = int_to_ptr.vmem [resolvable:$true] %s138
          %141 = dma.hbm_to_vmem [thread:$0]  %s2, 64, %s139, [#allocation5]
        $region20: #{bert_forward.25} parent=11 // pred_fallthru
          _
      $region12: #{bert_forward.25} parent=5 // pred_fallthru
        _
      %p142 = scmp.lt.s32.totalorder %s11, 2
      // Predicated region
      $region21: #{bert_forward.25} parent=5 // pred_check
        %p143 = pneg %p142
      $region22: #{bert_forward.25} parent=5 // pred_check_branch
        %145 = sbr.rel (%p143) target = $region24
      $region23: #{bert_forward.25} parent=5 // pred_region
        // Predicated region
        $region25: #{bert_forward.25} parent=23 // pred_check
          %p146 = pneg %p31
        $region26: #{bert_forward.25} parent=23 // pred_check_branch
          %148 = sbr.rel (%p146) target = $region28
        $region27: #{bert_forward.25} parent=23 // pred_region
          %p149 = scmp.lt.s32.totalorder %s11, 1
          %s150 = scalar_select %p149, %s11, 1
          %s151 = smul.addr %s150, 4
          %s152 = smul.addr %s151, 8
          %s153 = scalar_lea.vmem %s0, %s152
        $region28: #{bert_forward.25} parent=23 // pred_fallthru
          _
      $region24: #{bert_forward.25} parent=5 // pred_fallthru
        _
      %p154 = scmp.le.s32.totalorder 1, %s11
      %p155 = scmp.lt.s32.totalorder %s11, 3
      %p156 = pnand %p154, %p155
      %p157 = pneg %p156
      // Predicated region
      $region29: #{bert_forward.25} parent=5 // pred_check
        _
      $region30: #{bert_forward.25} parent=5 // pred_check_branch
        %159 = sbr.rel (%p156) target = $region32
      $region31: #{bert_forward.25} parent=5 // pred_region
        %s160 = ssub.s32 %s11, 1
        // Predicated region
        $region33: #{bert_forward.25} parent=31 // pred_check
          %p161 = pneg %p58
        $region34: #{bert_forward.25} parent=31 // pred_check_branch
          %163 = sbr.rel (%p161) target = $region36
        $region35: #{bert_forward.25} parent=31 // pred_region
          %164 = dma.done [#allocation3], 64
        $region36: #{bert_forward.25} parent=31 // pred_fallthru
          _
        // Predicated region
        $region37: #{bert_forward.25} parent=31 // pred_check
          %p165 = pneg %p79
        $region38: #{bert_forward.25} parent=31 // pred_check_branch
          %167 = sbr.rel (%p165) target = $region40
        $region39: #{bert_forward.25} parent=31 // pred_region
          %168 = dma.done [#allocation5], 64
        $region40: #{bert_forward.25} parent=31 // pred_fallthru
          _
        %p169 = scmp.lt.s32.totalorder %s16, 1
        %s170 = scalar_select %p169, %s16, 1
        %s171 = smul.addr %s170, 4
        %s172 = smul.addr %s171, 8
        %s173 = scalar_lea.vmem %s0, %s172
        %p174 = pneg %p37
        %p175 = pneg %p34
        %p176 = pneg %p58
        %p177 = pneg %p55
        %p178 = pneg %p79
        %p179 = pneg %p76
        %p180 = pneg %p105
        %p181 = pneg %p102
        %p182 = scmp.lt.s32.totalorder %s16, 1
        %s183 = scalar_select %p182, %s16, 1
        %s184 = smul.addr %s183, 4
        %s185 = smul.addr %s184, 8
        %s186 = scalar_lea.vmem %s3, %s185
        %p187 = scmp.lt.s32.totalorder %s16, 1
        %s188 = scalar_select %p187, %s16, 1
        %s189 = smul.addr %s188, 4
        %s190 = smul.addr %s189, 8
        %s191 = scalar_lea.vmem %s0, %s190
        %p192 = scmp.lt.s32.totalorder %s16, 1
        %s193 = scalar_select %p192, %s16, 1
        %s194 = smul.addr %s193, 4
        %s195 = smul.addr %s194, 8
        %s196 = scalar_lea.vmem %s3, %s195
        %v197 = vld [vmem:[%s191] sm:$0xff]
        %v198 = vld [vmem:[%s191 + $0x8] sm:$0xff]
        %v199 = vld [vmem:[%s191 + $0x10] sm:$0xff]
        %v200 = vld [vmem:[%s191 + $0x18] sm:$0xff]
        %v201 = vadd.f32 %v197, %v198
        %v202 = vadd.f32 %v201, %v199
        %v203 = vadd.f32 %v202, %v200
        %204 = vadd.xlane.f32.xlu0 %v203
        %v205 = vpop.xlane.xlu0 %204
        %v206 = vrcp.pop 512.0
        %v207 = vmul.f32 %v205, %v206
        %v208 = vsub.f32 %v197, %v207
        %v209 = vsub.f32 %v198, %v207
        %v210 = vsub.f32 %v199, %v207
        %v211 = vsub.f32 %v200, %v207
        %v212 = vmul.f32 %v208, %v208
        %v213 = vmul.f32 %v209, %v209
        %v214 = vmul.f32 %v210, %v210
        %v215 = vmul.f32 %v211, %v211
        %v216 = vadd.f32 %v212, %v213
        %v217 = vadd.f32 %v216, %v214
        %v218 = vadd.f32 %v217, %v215
        %219 = vadd.xlane.f32.xlu0 %v218
        %v220 = vpop.xlane.xlu0 %219
        %v221 = vmul.f32 %v220, %v206
        %v222 = vadd.f32 %v221, 1e-12
        %v223 = vrsqrt.pop %v222
        %v224 = vmul.f32 %v208, %v223
        %v225 = vmul.f32 %v209, %v223
        %v226 = vmul.f32 %v210, %v223
        %v227 = vmul.f32 %v211, %v223
        %v228 = vld [vmem:[#allocation2] sm:$0xf]
        %v230 = vlaneseq
        %v231 = vshrl.u32 %v230, 7
        %v232 = vsub.s32 0, %v231
        %v233 = vrot.slane %v228, %v232
        %v234 = vlaneseq
        %v235 = vshrl.u32 %v234, 7
        %v236 = vsub.s32 1, %v235
        %v237 = vrot.slane %v228, %v236
        %v238 = vlaneseq
        %v239 = vshrl.u32 %v238, 7
        %v240 = vsub.s32 2, %v239
        %v241 = vrot.slane %v228, %v240
        %v242 = vlaneseq
        %v243 = vshrl.u32 %v242, 7
        %v244 = vsub.s32 3, %v243
        %v245 = vrot.slane %v228, %v244
        %v250 = vmul.f32 %v224, %v233
        %v251 = vmul.f32 %v225, %v237
        %v252 = vmul.f32 %v226, %v241
        %v253 = vmul.f32 %v227, %v245
        %v254 = vld [vmem:[#allocation4] sm:$0xf]
        %v256 = vlaneseq
        %v257 = vshrl.u32 %v256, 7
        %v258 = vsub.s32 0, %v257
        %v259 = vrot.slane %v254, %v258
        %v260 = vlaneseq
        %v261 = vshrl.u32 %v260, 7
        %v262 = vsub.s32 1, %v261
        %v263 = vrot.slane %v254, %v262
        %v264 = vlaneseq
        %v265 = vshrl.u32 %v264, 7
        %v266 = vsub.s32 2, %v265
        %v267 = vrot.slane %v254, %v266
        %v268 = vlaneseq
        %v269 = vshrl.u32 %v268, 7
        %v270 = vsub.s32 3, %v269
        %v271 = vrot.slane %v254, %v270
        %v276 = vadd.f32 %v250, %v259
        %v277 = vadd.f32 %v251, %v263
        %v278 = vadd.f32 %v252, %v267
        %v279 = vadd.f32 %v253, %v271
        %280 = vst [vmem:[%s196] sm:$0xff] %v276
        %281 = vst [vmem:[%s196 + $0x8] sm:$0xff] %v277
        %282 = vst [vmem:[%s196 + $0x10] sm:$0xff] %v278
        %283 = vst [vmem:[%s196 + $0x18] sm:$0xff] %v279
        %p284 = scmp.lt.s32.totalorder %s16, 1
        %s285 = scalar_select %p284, %s16, 1
        %s286 = smul.addr %s285, 4
        %s287 = smul.addr %s286, 8
        %s288 = scalar_lea.vmem %s3, %s287
        // Predicated region
        $region41: #{bert_forward.25} parent=31 // pred_check
          %p289 = pneg %p102
        $region42: #{bert_forward.25} parent=31 // pred_check_branch
          %291 = sbr.rel (%p289) target = $region44
        $region43: #{bert_forward.25} parent=31 // pred_region
          _
        $region44: #{bert_forward.25} parent=31 // pred_fallthru
          _
      $region32: #{bert_forward.25} parent=5 // pred_fallthru
        _
      %p292 = scmp.le.s32.totalorder 2, %s11
      // Predicated region
      $region45: #{bert_forward.25} parent=5 // pred_check
        %p293 = pneg %p292
      $region46: #{bert_forward.25} parent=5 // pred_check_branch
        %295 = sbr.rel (%p293) target = $region48
      $region47: #{bert_forward.25} parent=5 // pred_region
        %s296 = ssub.s32 %s11, 2
        // Predicated region
        $region49: #{bert_forward.25} parent=47 // pred_check
          %p297 = pneg %p108
        $region50: #{bert_forward.25} parent=47 // pred_check_branch
          %299 = sbr.rel (%p297) target = $region52
        $region51: #{bert_forward.25} parent=47 // pred_region
          %p300 = scmp.lt.s32.totalorder %s17, 1
          %s301 = scalar_select %p300, %s17, 1
          %s302 = smul.addr %s301, 4
          %s303 = smul.addr %s302, 8
          %s304 = scalar_lea.vmem %s3, %s303
        $region52: #{bert_forward.25} parent=47 // pred_fallthru
          _
      $region48: #{bert_forward.25} parent=5 // pred_fallthru
        _
    $region6: #{bert_forward.25} parent=1 // loop_footer
      %s15 = sadd.s32 1, %s11
    $region7: #{bert_forward.25} parent=1 // loop_footer_branch
      %10 = sbr.rel target = $region3
    $region8: #{bert_forward.25} parent=1 // loop_exit
      _
    %305 = vsyncpa [#allocation3], 1
    %s306 = scalar_lea.sflag [#allocation3], 1
    %307 = vsyncpa %s306, 1
    %308 = vsyncpa [#allocation5], 1

// kernel: bert_forward.27
$region0: #{bert_forward.27}
  #allocation0 [shape = 'u32[]', space=smem, size = 0x4, offset = 0x4, fixed_abs, tag = 'smem constant byte address 0x4 - core index']
  #allocation1 [shape = 'u32[144,128]{1,0:T(1,128)}', space=vmem, size = 0x12000, scoped, tag = 'internal scratch']
  %s0 = inlined_call_operand.vmem [shape: bf16[2,8,1536], index: 0, kind: input, shape index: {}, may-alias: {0,1,2}]
  %s1 = inlined_call_operand.vmem [shape: bf16[2,8,1536], index: 1, kind: input, shape index: {}, may-alias: {0,1,2}]
  %s2 = inlined_call_operand.vmem [shape: bf16[2,8,1536], index: 2, kind: input, shape index: {}, may-alias: {0,1,2}]
  %s3 = inlined_call_operand.vmem [shape: f32[2,1,8], index: 3, kind: input, shape index: {}]
  %s4 = inlined_call_operand.vmem [shape: bf16[2,8,512], index: 4, kind: output, shape index: {}]
  %s5 = sld [smem:[#allocation0]]
  $region49: #{bert_forward.27} parent=0
    _
  %s7 = ssub.s32 1, %s5
  %s8 = scalar_select 0, %s7, %s5
  loop: start=0, step=1, limit=4
  $region2: #{bert_forward.27} parent=0 // loop_pre_header
    _
  $region3: #{bert_forward.27} parent=0 // loop_header
    %s10 = sphi 0, %s14
    %p11 = scmp.ge.s32.totalorder %s10, 4
    %s20 = sphi 0, %s22
    %s23 = sphi 0, %s20
    %s24 = sphi 0, %s23
    %s40 = sphi 0, %s24
    %s46 = sphi 0, %s48
    %s49 = sphi 0, %s46
    %s50 = sphi 0, %s49
    %s66 = sphi 0, %s50
    %s72 = sphi 0, %s74
    %s75 = sphi 0, %s72
    %s76 = sphi 0, %s75
    %s92 = sphi 0, %s76
    %s98 = sphi 0, %s100
    %s101 = sphi 0, %s98
    %s102 = sphi 0, %s101
    %s118 = sphi 0, %s102
    %s124 = sphi 0, %s126
    %s127 = sphi 0, %s124
    %s128 = sphi 0, %s127
    %s144 = sphi 0, %s128
  $region4: #{bert_forward.27} parent=0 // loop_header_branch
    %13 = sbr.rel (%p11) target = $region8
  $region5: #{bert_forward.27} parent=0 // loop_body
    %s15 = ssub.s32 %s10, 1
    %s16 = ssub.s32 %s10, 2
    %s17 = sadd.s32 %s10, 1
    %s18 = ssub.s32 %s10, %s17
    %p19 = scmp.eq.s32.totalorder %s18, 0
    %s21 = sadd.s32 %s20, 1
    %s22 = scalar_select %p19, %s20, %s21
    %p25 = pneg %p19
    %p26 = scmp.eq.s32.totalorder %s10, 1
    %p27 = por %p25, %p26
    %p28 = scmp.ne.s32.totalorder %s20, %s23
    %p29 = scmp.eq.s32.totalorder %s10, 0
    %p30 = por %p28, %p29
    %p31 = scmp.ne.s32.totalorder %s20, %s23
    %p32 = scmp.eq.s32.totalorder %s15, 1
    %p33 = por %p31, %p32
    %p34 = scmp.ne.s32.totalorder %s23, %s24
    %p35 = scmp.eq.s32.totalorder %s15, 0
    %p36 = por %p34, %p35
    %p37 = scmp.ne.s32.totalorder %s23, %s24
    %p38 = scmp.eq.s32.totalorder %s16, 1
    %p39 = por %p37, %p38
    %p41 = scmp.ne.s32.totalorder %s24, %s40
    %p42 = scmp.eq.s32.totalorder %s16, 0
    %p43 = por %p41, %p42
    %s44 = ssub.s32 %s10, %s17
    %p45 = scmp.eq.s32.totalorder %s44, 0
    %s47 = sadd.s32 %s46, 1
    %s48 = scalar_select %p45, %s46, %s47
    %p51 = pneg %p45
    %p52 = scmp.eq.s32.totalorder %s10, 1
    %p53 = por %p51, %p52
    %p54 = scmp.ne.s32.totalorder %s46, %s49
    %p55 = scmp.eq.s32.totalorder %s10, 0
    %p56 = por %p54, %p55
    %p57 = scmp.ne.s32.totalorder %s46, %s49
    %p58 = scmp.eq.s32.totalorder %s15, 1
    %p59 = por %p57, %p58
    %p60 = scmp.ne.s32.totalorder %s49, %s50
    %p61 = scmp.eq.s32.totalorder %s15, 0
    %p62 = por %p60, %p61
    %p63 = scmp.ne.s32.totalorder %s49, %s50
    %p64 = scmp.eq.s32.totalorder %s16, 1
    %p65 = por %p63, %p64
    %p67 = scmp.ne.s32.totalorder %s50, %s66
    %p68 = scmp.eq.s32.totalorder %s16, 0
    %p69 = por %p67, %p68
    %s70 = ssub.s32 %s10, %s17
    %p71 = scmp.eq.s32.totalorder %s70, 0
    %s73 = sadd.s32 %s72, 1
    %s74 = scalar_select %p71, %s72, %s73
    %p77 = pneg %p71
    %p78 = scmp.eq.s32.totalorder %s10, 1
    %p79 = por %p77, %p78
    %p80 = scmp.ne.s32.totalorder %s72, %s75
    %p81 = scmp.eq.s32.totalorder %s10, 0
    %p82 = por %p80, %p81
    %p83 = scmp.ne.s32.totalorder %s72, %s75
    %p84 = scmp.eq.s32.totalorder %s15, 1
    %p85 = por %p83, %p84
    %p86 = scmp.ne.s32.totalorder %s75, %s76
    %p87 = scmp.eq.s32.totalorder %s15, 0
    %p88 = por %p86, %p87
    %p89 = scmp.ne.s32.totalorder %s75, %s76
    %p90 = scmp.eq.s32.totalorder %s16, 1
    %p91 = por %p89, %p90
    %p93 = scmp.ne.s32.totalorder %s76, %s92
    %p94 = scmp.eq.s32.totalorder %s16, 0
    %p95 = por %p93, %p94
    %s96 = ssub.s32 %s10, %s17
    %p97 = scmp.eq.s32.totalorder %s96, 0
    %s99 = sadd.s32 %s98, 1
    %s100 = scalar_select %p97, %s98, %s99
    %p103 = pneg %p97
    %p104 = scmp.eq.s32.totalorder %s10, 1
    %p105 = por %p103, %p104
    %p106 = scmp.ne.s32.totalorder %s98, %s101
    %p107 = scmp.eq.s32.totalorder %s10, 0
    %p108 = por %p106, %p107
    %p109 = scmp.ne.s32.totalorder %s98, %s101
    %p110 = scmp.eq.s32.totalorder %s15, 1
    %p111 = por %p109, %p110
    %p112 = scmp.ne.s32.totalorder %s101, %s102
    %p113 = scmp.eq.s32.totalorder %s15, 0
    %p114 = por %p112, %p113
    %p115 = scmp.ne.s32.totalorder %s101, %s102
    %p116 = scmp.eq.s32.totalorder %s16, 1
    %p117 = por %p115, %p116
    %p119 = scmp.ne.s32.totalorder %s102, %s118
    %p120 = scmp.eq.s32.totalorder %s16, 0
    %p121 = por %p119, %p120
    %s122 = ssub.s32 %s10, %s17
    %p123 = scmp.eq.s32.totalorder %s122, 0
    %s125 = sadd.s32 %s124, 1
    %s126 = scalar_select %p123, %s124, %s125
    %p129 = pneg %p123
    %p130 = scmp.eq.s32.totalorder %s10, 1
    %p131 = por %p129, %p130
    %p132 = scmp.ne.s32.totalorder %s124, %s127
    %p133 = scmp.eq.s32.totalorder %s10, 0
    %p134 = por %p132, %p133
    %p135 = scmp.ne.s32.totalorder %s124, %s127
    %p136 = scmp.eq.s32.totalorder %s15, 1
    %p137 = por %p135, %p136
    %p138 = scmp.ne.s32.totalorder %s127, %s128
    %p139 = scmp.eq.s32.totalorder %s15, 0
    %p140 = por %p138, %p139
    %p141 = scmp.ne.s32.totalorder %s127, %s128
    %p142 = scmp.eq.s32.totalorder %s16, 1
    %p143 = por %p141, %p142
    %p145 = scmp.ne.s32.totalorder %s128, %s144
    %p146 = scmp.eq.s32.totalorder %s16, 0
    %p147 = por %p145, %p146
    %p148 = scmp.le.s32.totalorder 1, %s10
    %p149 = scmp.lt.s32.totalorder %s10, 3
    %p150 = pnand %p148, %p149
    %p151 = pneg %p150
    // Predicated region
    $region9: #{bert_forward.27} parent=5 // pred_check
      _
    $region10: #{bert_forward.27} parent=5 // pred_check_branch
      %153 = sbr.rel (%p150) target = $region12
    $region11: #{bert_forward.27} parent=5 // pred_region
      %s154 = ssub.s32 %s10, 1
    $region12: #{bert_forward.27} parent=5 // pred_fallthru
      _
    %p155 = scmp.lt.s32.totalorder %s10, 2
    // Predicated region
    $region13: #{bert_forward.27} parent=5 // pred_check
      %p156 = pneg %p155
    $region14: #{bert_forward.27} parent=5 // pred_check_branch
      %158 = sbr.rel (%p156) target = $region16
    $region15: #{bert_forward.27} parent=5 // pred_region
      // Predicated region
      $region17: #{bert_forward.27} parent=15 // pred_check
        %p159 = pneg %p30
      $region18: #{bert_forward.27} parent=15 // pred_check_branch
        %161 = sbr.rel (%p159) target = $region20
      $region19: #{bert_forward.27} parent=15 // pred_region
        %p162 = scmp.lt.s32.totalorder %s10, 1
        %s163 = scalar_select %p162, %s10, 1
        %s164 = smul.addr %s163, 12
        %s165 = smul.addr %s164, 4
        %s166 = scalar_lea.vmem %s0, %s165
      $region20: #{bert_forward.27} parent=15 // pred_fallthru
        _
      // Predicated region
      $region21: #{bert_forward.27} parent=15 // pred_check
        %p167 = pneg %p56
      $region22: #{bert_forward.27} parent=15 // pred_check_branch
        %169 = sbr.rel (%p167) target = $region24
      $region23: #{bert_forward.27} parent=15 // pred_region
        %p170 = scmp.lt.s32.totalorder %s10, 1
        %s171 = scalar_select %p170, %s10, 1
        %s172 = smul.addr %s171, 12
        %s173 = sadd.s32 4, %s172
        %s174 = smul.addr %s173, 4
        %s175 = scalar_lea.vmem %s1, %s174
      $region24: #{bert_forward.27} parent=15 // pred_fallthru
        _
      // Predicated region
      $region25: #{bert_forward.27} parent=15 // pred_check
        %p176 = pneg %p82
      $region26: #{bert_forward.27} parent=15 // pred_check_branch
        %178 = sbr.rel (%p176) target = $region28
      $region27: #{bert_forward.27} parent=15 // pred_region
        %p179 = scmp.lt.s32.totalorder %s10, 1
        %s180 = scalar_select %p179, %s10, 1
        %s181 = smul.addr %s180, 12
        %s182 = sadd.s32 8, %s181
        %s183 = smul.addr %s182, 4
        %s184 = scalar_lea.vmem %s2, %s183
      $region28: #{bert_forward.27} parent=15 // pred_fallthru
        _
      // Predicated region
      $region29: #{bert_forward.27} parent=15 // pred_check
        %p185 = pneg %p108
      $region30: #{bert_forward.27} parent=15 // pred_check_branch
        %187 = sbr.rel (%p185) target = $region32
      $region31: #{bert_forward.27} parent=15 // pred_region
        %p188 = scmp.lt.s32.totalorder %s10, 1
        %s189 = scalar_select %p188, %s10, 1
        %s190 = scalar_lea.vmem %s3, %s189
      $region32: #{bert_forward.27} parent=15 // pred_fallthru
        _
    $region16: #{bert_forward.27} parent=5 // pred_fallthru
      _
    %p191 = scmp.le.s32.totalorder 1, %s10
    %p192 = scmp.lt.s32.totalorder %s10, 3
    %p193 = pnand %p191, %p192
    %p194 = pneg %p193
    // Predicated region
    $region33: #{bert_forward.27} parent=5 // pred_check
      _
    $region34: #{bert_forward.27} parent=5 // pred_check_branch
      %196 = sbr.rel (%p193) target = $region36
    $region35: #{bert_forward.27} parent=5 // pred_region
      %s197 = ssub.s32 %s10, 1
      %p198 = scmp.lt.s32.totalorder %s15, 1
      %s199 = scalar_select %p198, %s15, 1
      %s200 = smul.addr %s199, 12
      %s201 = smul.addr %s200, 4
      %s202 = scalar_lea.vmem %s0, %s201
      %p203 = pneg %p36
      %p204 = pneg %p33
      %p205 = scmp.lt.s32.totalorder %s15, 1
      %s206 = scalar_select %p205, %s15, 1
      %s207 = smul.addr %s206, 12
      %s208 = sadd.s32 4, %s207
      %s209 = smul.addr %s208, 4
      %s210 = scalar_lea.vmem %s1, %s209
      %p211 = pneg %p62
      %p212 = pneg %p59
      %p213 = scmp.lt.s32.totalorder %s15, 1
      %s214 = scalar_select %p213, %s15, 1
      %s215 = smul.addr %s214, 12
      %s216 = sadd.s32 8, %s215
      %s217 = smul.addr %s216, 4
      %s218 = scalar_lea.vmem %s2, %s217
      %p219 = pneg %p88
      %p220 = pneg %p85
      %p221 = scmp.lt.s32.totalorder %s15, 1
      %s222 = scalar_select %p221, %s15, 1
      %s223 = scalar_lea.vmem %s3, %s222
      %p224 = pneg %p114
      %p225 = pneg %p111
      %p226 = pneg %p140
      %p227 = pneg %p137
      %p228 = scmp.lt.s32.totalorder %s15, 1
      %s229 = scalar_select %p228, %s15, 1
      %s230 = smul.addr %s229, 4
      %s231 = smul.addr %s230, 4
      %s232 = scalar_lea.vmem %s4, %s231
      %p233 = scmp.lt.s32.totalorder %s15, 1
      %s234 = scalar_select %p233, %s15, 1
      %s235 = smul.addr %s234, 12
      %s236 = smul.addr %s235, 4
      %s237 = scalar_lea.vmem %s0, %s236
      %p238 = scmp.lt.s32.totalorder %s15, 1
      %s239 = scalar_select %p238, %s15, 1
      %s240 = smul.addr %s239, 12
      %s241 = sadd.s32 4, %s240
      %s242 = smul.addr %s241, 4
      %s243 = scalar_lea.vmem %s1, %s242
      %p244 = scmp.lt.s32.totalorder %s15, 1
      %s245 = scalar_select %p244, %s15, 1
      %s246 = smul.addr %s245, 12
      %s247 = sadd.s32 8, %s246
      %s248 = smul.addr %s247, 4
      %s249 = scalar_lea.vmem %s2, %s248
      %p250 = scmp.lt.s32.totalorder %s15, 1
      %s251 = scalar_select %p250, %s15, 1
      %s252 = scalar_lea.vmem %s3, %s251
      %p253 = scmp.lt.s32.totalorder %s15, 1
      %s254 = scalar_select %p253, %s15, 1
      %s255 = smul.addr %s254, 4
      %s256 = smul.addr %s255, 4
      %s257 = scalar_lea.vmem %s4, %s256
      %v259 = vld [vmem:[%s252] sm:$0x1]
      %v260 = vld [vmem:[%s237] sm:$0xf]
      %v261 = vld [vmem:[%s243] sm:$0xf]
      %v262 = vld [vmem:[%s249] sm:$0xf]
      %v264 = vlaneseq
      %v265 = vshrl.u32 %v264, 7
      %v266 = vsub.s32 0, %v265
      %v267 = vrot.slane %v259, %v266
      %vm269 = vcmask 523264
      %v271 = vsel %vm269, %v260, 0
      %v274 = vsel %vm269, %v261, 0
      %276 = vmatprep.subr.bf16.mxu0 0
      %277 = vmatpush1.bf16.xpose.msra.mxu0 0
      %278 = vmatprep.subr.bf16.mxu0 0
      %279 = vmatpush1.bf16.xpose.msra.mxu0 0
      %280 = vmatprep.subr.bf16.mxu0 0
      %281 = vmatpush1.bf16.xpose.msra.mxu0 0
      %282 = vmatprep.subr.bf16.mxu0 0
      %283 = vmatpush1.bf16.xpose.msra.mxu0 0
      %284 = vmatprep.subr.bf16.mxu0 0
      %285 = vmatpush1.bf16.xpose.msra.mxu0 0
      %286 = vmatprep.subr.bf16.mxu0 0
      %287 = vmatpush1.bf16.xpose.msra.mxu0 0
      %288 = vmatprep.subr.bf16.mxu0 0
      %289 = vmatpush1.bf16.xpose.msra.mxu0 0
      %290 = vmatprep.subr.bf16.mxu0 0
      %291 = vmatpush1.bf16.xpose.msra.mxu0 %v274
      %292 = vmatprep.subr.bf16.mxu0 0
      %293 = vmatpush2.bf16.xpose.msra.mxu0 0
      %294 = vmatprep.subr.bf16.mxu0 0
      %295 = vmatpush2.bf16.xpose.msra.mxu0 0
      %296 = vmatprep.subr.bf16.mxu0 0
      %297 = vmatpush2.bf16.xpose.msra.mxu0 0
      %298 = vmatprep.subr.bf16.mxu0 0
      %299 = vmatpush2.bf16.xpose.msra.mxu0 0
      %300 = vmatprep.subr.bf16.mxu0 0
      %301 = vmatpush2.bf16.xpose.msra.mxu0 0
      %302 = vmatprep.subr.bf16.mxu0 0
      %303 = vmatpush2.bf16.xpose.msra.mxu0 0
      %304 = vmatprep.subr.bf16.mxu0 0
      %305 = vmatpush2.bf16.xpose.msra.mxu0 0
      %306 = vmatprep.subr.bf16.mxu0 0
      %307 = vmatpush2.bf16.xpose.msra.mxu0 0
      %308 = vmatprep.mubr.bf16.mxu0 0
      %309 = vmatmul.mubr.bf16.gmra.mxu0 %v271
      %v310 = vpop.f32.mrf.mxu0
      %v311 = vadd.f32 %v267, %v310
      %v312 = vpop.f32.mrf.mxu0
      %v313 = vpop.f32.mrf.mxu0
      %v314 = vpop.f32.mrf.mxu0
      %315 = vdwg.mxu0
      %vm316 = vcmask 64512
      %v317 = vsel %vm316, %v311, -inf
      %318 = vmax.xlane.f32.xlu0 %v317
      %v319 = vpop.xlane.xlu0 %318
      %v320 = vsub.f32 %v311, %v319
      %v321 = vmul.f32 %v320, 1.442695
      %v322 = vpow.pop %v321
      %v323 = vsel %vm316, %v322, 0.0
      %324 = vadd.xlane.f32.xlu0 %v323
      %v325 = vpop.xlane.xlu0 %324
      %v326 = vrcp.pop %v325
      %v327 = vmul.f32 %v322, %v326
      %v328 = vpack.c.bf16 %v327, %v327
      %v330 = vsel %vm316, %v328, 0
      %vm332 = vcmask 1043456
      %v334 = vsel %vm332, %v262, 0
      %336 = vmatprep.subr.bf16.mxu0 0
      %337 = vmatpush1.bf16.msra.mxu0 0
      %338 = vmatprep.subr.bf16.mxu0 0
      %339 = vmatpush1.bf16.msra.mxu0 0
      %340 = vmatprep.subr.bf16.mxu0 0
      %341 = vmatpush1.bf16.msra.mxu0 0
      %342 = vmatprep.subr.bf16.mxu0 0
      %343 = vmatpush1.bf16.msra.mxu0 0
      %344 = vmatprep.subr.bf16.mxu0 0
      %345 = vmatpush1.bf16.msra.mxu0 0
      %346 = vmatprep.subr.bf16.mxu0 0
      %347 = vmatpush1.bf16.msra.mxu0 0
      %348 = vmatprep.subr.bf16.mxu0 0
      %349 = vmatpush1.bf16.msra.mxu0 0
      %350 = vmatprep.subr.bf16.mxu0 0
      %351 = vmatpush1.bf16.msra.mxu0 %v334
      %352 = vmatprep.subr.bf16.mxu0 0
      %353 = vmatpush2.bf16.msra.mxu0 0
      %354 = vmatprep.subr.bf16.mxu0 0
      %355 = vmatpush2.bf16.msra.mxu0 0
      %356 = vmatprep.subr.bf16.mxu0 0
      %357 = vmatpush2.bf16.msra.mxu0 0
      %358 = vmatprep.subr.bf16.mxu0 0
      %359 = vmatpush2.bf16.msra.mxu0 0
      %360 = vmatprep.subr.bf16.mxu0 0
      %361 = vmatpush2.bf16.msra.mxu0 0
      %362 = vmatprep.subr.bf16.mxu0 0
      %363 = vmatpush2.bf16.msra.mxu0 0
      %364 = vmatprep.subr.bf16.mxu0 0
      %365 = vmatpush2.bf16.msra.mxu0 0
      %366 = vmatprep.subr.bf16.mxu0 0
      %367 = vmatpush2.bf16.msra.mxu0 0
      %368 = vmatprep.mubr.bf16.mxu0 0
      %369 = vmatmul.mubr.bf16.gmra.mxu0 %v330
      %v370 = vpop.f32.mrf.mxu0
      %v371 = vadd.f32 0.0, %v370
      %v372 = vpop.f32.mrf.mxu0
      %v373 = vpop.f32.mrf.mxu0
      %v374 = vpop.f32.mrf.mxu0
      %375 = vdwg.mxu0
      %v377 = vunpack.c.l.b16 %v260
      %v378 = vpack.c.b16 %v377, %v377
      %379 = vrot.lane.b32.xlu0 %v378, 64
      %v380 = vpop.permute.xlu0 %379
      %v382 = vunpack.c.l.b16 %v261
      %v383 = vpack.c.b16 %v382, %v382
      %384 = vrot.lane.b32.xlu0 %v383, 64
      %v385 = vpop.permute.xlu0 %384
      %v387 = vsel %vm269, %v380, 0
      %v390 = vsel %vm269, %v385, 0
      %392 = vmatprep.subr.bf16.mxu0 0
      %393 = vmatpush1.bf16.xpose.msra.mxu0 0
      %394 = vmatprep.subr.bf16.mxu0 0
      %395 = vmatpush1.bf16.xpose.msra.mxu0 0
      %396 = vmatprep.subr.bf16.mxu0 0
      %397 = vmatpush1.bf16.xpose.msra.mxu0 0
      %398 = vmatprep.subr.bf16.mxu0 0
      %399 = vmatpush1.bf16.xpose.msra.mxu0 0
      %400 = vmatprep.subr.bf16.mxu0 0
      %401 = vmatpush1.bf16.xpose.msra.mxu0 0
      %402 = vmatprep.subr.bf16.mxu0 0
      %403 = vmatpush1.bf16.xpose.msra.mxu0 0
      %404 = vmatprep.subr.bf16.mxu0 0
      %405 = vmatpush1.bf16.xpose.msra.mxu0 0
      %406 = vmatprep.subr.bf16.mxu0 0
      %407 = vmatpush1.bf16.xpose.msra.mxu0 %v390
      %408 = vmatprep.subr.bf16.mxu0 0
      %409 = vmatpush2.bf16.xpose.msra.mxu0 0
      %410 = vmatprep.subr.bf16.mxu0 0
      %411 = vmatpush2.bf16.xpose.msra.mxu0 0
      %412 = vmatprep.subr.bf16.mxu0 0
      %413 = vmatpush2.bf16.xpose.msra.mxu0 0
      %414 = vmatprep.subr.bf16.mxu0 0
      %415 = vmatpush2.bf16.xpose.msra.mxu0 0
      %416 = vmatprep.subr.bf16.mxu0 0
      %417 = vmatpush2.bf16.xpose.msra.mxu0 0
      %418 = vmatprep.subr.bf16.mxu0 0
      %419 = vmatpush2.bf16.xpose.msra.mxu0 0
      %420 = vmatprep.subr.bf16.mxu0 0
      %421 = vmatpush2.bf16.xpose.msra.mxu0 0
      %422 = vmatprep.subr.bf16.mxu0 0
      %423 = vmatpush2.bf16.xpose.msra.mxu0 0
      %424 = vmatprep.mubr.bf16.mxu0 0
      %425 = vmatmul.mubr.bf16.gmra.mxu0 %v387
      %v426 = vpop.f32.mrf.mxu0
      %v427 = vadd.f32 %v267, %v426
      %v428 = vpop.f32.mrf.mxu0
      %v429 = vpop.f32.mrf.mxu0
      %v430 = vpop.f32.mrf.mxu0
      %431 = vdwg.mxu0
      %v432 = vsel %vm316, %v427, -inf
      %433 = vmax.xlane.f32.xlu0 %v432
      %v434 = vpop.xlane.xlu0 %433
      %v435 = vsub.f32 %v427, %v434
      %v436 = vmul.f32 %v435, 1.442695
      %v437 = vpow.pop %v436
      %v438 = vsel %vm316, %v437, 0.0
      %439 = vadd.xlane.f32.xlu0 %v438
      %v440 = vpop.xlane.xlu0 %439
      %v441 = vrcp.pop %v440
      %v442 = vmul.f32 %v437, %v441
      %v443 = vpack.c.bf16 %v442, %v442
      %v445 = vunpack.c.l.b16 %v262
      %v446 = vpack.c.b16 %v445, %v445
      %447 = vrot.lane.b32.xlu0 %v446, 64
      %v448 = vpop.permute.xlu0 %447
      %v450 = vsel %vm316, %v443, 0
      %v453 = vsel %vm332, %v448, 0
      %455 = vmatprep.subr.bf16.mxu0 0
      %456 = vmatpush1.bf16.msra.mxu0 0
      %457 = vmatprep.subr.bf16.mxu0 0
      %458 = vmatpush1.bf16.msra.mxu0 0
      %459 = vmatprep.subr.bf16.mxu0 0
      %460 = vmatpush1.bf16.msra.mxu0 0
      %461 = vmatprep.subr.bf16.mxu0 0
      %462 = vmatpush1.bf16.msra.mxu0 0
      %463 = vmatprep.subr.bf16.mxu0 0
      %464 = vmatpush1.bf16.msra.mxu0 0
      %465 = vmatprep.subr.bf16.mxu0 0
      %466 = vmatpush1.bf16.msra.mxu0 0
      %467 = vmatprep.subr.bf16.mxu0 0
      %468 = vmatpush1.bf16.msra.mxu0 0
      %469 = vmatprep.subr.bf16.mxu0 0
      %470 = vmatpush1.bf16.msra.mxu0 %v453
      %471 = vmatprep.subr.bf16.mxu0 0
      %472 = vmatpush2.bf16.msra.mxu0 0
      %473 = vmatprep.subr.bf16.mxu0 0
      %474 = vmatpush2.bf16.msra.mxu0 0
      %475 = vmatprep.subr.bf16.mxu0 0
      %476 = vmatpush2.bf16.msra.mxu0 0
      %477 = vmatprep.subr.bf16.mxu0 0
      %478 = vmatpush2.bf16.msra.mxu0 0
      %479 = vmatprep.subr.bf16.mxu0 0
      %480 = vmatpush2.bf16.msra.mxu0 0
      %481 = vmatprep.subr.bf16.mxu0 0
      %482 = vmatpush2.bf16.msra.mxu0 0
      %483 = vmatprep.subr.bf16.mxu0 0
      %484 = vmatpush2.bf16.msra.mxu0 0
      %485 = vmatprep.subr.bf16.mxu0 0
      %486 = vmatpush2.bf16.msra.mxu0 0
      %487 = vmatprep.mubr.bf16.mxu0 0
      %488 = vmatmul.mubr.bf16.gmra.mxu0 %v450
      %v489 = vpop.f32.mrf.mxu0
      %v490 = vadd.f32 0.0, %v489
      %v491 = vpop.f32.mrf.mxu0
      %v492 = vpop.f32.mrf.mxu0
      %v493 = vpop.f32.mrf.mxu0
      %494 = vdwg.mxu0
      %v495 = vld [vmem:[%s237 + $0x4] sm:$0xf]
      %v496 = vld [vmem:[%s243 + $0x4] sm:$0xf]
      %v497 = vld [vmem:[%s249 + $0x4] sm:$0xf]
      %v499 = vsel %vm269, %v495, 0
      %v502 = vsel %vm269, %v496, 0
      %504 = vmatprep.subr.bf16.mxu0 0
      %505 = vmatpush1.bf16.xpose.msra.mxu0 0
      %506 = vmatprep.subr.bf16.mxu0 0
      %507 = vmatpush1.bf16.xpose.msra.mxu0 0
      %508 = vmatprep.subr.bf16.mxu0 0
      %509 = vmatpush1.bf16.xpose.msra.mxu0 0
      %510 = vmatprep.subr.bf16.mxu0 0
      %511 = vmatpush1.bf16.xpose.msra.mxu0 0
      %512 = vmatprep.subr.bf16.mxu0 0
      %513 = vmatpush1.bf16.xpose.msra.mxu0 0
      %514 = vmatprep.subr.bf16.mxu0 0
      %515 = vmatpush1.bf16.xpose.msra.mxu0 0
      %516 = vmatprep.subr.bf16.mxu0 0
      %517 = vmatpush1.bf16.xpose.msra.mxu0 0
      %518 = vmatprep.subr.bf16.mxu0 0
      %519 = vmatpush1.bf16.xpose.msra.mxu0 %v502
      %520 = vmatprep.subr.bf16.mxu0 0
      %521 = vmatpush2.bf16.xpose.msra.mxu0 0
      %522 = vmatprep.subr.bf16.mxu0 0
      %523 = vmatpush2.bf16.xpose.msra.mxu0 0
      %524 = vmatprep.subr.bf16.mxu0 0
      %525 = vmatpush2.bf16.xpose.msra.mxu0 0
      %526 = vmatprep.subr.bf16.mxu0 0
      %527 = vmatpush2.bf16.xpose.msra.mxu0 0
      %528 = vmatprep.subr.bf16.mxu0 0
      %529 = vmatpush2.bf16.xpose.msra.mxu0 0
      %530 = vmatprep.subr.bf16.mxu0 0
      %531 = vmatpush2.bf16.xpose.msra.mxu0 0
      %532 = vmatprep.subr.bf16.mxu0 0
      %533 = vmatpush2.bf16.xpose.msra.mxu0 0
      %534 = vmatprep.subr.bf16.mxu0 0
      %535 = vmatpush2.bf16.xpose.msra.mxu0 0
      %536 = vmatprep.mubr.bf16.mxu0 0
      %537 = vmatmul.mubr.bf16.gmra.mxu0 %v499
      %v538 = vpop.f32.mrf.mxu0
      %v539 = vadd.f32 %v267, %v538
      %v540 = vpop.f32.mrf.mxu0
      %v541 = vpop.f32.mrf.mxu0
      %v542 = vpop.f32.mrf.mxu0
      %543 = vdwg.mxu0
      %v544 = vsel %vm316, %v539, -inf
      %545 = vmax.xlane.f32.xlu0 %v544
      %v546 = vpop.xlane.xlu0 %545
      %v547 = vsub.f32 %v539, %v546
      %v548 = vmul.f32 %v547, 1.442695
      %v549 = vpow.pop %v548
      %v550 = vsel %vm316, %v549, 0.0
      %551 = vadd.xlane.f32.xlu0 %v550
      %v552 = vpop.xlane.xlu0 %551
      %v553 = vrcp.pop %v552
      %v554 = vmul.f32 %v549, %v553
      %v555 = vpack.c.bf16 %v554, %v554
      %v557 = vsel %vm316, %v555, 0
      %v560 = vsel %vm332, %v497, 0
      %562 = vmatprep.subr.bf16.mxu0 0
      %563 = vmatpush1.bf16.msra.mxu0 0
      %564 = vmatprep.subr.bf16.mxu0 0
      %565 = vmatpush1.bf16.msra.mxu0 0
      %566 = vmatprep.subr.bf16.mxu0 0
      %567 = vmatpush1.bf16.msra.mxu0 0
      %568 = vmatprep.subr.bf16.mxu0 0
      %569 = vmatpush1.bf16.msra.mxu0 0
      %570 = vmatprep.subr.bf16.mxu0 0
      %571 = vmatpush1.bf16.msra.mxu0 0
      %572 = vmatprep.subr.bf16.mxu0 0
      %573 = vmatpush1.bf16.msra.mxu0 0
      %574 = vmatprep.subr.bf16.mxu0 0
      %575 = vmatpush1.bf16.msra.mxu0 0
      %576 = vmatprep.subr.bf16.mxu0 0
      %577 = vmatpush1.bf16.msra.mxu0 %v560
      %578 = vmatprep.subr.bf16.mxu0 0
      %579 = vmatpush2.bf16.msra.mxu0 0
      %580 = vmatprep.subr.bf16.mxu0 0
      %581 = vmatpush2.bf16.msra.mxu0 0
      %582 = vmatprep.subr.bf16.mxu0 0
      %583 = vmatpush2.bf16.msra.mxu0 0
      %584 = vmatprep.subr.bf16.mxu0 0
      %585 = vmatpush2.bf16.msra.mxu0 0
      %586 = vmatprep.subr.bf16.mxu0 0
      %587 = vmatpush2.bf16.msra.mxu0 0
      %588 = vmatprep.subr.bf16.mxu0 0
      %589 = vmatpush2.bf16.msra.mxu0 0
      %590 = vmatprep.subr.bf16.mxu0 0
      %591 = vmatpush2.bf16.msra.mxu0 0
      %592 = vmatprep.subr.bf16.mxu0 0
      %593 = vmatpush2.bf16.msra.mxu0 0
      %594 = vmatprep.mubr.bf16.mxu0 0
      %595 = vmatmul.mubr.bf16.gmra.mxu0 %v557
      %v596 = vpop.f32.mrf.mxu0
      %v597 = vadd.f32 0.0, %v596
      %v598 = vpop.f32.mrf.mxu0
      %v599 = vpop.f32.mrf.mxu0
      %v600 = vpop.f32.mrf.mxu0
      %601 = vdwg.mxu0
      %v603 = vunpack.c.l.b16 %v495
      %v604 = vpack.c.b16 %v603, %v603
      %605 = vrot.lane.b32.xlu0 %v604, 64
      %v606 = vpop.permute.xlu0 %605
      %v608 = vunpack.c.l.b16 %v496
      %v609 = vpack.c.b16 %v608, %v608
      %610 = vrot.lane.b32.xlu0 %v609, 64
      %v611 = vpop.permute.xlu0 %610
      %v613 = vsel %vm269, %v606, 0
      %v616 = vsel %vm269, %v611, 0
      %618 = vmatprep.subr.bf16.mxu0 0
      %619 = vmatpush1.bf16.xpose.msra.mxu0 0
      %620 = vmatprep.subr.bf16.mxu0 0
      %621 = vmatpush1.bf16.xpose.msra.mxu0 0
      %622 = vmatprep.subr.bf16.mxu0 0
      %623 = vmatpush1.bf16.xpose.msra.mxu0 0
      %624 = vmatprep.subr.bf16.mxu0 0
      %625 = vmatpush1.bf16.xpose.msra.mxu0 0
      %626 = vmatprep.subr.bf16.mxu0 0
      %627 = vmatpush1.bf16.xpose.msra.mxu0 0
      %628 = vmatprep.subr.bf16.mxu0 0
      %629 = vmatpush1.bf16.xpose.msra.mxu0 0
      %630 = vmatprep.subr.bf16.mxu0 0
      %631 = vmatpush1.bf16.xpose.msra.mxu0 0
      %632 = vmatprep.subr.bf16.mxu0 0
      %633 = vmatpush1.bf16.xpose.msra.mxu0 %v616
      %634 = vmatprep.subr.bf16.mxu0 0
      %635 = vmatpush2.bf16.xpose.msra.mxu0 0
      %636 = vmatprep.subr.bf16.mxu0 0
      %637 = vmatpush2.bf16.xpose.msra.mxu0 0
      %638 = vmatprep.subr.bf16.mxu0 0
      %639 = vmatpush2.bf16.xpose.msra.mxu0 0
      %640 = vmatprep.subr.bf16.mxu0 0
      %641 = vmatpush2.bf16.xpose.msra.mxu0 0
      %642 = vmatprep.subr.bf16.mxu0 0
      %643 = vmatpush2.bf16.xpose.msra.mxu0 0
      %644 = vmatprep.subr.bf16.mxu0 0
      %645 = vmatpush2.bf16.xpose.msra.mxu0 0
      %646 = vmatprep.subr.bf16.mxu0 0
      %647 = vmatpush2.bf16.xpose.msra.mxu0 0
      %648 = vmatprep.subr.bf16.mxu0 0
      %649 = vmatpush2.bf16.xpose.msra.mxu0 0
      %650 = vmatprep.mubr.bf16.mxu0 0
      %651 = vmatmul.mubr.bf16.gmra.mxu0 %v613
      %v652 = vpop.f32.mrf.mxu0
      %v653 = vadd.f32 %v267, %v652
      %v654 = vpop.f32.mrf.mxu0
      %v655 = vpop.f32.mrf.mxu0
      %v656 = vpop.f32.mrf.mxu0
      %657 = vdwg.mxu0
      %v658 = vsel %vm316, %v653, -inf
      %659 = vmax.xlane.f32.xlu0 %v658
      %v660 = vpop.xlane.xlu0 %659
      %v661 = vsub.f32 %v653, %v660
      %v662 = vmul.f32 %v661, 1.442695
      %v663 = vpow.pop %v662
      %v664 = vsel %vm316, %v663, 0.0
      %665 = vadd.xlane.f32.xlu0 %v664
      %v666 = vpop.xlane.xlu0 %665
      %v667 = vrcp.pop %v666
      %v668 = vmul.f32 %v663, %v667
      %v669 = vpack.c.bf16 %v668, %v668
      %v671 = vunpack.c.l.b16 %v497
      %v672 = vpack.c.b16 %v671, %v671
      %673 = vrot.lane.b32.xlu0 %v672, 64
      %v674 = vpop.permute.xlu0 %673
      %v676 = vsel %vm316, %v669, 0
      %v679 = vsel %vm332, %v674, 0
      %681 = vmatprep.subr.bf16.mxu0 0
      %682 = vmatpush1.bf16.msra.mxu0 0
      %683 = vmatprep.subr.bf16.mxu0 0
      %684 = vmatpush1.bf16.msra.mxu0 0
      %685 = vmatprep.subr.bf16.mxu0 0
      %686 = vmatpush1.bf16.msra.mxu0 0
      %687 = vmatprep.subr.bf16.mxu0 0
      %688 = vmatpush1.bf16.msra.mxu0 0
      %689 = vmatprep.subr.bf16.mxu0 0
      %690 = vmatpush1.bf16.msra.mxu0 0
      %691 = vmatprep.subr.bf16.mxu0 0
      %692 = vmatpush1.bf16.msra.mxu0 0
      %693 = vmatprep.subr.bf16.mxu0 0
      %694 = vmatpush1.bf16.msra.mxu0 0
      %695 = vmatprep.subr.bf16.mxu0 0
      %696 = vmatpush1.bf16.msra.mxu0 %v679
      %697 = vmatprep.subr.bf16.mxu0 0
      %698 = vmatpush2.bf16.msra.mxu0 0
      %699 = vmatprep.subr.bf16.mxu0 0
      %700 = vmatpush2.bf16.msra.mxu0 0
      %701 = vmatprep.subr.bf16.mxu0 0
      %702 = vmatpush2.bf16.msra.mxu0 0
      %703 = vmatprep.subr.bf16.mxu0 0
      %704 = vmatpush2.bf16.msra.mxu0 0
      %705 = vmatprep.subr.bf16.mxu0 0
      %706 = vmatpush2.bf16.msra.mxu0 0
      %707 = vmatprep.subr.bf16.mxu0 0
      %708 = vmatpush2.bf16.msra.mxu0 0
      %709 = vmatprep.subr.bf16.mxu0 0
      %710 = vmatpush2.bf16.msra.mxu0 0
      %711 = vmatprep.subr.bf16.mxu0 0
      %712 = vmatpush2.bf16.msra.mxu0 0
      %713 = vmatprep.mubr.bf16.mxu0 0
      %714 = vmatmul.mubr.bf16.gmra.mxu0 %v676
      %v715 = vpop.f32.mrf.mxu0
      %v716 = vadd.f32 0.0, %v715
      %v717 = vpop.f32.mrf.mxu0
      %v718 = vpop.f32.mrf.mxu0
      %v719 = vpop.f32.mrf.mxu0
      %720 = vdwg.mxu0
      %v721 = vld [vmem:[%s237 + $0x8] sm:$0xf]
      %v722 = vld [vmem:[%s243 + $0x8] sm:$0xf]
      %v723 = vld [vmem:[%s249 + $0x8] sm:$0xf]
      %v725 = vsel %vm269, %v721, 0
      %v728 = vsel %vm269, %v722, 0
      %730 = vmatprep.subr.bf16.mxu0 0
      %731 = vmatpush1.bf16.xpose.msra.mxu0 0
      %732 = vmatprep.subr.bf16.mxu0 0
      %733 = vmatpush1.bf16.xpose.msra.mxu0 0
      %734 = vmatprep.subr.bf16.mxu0 0
      %735 = vmatpush1.bf16.xpose.msra.mxu0 0
      %736 = vmatprep.subr.bf16.mxu0 0
      %737 = vmatpush1.bf16.xpose.msra.mxu0 0
      %738 = vmatprep.subr.bf16.mxu0 0
      %739 = vmatpush1.bf16.xpose.msra.mxu0 0
      %740 = vmatprep.subr.bf16.mxu0 0
      %741 = vmatpush1.bf16.xpose.msra.mxu0 0
      %742 = vmatprep.subr.bf16.mxu0 0
      %743 = vmatpush1.bf16.xpose.msra.mxu0 0
      %744 = vmatprep.subr.bf16.mxu0 0
      %745 = vmatpush1.bf16.xpose.msra.mxu0 %v728
      %746 = vmatprep.subr.bf16.mxu0 0
      %747 = vmatpush2.bf16.xpose.msra.mxu0 0
      %748 = vmatprep.subr.bf16.mxu0 0
      %749 = vmatpush2.bf16.xpose.msra.mxu0 0
      %750 = vmatprep.subr.bf16.mxu0 0
      %751 = vmatpush2.bf16.xpose.msra.mxu0 0
      %752 = vmatprep.subr.bf16.mxu0 0
      %753 = vmatpush2.bf16.xpose.msra.mxu0 0
      %754 = vmatprep.subr.bf16.mxu0 0
      %755 = vmatpush2.bf16.xpose.msra.mxu0 0
      %756 = vmatprep.subr.bf16.mxu0 0
      %757 = vmatpush2.bf16.xpose.msra.mxu0 0
      %758 = vmatprep.subr.bf16.mxu0 0
      %759 = vmatpush2.bf16.xpose.msra.mxu0 0
      %760 = vmatprep.subr.bf16.mxu0 0
      %761 = vmatpush2.bf16.xpose.msra.mxu0 0
      %762 = vmatprep.mubr.bf16.mxu0 0
      %763 = vmatmul.mubr.bf16.gmra.mxu0 %v725
      %v764 = vpop.f32.mrf.mxu0
      %v765 = vadd.f32 %v267, %v764
      %v766 = vpop.f32.mrf.mxu0
      %v767 = vpop.f32.mrf.mxu0
      %v768 = vpop.f32.mrf.mxu0
      %769 = vdwg.mxu0
      %v770 = vsel %vm316, %v765, -inf
      %771 = vmax.xlane.f32.xlu0 %v770
      %v772 = vpop.xlane.xlu0 %771
      %v773 = vsub.f32 %v765, %v772
      %v774 = vmul.f32 %v773, 1.442695
      %v775 = vpow.pop %v774
      %v776 = vsel %vm316, %v775, 0.0
      %777 = vadd.xlane.f32.xlu0 %v776
      %v778 = vpop.xlane.xlu0 %777
      %v779 = vrcp.pop %v778
      %v780 = vmul.f32 %v775, %v779
      %v781 = vpack.c.bf16 %v780, %v780
      %v783 = vsel %vm316, %v781, 0
      %v786 = vsel %vm332, %v723, 0
      %788 = vmatprep.subr.bf16.mxu0 0
      %789 = vmatpush1.bf16.msra.mxu0 0
      %790 = vmatprep.subr.bf16.mxu0 0
      %791 = vmatpush1.bf16.msra.mxu0 0
      %792 = vmatprep.subr.bf16.mxu0 0
      %793 = vmatpush1.bf16.msra.mxu0 0
      %794 = vmatprep.subr.bf16.mxu0 0
      %795 = vmatpush1.bf16.msra.mxu0 0
      %796 = vmatprep.subr.bf16.mxu0 0
      %797 = vmatpush1.bf16.msra.mxu0 0
      %798 = vmatprep.subr.bf16.mxu0 0
      %799 = vmatpush1.bf16.msra.mxu0 0
      %800 = vmatprep.subr.bf16.mxu0 0
      %801 = vmatpush1.bf16.msra.mxu0 0
      %802 = vmatprep.subr.bf16.mxu0 0
      %803 = vmatpush1.bf16.msra.mxu0 %v786
      %804 = vmatprep.subr.bf16.mxu0 0
      %805 = vmatpush2.bf16.msra.mxu0 0
      %806 = vmatprep.subr.bf16.mxu0 0
      %807 = vmatpush2.bf16.msra.mxu0 0
      %808 = vmatprep.subr.bf16.mxu0 0
      %809 = vmatpush2.bf16.msra.mxu0 0
      %810 = vmatprep.subr.bf16.mxu0 0
      %811 = vmatpush2.bf16.msra.mxu0 0
      %812 = vmatprep.subr.bf16.mxu0 0
      %813 = vmatpush2.bf16.msra.mxu0 0
      %814 = vmatprep.subr.bf16.mxu0 0
      %815 = vmatpush2.bf16.msra.mxu0 0
      %816 = vmatprep.subr.bf16.mxu0 0
      %817 = vmatpush2.bf16.msra.mxu0 0
      %818 = vmatprep.subr.bf16.mxu0 0
      %819 = vmatpush2.bf16.msra.mxu0 0
      %820 = vmatprep.mubr.bf16.mxu0 0
      %821 = vmatmul.mubr.bf16.gmra.mxu0 %v783
      %v822 = vpop.f32.mrf.mxu0
      %v823 = vadd.f32 0.0, %v822
      %v824 = vpop.f32.mrf.mxu0
      %v825 = vpop.f32.mrf.mxu0
      %v826 = vpop.f32.mrf.mxu0
      %827 = vdwg.mxu0
      %v829 = vunpack.c.l.b16 %v721
      %v830 = vpack.c.b16 %v829, %v829
      %831 = vrot.lane.b32.xlu0 %v830, 64
      %v832 = vpop.permute.xlu0 %831
      %v834 = vunpack.c.l.b16 %v722
      %v835 = vpack.c.b16 %v834, %v834
      %836 = vrot.lane.b32.xlu0 %v835, 64
      %v837 = vpop.permute.xlu0 %836
      %v839 = vsel %vm269, %v832, 0
      %v842 = vsel %vm269, %v837, 0
      %844 = vmatprep.subr.bf16.mxu0 0
      %845 = vmatpush1.bf16.xpose.msra.mxu0 0
      %846 = vmatprep.subr.bf16.mxu0 0
      %847 = vmatpush1.bf16.xpose.msra.mxu0 0
      %848 = vmatprep.subr.bf16.mxu0 0
      %849 = vmatpush1.bf16.xpose.msra.mxu0 0
      %850 = vmatprep.subr.bf16.mxu0 0
      %851 = vmatpush1.bf16.xpose.msra.mxu0 0
      %852 = vmatprep.subr.bf16.mxu0 0
      %853 = vmatpush1.bf16.xpose.msra.mxu0 0
      %854 = vmatprep.subr.bf16.mxu0 0
      %855 = vmatpush1.bf16.xpose.msra.mxu0 0
      %856 = vmatprep.subr.bf16.mxu0 0
      %857 = vmatpush1.bf16.xpose.msra.mxu0 0
      %858 = vmatprep.subr.bf16.mxu0 0
      %859 = vmatpush1.bf16.xpose.msra.mxu0 %v842
      %860 = vmatprep.subr.bf16.mxu0 0
      %861 = vmatpush2.bf16.xpose.msra.mxu0 0
      %862 = vmatprep.subr.bf16.mxu0 0
      %863 = vmatpush2.bf16.xpose.msra.mxu0 0
      %864 = vmatprep.subr.bf16.mxu0 0
      %865 = vmatpush2.bf16.xpose.msra.mxu0 0
      %866 = vmatprep.subr.bf16.mxu0 0
      %867 = vmatpush2.bf16.xpose.msra.mxu0 0
      %868 = vmatprep.subr.bf16.mxu0 0
      %869 = vmatpush2.bf16.xpose.msra.mxu0 0
      %870 = vmatprep.subr.bf16.mxu0 0
      %871 = vmatpush2.bf16.xpose.msra.mxu0 0
      %872 = vmatprep.subr.bf16.mxu0 0
      %873 = vmatpush2.bf16.xpose.msra.mxu0 0
      %874 = vmatprep.subr.bf16.mxu0 0
      %875 = vmatpush2.bf16.xpose.msra.mxu0 0
      %876 = vmatprep.mubr.bf16.mxu0 0
      %877 = vmatmul.mubr.bf16.gmra.mxu0 %v839
      %v878 = vpop.f32.mrf.mxu0
      %v879 = vadd.f32 %v267, %v878
      %v880 = vpop.f32.mrf.mxu0
      %v881 = vpop.f32.mrf.mxu0
      %v882 = vpop.f32.mrf.mxu0
      %883 = vdwg.mxu0
      %v884 = vsel %vm316, %v879, -inf
      %885 = vmax.xlane.f32.xlu0 %v884
      %v886 = vpop.xlane.xlu0 %885
      %v887 = vsub.f32 %v879, %v886
      %v888 = vmul.f32 %v887, 1.442695
      %v889 = vpow.pop %v888
      %v890 = vsel %vm316, %v889, 0.0
      %891 = vadd.xlane.f32.xlu0 %v890
      %v892 = vpop.xlane.xlu0 %891
      %v893 = vrcp.pop %v892
      %v894 = vmul.f32 %v889, %v893
      %v895 = vpack.c.bf16 %v894, %v894
      %v897 = vunpack.c.l.b16 %v723
      %v898 = vpack.c.b16 %v897, %v897
      %899 = vrot.lane.b32.xlu0 %v898, 64
      %v900 = vpop.permute.xlu0 %899
      %v902 = vsel %vm316, %v895, 0
      %v905 = vsel %vm332, %v900, 0
      %907 = vmatprep.subr.bf16.mxu0 0
      %908 = vmatpush1.bf16.msra.mxu0 0
      %909 = vmatprep.subr.bf16.mxu0 0
      %910 = vmatpush1.bf16.msra.mxu0 0
      %911 = vmatprep.subr.bf16.mxu0 0
      %912 = vmatpush1.bf16.msra.mxu0 0
      %913 = vmatprep.subr.bf16.mxu0 0
      %914 = vmatpush1.bf16.msra.mxu0 0
      %915 = vmatprep.subr.bf16.mxu0 0
      %916 = vmatpush1.bf16.msra.mxu0 0
      %917 = vmatprep.subr.bf16.mxu0 0
      %918 = vmatpush1.bf16.msra.mxu0 0
      %919 = vmatprep.subr.bf16.mxu0 0
      %920 = vmatpush1.bf16.msra.mxu0 0
      %921 = vmatprep.subr.bf16.mxu0 0
      %922 = vmatpush1.bf16.msra.mxu0 %v905
      %923 = vmatprep.subr.bf16.mxu0 0
      %924 = vmatpush2.bf16.msra.mxu0 0
      %925 = vmatprep.subr.bf16.mxu0 0
      %926 = vmatpush2.bf16.msra.mxu0 0
      %927 = vmatprep.subr.bf16.mxu0 0
      %928 = vmatpush2.bf16.msra.mxu0 0
      %929 = vmatprep.subr.bf16.mxu0 0
      %930 = vmatpush2.bf16.msra.mxu0 0
      %931 = vmatprep.subr.bf16.mxu0 0
      %932 = vmatpush2.bf16.msra.mxu0 0
      %933 = vmatprep.subr.bf16.mxu0 0
      %934 = vmatpush2.bf16.msra.mxu0 0
      %935 = vmatprep.subr.bf16.mxu0 0
      %936 = vmatpush2.bf16.msra.mxu0 0
      %937 = vmatprep.subr.bf16.mxu0 0
      %938 = vmatpush2.bf16.msra.mxu0 0
      %939 = vmatprep.mubr.bf16.mxu0 0
      %940 = vmatmul.mubr.bf16.gmra.mxu0 %v902
      %v941 = vpop.f32.mrf.mxu0
      %v942 = vadd.f32 0.0, %v941
      %v943 = vpop.f32.mrf.mxu0
      %v944 = vpop.f32.mrf.mxu0
      %v945 = vpop.f32.mrf.mxu0
      %946 = vdwg.mxu0
      %v947 = vld [vmem:[%s237 + $0xc] sm:$0xf]
      %v948 = vld [vmem:[%s243 + $0xc] sm:$0xf]
      %v949 = vld [vmem:[%s249 + $0xc] sm:$0xf]
      %v951 = vsel %vm269, %v947, 0
      %v954 = vsel %vm269, %v948, 0
      %956 = vmatprep.subr.bf16.mxu0 0
      %957 = vmatpush1.bf16.xpose.msra.mxu0 0
      %958 = vmatprep.subr.bf16.mxu0 0
      %959 = vmatpush1.bf16.xpose.msra.mxu0 0
      %960 = vmatprep.subr.bf16.mxu0 0
      %961 = vmatpush1.bf16.xpose.msra.mxu0 0
      %962 = vmatprep.subr.bf16.mxu0 0
      %963 = vmatpush1.bf16.xpose.msra.mxu0 0
      %964 = vmatprep.subr.bf16.mxu0 0
      %965 = vmatpush1.bf16.xpose.msra.mxu0 0
      %966 = vmatprep.subr.bf16.mxu0 0
      %967 = vmatpush1.bf16.xpose.msra.mxu0 0
      %968 = vmatprep.subr.bf16.mxu0 0
      %969 = vmatpush1.bf16.xpose.msra.mxu0 0
      %970 = vmatprep.subr.bf16.mxu0 0
      %971 = vmatpush1.bf16.xpose.msra.mxu0 %v954
      %972 = vmatprep.subr.bf16.mxu0 0
      %973 = vmatpush2.bf16.xpose.msra.mxu0 0
      %974 = vmatprep.subr.bf16.mxu0 0
      %975 = vmatpush2.bf16.xpose.msra.mxu0 0
      %976 = vmatprep.subr.bf16.mxu0 0
      %977 = vmatpush2.bf16.xpose.msra.mxu0 0
      %978 = vmatprep.subr.bf16.mxu0 0
      %979 = vmatpush2.bf16.xpose.msra.mxu0 0
      %980 = vmatprep.subr.bf16.mxu0 0
      %981 = vmatpush2.bf16.xpose.msra.mxu0 0
      %982 = vmatprep.subr.bf16.mxu0 0
      %983 = vmatpush2.bf16.xpose.msra.mxu0 0
      %984 = vmatprep.subr.bf16.mxu0 0
      %985 = vmatpush2.bf16.xpose.msra.mxu0 0
      %986 = vmatprep.subr.bf16.mxu0 0
      %987 = vmatpush2.bf16.xpose.msra.mxu0 0
      %988 = vmatprep.mubr.bf16.mxu0 0
      %989 = vmatmul.mubr.bf16.gmra.mxu0 %v951
      %v990 = vpop.f32.mrf.mxu0
      %v991 = vadd.f32 %v267, %v990
      %v992 = vpop.f32.mrf.mxu0
      %v993 = vpop.f32.mrf.mxu0
      %v994 = vpop.f32.mrf.mxu0
      %995 = vdwg.mxu0
      %v996 = vsel %vm316, %v991, -inf
      %997 = vmax.xlane.f32.xlu0 %v996
      %v998 = vpop.xlane.xlu0 %997
      %v999 = vsub.f32 %v991, %v998
      %v1000 = vmul.f32 %v999, 1.442695
      %v1001 = vpow.pop %v1000
      %v1002 = vsel %vm316, %v1001, 0.0
      %1003 = vadd.xlane.f32.xlu0 %v1002
      %v1004 = vpop.xlane.xlu0 %1003
      %v1005 = vrcp.pop %v1004
      %v1006 = vmul.f32 %v1001, %v1005
      %v1007 = vpack.c.bf16 %v1006, %v1006
      %v1009 = vsel %vm316, %v1007, 0
      %v1012 = vsel %vm332, %v949, 0
      %1014 = vmatprep.subr.bf16.mxu0 0
      %1015 = vmatpush1.bf16.msra.mxu0 0
      %1016 = vmatprep.subr.bf16.mxu0 0
      %1017 = vmatpush1.bf16.msra.mxu0 0
      %1018 = vmatprep.subr.bf16.mxu0 0
      %1019 = vmatpush1.bf16.msra.mxu0 0
      %1020 = vmatprep.subr.bf16.mxu0 0
      %1021 = vmatpush1.bf16.msra.mxu0 0
      %1022 = vmatprep.subr.bf16.mxu0 0
      %1023 = vmatpush1.bf16.msra.mxu0 0
      %1024 = vmatprep.subr.bf16.mxu0 0
      %1025 = vmatpush1.bf16.msra.mxu0 0
      %1026 = vmatprep.subr.bf16.mxu0 0
      %1027 = vmatpush1.bf16.msra.mxu0 0
      %1028 = vmatprep.subr.bf16.mxu0 0
      %1029 = vmatpush1.bf16.msra.mxu0 %v1012
      %1030 = vmatprep.subr.bf16.mxu0 0
      %1031 = vmatpush2.bf16.msra.mxu0 0
      %1032 = vmatprep.subr.bf16.mxu0 0
      %1033 = vmatpush2.bf16.msra.mxu0 0
      %1034 = vmatprep.subr.bf16.mxu0 0
      %1035 = vmatpush2.bf16.msra.mxu0 0
      %1036 = vmatprep.subr.bf16.mxu0 0
      %1037 = vmatpush2.bf16.msra.mxu0 0
      %1038 = vmatprep.subr.bf16.mxu0 0
      %1039 = vmatpush2.bf16.msra.mxu0 0
      %1040 = vmatprep.subr.bf16.mxu0 0
      %1041 = vmatpush2.bf16.msra.mxu0 0
      %1042 = vmatprep.subr.bf16.mxu0 0
      %1043 = vmatpush2.bf16.msra.mxu0 0
      %1044 = vmatprep.subr.bf16.mxu0 0
      %1045 = vmatpush2.bf16.msra.mxu0 0
      %1046 = vmatprep.mubr.bf16.mxu0 0
      %1047 = vmatmul.mubr.bf16.gmra.mxu0 %v1009
      %v1048 = vpop.f32.mrf.mxu0
      %v1049 = vadd.f32 0.0, %v1048
      %v1050 = vpop.f32.mrf.mxu0
      %v1051 = vpop.f32.mrf.mxu0
      %v1052 = vpop.f32.mrf.mxu0
      %1053 = vdwg.mxu0
      %v1055 = vunpack.c.l.b16 %v947
      %v1056 = vpack.c.b16 %v1055, %v1055
      %1057 = vrot.lane.b32.xlu0 %v1056, 64
      %v1058 = vpop.permute.xlu0 %1057
      %v1060 = vunpack.c.l.b16 %v948
      %v1061 = vpack.c.b16 %v1060, %v1060
      %1062 = vrot.lane.b32.xlu0 %v1061, 64
      %v1063 = vpop.permute.xlu0 %1062
      %v1065 = vsel %vm269, %v1058, 0
      %v1068 = vsel %vm269, %v1063, 0
      %1070 = vmatprep.subr.bf16.mxu0 0
      %1071 = vmatpush1.bf16.xpose.msra.mxu0 0
      %1072 = vmatprep.subr.bf16.mxu0 0
      %1073 = vmatpush1.bf16.xpose.msra.mxu0 0
      %1074 = vmatprep.subr.bf16.mxu0 0
      %1075 = vmatpush1.bf16.xpose.msra.mxu0 0
      %1076 = vmatprep.subr.bf16.mxu0 0
      %1077 = vmatpush1.bf16.xpose.msra.mxu0 0
      %1078 = vmatprep.subr.bf16.mxu0 0
      %1079 = vmatpush1.bf16.xpose.msra.mxu0 0
      %1080 = vmatprep.subr.bf16.mxu0 0
      %1081 = vmatpush1.bf16.xpose.msra.mxu0 0
      %1082 = vmatprep.subr.bf16.mxu0 0
      %1083 = vmatpush1.bf16.xpose.msra.mxu0 0
      %1084 = vmatprep.subr.bf16.mxu0 0
      %1085 = vmatpush1.bf16.xpose.msra.mxu0 %v1068
      %1086 = vmatprep.subr.bf16.mxu0 0
      %1087 = vmatpush2.bf16.xpose.msra.mxu0 0
      %1088 = vmatprep.subr.bf16.mxu0 0
      %1089 = vmatpush2.bf16.xpose.msra.mxu0 0
      %1090 = vmatprep.subr.bf16.mxu0 0
      %1091 = vmatpush2.bf16.xpose.msra.mxu0 0
      %1092 = vmatprep.subr.bf16.mxu0 0
      %1093 = vmatpush2.bf16.xpose.msra.mxu0 0
      %1094 = vmatprep.subr.bf16.mxu0 0
      %1095 = vmatpush2.bf16.xpose.msra.mxu0 0
      %1096 = vmatprep.subr.bf16.mxu0 0
      %1097 = vmatpush2.bf16.xpose.msra.mxu0 0
      %1098 = vmatprep.subr.bf16.mxu0 0
      %1099 = vmatpush2.bf16.xpose.msra.mxu0 0
      %1100 = vmatprep.subr.bf16.mxu0 0
      %1101 = vmatpush2.bf16.xpose.msra.mxu0 0
      %1102 = vmatprep.mubr.bf16.mxu0 0
      %1103 = vmatmul.mubr.bf16.gmra.mxu0 %v1065
      %v1104 = vpop.f32.mrf.mxu0
      %v1105 = vadd.f32 %v267, %v1104
      %v1106 = vpop.f32.mrf.mxu0
      %v1107 = vpop.f32.mrf.mxu0
      %v1108 = vpop.f32.mrf.mxu0
      %1109 = vdwg.mxu0
      %v1110 = vsel %vm316, %v1105, -inf
      %1111 = vmax.xlane.f32.xlu0 %v1110
      %v1112 = vpop.xlane.xlu0 %1111
      %v1113 = vsub.f32 %v1105, %v1112
      %v1114 = vmul.f32 %v1113, 1.442695
      %v1115 = vpow.pop %v1114
      %v1116 = vsel %vm316, %v1115, 0.0
      %1117 = vadd.xlane.f32.xlu0 %v1116
      %v1118 = vpop.xlane.xlu0 %1117
      %v1119 = vrcp.pop %v1118
      %v1120 = vmul.f32 %v1115, %v1119
      %v1121 = vpack.c.bf16 %v1120, %v1120
      %v1123 = vunpack.c.l.b16 %v949
      %v1124 = vpack.c.b16 %v1123, %v1123
      %1125 = vrot.lane.b32.xlu0 %v1124, 64
      %v1126 = vpop.permute.xlu0 %1125
      %v1128 = vsel %vm316, %v1121, 0
      %v1131 = vsel %vm332, %v1126, 0
      %1133 = vmatprep.subr.bf16.mxu0 0
      %1134 = vmatpush1.bf16.msra.mxu0 0
      %1135 = vmatprep.subr.bf16.mxu0 0
      %1136 = vmatpush1.bf16.msra.mxu0 0
      %1137 = vmatprep.subr.bf16.mxu0 0
      %1138 = vmatpush1.bf16.msra.mxu0 0
      %1139 = vmatprep.subr.bf16.mxu0 0
      %1140 = vmatpush1.bf16.msra.mxu0 0
      %1141 = vmatprep.subr.bf16.mxu0 0
      %1142 = vmatpush1.bf16.msra.mxu0 0
      %1143 = vmatprep.subr.bf16.mxu0 0
      %1144 = vmatpush1.bf16.msra.mxu0 0
      %1145 = vmatprep.subr.bf16.mxu0 0
      %1146 = vmatpush1.bf16.msra.mxu0 0
      %1147 = vmatprep.subr.bf16.mxu0 0
      %1148 = vmatpush1.bf16.msra.mxu0 %v1131
      %1149 = vmatprep.subr.bf16.mxu0 0
      %1150 = vmatpush2.bf16.msra.mxu0 0
      %1151 = vmatprep.subr.bf16.mxu0 0
      %1152 = vmatpush2.bf16.msra.mxu0 0
      %1153 = vmatprep.subr.bf16.mxu0 0
      %1154 = vmatpush2.bf16.msra.mxu0 0
      %1155 = vmatprep.subr.bf16.mxu0 0
      %1156 = vmatpush2.bf16.msra.mxu0 0
      %1157 = vmatprep.subr.bf16.mxu0 0
      %1158 = vmatpush2.bf16.msra.mxu0 0
      %1159 = vmatprep.subr.bf16.mxu0 0
      %1160 = vmatpush2.bf16.msra.mxu0 0
      %1161 = vmatprep.subr.bf16.mxu0 0
      %1162 = vmatpush2.bf16.msra.mxu0 0
      %1163 = vmatprep.subr.bf16.mxu0 0
      %1164 = vmatpush2.bf16.msra.mxu0 0
      %1165 = vmatprep.mubr.bf16.mxu0 0
      %1166 = vmatmul.mubr.bf16.gmra.mxu0 %v1128
      %v1167 = vpop.f32.mrf.mxu0
      %v1168 = vadd.f32 0.0, %v1167
      %v1169 = vpop.f32.mrf.mxu0
      %v1170 = vpop.f32.mrf.mxu0
      %v1171 = vpop.f32.mrf.mxu0
      %1172 = vdwg.mxu0
      %1174 = vrot.lane.b32.xlu0 %v490, 64
      %v1175 = vpop.permute.xlu0 %1174
      %1178 = vrot.lane.b32.xlu0 %v716, 64
      %v1179 = vpop.permute.xlu0 %1178
      %1182 = vrot.lane.b32.xlu0 %v942, 64
      %v1183 = vpop.permute.xlu0 %1182
      %1186 = vrot.lane.b32.xlu0 %v1168, 64
      %v1187 = vpop.permute.xlu0 %1186
      %v1189 = vsel %vm269, %v371, %v1175
      %v1190 = vsel %vm269, %v597, %v1179
      %v1191 = vsel %vm269, %v823, %v1183
      %v1192 = vsel %vm269, %v1049, %v1187
      %v1193 = vpack.c.bf16 %v1189, %v1189
      %v1194 = vpack.c.bf16 %v1190, %v1190
      %v1195 = vpack.c.bf16 %v1191, %v1191
      %v1196 = vpack.c.bf16 %v1192, %v1192
      %v1201 = vunpack.c.l.b16 %v1193
      %v1202 = vunpack.c.l.b16 %v1194
      %v1203 = vunpack.c.l.b16 %v1195
      %v1204 = vunpack.c.l.b16 %v1196
      %v1205 = vpack.c.b16 %v1202, %v1201
      %v1206 = vpack.c.b16 %v1204, %v1203
      %1209 = vst [vmem:[%s257] sm:$0xff] %v1205
      %1210 = vst [vmem:[%s257 + $0x8] sm:$0xff] %v1206
      %p1211 = scmp.lt.s32.totalorder %s15, 1
      %s1212 = scalar_select %p1211, %s15, 1
      %s1213 = smul.addr %s1212, 4
      %s1214 = smul.addr %s1213, 4
      %s1215 = scalar_lea.vmem %s4, %s1214
      // Predicated region
      $region37: #{bert_forward.27} parent=35 // pred_check
        %p1216 = pneg %p137
      $region38: #{bert_forward.27} parent=35 // pred_check_branch
        %1218 = sbr.rel (%p1216) target = $region40
      $region39: #{bert_forward.27} parent=35 // pred_region
        _
      $region40: #{bert_forward.27} parent=35 // pred_fallthru
        _
    $region36: #{bert_forward.27} parent=5 // pred_fallthru
      _
    %p1219 = scmp.le.s32.totalorder 2, %s10
    // Predicated region
    $region41: #{bert_forward.27} parent=5 // pred_check
      %p1220 = pneg %p1219
    $region42: #{bert_forward.27} parent=5 // pred_check_branch
      %1222 = sbr.rel (%p1220) target = $region44
    $region43: #{bert_forward.27} parent=5 // pred_region
      %s1223 = ssub.s32 %s10, 2
      // Predicated region
      $region45: #{bert_forward.27} parent=43 // pred_check
        %p1224 = pneg %p143
      $region46: #{bert_forward.27} parent=43 // pred_check_branch
        %1226 = sbr.rel (%p1224) target = $region48
      $region47: #{bert_forward.27} parent=43 // pred_region
        %p1227 = scmp.lt.s32.totalorder %s16, 1
        %s1228 = scalar_select %p1227, %s16, 1
        %s1229 = smul.addr %s1228, 4
        %s1230 = smul.addr %s1229, 4
        %s1231 = scalar_lea.vmem %s4, %s1230
      $region48: #{bert_forward.27} parent=43 // pred_fallthru
        _
    $region44: #{bert_forward.27} parent=5 // pred_fallthru
      _
  $region6: #{bert_forward.27} parent=0 // loop_footer
    %s14 = sadd.s32 1, %s10
  $region7: #{bert_forward.27} parent=0 // loop_footer_branch
    %9 = sbr.rel target = $region3
  $region8: #{bert_forward.27} parent=0 // loop_exit
    _

// kernel: bert_forward.28
$region0: #{bert_forward.28}
  #allocation0 [shape = 'u32[]', space=smem, size = 0x4, offset = 0x4, fixed_abs, tag = 'smem constant byte address 0x4 - core index']
  #allocation1 [shape = 'u32[144,128]{1,0:T(1,128)}', space=vmem, size = 0x12000, scoped, tag = 'internal scratch']
  %s0 = inlined_call_operand.vmem [shape: bf16[16,512], index: 0, kind: input, shape index: {}]
  %s1 = inlined_call_operand.vmem [shape: bf16[512,512], index: 1, kind: input, shape index: {}]
  %s2 = inlined_call_operand.vmem [shape: f32[1,512], index: 2, kind: input, shape index: {}]
  %s3 = inlined_call_operand.vmem [shape: f32[16,512], index: 3, kind: input, shape index: {}]
  %s4 = inlined_call_operand.vmem [shape: f32[1,512], index: 4, kind: input, shape index: {}]
  %s5 = inlined_call_operand.vmem [shape: f32[1,512], index: 5, kind: input, shape index: {}]
  %s6 = inlined_call_operand.vmem [shape: f32[16,512], index: 6, kind: output, shape index: {}]
  %s7 = sld [smem:[#allocation0]]
  $region57: #{bert_forward.28} parent=0
    _
  %s9 = ssub.s32 1, %s7
  %s10 = scalar_select 0, %s9, %s7
  loop: start=0, step=1, limit=4
  $region2: #{bert_forward.28} parent=0 // loop_pre_header
    _
  $region3: #{bert_forward.28} parent=0 // loop_header
    %s12 = sphi 0, %s16
    %p13 = scmp.ge.s32.totalorder %s12, 4
    %s22 = sphi 0, %s24
    %s25 = sphi 0, %s22
    %s26 = sphi 0, %s25
    %s42 = sphi 0, %s26
    %s46 = sphi 0, %s46
    %s48 = sphi 0, %s46
    %s49 = sphi 0, %s48
    %s63 = sphi 0, %s49
    %s67 = sphi 0, %s67
    %s69 = sphi 0, %s67
    %s70 = sphi 0, %s69
    %s84 = sphi 0, %s70
    %s90 = sphi 0, %s92
    %s93 = sphi 0, %s90
    %s94 = sphi 0, %s93
    %s110 = sphi 0, %s94
    %s114 = sphi 0, %s114
    %s116 = sphi 0, %s114
    %s117 = sphi 0, %s116
    %s131 = sphi 0, %s117
    %s135 = sphi 0, %s135
    %s137 = sphi 0, %s135
    %s138 = sphi 0, %s137
    %s152 = sphi 0, %s138
    %s158 = sphi 0, %s160
    %s161 = sphi 0, %s158
    %s162 = sphi 0, %s161
    %s178 = sphi 0, %s162
  $region4: #{bert_forward.28} parent=0 // loop_header_branch
    %15 = sbr.rel (%p13) target = $region8
  $region5: #{bert_forward.28} parent=0 // loop_body
    %s17 = ssub.s32 %s12, 1
    %s18 = ssub.s32 %s12, 2
    %s19 = sadd.s32 %s12, 1
    %s20 = ssub.s32 %s12, %s19
    %p21 = scmp.eq.s32.totalorder %s20, 0
    %s23 = sadd.s32 %s22, 1
    %s24 = scalar_select %p21, %s22, %s23
    %p27 = pneg %p21
    %p28 = scmp.eq.s32.totalorder %s12, 1
    %p29 = por %p27, %p28
    %p30 = scmp.ne.s32.totalorder %s22, %s25
    %p31 = scmp.eq.s32.totalorder %s12, 0
    %p32 = por %p30, %p31
    %p33 = scmp.ne.s32.totalorder %s22, %s25
    %p34 = scmp.eq.s32.totalorder %s17, 1
    %p35 = por %p33, %p34
    %p36 = scmp.ne.s32.totalorder %s25, %s26
    %p37 = scmp.eq.s32.totalorder %s17, 0
    %p38 = por %p36, %p37
    %p39 = scmp.ne.s32.totalorder %s25, %s26
    %p40 = scmp.eq.s32.totalorder %s18, 1
    %p41 = por %p39, %p40
    %p43 = scmp.ne.s32.totalorder %s26, %s42
    %p44 = scmp.eq.s32.totalorder %s18, 0
    %p45 = por %p43, %p44
    %s47 = sadd.s32 %s46, 1
    %p50 = scmp.eq.s32.totalorder %s12, 1
    %p51 = scmp.ne.s32.totalorder %s46, %s48
    %p52 = scmp.eq.s32.totalorder %s12, 0
    %p53 = por %p51, %p52
    %p54 = scmp.ne.s32.totalorder %s46, %s48
    %p55 = scmp.eq.s32.totalorder %s17, 1
    %p56 = por %p54, %p55
    %p57 = scmp.ne.s32.totalorder %s48, %s49
    %p58 = scmp.eq.s32.totalorder %s17, 0
    %p59 = por %p57, %p58
    %p60 = scmp.ne.s32.totalorder %s48, %s49
    %p61 = scmp.eq.s32.totalorder %s18, 1
    %p62 = por %p60, %p61
    %p64 = scmp.ne.s32.totalorder %s49, %s63
    %p65 = scmp.eq.s32.totalorder %s18, 0
    %p66 = por %p64, %p65
    %s68 = sadd.s32 %s67, 1
    %p71 = scmp.eq.s32.totalorder %s12, 1
    %p72 = scmp.ne.s32.totalorder %s67, %s69
    %p73 = scmp.eq.s32.totalorder %s12, 0
    %p74 = por %p72, %p73
    %p75 = scmp.ne.s32.totalorder %s67, %s69
    %p76 = scmp.eq.s32.totalorder %s17, 1
    %p77 = por %p75, %p76
    %p78 = scmp.ne.s32.totalorder %s69, %s70
    %p79 = scmp.eq.s32.totalorder %s17, 0
    %p80 = por %p78, %p79
    %p81 = scmp.ne.s32.totalorder %s69, %s70
    %p82 = scmp.eq.s32.totalorder %s18, 1
    %p83 = por %p81, %p82
    %p85 = scmp.ne.s32.totalorder %s70, %s84
    %p86 = scmp.eq.s32.totalorder %s18, 0
    %p87 = por %p85, %p86
    %s88 = ssub.s32 %s12, %s19
    %p89 = scmp.eq.s32.totalorder %s88, 0
    %s91 = sadd.s32 %s90, 1
    %s92 = scalar_select %p89, %s90, %s91
    %p95 = pneg %p89
    %p96 = scmp.eq.s32.totalorder %s12, 1
    %p97 = por %p95, %p96
    %p98 = scmp.ne.s32.totalorder %s90, %s93
    %p99 = scmp.eq.s32.totalorder %s12, 0
    %p100 = por %p98, %p99
    %p101 = scmp.ne.s32.totalorder %s90, %s93
    %p102 = scmp.eq.s32.totalorder %s17, 1
    %p103 = por %p101, %p102
    %p104 = scmp.ne.s32.totalorder %s93, %s94
    %p105 = scmp.eq.s32.totalorder %s17, 0
    %p106 = por %p104, %p105
    %p107 = scmp.ne.s32.totalorder %s93, %s94
    %p108 = scmp.eq.s32.totalorder %s18, 1
    %p109 = por %p107, %p108
    %p111 = scmp.ne.s32.totalorder %s94, %s110
    %p112 = scmp.eq.s32.totalorder %s18, 0
    %p113 = por %p111, %p112
    %s115 = sadd.s32 %s114, 1
    %p118 = scmp.eq.s32.totalorder %s12, 1
    %p119 = scmp.ne.s32.totalorder %s114, %s116
    %p120 = scmp.eq.s32.totalorder %s12, 0
    %p121 = por %p119, %p120
    %p122 = scmp.ne.s32.totalorder %s114, %s116
    %p123 = scmp.eq.s32.totalorder %s17, 1
    %p124 = por %p122, %p123
    %p125 = scmp.ne.s32.totalorder %s116, %s117
    %p126 = scmp.eq.s32.totalorder %s17, 0
    %p127 = por %p125, %p126
    %p128 = scmp.ne.s32.totalorder %s116, %s117
    %p129 = scmp.eq.s32.totalorder %s18, 1
    %p130 = por %p128, %p129
    %p132 = scmp.ne.s32.totalorder %s117, %s131
    %p133 = scmp.eq.s32.totalorder %s18, 0
    %p134 = por %p132, %p133
    %s136 = sadd.s32 %s135, 1
    %p139 = scmp.eq.s32.totalorder %s12, 1
    %p140 = scmp.ne.s32.totalorder %s135, %s137
    %p141 = scmp.eq.s32.totalorder %s12, 0
    %p142 = por %p140, %p141
    %p143 = scmp.ne.s32.totalorder %s135, %s137
    %p144 = scmp.eq.s32.totalorder %s17, 1
    %p145 = por %p143, %p144
    %p146 = scmp.ne.s32.totalorder %s137, %s138
    %p147 = scmp.eq.s32.totalorder %s17, 0
    %p148 = por %p146, %p147
    %p149 = scmp.ne.s32.totalorder %s137, %s138
    %p150 = scmp.eq.s32.totalorder %s18, 1
    %p151 = por %p149, %p150
    %p153 = scmp.ne.s32.totalorder %s138, %s152
    %p154 = scmp.eq.s32.totalorder %s18, 0
    %p155 = por %p153, %p154
    %s156 = ssub.s32 %s12, %s19
    %p157 = scmp.eq.s32.totalorder %s156, 0
    %s159 = sadd.s32 %s158, 1
    %s160 = scalar_select %p157, %s158, %s159
    %p163 = pneg %p157
    %p164 = scmp.eq.s32.totalorder %s12, 1
    %p165 = por %p163, %p164
    %p166 = scmp.ne.s32.totalorder %s158, %s161
    %p167 = scmp.eq.s32.totalorder %s12, 0
    %p168 = por %p166, %p167
    %p169 = scmp.ne.s32.totalorder %s158, %s161
    %p170 = scmp.eq.s32.totalorder %s17, 1
    %p171 = por %p169, %p170
    %p172 = scmp.ne.s32.totalorder %s161, %s162
    %p173 = scmp.eq.s32.totalorder %s17, 0
    %p174 = por %p172, %p173
    %p175 = scmp.ne.s32.totalorder %s161, %s162
    %p176 = scmp.eq.s32.totalorder %s18, 1
    %p177 = por %p175, %p176
    %p179 = scmp.ne.s32.totalorder %s162, %s178
    %p180 = scmp.eq.s32.totalorder %s18, 0
    %p181 = por %p179, %p180
    %p182 = scmp.le.s32.totalorder 1, %s12
    %p183 = scmp.lt.s32.totalorder %s12, 3
    %p184 = pnand %p182, %p183
    %p185 = pneg %p184
    // Predicated region
    $region9: #{bert_forward.28} parent=5 // pred_check
      _
    $region10: #{bert_forward.28} parent=5 // pred_check_branch
      %187 = sbr.rel (%p184) target = $region12
    $region11: #{bert_forward.28} parent=5 // pred_region
      %s188 = ssub.s32 %s12, 1
      // Predicated region
      $region13: #{bert_forward.28} parent=11 // pred_check
        %p189 = pneg %p59
      $region14: #{bert_forward.28} parent=11 // pred_check_branch
        %191 = sbr.rel (%p189) target = $region16
      $region15: #{bert_forward.28} parent=11 // pred_region
        _
      $region16: #{bert_forward.28} parent=11 // pred_fallthru
        _
      // Predicated region
      $region17: #{bert_forward.28} parent=11 // pred_check
        %p192 = pneg %p80
      $region18: #{bert_forward.28} parent=11 // pred_check_branch
        %194 = sbr.rel (%p192) target = $region20
      $region19: #{bert_forward.28} parent=11 // pred_region
        _
      $region20: #{bert_forward.28} parent=11 // pred_fallthru
        _
      // Predicated region
      $region21: #{bert_forward.28} parent=11 // pred_check
        %p195 = pneg %p127
      $region22: #{bert_forward.28} parent=11 // pred_check_branch
        %197 = sbr.rel (%p195) target = $region24
      $region23: #{bert_forward.28} parent=11 // pred_region
        _
      $region24: #{bert_forward.28} parent=11 // pred_fallthru
        _
      // Predicated region
      $region25: #{bert_forward.28} parent=11 // pred_check
        %p198 = pneg %p148
      $region26: #{bert_forward.28} parent=11 // pred_check_branch
        %200 = sbr.rel (%p198) target = $region28
      $region27: #{bert_forward.28} parent=11 // pred_region
        _
      $region28: #{bert_forward.28} parent=11 // pred_fallthru
        _
    $region12: #{bert_forward.28} parent=5 // pred_fallthru
      _
    %p201 = scmp.lt.s32.totalorder %s12, 2
    // Predicated region
    $region29: #{bert_forward.28} parent=5 // pred_check
      %p202 = pneg %p201
    $region30: #{bert_forward.28} parent=5 // pred_check_branch
      %204 = sbr.rel (%p202) target = $region32
    $region31: #{bert_forward.28} parent=5 // pred_region
      // Predicated region
      $region33: #{bert_forward.28} parent=31 // pred_check
        %p205 = pneg %p32
      $region34: #{bert_forward.28} parent=31 // pred_check_branch
        %207 = sbr.rel (%p205) target = $region36
      $region35: #{bert_forward.28} parent=31 // pred_region
        %p208 = scmp.lt.s32.totalorder %s12, 1
        %s209 = scalar_select %p208, %s12, 1
        %s210 = smul.addr %s209, 4
        %s211 = smul.addr %s210, 4
        %s212 = scalar_lea.vmem %s0, %s211
      $region36: #{bert_forward.28} parent=31 // pred_fallthru
        _
      // Predicated region
      $region37: #{bert_forward.28} parent=31 // pred_check
        %p213 = pneg %p100
      $region38: #{bert_forward.28} parent=31 // pred_check_branch
        %215 = sbr.rel (%p213) target = $region40
      $region39: #{bert_forward.28} parent=31 // pred_region
        %p216 = scmp.lt.s32.totalorder %s12, 1
        %s217 = scalar_select %p216, %s12, 1
        %s218 = smul.addr %s217, 4
        %s219 = smul.addr %s218, 8
        %s220 = scalar_lea.vmem %s3, %s219
      $region40: #{bert_forward.28} parent=31 // pred_fallthru
        _
    $region32: #{bert_forward.28} parent=5 // pred_fallthru
      _
    %p221 = scmp.le.s32.totalorder 1, %s12
    %p222 = scmp.lt.s32.totalorder %s12, 3
    %p223 = pnand %p221, %p222
    %p224 = pneg %p223
    // Predicated region
    $region41: #{bert_forward.28} parent=5 // pred_check
      _
    $region42: #{bert_forward.28} parent=5 // pred_check_branch
      %226 = sbr.rel (%p223) target = $region44
    $region43: #{bert_forward.28} parent=5 // pred_region
      %s227 = ssub.s32 %s12, 1
      %p228 = scmp.lt.s32.totalorder %s17, 1
      %s229 = scalar_select %p228, %s17, 1
      %s230 = smul.addr %s229, 4
      %s231 = smul.addr %s230, 4
      %s232 = scalar_lea.vmem %s0, %s231
      %p233 = pneg %p38
      %p234 = pneg %p35
      %p235 = pneg %p59
      %p236 = pneg %p56
      %p237 = pneg %p80
      %p238 = pneg %p77
      %p239 = scmp.lt.s32.totalorder %s17, 1
      %s240 = scalar_select %p239, %s17, 1
      %s241 = smul.addr %s240, 4
      %s242 = smul.addr %s241, 8
      %s243 = scalar_lea.vmem %s3, %s242
      %p244 = pneg %p106
      %p245 = pneg %p103
      %p246 = pneg %p127
      %p247 = pneg %p124
      %p248 = pneg %p148
      %p249 = pneg %p145
      %p250 = pneg %p174
      %p251 = pneg %p171
      %p252 = scmp.lt.s32.totalorder %s17, 1
      %s253 = scalar_select %p252, %s17, 1
      %s254 = smul.addr %s253, 4
      %s255 = smul.addr %s254, 8
      %s256 = scalar_lea.vmem %s6, %s255
      %p257 = scmp.lt.s32.totalorder %s17, 1
      %s258 = scalar_select %p257, %s17, 1
      %s259 = smul.addr %s258, 4
      %s260 = smul.addr %s259, 4
      %s261 = scalar_lea.vmem %s0, %s260
      %p262 = scmp.lt.s32.totalorder %s17, 1
      %s263 = scalar_select %p262, %s17, 1
      %s264 = smul.addr %s263, 4
      %s265 = smul.addr %s264, 8
      %s266 = scalar_lea.vmem %s3, %s265
      %p267 = scmp.lt.s32.totalorder %s17, 1
      %s268 = scalar_select %p267, %s17, 1
      %s269 = smul.addr %s268, 4
      %s270 = smul.addr %s269, 8
      %s271 = scalar_lea.vmem %s6, %s270
      %v272 = vld [vmem:[%s261] sm:$0xff]
      %v273 = vld [vmem:[%s261 + $0x8] sm:$0xff]
      %v274 = vld [vmem:[%s1] sm:$0xff]
      %v275 = vld [vmem:[%s1 + $0x8] sm:$0xff]
      %v276 = vld [vmem:[%s1 + $0x10] sm:$0xff]
      %v277 = vld [vmem:[%s1 + $0x18] sm:$0xff]
      %v278 = vld [vmem:[%s1 + $0x20] sm:$0xff]
      %v279 = vld [vmem:[%s1 + $0x28] sm:$0xff]
      %v280 = vld [vmem:[%s1 + $0x30] sm:$0xff]
      %v281 = vld [vmem:[%s1 + $0x38] sm:$0xff]
      %v282 = vld [vmem:[%s1 + $0x40] sm:$0xff]
      %v283 = vld [vmem:[%s1 + $0x48] sm:$0xff]
      %v284 = vld [vmem:[%s1 + $0x50] sm:$0xff]
      %v285 = vld [vmem:[%s1 + $0x58] sm:$0xff]
      %v286 = vld [vmem:[%s1 + $0x60] sm:$0xff]
      %v287 = vld [vmem:[%s1 + $0x68] sm:$0xff]
      %v288 = vld [vmem:[%s1 + $0x70] sm:$0xff]
      %v289 = vld [vmem:[%s1 + $0x78] sm:$0xff]
      %v290 = vld [vmem:[%s1 + $0x80] sm:$0xff]
      %v291 = vld [vmem:[%s1 + $0x88] sm:$0xff]
      %v292 = vld [vmem:[%s1 + $0x90] sm:$0xff]
      %v293 = vld [vmem:[%s1 + $0x98] sm:$0xff]
      %v294 = vld [vmem:[%s1 + $0xa0] sm:$0xff]
      %v295 = vld [vmem:[%s1 + $0xa8] sm:$0xff]
      %v296 = vld [vmem:[%s1 + $0xb0] sm:$0xff]
      %v297 = vld [vmem:[%s1 + $0xb8] sm:$0xff]
      %v298 = vld [vmem:[%s1 + $0xc0] sm:$0xff]
      %v299 = vld [vmem:[%s1 + $0xc8] sm:$0xff]
      %v300 = vld [vmem:[%s1 + $0xd0] sm:$0xff]
      %v301 = vld [vmem:[%s1 + $0xd8] sm:$0xff]
      %v302 = vld [vmem:[%s1 + $0xe0] sm:$0xff]
      %v303 = vld [vmem:[%s1 + $0xe8] sm:$0xff]
      %v304 = vld [vmem:[%s1 + $0xf0] sm:$0xff]
      %v305 = vld [vmem:[%s1 + $0xf8] sm:$0xff]
      %v306 = vld [vmem:[%s1 + $0x100] sm:$0xff]
      %v307 = vld [vmem:[%s1 + $0x108] sm:$0xff]
      %v308 = vld [vmem:[%s1 + $0x110] sm:$0xff]
      %v309 = vld [vmem:[%s1 + $0x118] sm:$0xff]
      %v310 = vld [vmem:[%s1 + $0x120] sm:$0xff]
      %v311 = vld [vmem:[%s1 + $0x128] sm:$0xff]
      %v312 = vld [vmem:[%s1 + $0x130] sm:$0xff]
      %v313 = vld [vmem:[%s1 + $0x138] sm:$0xff]
      %v314 = vld [vmem:[%s1 + $0x140] sm:$0xff]
      %v315 = vld [vmem:[%s1 + $0x148] sm:$0xff]
      %v316 = vld [vmem:[%s1 + $0x150] sm:$0xff]
      %v317 = vld [vmem:[%s1 + $0x158] sm:$0xff]
      %v318 = vld [vmem:[%s1 + $0x160] sm:$0xff]
      %v319 = vld [vmem:[%s1 + $0x168] sm:$0xff]
      %v320 = vld [vmem:[%s1 + $0x170] sm:$0xff]
      %v321 = vld [vmem:[%s1 + $0x178] sm:$0xff]
      %v322 = vld [vmem:[%s1 + $0x180] sm:$0xff]
      %v323 = vld [vmem:[%s1 + $0x188] sm:$0xff]
      %v324 = vld [vmem:[%s1 + $0x190] sm:$0xff]
      %v325 = vld [vmem:[%s1 + $0x198] sm:$0xff]
      %v326 = vld [vmem:[%s1 + $0x1a0] sm:$0xff]
      %v327 = vld [vmem:[%s1 + $0x1a8] sm:$0xff]
      %v328 = vld [vmem:[%s1 + $0x1b0] sm:$0xff]
      %v329 = vld [vmem:[%s1 + $0x1b8] sm:$0xff]
      %v330 = vld [vmem:[%s1 + $0x1c0] sm:$0xff]
      %v331 = vld [vmem:[%s1 + $0x1c8] sm:$0xff]
      %v332 = vld [vmem:[%s1 + $0x1d0] sm:$0xff]
      %v333 = vld [vmem:[%s1 + $0x1d8] sm:$0xff]
      %v334 = vld [vmem:[%s1 + $0x1e0] sm:$0xff]
      %v335 = vld [vmem:[%s1 + $0x1e8] sm:$0xff]
      %v336 = vld [vmem:[%s1 + $0x1f0] sm:$0xff]
      %v337 = vld [vmem:[%s1 + $0x1f8] sm:$0xff]
      %v338 = vld [vmem:[%s1 + $0x200] sm:$0xff]
      %v339 = vld [vmem:[%s1 + $0x208] sm:$0xff]
      %v340 = vld [vmem:[%s1 + $0x210] sm:$0xff]
      %v341 = vld [vmem:[%s1 + $0x218] sm:$0xff]
      %v342 = vld [vmem:[%s1 + $0x220] sm:$0xff]
      %v343 = vld [vmem:[%s1 + $0x228] sm:$0xff]
      %v344 = vld [vmem:[%s1 + $0x230] sm:$0xff]
      %v345 = vld [vmem:[%s1 + $0x238] sm:$0xff]
      %v346 = vld [vmem:[%s1 + $0x240] sm:$0xff]
      %v347 = vld [vmem:[%s1 + $0x248] sm:$0xff]
      %v348 = vld [vmem:[%s1 + $0x250] sm:$0xff]
      %v349 = vld [vmem:[%s1 + $0x258] sm:$0xff]
      %v350 = vld [vmem:[%s1 + $0x260] sm:$0xff]
      %v351 = vld [vmem:[%s1 + $0x268] sm:$0xff]
      %v352 = vld [vmem:[%s1 + $0x270] sm:$0xff]
      %v353 = vld [vmem:[%s1 + $0x278] sm:$0xff]
      %v354 = vld [vmem:[%s1 + $0x280] sm:$0xff]
      %v355 = vld [vmem:[%s1 + $0x288] sm:$0xff]
      %v356 = vld [vmem:[%s1 + $0x290] sm:$0xff]
      %v357 = vld [vmem:[%s1 + $0x298] sm:$0xff]
      %v358 = vld [vmem:[%s1 + $0x2a0] sm:$0xff]
      %v359 = vld [vmem:[%s1 + $0x2a8] sm:$0xff]
      %v360 = vld [vmem:[%s1 + $0x2b0] sm:$0xff]
      %v361 = vld [vmem:[%s1 + $0x2b8] sm:$0xff]
      %v362 = vld [vmem:[%s1 + $0x2c0] sm:$0xff]
      %v363 = vld [vmem:[%s1 + $0x2c8] sm:$0xff]
      %v364 = vld [vmem:[%s1 + $0x2d0] sm:$0xff]
      %v365 = vld [vmem:[%s1 + $0x2d8] sm:$0xff]
      %v366 = vld [vmem:[%s1 + $0x2e0] sm:$0xff]
      %v367 = vld [vmem:[%s1 + $0x2e8] sm:$0xff]
      %v368 = vld [vmem:[%s1 + $0x2f0] sm:$0xff]
      %v369 = vld [vmem:[%s1 + $0x2f8] sm:$0xff]
      %v370 = vld [vmem:[%s1 + $0x300] sm:$0xff]
      %v371 = vld [vmem:[%s1 + $0x308] sm:$0xff]
      %v372 = vld [vmem:[%s1 + $0x310] sm:$0xff]
      %v373 = vld [vmem:[%s1 + $0x318] sm:$0xff]
      %v374 = vld [vmem:[%s1 + $0x320] sm:$0xff]
      %v375 = vld [vmem:[%s1 + $0x328] sm:$0xff]
      %v376 = vld [vmem:[%s1 + $0x330] sm:$0xff]
      %v377 = vld [vmem:[%s1 + $0x338] sm:$0xff]
      %v378 = vld [vmem:[%s1 + $0x340] sm:$0xff]
      %v379 = vld [vmem:[%s1 + $0x348] sm:$0xff]
      %v380 = vld [vmem:[%s1 + $0x350] sm:$0xff]
      %v381 = vld [vmem:[%s1 + $0x358] sm:$0xff]
      %v382 = vld [vmem:[%s1 + $0x360] sm:$0xff]
      %v383 = vld [vmem:[%s1 + $0x368] sm:$0xff]
      %v384 = vld [vmem:[%s1 + $0x370] sm:$0xff]
      %v385 = vld [vmem:[%s1 + $0x378] sm:$0xff]
      %v386 = vld [vmem:[%s1 + $0x380] sm:$0xff]
      %v387 = vld [vmem:[%s1 + $0x388] sm:$0xff]
      %v388 = vld [vmem:[%s1 + $0x390] sm:$0xff]
      %v389 = vld [vmem:[%s1 + $0x398] sm:$0xff]
      %v390 = vld [vmem:[%s1 + $0x3a0] sm:$0xff]
      %v391 = vld [vmem:[%s1 + $0x3a8] sm:$0xff]
      %v392 = vld [vmem:[%s1 + $0x3b0] sm:$0xff]
      %v393 = vld [vmem:[%s1 + $0x3b8] sm:$0xff]
      %v394 = vld [vmem:[%s1 + $0x3c0] sm:$0xff]
      %v395 = vld [vmem:[%s1 + $0x3c8] sm:$0xff]
      %v396 = vld [vmem:[%s1 + $0x3d0] sm:$0xff]
      %v397 = vld [vmem:[%s1 + $0x3d8] sm:$0xff]
      %v398 = vld [vmem:[%s1 + $0x3e0] sm:$0xff]
      %v399 = vld [vmem:[%s1 + $0x3e8] sm:$0xff]
      %v400 = vld [vmem:[%s1 + $0x3f0] sm:$0xff]
      %v401 = vld [vmem:[%s1 + $0x3f8] sm:$0xff]
      %v402 = vld [vmem:[%s2] sm:$0xf]
      %v404 = vlaneseq
      %v405 = vshrl.u32 %v404, 7
      %v406 = vsub.s32 0, %v405
      %v407 = vrot.slane %v402, %v406
      %v408 = vlaneseq
      %v409 = vshrl.u32 %v408, 7
      %v410 = vsub.s32 1, %v409
      %v411 = vrot.slane %v402, %v410
      %v412 = vlaneseq
      %v413 = vshrl.u32 %v412, 7
      %v414 = vsub.s32 2, %v413
      %v415 = vrot.slane %v402, %v414
      %v416 = vlaneseq
      %v417 = vshrl.u32 %v416, 7
      %v418 = vsub.s32 3, %v417
      %v419 = vrot.slane %v402, %v418
      %v426 = vunpack.c.l.b16 %v272
      %v427 = vunpack.c.h.b16 %v272
      %v428 = vunpack.c.l.b16 %v273
      %v429 = vunpack.c.h.b16 %v273
      %v430 = vpack.c.b16 %v426, %v426
      %v431 = vpack.c.b16 %v427, %v427
      %v432 = vpack.c.b16 %v428, %v428
      %v433 = vpack.c.b16 %v429, %v429
      %v566 = vunpack.c.l.b16 %v274
      %v567 = vunpack.c.h.b16 %v274
      %v568 = vunpack.c.l.b16 %v275
      %v569 = vunpack.c.h.b16 %v275
      %v570 = vunpack.c.l.b16 %v276
      %v571 = vunpack.c.h.b16 %v276
      %v572 = vunpack.c.l.b16 %v277
      %v573 = vunpack.c.h.b16 %v277
      %v574 = vunpack.c.l.b16 %v278
      %v575 = vunpack.c.h.b16 %v278
      %v576 = vunpack.c.l.b16 %v279
      %v577 = vunpack.c.h.b16 %v279
      %v578 = vunpack.c.l.b16 %v280
      %v579 = vunpack.c.h.b16 %v280
      %v580 = vunpack.c.l.b16 %v281
      %v581 = vunpack.c.h.b16 %v281
      %v582 = vunpack.c.l.b16 %v282
      %v583 = vunpack.c.h.b16 %v282
      %v584 = vunpack.c.l.b16 %v283
      %v585 = vunpack.c.h.b16 %v283
      %v586 = vunpack.c.l.b16 %v284
      %v587 = vunpack.c.h.b16 %v284
      %v588 = vunpack.c.l.b16 %v285
      %v589 = vunpack.c.h.b16 %v285
      %v590 = vunpack.c.l.b16 %v286
      %v591 = vunpack.c.h.b16 %v286
      %v592 = vunpack.c.l.b16 %v287
      %v593 = vunpack.c.h.b16 %v287
      %v594 = vunpack.c.l.b16 %v288
      %v595 = vunpack.c.h.b16 %v288
      %v596 = vunpack.c.l.b16 %v289
      %v597 = vunpack.c.h.b16 %v289
      %v598 = vunpack.c.l.b16 %v290
      %v599 = vunpack.c.h.b16 %v290
      %v600 = vunpack.c.l.b16 %v291
      %v601 = vunpack.c.h.b16 %v291
      %v602 = vunpack.c.l.b16 %v292
      %v603 = vunpack.c.h.b16 %v292
      %v604 = vunpack.c.l.b16 %v293
      %v605 = vunpack.c.h.b16 %v293
      %v606 = vunpack.c.l.b16 %v294
      %v607 = vunpack.c.h.b16 %v294
      %v608 = vunpack.c.l.b16 %v295
      %v609 = vunpack.c.h.b16 %v295
      %v610 = vunpack.c.l.b16 %v296
      %v611 = vunpack.c.h.b16 %v296
      %v612 = vunpack.c.l.b16 %v297
      %v613 = vunpack.c.h.b16 %v297
      %v614 = vunpack.c.l.b16 %v298
      %v615 = vunpack.c.h.b16 %v298
      %v616 = vunpack.c.l.b16 %v299
      %v617 = vunpack.c.h.b16 %v299
      %v618 = vunpack.c.l.b16 %v300
      %v619 = vunpack.c.h.b16 %v300
      %v620 = vunpack.c.l.b16 %v301
      %v621 = vunpack.c.h.b16 %v301
      %v622 = vunpack.c.l.b16 %v302
      %v623 = vunpack.c.h.b16 %v302
      %v624 = vunpack.c.l.b16 %v303
      %v625 = vunpack.c.h.b16 %v303
      %v626 = vunpack.c.l.b16 %v304
      %v627 = vunpack.c.h.b16 %v304
      %v628 = vunpack.c.l.b16 %v305
      %v629 = vunpack.c.h.b16 %v305
      %v630 = vunpack.c.l.b16 %v306
      %v631 = vunpack.c.h.b16 %v306
      %v632 = vunpack.c.l.b16 %v307
      %v633 = vunpack.c.h.b16 %v307
      %v634 = vunpack.c.l.b16 %v308
      %v635 = vunpack.c.h.b16 %v308
      %v636 = vunpack.c.l.b16 %v309
      %v637 = vunpack.c.h.b16 %v309
      %v638 = vunpack.c.l.b16 %v310
      %v639 = vunpack.c.h.b16 %v310
      %v640 = vunpack.c.l.b16 %v311
      %v641 = vunpack.c.h.b16 %v311
      %v642 = vunpack.c.l.b16 %v312
      %v643 = vunpack.c.h.b16 %v312
      %v644 = vunpack.c.l.b16 %v313
      %v645 = vunpack.c.h.b16 %v313
      %v646 = vunpack.c.l.b16 %v314
      %v647 = vunpack.c.h.b16 %v314
      %v648 = vunpack.c.l.b16 %v315
      %v649 = vunpack.c.h.b16 %v315
      %v650 = vunpack.c.l.b16 %v316
      %v651 = vunpack.c.h.b16 %v316
      %v652 = vunpack.c.l.b16 %v317
      %v653 = vunpack.c.h.b16 %v317
      %v654 = vunpack.c.l.b16 %v318
      %v655 = vunpack.c.h.b16 %v318
      %v656 = vunpack.c.l.b16 %v319
      %v657 = vunpack.c.h.b16 %v319
      %v658 = vunpack.c.l.b16 %v320
      %v659 = vunpack.c.h.b16 %v320
      %v660 = vunpack.c.l.b16 %v321
      %v661 = vunpack.c.h.b16 %v321
      %v662 = vunpack.c.l.b16 %v322
      %v663 = vunpack.c.h.b16 %v322
      %v664 = vunpack.c.l.b16 %v323
      %v665 = vunpack.c.h.b16 %v323
      %v666 = vunpack.c.l.b16 %v324
      %v667 = vunpack.c.h.b16 %v324
      %v668 = vunpack.c.l.b16 %v325
      %v669 = vunpack.c.h.b16 %v325
      %v670 = vunpack.c.l.b16 %v326
      %v671 = vunpack.c.h.b16 %v326
      %v672 = vunpack.c.l.b16 %v327
      %v673 = vunpack.c.h.b16 %v327
      %v674 = vunpack.c.l.b16 %v328
      %v675 = vunpack.c.h.b16 %v328
      %v676 = vunpack.c.l.b16 %v329
      %v677 = vunpack.c.h.b16 %v329
      %v678 = vunpack.c.l.b16 %v330
      %v679 = vunpack.c.h.b16 %v330
      %v680 = vunpack.c.l.b16 %v331
      %v681 = vunpack.c.h.b16 %v331
      %v682 = vunpack.c.l.b16 %v332
      %v683 = vunpack.c.h.b16 %v332
      %v684 = vunpack.c.l.b16 %v333
      %v685 = vunpack.c.h.b16 %v333
      %v686 = vunpack.c.l.b16 %v334
      %v687 = vunpack.c.h.b16 %v334
      %v688 = vunpack.c.l.b16 %v335
      %v689 = vunpack.c.h.b16 %v335
      %v690 = vunpack.c.l.b16 %v336
      %v691 = vunpack.c.h.b16 %v336
      %v692 = vunpack.c.l.b16 %v337
      %v693 = vunpack.c.h.b16 %v337
      %v694 = vunpack.c.l.b16 %v338
      %v695 = vunpack.c.h.b16 %v338
      %v696 = vunpack.c.l.b16 %v339
      %v697 = vunpack.c.h.b16 %v339
      %v698 = vunpack.c.l.b16 %v340
      %v699 = vunpack.c.h.b16 %v340
      %v700 = vunpack.c.l.b16 %v341
      %v701 = vunpack.c.h.b16 %v341
      %v702 = vunpack.c.l.b16 %v342
      %v703 = vunpack.c.h.b16 %v342
      %v704 = vunpack.c.l.b16 %v343
      %v705 = vunpack.c.h.b16 %v343
      %v706 = vunpack.c.l.b16 %v344
      %v707 = vunpack.c.h.b16 %v344
      %v708 = vunpack.c.l.b16 %v345
      %v709 = vunpack.c.h.b16 %v345
      %v710 = vunpack.c.l.b16 %v346
      %v711 = vunpack.c.h.b16 %v346
      %v712 = vunpack.c.l.b16 %v347
      %v713 = vunpack.c.h.b16 %v347
      %v714 = vunpack.c.l.b16 %v348
      %v715 = vunpack.c.h.b16 %v348
      %v716 = vunpack.c.l.b16 %v349
      %v717 = vunpack.c.h.b16 %v349
      %v718 = vunpack.c.l.b16 %v350
      %v719 = vunpack.c.h.b16 %v350
      %v720 = vunpack.c.l.b16 %v351
      %v721 = vunpack.c.h.b16 %v351
      %v722 = vunpack.c.l.b16 %v352
      %v723 = vunpack.c.h.b16 %v352
      %v724 = vunpack.c.l.b16 %v353
      %v725 = vunpack.c.h.b16 %v353
      %v726 = vunpack.c.l.b16 %v354
      %v727 = vunpack.c.h.b16 %v354
      %v728 = vunpack.c.l.b16 %v355
      %v729 = vunpack.c.h.b16 %v355
      %v730 = vunpack.c.l.b16 %v356
      %v731 = vunpack.c.h.b16 %v356
      %v732 = vunpack.c.l.b16 %v357
      %v733 = vunpack.c.h.b16 %v357
      %v734 = vunpack.c.l.b16 %v358
      %v735 = vunpack.c.h.b16 %v358
      %v736 = vunpack.c.l.b16 %v359
      %v737 = vunpack.c.h.b16 %v359
      %v738 = vunpack.c.l.b16 %v360
      %v739 = vunpack.c.h.b16 %v360
      %v740 = vunpack.c.l.b16 %v361
      %v741 = vunpack.c.h.b16 %v361
      %v742 = vunpack.c.l.b16 %v362
      %v743 = vunpack.c.h.b16 %v362
      %v744 = vunpack.c.l.b16 %v363
      %v745 = vunpack.c.h.b16 %v363
      %v746 = vunpack.c.l.b16 %v364
      %v747 = vunpack.c.h.b16 %v364
      %v748 = vunpack.c.l.b16 %v365
      %v749 = vunpack.c.h.b16 %v365
      %v750 = vunpack.c.l.b16 %v366
      %v751 = vunpack.c.h.b16 %v366
      %v752 = vunpack.c.l.b16 %v367
      %v753 = vunpack.c.h.b16 %v367
      %v754 = vunpack.c.l.b16 %v368
      %v755 = vunpack.c.h.b16 %v368
      %v756 = vunpack.c.l.b16 %v369
      %v757 = vunpack.c.h.b16 %v369
      %v758 = vunpack.c.l.b16 %v370
      %v759 = vunpack.c.h.b16 %v370
      %v760 = vunpack.c.l.b16 %v371
      %v761 = vunpack.c.h.b16 %v371
      %v762 = vunpack.c.l.b16 %v372
      %v763 = vunpack.c.h.b16 %v372
      %v764 = vunpack.c.l.b16 %v373
      %v765 = vunpack.c.h.b16 %v373
      %v766 = vunpack.c.l.b16 %v374
      %v767 = vunpack.c.h.b16 %v374
      %v768 = vunpack.c.l.b16 %v375
      %v769 = vunpack.c.h.b16 %v375
      %v770 = vunpack.c.l.b16 %v376
      %v771 = vunpack.c.h.b16 %v376
      %v772 = vunpack.c.l.b16 %v377
      %v773 = vunpack.c.h.b16 %v377
      %v774 = vunpack.c.l.b16 %v378
      %v775 = vunpack.c.h.b16 %v378
      %v776 = vunpack.c.l.b16 %v379
      %v777 = vunpack.c.h.b16 %v379
      %v778 = vunpack.c.l.b16 %v380
      %v779 = vunpack.c.h.b16 %v380
      %v780 = vunpack.c.l.b16 %v381
      %v781 = vunpack.c.h.b16 %v381
      %v782 = vunpack.c.l.b16 %v382
      %v783 = vunpack.c.h.b16 %v382
      %v784 = vunpack.c.l.b16 %v383
      %v785 = vunpack.c.h.b16 %v383
      %v786 = vunpack.c.l.b16 %v384
      %v787 = vunpack.c.h.b16 %v384
      %v788 = vunpack.c.l.b16 %v385
      %v789 = vunpack.c.h.b16 %v385
      %v790 = vunpack.c.l.b16 %v386
      %v791 = vunpack.c.h.b16 %v386
      %v792 = vunpack.c.l.b16 %v387
      %v793 = vunpack.c.h.b16 %v387
      %v794 = vunpack.c.l.b16 %v388
      %v795 = vunpack.c.h.b16 %v388
      %v796 = vunpack.c.l.b16 %v389
      %v797 = vunpack.c.h.b16 %v389
      %v798 = vunpack.c.l.b16 %v390
      %v799 = vunpack.c.h.b16 %v390
      %v800 = vunpack.c.l.b16 %v391
      %v801 = vunpack.c.h.b16 %v391
      %v802 = vunpack.c.l.b16 %v392
      %v803 = vunpack.c.h.b16 %v392
      %v804 = vunpack.c.l.b16 %v393
      %v805 = vunpack.c.h.b16 %v393
      %v806 = vunpack.c.l.b16 %v394
      %v807 = vunpack.c.h.b16 %v394
      %v808 = vunpack.c.l.b16 %v395
      %v809 = vunpack.c.h.b16 %v395
      %v810 = vunpack.c.l.b16 %v396
      %v811 = vunpack.c.h.b16 %v396
      %v812 = vunpack.c.l.b16 %v397
      %v813 = vunpack.c.h.b16 %v397
      %v814 = vunpack.c.l.b16 %v398
      %v815 = vunpack.c.h.b16 %v398
      %v816 = vunpack.c.l.b16 %v399
      %v817 = vunpack.c.h.b16 %v399
      %v818 = vunpack.c.l.b16 %v400
      %v819 = vunpack.c.h.b16 %v400
      %v820 = vunpack.c.l.b16 %v401
      %v821 = vunpack.c.h.b16 %v401
      %v822 = vpack.c.b16 %v570, %v566
      %v823 = vpack.c.b16 %v571, %v567
      %v824 = vpack.c.b16 %v572, %v568
      %v825 = vpack.c.b16 %v573, %v569
      %v826 = vpack.c.b16 %v578, %v574
      %v827 = vpack.c.b16 %v579, %v575
      %v828 = vpack.c.b16 %v580, %v576
      %v829 = vpack.c.b16 %v581, %v577
      %v830 = vpack.c.b16 %v586, %v582
      %v831 = vpack.c.b16 %v587, %v583
      %v832 = vpack.c.b16 %v588, %v584
      %v833 = vpack.c.b16 %v589, %v585
      %v834 = vpack.c.b16 %v594, %v590
      %v835 = vpack.c.b16 %v595, %v591
      %v836 = vpack.c.b16 %v596, %v592
      %v837 = vpack.c.b16 %v597, %v593
      %v838 = vpack.c.b16 %v602, %v598
      %v839 = vpack.c.b16 %v603, %v599
      %v840 = vpack.c.b16 %v604, %v600
      %v841 = vpack.c.b16 %v605, %v601
      %v842 = vpack.c.b16 %v610, %v606
      %v843 = vpack.c.b16 %v611, %v607
      %v844 = vpack.c.b16 %v612, %v608
      %v845 = vpack.c.b16 %v613, %v609
      %v846 = vpack.c.b16 %v618, %v614
      %v847 = vpack.c.b16 %v619, %v615
      %v848 = vpack.c.b16 %v620, %v616
      %v849 = vpack.c.b16 %v621, %v617
      %v850 = vpack.c.b16 %v626, %v622
      %v851 = vpack.c.b16 %v627, %v623
      %v852 = vpack.c.b16 %v628, %v624
      %v853 = vpack.c.b16 %v629, %v625
      %v854 = vpack.c.b16 %v634, %v630
      %v855 = vpack.c.b16 %v635, %v631
      %v856 = vpack.c.b16 %v636, %v632
      %v857 = vpack.c.b16 %v637, %v633
      %v858 = vpack.c.b16 %v642, %v638
      %v859 = vpack.c.b16 %v643, %v639
      %v860 = vpack.c.b16 %v644, %v640
      %v861 = vpack.c.b16 %v645, %v641
      %v862 = vpack.c.b16 %v650, %v646
      %v863 = vpack.c.b16 %v651, %v647
      %v864 = vpack.c.b16 %v652, %v648
      %v865 = vpack.c.b16 %v653, %v649
      %v866 = vpack.c.b16 %v658, %v654
      %v867 = vpack.c.b16 %v659, %v655
      %v868 = vpack.c.b16 %v660, %v656
      %v869 = vpack.c.b16 %v661, %v657
      %v870 = vpack.c.b16 %v666, %v662
      %v871 = vpack.c.b16 %v667, %v663
      %v872 = vpack.c.b16 %v668, %v664
      %v873 = vpack.c.b16 %v669, %v665
      %v874 = vpack.c.b16 %v674, %v670
      %v875 = vpack.c.b16 %v675, %v671
      %v876 = vpack.c.b16 %v676, %v672
      %v877 = vpack.c.b16 %v677, %v673
      %v878 = vpack.c.b16 %v682, %v678
      %v879 = vpack.c.b16 %v683, %v679
      %v880 = vpack.c.b16 %v684, %v680
      %v881 = vpack.c.b16 %v685, %v681
      %v882 = vpack.c.b16 %v690, %v686
      %v883 = vpack.c.b16 %v691, %v687
      %v884 = vpack.c.b16 %v692, %v688
      %v885 = vpack.c.b16 %v693, %v689
      %v886 = vpack.c.b16 %v698, %v694
      %v887 = vpack.c.b16 %v699, %v695
      %v888 = vpack.c.b16 %v700, %v696
      %v889 = vpack.c.b16 %v701, %v697
      %v890 = vpack.c.b16 %v706, %v702
      %v891 = vpack.c.b16 %v707, %v703
      %v892 = vpack.c.b16 %v708, %v704
      %v893 = vpack.c.b16 %v709, %v705
      %v894 = vpack.c.b16 %v714, %v710
      %v895 = vpack.c.b16 %v715, %v711
      %v896 = vpack.c.b16 %v716, %v712
      %v897 = vpack.c.b16 %v717, %v713
      %v898 = vpack.c.b16 %v722, %v718
      %v899 = vpack.c.b16 %v723, %v719
      %v900 = vpack.c.b16 %v724, %v720
      %v901 = vpack.c.b16 %v725, %v721
      %v902 = vpack.c.b16 %v730, %v726
      %v903 = vpack.c.b16 %v731, %v727
      %v904 = vpack.c.b16 %v732, %v728
      %v905 = vpack.c.b16 %v733, %v729
      %v906 = vpack.c.b16 %v738, %v734
      %v907 = vpack.c.b16 %v739, %v735
      %v908 = vpack.c.b16 %v740, %v736
      %v909 = vpack.c.b16 %v741, %v737
      %v910 = vpack.c.b16 %v746, %v742
      %v911 = vpack.c.b16 %v747, %v743
      %v912 = vpack.c.b16 %v748, %v744
      %v913 = vpack.c.b16 %v749, %v745
      %v914 = vpack.c.b16 %v754, %v750
      %v915 = vpack.c.b16 %v755, %v751
      %v916 = vpack.c.b16 %v756, %v752
      %v917 = vpack.c.b16 %v757, %v753
      %v918 = vpack.c.b16 %v762, %v758
      %v919 = vpack.c.b16 %v763, %v759
      %v920 = vpack.c.b16 %v764, %v760
      %v921 = vpack.c.b16 %v765, %v761
      %v922 = vpack.c.b16 %v770, %v766
      %v923 = vpack.c.b16 %v771, %v767
      %v924 = vpack.c.b16 %v772, %v768
      %v925 = vpack.c.b16 %v773, %v769
      %v926 = vpack.c.b16 %v778, %v774
      %v927 = vpack.c.b16 %v779, %v775
      %v928 = vpack.c.b16 %v780, %v776
      %v929 = vpack.c.b16 %v781, %v777
      %v930 = vpack.c.b16 %v786, %v782
      %v931 = vpack.c.b16 %v787, %v783
      %v932 = vpack.c.b16 %v788, %v784
      %v933 = vpack.c.b16 %v789, %v785
      %v934 = vpack.c.b16 %v794, %v790
      %v935 = vpack.c.b16 %v795, %v791
      %v936 = vpack.c.b16 %v796, %v792
      %v937 = vpack.c.b16 %v797, %v793
      %v938 = vpack.c.b16 %v802, %v798
      %v939 = vpack.c.b16 %v803, %v799
      %v940 = vpack.c.b16 %v804, %v800
      %v941 = vpack.c.b16 %v805, %v801
      %v942 = vpack.c.b16 %v810, %v806
      %v943 = vpack.c.b16 %v811, %v807
      %v944 = vpack.c.b16 %v812, %v808
      %v945 = vpack.c.b16 %v813, %v809
      %v946 = vpack.c.b16 %v818, %v814
      %v947 = vpack.c.b16 %v819, %v815
      %v948 = vpack.c.b16 %v820, %v816
      %v949 = vpack.c.b16 %v821, %v817
      %1078 = vmatprep.subr.bf16.mxu0 %v851
      %1079 = vmatpush1.bf16.msra.mxu0 %v850
      %1080 = vmatprep.subr.bf16.mxu0 %v847
      %1081 = vmatpush1.bf16.msra.mxu0 %v846
      %1082 = vmatprep.subr.bf16.mxu0 %v843
      %1083 = vmatpush1.bf16.msra.mxu0 %v842
      %1084 = vmatprep.subr.bf16.mxu0 %v839
      %1085 = vmatpush1.bf16.msra.mxu0 %v838
      %1086 = vmatprep.subr.bf16.mxu0 %v835
      %1087 = vmatpush1.bf16.msra.mxu0 %v834
      %1088 = vmatprep.subr.bf16.mxu0 %v831
      %1089 = vmatpush1.bf16.msra.mxu0 %v830
      %1090 = vmatprep.subr.bf16.mxu0 %v827
      %1091 = vmatpush1.bf16.msra.mxu0 %v826
      %1092 = vmatprep.subr.bf16.mxu0 %v823
      %1093 = vmatpush1.bf16.msra.mxu0 %v822
      %1094 = vmatprep.subr.bf16.mxu0 %v883
      %1095 = vmatpush2.bf16.msra.mxu0 %v882
      %1096 = vmatprep.subr.bf16.mxu0 %v879
      %1097 = vmatpush2.bf16.msra.mxu0 %v878
      %1098 = vmatprep.subr.bf16.mxu0 %v875
      %1099 = vmatpush2.bf16.msra.mxu0 %v874
      %1100 = vmatprep.subr.bf16.mxu0 %v871
      %1101 = vmatpush2.bf16.msra.mxu0 %v870
      %1102 = vmatprep.subr.bf16.mxu0 %v867
      %1103 = vmatpush2.bf16.msra.mxu0 %v866
      %1104 = vmatprep.subr.bf16.mxu0 %v863
      %1105 = vmatpush2.bf16.msra.mxu0 %v862
      %1106 = vmatprep.subr.bf16.mxu0 %v859
      %1107 = vmatpush2.bf16.msra.mxu0 %v858
      %1108 = vmatprep.subr.bf16.mxu0 %v855
      %1109 = vmatpush2.bf16.msra.mxu0 %v854
      %1110 = vmatprep.mubr.bf16.mxu0 %v431
      %1111 = vmatmul.mubr.bf16.gmra.mxu0 %v430
      %v1112 = vpop.f32.mrf.mxu0
      %v1113 = vadd.f32 %v407, %v1112
      %v1114 = vpop.f32.mrf.mxu0
      %v1115 = vadd.f32 %v411, %v1114
      %v1116 = vpop.f32.mrf.mxu0
      %v1117 = vpop.f32.mrf.mxu0
      %1118 = vdwg.mxu0
      %1119 = vmatprep.subr.bf16.mxu0 %v915
      %1120 = vmatpush1.bf16.msra.mxu0 %v914
      %1121 = vmatprep.subr.bf16.mxu0 %v911
      %1122 = vmatpush1.bf16.msra.mxu0 %v910
      %1123 = vmatprep.subr.bf16.mxu0 %v907
      %1124 = vmatpush1.bf16.msra.mxu0 %v906
      %1125 = vmatprep.subr.bf16.mxu0 %v903
      %1126 = vmatpush1.bf16.msra.mxu0 %v902
      %1127 = vmatprep.subr.bf16.mxu0 %v899
      %1128 = vmatpush1.bf16.msra.mxu0 %v898
      %1129 = vmatprep.subr.bf16.mxu0 %v895
      %1130 = vmatpush1.bf16.msra.mxu0 %v894
      %1131 = vmatprep.subr.bf16.mxu0 %v891
      %1132 = vmatpush1.bf16.msra.mxu0 %v890
      %1133 = vmatprep.subr.bf16.mxu0 %v887
      %1134 = vmatpush1.bf16.msra.mxu0 %v886
      %1135 = vmatprep.subr.bf16.mxu0 %v947
      %1136 = vmatpush2.bf16.msra.mxu0 %v946
      %1137 = vmatprep.subr.bf16.mxu0 %v943
      %1138 = vmatpush2.bf16.msra.mxu0 %v942
      %1139 = vmatprep.subr.bf16.mxu0 %v939
      %1140 = vmatpush2.bf16.msra.mxu0 %v938
      %1141 = vmatprep.subr.bf16.mxu0 %v935
      %1142 = vmatpush2.bf16.msra.mxu0 %v934
      %1143 = vmatprep.subr.bf16.mxu0 %v931
      %1144 = vmatpush2.bf16.msra.mxu0 %v930
      %1145 = vmatprep.subr.bf16.mxu0 %v927
      %1146 = vmatpush2.bf16.msra.mxu0 %v926
      %1147 = vmatprep.subr.bf16.mxu0 %v923
      %1148 = vmatpush2.bf16.msra.mxu0 %v922
      %1149 = vmatprep.subr.bf16.mxu0 %v919
      %1150 = vmatpush2.bf16.msra.mxu0 %v918
      %1151 = vmatprep.mubr.bf16.mxu0 %v433
      %1152 = vmatmul.mubr.bf16.gmra.mxu0 %v432
      %v1153 = vpop.f32.mrf.mxu0
      %v1154 = vadd.f32 %v1113, %v1153
      %v1155 = vpop.f32.mrf.mxu0
      %v1156 = vadd.f32 %v1115, %v1155
      %v1157 = vpop.f32.mrf.mxu0
      %v1158 = vpop.f32.mrf.mxu0
      %1159 = vdwg.mxu0
      %1160 = vmatprep.subr.bf16.mxu0 %v853
      %1161 = vmatpush1.bf16.msra.mxu0 %v852
      %1162 = vmatprep.subr.bf16.mxu0 %v849
      %1163 = vmatpush1.bf16.msra.mxu0 %v848
      %1164 = vmatprep.subr.bf16.mxu0 %v845
      %1165 = vmatpush1.bf16.msra.mxu0 %v844
      %1166 = vmatprep.subr.bf16.mxu0 %v841
      %1167 = vmatpush1.bf16.msra.mxu0 %v840
      %1168 = vmatprep.subr.bf16.mxu0 %v837
      %1169 = vmatpush1.bf16.msra.mxu0 %v836
      %1170 = vmatprep.subr.bf16.mxu0 %v833
      %1171 = vmatpush1.bf16.msra.mxu0 %v832
      %1172 = vmatprep.subr.bf16.mxu0 %v829
      %1173 = vmatpush1.bf16.msra.mxu0 %v828
      %1174 = vmatprep.subr.bf16.mxu0 %v825
      %1175 = vmatpush1.bf16.msra.mxu0 %v824
      %1176 = vmatprep.subr.bf16.mxu0 %v885
      %1177 = vmatpush2.bf16.msra.mxu0 %v884
      %1178 = vmatprep.subr.bf16.mxu0 %v881
      %1179 = vmatpush2.bf16.msra.mxu0 %v880
      %1180 = vmatprep.subr.bf16.mxu0 %v877
      %1181 = vmatpush2.bf16.msra.mxu0 %v876
      %1182 = vmatprep.subr.bf16.mxu0 %v873
      %1183 = vmatpush2.bf16.msra.mxu0 %v872
      %1184 = vmatprep.subr.bf16.mxu0 %v869
      %1185 = vmatpush2.bf16.msra.mxu0 %v868
      %1186 = vmatprep.subr.bf16.mxu0 %v865
      %1187 = vmatpush2.bf16.msra.mxu0 %v864
      %1188 = vmatprep.subr.bf16.mxu0 %v861
      %1189 = vmatpush2.bf16.msra.mxu0 %v860
      %1190 = vmatprep.subr.bf16.mxu0 %v857
      %1191 = vmatpush2.bf16.msra.mxu0 %v856
      %1192 = vmatprep.mubr.bf16.mxu0 %v431
      %1193 = vmatmul.mubr.bf16.gmra.mxu0 %v430
      %v1194 = vpop.f32.mrf.mxu0
      %v1195 = vadd.f32 %v415, %v1194
      %v1196 = vpop.f32.mrf.mxu0
      %v1197 = vadd.f32 %v419, %v1196
      %v1198 = vpop.f32.mrf.mxu0
      %v1199 = vpop.f32.mrf.mxu0
      %1200 = vdwg.mxu0
      %1201 = vmatprep.subr.bf16.mxu0 %v917
      %1202 = vmatpush1.bf16.msra.mxu0 %v916
      %1203 = vmatprep.subr.bf16.mxu0 %v913
      %1204 = vmatpush1.bf16.msra.mxu0 %v912
      %1205 = vmatprep.subr.bf16.mxu0 %v909
      %1206 = vmatpush1.bf16.msra.mxu0 %v908
      %1207 = vmatprep.subr.bf16.mxu0 %v905
      %1208 = vmatpush1.bf16.msra.mxu0 %v904
      %1209 = vmatprep.subr.bf16.mxu0 %v901
      %1210 = vmatpush1.bf16.msra.mxu0 %v900
      %1211 = vmatprep.subr.bf16.mxu0 %v897
      %1212 = vmatpush1.bf16.msra.mxu0 %v896
      %1213 = vmatprep.subr.bf16.mxu0 %v893
      %1214 = vmatpush1.bf16.msra.mxu0 %v892
      %1215 = vmatprep.subr.bf16.mxu0 %v889
      %1216 = vmatpush1.bf16.msra.mxu0 %v888
      %1217 = vmatprep.subr.bf16.mxu0 %v949
      %1218 = vmatpush2.bf16.msra.mxu0 %v948
      %1219 = vmatprep.subr.bf16.mxu0 %v945
      %1220 = vmatpush2.bf16.msra.mxu0 %v944
      %1221 = vmatprep.subr.bf16.mxu0 %v941
      %1222 = vmatpush2.bf16.msra.mxu0 %v940
      %1223 = vmatprep.subr.bf16.mxu0 %v937
      %1224 = vmatpush2.bf16.msra.mxu0 %v936
      %1225 = vmatprep.subr.bf16.mxu0 %v933
      %1226 = vmatpush2.bf16.msra.mxu0 %v932
      %1227 = vmatprep.subr.bf16.mxu0 %v929
      %1228 = vmatpush2.bf16.msra.mxu0 %v928
      %1229 = vmatprep.subr.bf16.mxu0 %v925
      %1230 = vmatpush2.bf16.msra.mxu0 %v924
      %1231 = vmatprep.subr.bf16.mxu0 %v921
      %1232 = vmatpush2.bf16.msra.mxu0 %v920
      %1233 = vmatprep.mubr.bf16.mxu0 %v433
      %1234 = vmatmul.mubr.bf16.gmra.mxu0 %v432
      %v1235 = vpop.f32.mrf.mxu0
      %v1236 = vadd.f32 %v1195, %v1235
      %v1237 = vpop.f32.mrf.mxu0
      %v1238 = vadd.f32 %v1197, %v1237
      %v1239 = vpop.f32.mrf.mxu0
      %v1240 = vpop.f32.mrf.mxu0
      %1241 = vdwg.mxu0
      %v1242 = vld [vmem:[%s266] sm:$0xff]
      %v1243 = vld [vmem:[%s266 + $0x8] sm:$0xff]
      %v1244 = vld [vmem:[%s266 + $0x10] sm:$0xff]
      %v1245 = vld [vmem:[%s266 + $0x18] sm:$0xff]
      %v1246 = vadd.f32 %v1154, %v1242
      %v1247 = vadd.f32 %v1156, %v1243
      %v1248 = vadd.f32 %v1236, %v1244
      %v1249 = vadd.f32 %v1238, %v1245
      %v1250 = vadd.f32 %v1246, %v1247
      %v1251 = vadd.f32 %v1250, %v1248
      %v1252 = vadd.f32 %v1251, %v1249
      %1253 = vadd.xlane.f32.xlu0 %v1252
      %v1254 = vpop.xlane.xlu0 %1253
      %v1255 = vrcp.pop 512.0
      %v1256 = vmul.f32 %v1254, %v1255
      %v1257 = vsub.f32 %v1246, %v1256
      %v1258 = vsub.f32 %v1247, %v1256
      %v1259 = vsub.f32 %v1248, %v1256
      %v1260 = vsub.f32 %v1249, %v1256
      %v1261 = vmul.f32 %v1257, %v1257
      %v1262 = vmul.f32 %v1258, %v1258
      %v1263 = vmul.f32 %v1259, %v1259
      %v1264 = vmul.f32 %v1260, %v1260
      %v1265 = vadd.f32 %v1261, %v1262
      %v1266 = vadd.f32 %v1265, %v1263
      %v1267 = vadd.f32 %v1266, %v1264
      %1268 = vadd.xlane.f32.xlu0 %v1267
      %v1269 = vpop.xlane.xlu0 %1268
      %v1270 = vmul.f32 %v1269, %v1255
      %v1271 = vadd.f32 %v1270, 1e-12
      %v1272 = vrsqrt.pop %v1271
      %v1273 = vmul.f32 %v1257, %v1272
      %v1274 = vmul.f32 %v1258, %v1272
      %v1275 = vmul.f32 %v1259, %v1272
      %v1276 = vmul.f32 %v1260, %v1272
      %v1277 = vld [vmem:[%s4] sm:$0xf]
      %v1279 = vlaneseq
      %v1280 = vshrl.u32 %v1279, 7
      %v1281 = vsub.s32 0, %v1280
      %v1282 = vrot.slane %v1277, %v1281
      %v1283 = vlaneseq
      %v1284 = vshrl.u32 %v1283, 7
      %v1285 = vsub.s32 1, %v1284
      %v1286 = vrot.slane %v1277, %v1285
      %v1287 = vlaneseq
      %v1288 = vshrl.u32 %v1287, 7
      %v1289 = vsub.s32 2, %v1288
      %v1290 = vrot.slane %v1277, %v1289
      %v1291 = vlaneseq
      %v1292 = vshrl.u32 %v1291, 7
      %v1293 = vsub.s32 3, %v1292
      %v1294 = vrot.slane %v1277, %v1293
      %v1299 = vmul.f32 %v1273, %v1282
      %v1300 = vmul.f32 %v1274, %v1286
      %v1301 = vmul.f32 %v1275, %v1290
      %v1302 = vmul.f32 %v1276, %v1294
      %v1303 = vld [vmem:[%s5] sm:$0xf]
      %v1305 = vlaneseq
      %v1306 = vshrl.u32 %v1305, 7
      %v1307 = vsub.s32 0, %v1306
      %v1308 = vrot.slane %v1303, %v1307
      %v1309 = vlaneseq
      %v1310 = vshrl.u32 %v1309, 7
      %v1311 = vsub.s32 1, %v1310
      %v1312 = vrot.slane %v1303, %v1311
      %v1313 = vlaneseq
      %v1314 = vshrl.u32 %v1313, 7
      %v1315 = vsub.s32 2, %v1314
      %v1316 = vrot.slane %v1303, %v1315
      %v1317 = vlaneseq
      %v1318 = vshrl.u32 %v1317, 7
      %v1319 = vsub.s32 3, %v1318
      %v1320 = vrot.slane %v1303, %v1319
      %v1325 = vadd.f32 %v1299, %v1308
      %v1326 = vadd.f32 %v1300, %v1312
      %v1327 = vadd.f32 %v1301, %v1316
      %v1328 = vadd.f32 %v1302, %v1320
      %1329 = vst [vmem:[%s271] sm:$0xff] %v1325
      %1330 = vst [vmem:[%s271 + $0x8] sm:$0xff] %v1326
      %1331 = vst [vmem:[%s271 + $0x10] sm:$0xff] %v1327
      %1332 = vst [vmem:[%s271 + $0x18] sm:$0xff] %v1328
      %p1333 = scmp.lt.s32.totalorder %s17, 1
      %s1334 = scalar_select %p1333, %s17, 1
      %s1335 = smul.addr %s1334, 4
      %s1336 = smul.addr %s1335, 8
      %s1337 = scalar_lea.vmem %s6, %s1336
      // Predicated region
      $region45: #{bert_forward.28} parent=43 // pred_check
        %p1338 = pneg %p171
      $region46: #{bert_forward.28} parent=43 // pred_check_branch
        %1340 = sbr.rel (%p1338) target = $region48
      $region47: #{bert_forward.28} parent=43 // pred_region
        _
      $region48: #{bert_forward.28} parent=43 // pred_fallthru
        _
    $region44: #{bert_forward.28} parent=5 // pred_fallthru
      _
    %p1341 = scmp.le.s32.totalorder 2, %s12
    // Predicated region
    $region49: #{bert_forward.28} parent=5 // pred_check
      %p1342 = pneg %p1341
    $region50: #{bert_forward.28} parent=5 // pred_check_branch
      %1344 = sbr.rel (%p1342) target = $region52
    $region51: #{bert_forward.28} parent=5 // pred_region
      %s1345 = ssub.s32 %s12, 2
      // Predicated region
      $region53: #{bert_forward.28} parent=51 // pred_check
        %p1346 = pneg %p177
      $region54: #{bert_forward.28} parent=51 // pred_check_branch
        %1348 = sbr.rel (%p1346) target = $region56
      $region55: #{bert_forward.28} parent=51 // pred_region
        %p1349 = scmp.lt.s32.totalorder %s18, 1
        %s1350 = scalar_select %p1349, %s18, 1
        %s1351 = smul.addr %s1350, 4
        %s1352 = smul.addr %s1351, 8
        %s1353 = scalar_lea.vmem %s6, %s1352
      $region56: #{bert_forward.28} parent=51 // pred_fallthru
        _
    $region52: #{bert_forward.28} parent=5 // pred_fallthru
      _
  $region6: #{bert_forward.28} parent=0 // loop_footer
    %s16 = sadd.s32 1, %s12
  $region7: #{bert_forward.28} parent=0 // loop_footer_branch
    %11 = sbr.rel target = $region3
  $region8: #{bert_forward.28} parent=0 // loop_exit
    _

// kernel: bert_forward.26
$region0: #{bert_forward.26}
  #allocation0 [shape = 'u32[]', space=smem, size = 0x4, offset = 0x4, fixed_abs, tag = 'smem constant byte address 0x4 - core index']
  #allocation1 [shape = 'u32[144,128]{1,0:T(1,128)}', space=vmem, size = 0x12000, scoped, tag = 'internal scratch']
  %s0 = inlined_call_operand.vmem [shape: f32[16,512], index: 0, kind: input, shape index: {}]
  %s1 = inlined_call_operand.vmem [shape: bf16[512,1536], index: 1, kind: input, shape index: {}]
  %s2 = inlined_call_operand.vmem [shape: f32[1,1536], index: 2, kind: input, shape index: {}]
  %s3 = inlined_call_operand.vmem [shape: bf16[16,1536], index: 3, kind: output, shape index: {}]
  %s4 = sld [smem:[#allocation0]]
  $region45: #{bert_forward.26} parent=0
    _
  %s6 = ssub.s32 1, %s4
  %s7 = scalar_select 0, %s6, %s4
  loop: start=0, step=1, limit=4
  $region2: #{bert_forward.26} parent=0 // loop_pre_header
    _
  $region3: #{bert_forward.26} parent=0 // loop_header
    %s9 = sphi 0, %s13
    %p10 = scmp.ge.s32.totalorder %s9, 4
    %s19 = sphi 0, %s21
    %s22 = sphi 0, %s19
    %s23 = sphi 0, %s22
    %s39 = sphi 0, %s23
    %s43 = sphi 0, %s43
    %s45 = sphi 0, %s43
    %s46 = sphi 0, %s45
    %s60 = sphi 0, %s46
    %s64 = sphi 0, %s64
    %s66 = sphi 0, %s64
    %s67 = sphi 0, %s66
    %s81 = sphi 0, %s67
    %s87 = sphi 0, %s89
    %s90 = sphi 0, %s87
    %s91 = sphi 0, %s90
    %s107 = sphi 0, %s91
  $region4: #{bert_forward.26} parent=0 // loop_header_branch
    %12 = sbr.rel (%p10) target = $region8
  $region5: #{bert_forward.26} parent=0 // loop_body
    %s14 = ssub.s32 %s9, 1
    %s15 = ssub.s32 %s9, 2
    %s16 = sadd.s32 %s9, 1
    %s17 = ssub.s32 %s9, %s16
    %p18 = scmp.eq.s32.totalorder %s17, 0
    %s20 = sadd.s32 %s19, 1
    %s21 = scalar_select %p18, %s19, %s20
    %p24 = pneg %p18
    %p25 = scmp.eq.s32.totalorder %s9, 1
    %p26 = por %p24, %p25
    %p27 = scmp.ne.s32.totalorder %s19, %s22
    %p28 = scmp.eq.s32.totalorder %s9, 0
    %p29 = por %p27, %p28
    %p30 = scmp.ne.s32.totalorder %s19, %s22
    %p31 = scmp.eq.s32.totalorder %s14, 1
    %p32 = por %p30, %p31
    %p33 = scmp.ne.s32.totalorder %s22, %s23
    %p34 = scmp.eq.s32.totalorder %s14, 0
    %p35 = por %p33, %p34
    %p36 = scmp.ne.s32.totalorder %s22, %s23
    %p37 = scmp.eq.s32.totalorder %s15, 1
    %p38 = por %p36, %p37
    %p40 = scmp.ne.s32.totalorder %s23, %s39
    %p41 = scmp.eq.s32.totalorder %s15, 0
    %p42 = por %p40, %p41
    %s44 = sadd.s32 %s43, 1
    %p47 = scmp.eq.s32.totalorder %s9, 1
    %p48 = scmp.ne.s32.totalorder %s43, %s45
    %p49 = scmp.eq.s32.totalorder %s9, 0
    %p50 = por %p48, %p49
    %p51 = scmp.ne.s32.totalorder %s43, %s45
    %p52 = scmp.eq.s32.totalorder %s14, 1
    %p53 = por %p51, %p52
    %p54 = scmp.ne.s32.totalorder %s45, %s46
    %p55 = scmp.eq.s32.totalorder %s14, 0
    %p56 = por %p54, %p55
    %p57 = scmp.ne.s32.totalorder %s45, %s46
    %p58 = scmp.eq.s32.totalorder %s15, 1
    %p59 = por %p57, %p58
    %p61 = scmp.ne.s32.totalorder %s46, %s60
    %p62 = scmp.eq.s32.totalorder %s15, 0
    %p63 = por %p61, %p62
    %s65 = sadd.s32 %s64, 1
    %p68 = scmp.eq.s32.totalorder %s9, 1
    %p69 = scmp.ne.s32.totalorder %s64, %s66
    %p70 = scmp.eq.s32.totalorder %s9, 0
    %p71 = por %p69, %p70
    %p72 = scmp.ne.s32.totalorder %s64, %s66
    %p73 = scmp.eq.s32.totalorder %s14, 1
    %p74 = por %p72, %p73
    %p75 = scmp.ne.s32.totalorder %s66, %s67
    %p76 = scmp.eq.s32.totalorder %s14, 0
    %p77 = por %p75, %p76
    %p78 = scmp.ne.s32.totalorder %s66, %s67
    %p79 = scmp.eq.s32.totalorder %s15, 1
    %p80 = por %p78, %p79
    %p82 = scmp.ne.s32.totalorder %s67, %s81
    %p83 = scmp.eq.s32.totalorder %s15, 0
    %p84 = por %p82, %p83
    %s85 = ssub.s32 %s9, %s16
    %p86 = scmp.eq.s32.totalorder %s85, 0
    %s88 = sadd.s32 %s87, 1
    %s89 = scalar_select %p86, %s87, %s88
    %p92 = pneg %p86
    %p93 = scmp.eq.s32.totalorder %s9, 1
    %p94 = por %p92, %p93
    %p95 = scmp.ne.s32.totalorder %s87, %s90
    %p96 = scmp.eq.s32.totalorder %s9, 0
    %p97 = por %p95, %p96
    %p98 = scmp.ne.s32.totalorder %s87, %s90
    %p99 = scmp.eq.s32.totalorder %s14, 1
    %p100 = por %p98, %p99
    %p101 = scmp.ne.s32.totalorder %s90, %s91
    %p102 = scmp.eq.s32.totalorder %s14, 0
    %p103 = por %p101, %p102
    %p104 = scmp.ne.s32.totalorder %s90, %s91
    %p105 = scmp.eq.s32.totalorder %s15, 1
    %p106 = por %p104, %p105
    %p108 = scmp.ne.s32.totalorder %s91, %s107
    %p109 = scmp.eq.s32.totalorder %s15, 0
    %p110 = por %p108, %p109
    %p111 = scmp.le.s32.totalorder 1, %s9
    %p112 = scmp.lt.s32.totalorder %s9, 3
    %p113 = pnand %p111, %p112
    %p114 = pneg %p113
    // Predicated region
    $region9: #{bert_forward.26} parent=5 // pred_check
      _
    $region10: #{bert_forward.26} parent=5 // pred_check_branch
      %116 = sbr.rel (%p113) target = $region12
    $region11: #{bert_forward.26} parent=5 // pred_region
      %s117 = ssub.s32 %s9, 1
      // Predicated region
      $region13: #{bert_forward.26} parent=11 // pred_check
        %p118 = pneg %p56
      $region14: #{bert_forward.26} parent=11 // pred_check_branch
        %120 = sbr.rel (%p118) target = $region16
      $region15: #{bert_forward.26} parent=11 // pred_region
        _
      $region16: #{bert_forward.26} parent=11 // pred_fallthru
        _
      // Predicated region
      $region17: #{bert_forward.26} parent=11 // pred_check
        %p121 = pneg %p77
      $region18: #{bert_forward.26} parent=11 // pred_check_branch
        %123 = sbr.rel (%p121) target = $region20
      $region19: #{bert_forward.26} parent=11 // pred_region
        _
      $region20: #{bert_forward.26} parent=11 // pred_fallthru
        _
    $region12: #{bert_forward.26} parent=5 // pred_fallthru
      _
    %p124 = scmp.lt.s32.totalorder %s9, 2
    // Predicated region
    $region21: #{bert_forward.26} parent=5 // pred_check
      %p125 = pneg %p124
    $region22: #{bert_forward.26} parent=5 // pred_check_branch
      %127 = sbr.rel (%p125) target = $region24
    $region23: #{bert_forward.26} parent=5 // pred_region
      // Predicated region
      $region25: #{bert_forward.26} parent=23 // pred_check
        %p128 = pneg %p29
      $region26: #{bert_forward.26} parent=23 // pred_check_branch
        %130 = sbr.rel (%p128) target = $region28
      $region27: #{bert_forward.26} parent=23 // pred_region
        %p131 = scmp.lt.s32.totalorder %s9, 1
        %s132 = scalar_select %p131, %s9, 1
        %s133 = smul.addr %s132, 4
        %s134 = smul.addr %s133, 8
        %s135 = scalar_lea.vmem %s0, %s134
      $region28: #{bert_forward.26} parent=23 // pred_fallthru
        _
    $region24: #{bert_forward.26} parent=5 // pred_fallthru
      _
    %p136 = scmp.le.s32.totalorder 1, %s9
    %p137 = scmp.lt.s32.totalorder %s9, 3
    %p138 = pnand %p136, %p137
    %p139 = pneg %p138
    // Predicated region
    $region29: #{bert_forward.26} parent=5 // pred_check
      _
    $region30: #{bert_forward.26} parent=5 // pred_check_branch
      %141 = sbr.rel (%p138) target = $region32
    $region31: #{bert_forward.26} parent=5 // pred_region
      %s142 = ssub.s32 %s9, 1
      %p143 = scmp.lt.s32.totalorder %s14, 1
      %s144 = scalar_select %p143, %s14, 1
      %s145 = smul.addr %s144, 4
      %s146 = smul.addr %s145, 8
      %s147 = scalar_lea.vmem %s0, %s146
      %p148 = pneg %p35
      %p149 = pneg %p32
      %p150 = pneg %p56
      %p151 = pneg %p53
      %p152 = pneg %p77
      %p153 = pneg %p74
      %p154 = pneg %p103
      %p155 = pneg %p100
      %p156 = scmp.lt.s32.totalorder %s14, 1
      %s157 = scalar_select %p156, %s14, 1
      %s158 = smul.addr %s157, 12
      %s159 = smul.addr %s158, 4
      %s160 = scalar_lea.vmem %s3, %s159
      %p161 = scmp.lt.s32.totalorder %s14, 1
      %s162 = scalar_select %p161, %s14, 1
      %s163 = smul.addr %s162, 4
      %s164 = smul.addr %s163, 8
      %s165 = scalar_lea.vmem %s0, %s164
      %p166 = scmp.lt.s32.totalorder %s14, 1
      %s167 = scalar_select %p166, %s14, 1
      %s168 = smul.addr %s167, 12
      %s169 = smul.addr %s168, 4
      %s170 = scalar_lea.vmem %s3, %s169
      %v171 = vld [vmem:[%s165] sm:$0xff]
      %v172 = vld [vmem:[%s165 + $0x8] sm:$0xff]
      %v173 = vld [vmem:[%s165 + $0x10] sm:$0xff]
      %v174 = vld [vmem:[%s165 + $0x18] sm:$0xff]
      %v175 = vpack.c.bf16 %v171, %v171
      %v176 = vpack.c.bf16 %v172, %v172
      %v177 = vpack.c.bf16 %v173, %v173
      %v178 = vpack.c.bf16 %v174, %v174
      %v179 = vld [vmem:[%s1] sm:$0xff]
      %v180 = vld [vmem:[%s1 + $0x8] sm:$0xff]
      %v181 = vld [vmem:[%s1 + $0x10] sm:$0xff]
      %v182 = vld [vmem:[%s1 + $0x18] sm:$0xff]
      %v183 = vld [vmem:[%s1 + $0x20] sm:$0xff]
      %v184 = vld [vmem:[%s1 + $0x28] sm:$0xff]
      %v185 = vld [vmem:[%s1 + $0x30] sm:$0xff]
      %v186 = vld [vmem:[%s1 + $0x38] sm:$0xff]
      %v187 = vld [vmem:[%s1 + $0x40] sm:$0xff]
      %v188 = vld [vmem:[%s1 + $0x48] sm:$0xff]
      %v189 = vld [vmem:[%s1 + $0x50] sm:$0xff]
      %v190 = vld [vmem:[%s1 + $0x58] sm:$0xff]
      %v191 = vld [vmem:[%s1 + $0x60] sm:$0xff]
      %v192 = vld [vmem:[%s1 + $0x68] sm:$0xff]
      %v193 = vld [vmem:[%s1 + $0x70] sm:$0xff]
      %v194 = vld [vmem:[%s1 + $0x78] sm:$0xff]
      %v195 = vld [vmem:[%s1 + $0x80] sm:$0xff]
      %v196 = vld [vmem:[%s1 + $0x88] sm:$0xff]
      %v197 = vld [vmem:[%s1 + $0x90] sm:$0xff]
      %v198 = vld [vmem:[%s1 + $0x98] sm:$0xff]
      %v199 = vld [vmem:[%s1 + $0xa0] sm:$0xff]
      %v200 = vld [vmem:[%s1 + $0xa8] sm:$0xff]
      %v201 = vld [vmem:[%s1 + $0xb0] sm:$0xff]
      %v202 = vld [vmem:[%s1 + $0xb8] sm:$0xff]
      %v203 = vld [vmem:[%s1 + $0xc0] sm:$0xff]
      %v204 = vld [vmem:[%s1 + $0xc8] sm:$0xff]
      %v205 = vld [vmem:[%s1 + $0xd0] sm:$0xff]
      %v206 = vld [vmem:[%s1 + $0xd8] sm:$0xff]
      %v207 = vld [vmem:[%s1 + $0xe0] sm:$0xff]
      %v208 = vld [vmem:[%s1 + $0xe8] sm:$0xff]
      %v209 = vld [vmem:[%s1 + $0xf0] sm:$0xff]
      %v210 = vld [vmem:[%s1 + $0xf8] sm:$0xff]
      %v211 = vld [vmem:[%s1 + $0x100] sm:$0xff]
      %v212 = vld [vmem:[%s1 + $0x108] sm:$0xff]
      %v213 = vld [vmem:[%s1 + $0x110] sm:$0xff]
      %v214 = vld [vmem:[%s1 + $0x118] sm:$0xff]
      %v215 = vld [vmem:[%s1 + $0x120] sm:$0xff]
      %v216 = vld [vmem:[%s1 + $0x128] sm:$0xff]
      %v217 = vld [vmem:[%s1 + $0x130] sm:$0xff]
      %v218 = vld [vmem:[%s1 + $0x138] sm:$0xff]
      %v219 = vld [vmem:[%s1 + $0x140] sm:$0xff]
      %v220 = vld [vmem:[%s1 + $0x148] sm:$0xff]
      %v221 = vld [vmem:[%s1 + $0x150] sm:$0xff]
      %v222 = vld [vmem:[%s1 + $0x158] sm:$0xff]
      %v223 = vld [vmem:[%s1 + $0x160] sm:$0xff]
      %v224 = vld [vmem:[%s1 + $0x168] sm:$0xff]
      %v225 = vld [vmem:[%s1 + $0x170] sm:$0xff]
      %v226 = vld [vmem:[%s1 + $0x178] sm:$0xff]
      %v227 = vld [vmem:[%s1 + $0x180] sm:$0xff]
      %v228 = vld [vmem:[%s1 + $0x188] sm:$0xff]
      %v229 = vld [vmem:[%s1 + $0x190] sm:$0xff]
      %v230 = vld [vmem:[%s1 + $0x198] sm:$0xff]
      %v231 = vld [vmem:[%s1 + $0x1a0] sm:$0xff]
      %v232 = vld [vmem:[%s1 + $0x1a8] sm:$0xff]
      %v233 = vld [vmem:[%s1 + $0x1b0] sm:$0xff]
      %v234 = vld [vmem:[%s1 + $0x1b8] sm:$0xff]
      %v235 = vld [vmem:[%s1 + $0x1c0] sm:$0xff]
      %v236 = vld [vmem:[%s1 + $0x1c8] sm:$0xff]
      %v237 = vld [vmem:[%s1 + $0x1d0] sm:$0xff]
      %v238 = vld [vmem:[%s1 + $0x1d8] sm:$0xff]
      %v239 = vld [vmem:[%s1 + $0x1e0] sm:$0xff]
      %v240 = vld [vmem:[%s1 + $0x1e8] sm:$0xff]
      %v241 = vld [vmem:[%s1 + $0x1f0] sm:$0xff]
      %v242 = vld [vmem:[%s1 + $0x1f8] sm:$0xff]
      %v243 = vld [vmem:[%s1 + $0x200] sm:$0xff]
      %v244 = vld [vmem:[%s1 + $0x208] sm:$0xff]
      %v245 = vld [vmem:[%s1 + $0x210] sm:$0xff]
      %v246 = vld [vmem:[%s1 + $0x218] sm:$0xff]
      %v247 = vld [vmem:[%s1 + $0x220] sm:$0xff]
      %v248 = vld [vmem:[%s1 + $0x228] sm:$0xff]
      %v249 = vld [vmem:[%s1 + $0x230] sm:$0xff]
      %v250 = vld [vmem:[%s1 + $0x238] sm:$0xff]
      %v251 = vld [vmem:[%s1 + $0x240] sm:$0xff]
      %v252 = vld [vmem:[%s1 + $0x248] sm:$0xff]
      %v253 = vld [vmem:[%s1 + $0x250] sm:$0xff]
      %v254 = vld [vmem:[%s1 + $0x258] sm:$0xff]
      %v255 = vld [vmem:[%s1 + $0x260] sm:$0xff]
      %v256 = vld [vmem:[%s1 + $0x268] sm:$0xff]
      %v257 = vld [vmem:[%s1 + $0x270] sm:$0xff]
      %v258 = vld [vmem:[%s1 + $0x278] sm:$0xff]
      %v259 = vld [vmem:[%s1 + $0x280] sm:$0xff]
      %v260 = vld [vmem:[%s1 + $0x288] sm:$0xff]
      %v261 = vld [vmem:[%s1 + $0x290] sm:$0xff]
      %v262 = vld [vmem:[%s1 + $0x298] sm:$0xff]
      %v263 = vld [vmem:[%s1 + $0x2a0] sm:$0xff]
      %v264 = vld [vmem:[%s1 + $0x2a8] sm:$0xff]
      %v265 = vld [vmem:[%s1 + $0x2b0] sm:$0xff]
      %v266 = vld [vmem:[%s1 + $0x2b8] sm:$0xff]
      %v267 = vld [vmem:[%s1 + $0x2c0] sm:$0xff]
      %v268 = vld [vmem:[%s1 + $0x2c8] sm:$0xff]
      %v269 = vld [vmem:[%s1 + $0x2d0] sm:$0xff]
      %v270 = vld [vmem:[%s1 + $0x2d8] sm:$0xff]
      %v271 = vld [vmem:[%s1 + $0x2e0] sm:$0xff]
      %v272 = vld [vmem:[%s1 + $0x2e8] sm:$0xff]
      %v273 = vld [vmem:[%s1 + $0x2f0] sm:$0xff]
      %v274 = vld [vmem:[%s1 + $0x2f8] sm:$0xff]
      %v275 = vld [vmem:[%s1 + $0x300] sm:$0xff]
      %v276 = vld [vmem:[%s1 + $0x308] sm:$0xff]
      %v277 = vld [vmem:[%s1 + $0x310] sm:$0xff]
      %v278 = vld [vmem:[%s1 + $0x318] sm:$0xff]
      %v279 = vld [vmem:[%s1 + $0x320] sm:$0xff]
      %v280 = vld [vmem:[%s1 + $0x328] sm:$0xff]
      %v281 = vld [vmem:[%s1 + $0x330] sm:$0xff]
      %v282 = vld [vmem:[%s1 + $0x338] sm:$0xff]
      %v283 = vld [vmem:[%s1 + $0x340] sm:$0xff]
      %v284 = vld [vmem:[%s1 + $0x348] sm:$0xff]
      %v285 = vld [vmem:[%s1 + $0x350] sm:$0xff]
      %v286 = vld [vmem:[%s1 + $0x358] sm:$0xff]
      %v287 = vld [vmem:[%s1 + $0x360] sm:$0xff]
      %v288 = vld [vmem:[%s1 + $0x368] sm:$0xff]
      %v289 = vld [vmem:[%s1 + $0x370] sm:$0xff]
      %v290 = vld [vmem:[%s1 + $0x378] sm:$0xff]
      %v291 = vld [vmem:[%s1 + $0x380] sm:$0xff]
      %v292 = vld [vmem:[%s1 + $0x388] sm:$0xff]
      %v293 = vld [vmem:[%s1 + $0x390] sm:$0xff]
      %v294 = vld [vmem:[%s1 + $0x398] sm:$0xff]
      %v295 = vld [vmem:[%s1 + $0x3a0] sm:$0xff]
      %v296 = vld [vmem:[%s1 + $0x3a8] sm:$0xff]
      %v297 = vld [vmem:[%s1 + $0x3b0] sm:$0xff]
      %v298 = vld [vmem:[%s1 + $0x3b8] sm:$0xff]
      %v299 = vld [vmem:[%s1 + $0x3c0] sm:$0xff]
      %v300 = vld [vmem:[%s1 + $0x3c8] sm:$0xff]
      %v301 = vld [vmem:[%s1 + $0x3d0] sm:$0xff]
      %v302 = vld [vmem:[%s1 + $0x3d8] sm:$0xff]
      %v303 = vld [vmem:[%s1 + $0x3e0] sm:$0xff]
      %v304 = vld [vmem:[%s1 + $0x3e8] sm:$0xff]
      %v305 = vld [vmem:[%s1 + $0x3f0] sm:$0xff]
      %v306 = vld [vmem:[%s1 + $0x3f8] sm:$0xff]
      %v307 = vld [vmem:[%s1 + $0x400] sm:$0xff]
      %v308 = vld [vmem:[%s1 + $0x408] sm:$0xff]
      %v309 = vld [vmem:[%s1 + $0x410] sm:$0xff]
      %v310 = vld [vmem:[%s1 + $0x418] sm:$0xff]
      %v311 = vld [vmem:[%s1 + $0x420] sm:$0xff]
      %v312 = vld [vmem:[%s1 + $0x428] sm:$0xff]
      %v313 = vld [vmem:[%s1 + $0x430] sm:$0xff]
      %v314 = vld [vmem:[%s1 + $0x438] sm:$0xff]
      %v315 = vld [vmem:[%s1 + $0x440] sm:$0xff]
      %v316 = vld [vmem:[%s1 + $0x448] sm:$0xff]
      %v317 = vld [vmem:[%s1 + $0x450] sm:$0xff]
      %v318 = vld [vmem:[%s1 + $0x458] sm:$0xff]
      %v319 = vld [vmem:[%s1 + $0x460] sm:$0xff]
      %v320 = vld [vmem:[%s1 + $0x468] sm:$0xff]
      %v321 = vld [vmem:[%s1 + $0x470] sm:$0xff]
      %v322 = vld [vmem:[%s1 + $0x478] sm:$0xff]
      %v323 = vld [vmem:[%s1 + $0x480] sm:$0xff]
      %v324 = vld [vmem:[%s1 + $0x488] sm:$0xff]
      %v325 = vld [vmem:[%s1 + $0x490] sm:$0xff]
      %v326 = vld [vmem:[%s1 + $0x498] sm:$0xff]
      %v327 = vld [vmem:[%s1 + $0x4a0] sm:$0xff]
      %v328 = vld [vmem:[%s1 + $0x4a8] sm:$0xff]
      %v329 = vld [vmem:[%s1 + $0x4b0] sm:$0xff]
      %v330 = vld [vmem:[%s1 + $0x4b8] sm:$0xff]
      %v331 = vld [vmem:[%s1 + $0x4c0] sm:$0xff]
      %v332 = vld [vmem:[%s1 + $0x4c8] sm:$0xff]
      %v333 = vld [vmem:[%s1 + $0x4d0] sm:$0xff]
      %v334 = vld [vmem:[%s1 + $0x4d8] sm:$0xff]
      %v335 = vld [vmem:[%s1 + $0x4e0] sm:$0xff]
      %v336 = vld [vmem:[%s1 + $0x4e8] sm:$0xff]
      %v337 = vld [vmem:[%s1 + $0x4f0] sm:$0xff]
      %v338 = vld [vmem:[%s1 + $0x4f8] sm:$0xff]
      %v339 = vld [vmem:[%s1 + $0x500] sm:$0xff]
      %v340 = vld [vmem:[%s1 + $0x508] sm:$0xff]
      %v341 = vld [vmem:[%s1 + $0x510] sm:$0xff]
      %v342 = vld [vmem:[%s1 + $0x518] sm:$0xff]
      %v343 = vld [vmem:[%s1 + $0x520] sm:$0xff]
      %v344 = vld [vmem:[%s1 + $0x528] sm:$0xff]
      %v345 = vld [vmem:[%s1 + $0x530] sm:$0xff]
      %v346 = vld [vmem:[%s1 + $0x538] sm:$0xff]
      %v347 = vld [vmem:[%s1 + $0x540] sm:$0xff]
      %v348 = vld [vmem:[%s1 + $0x548] sm:$0xff]
      %v349 = vld [vmem:[%s1 + $0x550] sm:$0xff]
      %v350 = vld [vmem:[%s1 + $0x558] sm:$0xff]
      %v351 = vld [vmem:[%s1 + $0x560] sm:$0xff]
      %v352 = vld [vmem:[%s1 + $0x568] sm:$0xff]
      %v353 = vld [vmem:[%s1 + $0x570] sm:$0xff]
      %v354 = vld [vmem:[%s1 + $0x578] sm:$0xff]
      %v355 = vld [vmem:[%s1 + $0x580] sm:$0xff]
      %v356 = vld [vmem:[%s1 + $0x588] sm:$0xff]
      %v357 = vld [vmem:[%s1 + $0x590] sm:$0xff]
      %v358 = vld [vmem:[%s1 + $0x598] sm:$0xff]
      %v359 = vld [vmem:[%s1 + $0x5a0] sm:$0xff]
      %v360 = vld [vmem:[%s1 + $0x5a8] sm:$0xff]
      %v361 = vld [vmem:[%s1 + $0x5b0] sm:$0xff]
      %v362 = vld [vmem:[%s1 + $0x5b8] sm:$0xff]
      %v363 = vld [vmem:[%s1 + $0x5c0] sm:$0xff]
      %v364 = vld [vmem:[%s1 + $0x5c8] sm:$0xff]
      %v365 = vld [vmem:[%s1 + $0x5d0] sm:$0xff]
      %v366 = vld [vmem:[%s1 + $0x5d8] sm:$0xff]
      %v367 = vld [vmem:[%s1 + $0x5e0] sm:$0xff]
      %v368 = vld [vmem:[%s1 + $0x5e8] sm:$0xff]
      %v369 = vld [vmem:[%s1 + $0x5f0] sm:$0xff]
      %v370 = vld [vmem:[%s1 + $0x5f8] sm:$0xff]
      %v371 = vld [vmem:[%s1 + $0x600] sm:$0xff]
      %v372 = vld [vmem:[%s1 + $0x608] sm:$0xff]
      %v373 = vld [vmem:[%s1 + $0x610] sm:$0xff]
      %v374 = vld [vmem:[%s1 + $0x618] sm:$0xff]
      %v375 = vld [vmem:[%s1 + $0x620] sm:$0xff]
      %v376 = vld [vmem:[%s1 + $0x628] sm:$0xff]
      %v377 = vld [vmem:[%s1 + $0x630] sm:$0xff]
      %v378 = vld [vmem:[%s1 + $0x638] sm:$0xff]
      %v379 = vld [vmem:[%s1 + $0x640] sm:$0xff]
      %v380 = vld [vmem:[%s1 + $0x648] sm:$0xff]
      %v381 = vld [vmem:[%s1 + $0x650] sm:$0xff]
      %v382 = vld [vmem:[%s1 + $0x658] sm:$0xff]
      %v383 = vld [vmem:[%s1 + $0x660] sm:$0xff]
      %v384 = vld [vmem:[%s1 + $0x668] sm:$0xff]
      %v385 = vld [vmem:[%s1 + $0x670] sm:$0xff]
      %v386 = vld [vmem:[%s1 + $0x678] sm:$0xff]
      %v387 = vld [vmem:[%s1 + $0x680] sm:$0xff]
      %v388 = vld [vmem:[%s1 + $0x688] sm:$0xff]
      %v389 = vld [vmem:[%s1 + $0x690] sm:$0xff]
      %v390 = vld [vmem:[%s1 + $0x698] sm:$0xff]
      %v391 = vld [vmem:[%s1 + $0x6a0] sm:$0xff]
      %v392 = vld [vmem:[%s1 + $0x6a8] sm:$0xff]
      %v393 = vld [vmem:[%s1 + $0x6b0] sm:$0xff]
      %v394 = vld [vmem:[%s1 + $0x6b8] sm:$0xff]
      %v395 = vld [vmem:[%s1 + $0x6c0] sm:$0xff]
      %v396 = vld [vmem:[%s1 + $0x6c8] sm:$0xff]
      %v397 = vld [vmem:[%s1 + $0x6d0] sm:$0xff]
      %v398 = vld [vmem:[%s1 + $0x6d8] sm:$0xff]
      %v399 = vld [vmem:[%s1 + $0x6e0] sm:$0xff]
      %v400 = vld [vmem:[%s1 + $0x6e8] sm:$0xff]
      %v401 = vld [vmem:[%s1 + $0x6f0] sm:$0xff]
      %v402 = vld [vmem:[%s1 + $0x6f8] sm:$0xff]
      %v403 = vld [vmem:[%s1 + $0x700] sm:$0xff]
      %v404 = vld [vmem:[%s1 + $0x708] sm:$0xff]
      %v405 = vld [vmem:[%s1 + $0x710] sm:$0xff]
      %v406 = vld [vmem:[%s1 + $0x718] sm:$0xff]
      %v407 = vld [vmem:[%s1 + $0x720] sm:$0xff]
      %v408 = vld [vmem:[%s1 + $0x728] sm:$0xff]
      %v409 = vld [vmem:[%s1 + $0x730] sm:$0xff]
      %v410 = vld [vmem:[%s1 + $0x738] sm:$0xff]
      %v411 = vld [vmem:[%s1 + $0x740] sm:$0xff]
      %v412 = vld [vmem:[%s1 + $0x748] sm:$0xff]
      %v413 = vld [vmem:[%s1 + $0x750] sm:$0xff]
      %v414 = vld [vmem:[%s1 + $0x758] sm:$0xff]
      %v415 = vld [vmem:[%s1 + $0x760] sm:$0xff]
      %v416 = vld [vmem:[%s1 + $0x768] sm:$0xff]
      %v417 = vld [vmem:[%s1 + $0x770] sm:$0xff]
      %v418 = vld [vmem:[%s1 + $0x778] sm:$0xff]
      %v419 = vld [vmem:[%s1 + $0x780] sm:$0xff]
      %v420 = vld [vmem:[%s1 + $0x788] sm:$0xff]
      %v421 = vld [vmem:[%s1 + $0x790] sm:$0xff]
      %v422 = vld [vmem:[%s1 + $0x798] sm:$0xff]
      %v423 = vld [vmem:[%s1 + $0x7a0] sm:$0xff]
      %v424 = vld [vmem:[%s1 + $0x7a8] sm:$0xff]
      %v425 = vld [vmem:[%s1 + $0x7b0] sm:$0xff]
      %v426 = vld [vmem:[%s1 + $0x7b8] sm:$0xff]
      %v427 = vld [vmem:[%s1 + $0x7c0] sm:$0xff]
      %v428 = vld [vmem:[%s1 + $0x7c8] sm:$0xff]
      %v429 = vld [vmem:[%s1 + $0x7d0] sm:$0xff]
      %v430 = vld [vmem:[%s1 + $0x7d8] sm:$0xff]
      %v431 = vld [vmem:[%s1 + $0x7e0] sm:$0xff]
      %v432 = vld [vmem:[%s1 + $0x7e8] sm:$0xff]
      %v433 = vld [vmem:[%s1 + $0x7f0] sm:$0xff]
      %v434 = vld [vmem:[%s1 + $0x7f8] sm:$0xff]
      %v435 = vld [vmem:[%s1 + $0x800] sm:$0xff]
      %v436 = vld [vmem:[%s1 + $0x808] sm:$0xff]
      %v437 = vld [vmem:[%s1 + $0x810] sm:$0xff]
      %v438 = vld [vmem:[%s1 + $0x818] sm:$0xff]
      %v439 = vld [vmem:[%s1 + $0x820] sm:$0xff]
      %v440 = vld [vmem:[%s1 + $0x828] sm:$0xff]
      %v441 = vld [vmem:[%s1 + $0x830] sm:$0xff]
      %v442 = vld [vmem:[%s1 + $0x838] sm:$0xff]
      %v443 = vld [vmem:[%s1 + $0x840] sm:$0xff]
      %v444 = vld [vmem:[%s1 + $0x848] sm:$0xff]
      %v445 = vld [vmem:[%s1 + $0x850] sm:$0xff]
      %v446 = vld [vmem:[%s1 + $0x858] sm:$0xff]
      %v447 = vld [vmem:[%s1 + $0x860] sm:$0xff]
      %v448 = vld [vmem:[%s1 + $0x868] sm:$0xff]
      %v449 = vld [vmem:[%s1 + $0x870] sm:$0xff]
      %v450 = vld [vmem:[%s1 + $0x878] sm:$0xff]
      %v451 = vld [vmem:[%s1 + $0x880] sm:$0xff]
      %v452 = vld [vmem:[%s1 + $0x888] sm:$0xff]
      %v453 = vld [vmem:[%s1 + $0x890] sm:$0xff]
      %v454 = vld [vmem:[%s1 + $0x898] sm:$0xff]
      %v455 = vld [vmem:[%s1 + $0x8a0] sm:$0xff]
      %v456 = vld [vmem:[%s1 + $0x8a8] sm:$0xff]
      %v457 = vld [vmem:[%s1 + $0x8b0] sm:$0xff]
      %v458 = vld [vmem:[%s1 + $0x8b8] sm:$0xff]
      %v459 = vld [vmem:[%s1 + $0x8c0] sm:$0xff]
      %v460 = vld [vmem:[%s1 + $0x8c8] sm:$0xff]
      %v461 = vld [vmem:[%s1 + $0x8d0] sm:$0xff]
      %v462 = vld [vmem:[%s1 + $0x8d8] sm:$0xff]
      %v463 = vld [vmem:[%s1 + $0x8e0] sm:$0xff]
      %v464 = vld [vmem:[%s1 + $0x8e8] sm:$0xff]
      %v465 = vld [vmem:[%s1 + $0x8f0] sm:$0xff]
      %v466 = vld [vmem:[%s1 + $0x8f8] sm:$0xff]
      %v467 = vld [vmem:[%s1 + $0x900] sm:$0xff]
      %v468 = vld [vmem:[%s1 + $0x908] sm:$0xff]
      %v469 = vld [vmem:[%s1 + $0x910] sm:$0xff]
      %v470 = vld [vmem:[%s1 + $0x918] sm:$0xff]
      %v471 = vld [vmem:[%s1 + $0x920] sm:$0xff]
      %v472 = vld [vmem:[%s1 + $0x928] sm:$0xff]
      %v473 = vld [vmem:[%s1 + $0x930] sm:$0xff]
      %v474 = vld [vmem:[%s1 + $0x938] sm:$0xff]
      %v475 = vld [vmem:[%s1 + $0x940] sm:$0xff]
      %v476 = vld [vmem:[%s1 + $0x948] sm:$0xff]
      %v477 = vld [vmem:[%s1 + $0x950] sm:$0xff]
      %v478 = vld [vmem:[%s1 + $0x958] sm:$0xff]
      %v479 = vld [vmem:[%s1 + $0x960] sm:$0xff]
      %v480 = vld [vmem:[%s1 + $0x968] sm:$0xff]
      %v481 = vld [vmem:[%s1 + $0x970] sm:$0xff]
      %v482 = vld [vmem:[%s1 + $0x978] sm:$0xff]
      %v483 = vld [vmem:[%s1 + $0x980] sm:$0xff]
      %v484 = vld [vmem:[%s1 + $0x988] sm:$0xff]
      %v485 = vld [vmem:[%s1 + $0x990] sm:$0xff]
      %v486 = vld [vmem:[%s1 + $0x998] sm:$0xff]
      %v487 = vld [vmem:[%s1 + $0x9a0] sm:$0xff]
      %v488 = vld [vmem:[%s1 + $0x9a8] sm:$0xff]
      %v489 = vld [vmem:[%s1 + $0x9b0] sm:$0xff]
      %v490 = vld [vmem:[%s1 + $0x9b8] sm:$0xff]
      %v491 = vld [vmem:[%s1 + $0x9c0] sm:$0xff]
      %v492 = vld [vmem:[%s1 + $0x9c8] sm:$0xff]
      %v493 = vld [vmem:[%s1 + $0x9d0] sm:$0xff]
      %v494 = vld [vmem:[%s1 + $0x9d8] sm:$0xff]
      %v495 = vld [vmem:[%s1 + $0x9e0] sm:$0xff]
      %v496 = vld [vmem:[%s1 + $0x9e8] sm:$0xff]
      %v497 = vld [vmem:[%s1 + $0x9f0] sm:$0xff]
      %v498 = vld [vmem:[%s1 + $0x9f8] sm:$0xff]
      %v499 = vld [vmem:[%s1 + $0xa00] sm:$0xff]
      %v500 = vld [vmem:[%s1 + $0xa08] sm:$0xff]
      %v501 = vld [vmem:[%s1 + $0xa10] sm:$0xff]
      %v502 = vld [vmem:[%s1 + $0xa18] sm:$0xff]
      %v503 = vld [vmem:[%s1 + $0xa20] sm:$0xff]
      %v504 = vld [vmem:[%s1 + $0xa28] sm:$0xff]
      %v505 = vld [vmem:[%s1 + $0xa30] sm:$0xff]
      %v506 = vld [vmem:[%s1 + $0xa38] sm:$0xff]
      %v507 = vld [vmem:[%s1 + $0xa40] sm:$0xff]
      %v508 = vld [vmem:[%s1 + $0xa48] sm:$0xff]
      %v509 = vld [vmem:[%s1 + $0xa50] sm:$0xff]
      %v510 = vld [vmem:[%s1 + $0xa58] sm:$0xff]
      %v511 = vld [vmem:[%s1 + $0xa60] sm:$0xff]
      %v512 = vld [vmem:[%s1 + $0xa68] sm:$0xff]
      %v513 = vld [vmem:[%s1 + $0xa70] sm:$0xff]
      %v514 = vld [vmem:[%s1 + $0xa78] sm:$0xff]
      %v515 = vld [vmem:[%s1 + $0xa80] sm:$0xff]
      %v516 = vld [vmem:[%s1 + $0xa88] sm:$0xff]
      %v517 = vld [vmem:[%s1 + $0xa90] sm:$0xff]
      %v518 = vld [vmem:[%s1 + $0xa98] sm:$0xff]
      %v519 = vld [vmem:[%s1 + $0xaa0] sm:$0xff]
      %v520 = vld [vmem:[%s1 + $0xaa8] sm:$0xff]
      %v521 = vld [vmem:[%s1 + $0xab0] sm:$0xff]
      %v522 = vld [vmem:[%s1 + $0xab8] sm:$0xff]
      %v523 = vld [vmem:[%s1 + $0xac0] sm:$0xff]
      %v524 = vld [vmem:[%s1 + $0xac8] sm:$0xff]
      %v525 = vld [vmem:[%s1 + $0xad0] sm:$0xff]
      %v526 = vld [vmem:[%s1 + $0xad8] sm:$0xff]
      %v527 = vld [vmem:[%s1 + $0xae0] sm:$0xff]
      %v528 = vld [vmem:[%s1 + $0xae8] sm:$0xff]
      %v529 = vld [vmem:[%s1 + $0xaf0] sm:$0xff]
      %v530 = vld [vmem:[%s1 + $0xaf8] sm:$0xff]
      %v531 = vld [vmem:[%s1 + $0xb00] sm:$0xff]
      %v532 = vld [vmem:[%s1 + $0xb08] sm:$0xff]
      %v533 = vld [vmem:[%s1 + $0xb10] sm:$0xff]
      %v534 = vld [vmem:[%s1 + $0xb18] sm:$0xff]
      %v535 = vld [vmem:[%s1 + $0xb20] sm:$0xff]
      %v536 = vld [vmem:[%s1 + $0xb28] sm:$0xff]
      %v537 = vld [vmem:[%s1 + $0xb30] sm:$0xff]
      %v538 = vld [vmem:[%s1 + $0xb38] sm:$0xff]
      %v539 = vld [vmem:[%s1 + $0xb40] sm:$0xff]
      %v540 = vld [vmem:[%s1 + $0xb48] sm:$0xff]
      %v541 = vld [vmem:[%s1 + $0xb50] sm:$0xff]
      %v542 = vld [vmem:[%s1 + $0xb58] sm:$0xff]
      %v543 = vld [vmem:[%s1 + $0xb60] sm:$0xff]
      %v544 = vld [vmem:[%s1 + $0xb68] sm:$0xff]
      %v545 = vld [vmem:[%s1 + $0xb70] sm:$0xff]
      %v546 = vld [vmem:[%s1 + $0xb78] sm:$0xff]
      %v547 = vld [vmem:[%s1 + $0xb80] sm:$0xff]
      %v548 = vld [vmem:[%s1 + $0xb88] sm:$0xff]
      %v549 = vld [vmem:[%s1 + $0xb90] sm:$0xff]
      %v550 = vld [vmem:[%s1 + $0xb98] sm:$0xff]
      %v551 = vld [vmem:[%s1 + $0xba0] sm:$0xff]
      %v552 = vld [vmem:[%s1 + $0xba8] sm:$0xff]
      %v553 = vld [vmem:[%s1 + $0xbb0] sm:$0xff]
      %v554 = vld [vmem:[%s1 + $0xbb8] sm:$0xff]
      %v555 = vld [vmem:[%s1 + $0xbc0] sm:$0xff]
      %v556 = vld [vmem:[%s1 + $0xbc8] sm:$0xff]
      %v557 = vld [vmem:[%s1 + $0xbd0] sm:$0xff]
      %v558 = vld [vmem:[%s1 + $0xbd8] sm:$0xff]
      %v559 = vld [vmem:[%s1 + $0xbe0] sm:$0xff]
      %v560 = vld [vmem:[%s1 + $0xbe8] sm:$0xff]
      %v561 = vld [vmem:[%s1 + $0xbf0] sm:$0xff]
      %v562 = vld [vmem:[%s1 + $0xbf8] sm:$0xff]
      %v563 = vld [vmem:[%s2] sm:$0xff]
      %v564 = vld [vmem:[%s2 + $0x8] sm:$0xf]
      %v567 = vlaneseq
      %v568 = vshrl.u32 %v567, 7
      %v569 = vsub.s32 0, %v568
      %v570 = vrot.slane %v563, %v569
      %v571 = vlaneseq
      %v572 = vshrl.u32 %v571, 7
      %v573 = vsub.s32 1, %v572
      %v574 = vrot.slane %v563, %v573
      %v575 = vlaneseq
      %v576 = vshrl.u32 %v575, 7
      %v577 = vsub.s32 2, %v576
      %v578 = vrot.slane %v563, %v577
      %v579 = vlaneseq
      %v580 = vshrl.u32 %v579, 7
      %v581 = vsub.s32 3, %v580
      %v582 = vrot.slane %v563, %v581
      %v583 = vlaneseq
      %v584 = vshrl.u32 %v583, 7
      %v585 = vsub.s32 4, %v584
      %v586 = vrot.slane %v563, %v585
      %v587 = vlaneseq
      %v588 = vshrl.u32 %v587, 7
      %v589 = vsub.s32 5, %v588
      %v590 = vrot.slane %v563, %v589
      %v591 = vlaneseq
      %v592 = vshrl.u32 %v591, 7
      %v593 = vsub.s32 6, %v592
      %v594 = vrot.slane %v563, %v593
      %v595 = vlaneseq
      %v596 = vshrl.u32 %v595, 7
      %v597 = vsub.s32 7, %v596
      %v598 = vrot.slane %v563, %v597
      %v599 = vlaneseq
      %v600 = vshrl.u32 %v599, 7
      %v601 = vsub.s32 0, %v600
      %v602 = vrot.slane %v564, %v601
      %v603 = vlaneseq
      %v604 = vshrl.u32 %v603, 7
      %v605 = vsub.s32 1, %v604
      %v606 = vrot.slane %v564, %v605
      %v607 = vlaneseq
      %v608 = vshrl.u32 %v607, 7
      %v609 = vsub.s32 2, %v608
      %v610 = vrot.slane %v564, %v609
      %v611 = vlaneseq
      %v612 = vshrl.u32 %v611, 7
      %v613 = vsub.s32 3, %v612
      %v614 = vrot.slane %v564, %v613
      %v1011 = vunpack.c.l.b16 %v179
      %v1012 = vunpack.c.h.b16 %v179
      %v1013 = vunpack.c.l.b16 %v180
      %v1014 = vunpack.c.h.b16 %v180
      %v1015 = vunpack.c.l.b16 %v181
      %v1016 = vunpack.c.h.b16 %v181
      %v1017 = vunpack.c.l.b16 %v182
      %v1018 = vunpack.c.h.b16 %v182
      %v1019 = vunpack.c.l.b16 %v183
      %v1020 = vunpack.c.h.b16 %v183
      %v1021 = vunpack.c.l.b16 %v184
      %v1022 = vunpack.c.h.b16 %v184
      %v1023 = vunpack.c.l.b16 %v185
      %v1024 = vunpack.c.h.b16 %v185
      %v1025 = vunpack.c.l.b16 %v186
      %v1026 = vunpack.c.h.b16 %v186
      %v1027 = vunpack.c.l.b16 %v187
      %v1028 = vunpack.c.h.b16 %v187
      %v1029 = vunpack.c.l.b16 %v188
      %v1030 = vunpack.c.h.b16 %v188
      %v1031 = vunpack.c.l.b16 %v189
      %v1032 = vunpack.c.h.b16 %v189
      %v1033 = vunpack.c.l.b16 %v190
      %v1034 = vunpack.c.h.b16 %v190
      %v1035 = vunpack.c.l.b16 %v191
      %v1036 = vunpack.c.h.b16 %v191
      %v1037 = vunpack.c.l.b16 %v192
      %v1038 = vunpack.c.h.b16 %v192
      %v1039 = vunpack.c.l.b16 %v193
      %v1040 = vunpack.c.h.b16 %v193
      %v1041 = vunpack.c.l.b16 %v194
      %v1042 = vunpack.c.h.b16 %v194
      %v1043 = vunpack.c.l.b16 %v195
      %v1044 = vunpack.c.h.b16 %v195
      %v1045 = vunpack.c.l.b16 %v196
      %v1046 = vunpack.c.h.b16 %v196
      %v1047 = vunpack.c.l.b16 %v197
      %v1048 = vunpack.c.h.b16 %v197
      %v1049 = vunpack.c.l.b16 %v198
      %v1050 = vunpack.c.h.b16 %v198
      %v1051 = vunpack.c.l.b16 %v199
      %v1052 = vunpack.c.h.b16 %v199
      %v1053 = vunpack.c.l.b16 %v200
      %v1054 = vunpack.c.h.b16 %v200
      %v1055 = vunpack.c.l.b16 %v201
      %v1056 = vunpack.c.h.b16 %v201
      %v1057 = vunpack.c.l.b16 %v202
      %v1058 = vunpack.c.h.b16 %v202
      %v1059 = vunpack.c.l.b16 %v203
      %v1060 = vunpack.c.h.b16 %v203
      %v1061 = vunpack.c.l.b16 %v204
      %v1062 = vunpack.c.h.b16 %v204
      %v1063 = vunpack.c.l.b16 %v205
      %v1064 = vunpack.c.h.b16 %v205
      %v1065 = vunpack.c.l.b16 %v206
      %v1066 = vunpack.c.h.b16 %v206
      %v1067 = vunpack.c.l.b16 %v207
      %v1068 = vunpack.c.h.b16 %v207
      %v1069 = vunpack.c.l.b16 %v208
      %v1070 = vunpack.c.h.b16 %v208
      %v1071 = vunpack.c.l.b16 %v209
      %v1072 = vunpack.c.h.b16 %v209
      %v1073 = vunpack.c.l.b16 %v210
      %v1074 = vunpack.c.h.b16 %v210
      %v1075 = vunpack.c.l.b16 %v211
      %v1076 = vunpack.c.h.b16 %v211
      %v1077 = vunpack.c.l.b16 %v212
      %v1078 = vunpack.c.h.b16 %v212
      %v1079 = vunpack.c.l.b16 %v213
      %v1080 = vunpack.c.h.b16 %v213
      %v1081 = vunpack.c.l.b16 %v214
      %v1082 = vunpack.c.h.b16 %v214
      %v1083 = vunpack.c.l.b16 %v215
      %v1084 = vunpack.c.h.b16 %v215
      %v1085 = vunpack.c.l.b16 %v216
      %v1086 = vunpack.c.h.b16 %v216
      %v1087 = vunpack.c.l.b16 %v217
      %v1088 = vunpack.c.h.b16 %v217
      %v1089 = vunpack.c.l.b16 %v218
      %v1090 = vunpack.c.h.b16 %v218
      %v1091 = vunpack.c.l.b16 %v219
      %v1092 = vunpack.c.h.b16 %v219
      %v1093 = vunpack.c.l.b16 %v220
      %v1094 = vunpack.c.h.b16 %v220
      %v1095 = vunpack.c.l.b16 %v221
      %v1096 = vunpack.c.h.b16 %v221
      %v1097 = vunpack.c.l.b16 %v222
      %v1098 = vunpack.c.h.b16 %v222
      %v1099 = vunpack.c.l.b16 %v223
      %v1100 = vunpack.c.h.b16 %v223
      %v1101 = vunpack.c.l.b16 %v224
      %v1102 = vunpack.c.h.b16 %v224
      %v1103 = vunpack.c.l.b16 %v225
      %v1104 = vunpack.c.h.b16 %v225
      %v1105 = vunpack.c.l.b16 %v226
      %v1106 = vunpack.c.h.b16 %v226
      %v1107 = vunpack.c.l.b16 %v227
      %v1108 = vunpack.c.h.b16 %v227
      %v1109 = vunpack.c.l.b16 %v228
      %v1110 = vunpack.c.h.b16 %v228
      %v1111 = vunpack.c.l.b16 %v229
      %v1112 = vunpack.c.h.b16 %v229
      %v1113 = vunpack.c.l.b16 %v230
      %v1114 = vunpack.c.h.b16 %v230
      %v1115 = vunpack.c.l.b16 %v231
      %v1116 = vunpack.c.h.b16 %v231
      %v1117 = vunpack.c.l.b16 %v232
      %v1118 = vunpack.c.h.b16 %v232
      %v1119 = vunpack.c.l.b16 %v233
      %v1120 = vunpack.c.h.b16 %v233
      %v1121 = vunpack.c.l.b16 %v234
      %v1122 = vunpack.c.h.b16 %v234
      %v1123 = vunpack.c.l.b16 %v235
      %v1124 = vunpack.c.h.b16 %v235
      %v1125 = vunpack.c.l.b16 %v236
      %v1126 = vunpack.c.h.b16 %v236
      %v1127 = vunpack.c.l.b16 %v237
      %v1128 = vunpack.c.h.b16 %v237
      %v1129 = vunpack.c.l.b16 %v238
      %v1130 = vunpack.c.h.b16 %v238
      %v1131 = vunpack.c.l.b16 %v239
      %v1132 = vunpack.c.h.b16 %v239
      %v1133 = vunpack.c.l.b16 %v240
      %v1134 = vunpack.c.h.b16 %v240
      %v1135 = vunpack.c.l.b16 %v241
      %v1136 = vunpack.c.h.b16 %v241
      %v1137 = vunpack.c.l.b16 %v242
      %v1138 = vunpack.c.h.b16 %v242
      %v1139 = vunpack.c.l.b16 %v243
      %v1140 = vunpack.c.h.b16 %v243
      %v1141 = vunpack.c.l.b16 %v244
      %v1142 = vunpack.c.h.b16 %v244
      %v1143 = vunpack.c.l.b16 %v245
      %v1144 = vunpack.c.h.b16 %v245
      %v1145 = vunpack.c.l.b16 %v246
      %v1146 = vunpack.c.h.b16 %v246
      %v1147 = vunpack.c.l.b16 %v247
      %v1148 = vunpack.c.h.b16 %v247
      %v1149 = vunpack.c.l.b16 %v248
      %v1150 = vunpack.c.h.b16 %v248
      %v1151 = vunpack.c.l.b16 %v249
      %v1152 = vunpack.c.h.b16 %v249
      %v1153 = vunpack.c.l.b16 %v250
      %v1154 = vunpack.c.h.b16 %v250
      %v1155 = vunpack.c.l.b16 %v251
      %v1156 = vunpack.c.h.b16 %v251
      %v1157 = vunpack.c.l.b16 %v252
      %v1158 = vunpack.c.h.b16 %v252
      %v1159 = vunpack.c.l.b16 %v253
      %v1160 = vunpack.c.h.b16 %v253
      %v1161 = vunpack.c.l.b16 %v254
      %v1162 = vunpack.c.h.b16 %v254
      %v1163 = vunpack.c.l.b16 %v255
      %v1164 = vunpack.c.h.b16 %v255
      %v1165 = vunpack.c.l.b16 %v256
      %v1166 = vunpack.c.h.b16 %v256
      %v1167 = vunpack.c.l.b16 %v257
      %v1168 = vunpack.c.h.b16 %v257
      %v1169 = vunpack.c.l.b16 %v258
      %v1170 = vunpack.c.h.b16 %v258
      %v1171 = vunpack.c.l.b16 %v259
      %v1172 = vunpack.c.h.b16 %v259
      %v1173 = vunpack.c.l.b16 %v260
      %v1174 = vunpack.c.h.b16 %v260
      %v1175 = vunpack.c.l.b16 %v261
      %v1176 = vunpack.c.h.b16 %v261
      %v1177 = vunpack.c.l.b16 %v262
      %v1178 = vunpack.c.h.b16 %v262
      %v1179 = vunpack.c.l.b16 %v263
      %v1180 = vunpack.c.h.b16 %v263
      %v1181 = vunpack.c.l.b16 %v264
      %v1182 = vunpack.c.h.b16 %v264
      %v1183 = vunpack.c.l.b16 %v265
      %v1184 = vunpack.c.h.b16 %v265
      %v1185 = vunpack.c.l.b16 %v266
      %v1186 = vunpack.c.h.b16 %v266
      %v1187 = vunpack.c.l.b16 %v267
      %v1188 = vunpack.c.h.b16 %v267
      %v1189 = vunpack.c.l.b16 %v268
      %v1190 = vunpack.c.h.b16 %v268
      %v1191 = vunpack.c.l.b16 %v269
      %v1192 = vunpack.c.h.b16 %v269
      %v1193 = vunpack.c.l.b16 %v270
      %v1194 = vunpack.c.h.b16 %v270
      %v1195 = vunpack.c.l.b16 %v271
      %v1196 = vunpack.c.h.b16 %v271
      %v1197 = vunpack.c.l.b16 %v272
      %v1198 = vunpack.c.h.b16 %v272
      %v1199 = vunpack.c.l.b16 %v273
      %v1200 = vunpack.c.h.b16 %v273
      %v1201 = vunpack.c.l.b16 %v274
      %v1202 = vunpack.c.h.b16 %v274
      %v1203 = vunpack.c.l.b16 %v275
      %v1204 = vunpack.c.h.b16 %v275
      %v1205 = vunpack.c.l.b16 %v276
      %v1206 = vunpack.c.h.b16 %v276
      %v1207 = vunpack.c.l.b16 %v277
      %v1208 = vunpack.c.h.b16 %v277
      %v1209 = vunpack.c.l.b16 %v278
      %v1210 = vunpack.c.h.b16 %v278
      %v1211 = vunpack.c.l.b16 %v279
      %v1212 = vunpack.c.h.b16 %v279
      %v1213 = vunpack.c.l.b16 %v280
      %v1214 = vunpack.c.h.b16 %v280
      %v1215 = vunpack.c.l.b16 %v281
      %v1216 = vunpack.c.h.b16 %v281
      %v1217 = vunpack.c.l.b16 %v282
      %v1218 = vunpack.c.h.b16 %v282
      %v1219 = vunpack.c.l.b16 %v283
      %v1220 = vunpack.c.h.b16 %v283
      %v1221 = vunpack.c.l.b16 %v284
      %v1222 = vunpack.c.h.b16 %v284
      %v1223 = vunpack.c.l.b16 %v285
      %v1224 = vunpack.c.h.b16 %v285
      %v1225 = vunpack.c.l.b16 %v286
      %v1226 = vunpack.c.h.b16 %v286
      %v1227 = vunpack.c.l.b16 %v287
      %v1228 = vunpack.c.h.b16 %v287
      %v1229 = vunpack.c.l.b16 %v288
      %v1230 = vunpack.c.h.b16 %v288
      %v1231 = vunpack.c.l.b16 %v289
      %v1232 = vunpack.c.h.b16 %v289
      %v1233 = vunpack.c.l.b16 %v290
      %v1234 = vunpack.c.h.b16 %v290
      %v1235 = vunpack.c.l.b16 %v291
      %v1236 = vunpack.c.h.b16 %v291
      %v1237 = vunpack.c.l.b16 %v292
      %v1238 = vunpack.c.h.b16 %v292
      %v1239 = vunpack.c.l.b16 %v293
      %v1240 = vunpack.c.h.b16 %v293
      %v1241 = vunpack.c.l.b16 %v294
      %v1242 = vunpack.c.h.b16 %v294
      %v1243 = vunpack.c.l.b16 %v295
      %v1244 = vunpack.c.h.b16 %v295
      %v1245 = vunpack.c.l.b16 %v296
      %v1246 = vunpack.c.h.b16 %v296
      %v1247 = vunpack.c.l.b16 %v297
      %v1248 = vunpack.c.h.b16 %v297
      %v1249 = vunpack.c.l.b16 %v298
      %v1250 = vunpack.c.h.b16 %v298
      %v1251 = vunpack.c.l.b16 %v299
      %v1252 = vunpack.c.h.b16 %v299
      %v1253 = vunpack.c.l.b16 %v300
      %v1254 = vunpack.c.h.b16 %v300
      %v1255 = vunpack.c.l.b16 %v301
      %v1256 = vunpack.c.h.b16 %v301
      %v1257 = vunpack.c.l.b16 %v302
      %v1258 = vunpack.c.h.b16 %v302
      %v1259 = vunpack.c.l.b16 %v303
      %v1260 = vunpack.c.h.b16 %v303
      %v1261 = vunpack.c.l.b16 %v304
      %v1262 = vunpack.c.h.b16 %v304
      %v1263 = vunpack.c.l.b16 %v305
      %v1264 = vunpack.c.h.b16 %v305
      %v1265 = vunpack.c.l.b16 %v306
      %v1266 = vunpack.c.h.b16 %v306
      %v1267 = vunpack.c.l.b16 %v307
      %v1268 = vunpack.c.h.b16 %v307
      %v1269 = vunpack.c.l.b16 %v308
      %v1270 = vunpack.c.h.b16 %v308
      %v1271 = vunpack.c.l.b16 %v309
      %v1272 = vunpack.c.h.b16 %v309
      %v1273 = vunpack.c.l.b16 %v310
      %v1274 = vunpack.c.h.b16 %v310
      %v1275 = vunpack.c.l.b16 %v311
      %v1276 = vunpack.c.h.b16 %v311
      %v1277 = vunpack.c.l.b16 %v312
      %v1278 = vunpack.c.h.b16 %v312
      %v1279 = vunpack.c.l.b16 %v313
      %v1280 = vunpack.c.h.b16 %v313
      %v1281 = vunpack.c.l.b16 %v314
      %v1282 = vunpack.c.h.b16 %v314
      %v1283 = vunpack.c.l.b16 %v315
      %v1284 = vunpack.c.h.b16 %v315
      %v1285 = vunpack.c.l.b16 %v316
      %v1286 = vunpack.c.h.b16 %v316
      %v1287 = vunpack.c.l.b16 %v317
      %v1288 = vunpack.c.h.b16 %v317
      %v1289 = vunpack.c.l.b16 %v318
      %v1290 = vunpack.c.h.b16 %v318
      %v1291 = vunpack.c.l.b16 %v319
      %v1292 = vunpack.c.h.b16 %v319
      %v1293 = vunpack.c.l.b16 %v320
      %v1294 = vunpack.c.h.b16 %v320
      %v1295 = vunpack.c.l.b16 %v321
      %v1296 = vunpack.c.h.b16 %v321
      %v1297 = vunpack.c.l.b16 %v322
      %v1298 = vunpack.c.h.b16 %v322
      %v1299 = vunpack.c.l.b16 %v323
      %v1300 = vunpack.c.h.b16 %v323
      %v1301 = vunpack.c.l.b16 %v324
      %v1302 = vunpack.c.h.b16 %v324
      %v1303 = vunpack.c.l.b16 %v325
      %v1304 = vunpack.c.h.b16 %v325
      %v1305 = vunpack.c.l.b16 %v326
      %v1306 = vunpack.c.h.b16 %v326
      %v1307 = vunpack.c.l.b16 %v327
      %v1308 = vunpack.c.h.b16 %v327
      %v1309 = vunpack.c.l.b16 %v328
      %v1310 = vunpack.c.h.b16 %v328
      %v1311 = vunpack.c.l.b16 %v329
      %v1312 = vunpack.c.h.b16 %v329
      %v1313 = vunpack.c.l.b16 %v330
      %v1314 = vunpack.c.h.b16 %v330
      %v1315 = vunpack.c.l.b16 %v331
      %v1316 = vunpack.c.h.b16 %v331
      %v1317 = vunpack.c.l.b16 %v332
      %v1318 = vunpack.c.h.b16 %v332
      %v1319 = vunpack.c.l.b16 %v333
      %v1320 = vunpack.c.h.b16 %v333
      %v1321 = vunpack.c.l.b16 %v334
      %v1322 = vunpack.c.h.b16 %v334
      %v1323 = vunpack.c.l.b16 %v335
      %v1324 = vunpack.c.h.b16 %v335
      %v1325 = vunpack.c.l.b16 %v336
      %v1326 = vunpack.c.h.b16 %v336
      %v1327 = vunpack.c.l.b16 %v337
      %v1328 = vunpack.c.h.b16 %v337
      %v1329 = vunpack.c.l.b16 %v338
      %v1330 = vunpack.c.h.b16 %v338
      %v1331 = vunpack.c.l.b16 %v339
      %v1332 = vunpack.c.h.b16 %v339
      %v1333 = vunpack.c.l.b16 %v340
      %v1334 = vunpack.c.h.b16 %v340
      %v1335 = vunpack.c.l.b16 %v341
      %v1336 = vunpack.c.h.b16 %v341
      %v1337 = vunpack.c.l.b16 %v342
      %v1338 = vunpack.c.h.b16 %v342
      %v1339 = vunpack.c.l.b16 %v343
      %v1340 = vunpack.c.h.b16 %v343
      %v1341 = vunpack.c.l.b16 %v344
      %v1342 = vunpack.c.h.b16 %v344
      %v1343 = vunpack.c.l.b16 %v345
      %v1344 = vunpack.c.h.b16 %v345
      %v1345 = vunpack.c.l.b16 %v346
      %v1346 = vunpack.c.h.b16 %v346
      %v1347 = vunpack.c.l.b16 %v347
      %v1348 = vunpack.c.h.b16 %v347
      %v1349 = vunpack.c.l.b16 %v348
      %v1350 = vunpack.c.h.b16 %v348
      %v1351 = vunpack.c.l.b16 %v349
      %v1352 = vunpack.c.h.b16 %v349
      %v1353 = vunpack.c.l.b16 %v350
      %v1354 = vunpack.c.h.b16 %v350
      %v1355 = vunpack.c.l.b16 %v351
      %v1356 = vunpack.c.h.b16 %v351
      %v1357 = vunpack.c.l.b16 %v352
      %v1358 = vunpack.c.h.b16 %v352
      %v1359 = vunpack.c.l.b16 %v353
      %v1360 = vunpack.c.h.b16 %v353
      %v1361 = vunpack.c.l.b16 %v354
      %v1362 = vunpack.c.h.b16 %v354
      %v1363 = vunpack.c.l.b16 %v355
      %v1364 = vunpack.c.h.b16 %v355
      %v1365 = vunpack.c.l.b16 %v356
      %v1366 = vunpack.c.h.b16 %v356
      %v1367 = vunpack.c.l.b16 %v357
      %v1368 = vunpack.c.h.b16 %v357
      %v1369 = vunpack.c.l.b16 %v358
      %v1370 = vunpack.c.h.b16 %v358
      %v1371 = vunpack.c.l.b16 %v359
      %v1372 = vunpack.c.h.b16 %v359
      %v1373 = vunpack.c.l.b16 %v360
      %v1374 = vunpack.c.h.b16 %v360
      %v1375 = vunpack.c.l.b16 %v361
      %v1376 = vunpack.c.h.b16 %v361
      %v1377 = vunpack.c.l.b16 %v362
      %v1378 = vunpack.c.h.b16 %v362
      %v1379 = vunpack.c.l.b16 %v363
      %v1380 = vunpack.c.h.b16 %v363
      %v1381 = vunpack.c.l.b16 %v364
      %v1382 = vunpack.c.h.b16 %v364
      %v1383 = vunpack.c.l.b16 %v365
      %v1384 = vunpack.c.h.b16 %v365
      %v1385 = vunpack.c.l.b16 %v366
      %v1386 = vunpack.c.h.b16 %v366
      %v1387 = vunpack.c.l.b16 %v367
      %v1388 = vunpack.c.h.b16 %v367
      %v1389 = vunpack.c.l.b16 %v368
      %v1390 = vunpack.c.h.b16 %v368
      %v1391 = vunpack.c.l.b16 %v369
      %v1392 = vunpack.c.h.b16 %v369
      %v1393 = vunpack.c.l.b16 %v370
      %v1394 = vunpack.c.h.b16 %v370
      %v1395 = vunpack.c.l.b16 %v371
      %v1396 = vunpack.c.h.b16 %v371
      %v1397 = vunpack.c.l.b16 %v372
      %v1398 = vunpack.c.h.b16 %v372
      %v1399 = vunpack.c.l.b16 %v373
      %v1400 = vunpack.c.h.b16 %v373
      %v1401 = vunpack.c.l.b16 %v374
      %v1402 = vunpack.c.h.b16 %v374
      %v1403 = vunpack.c.l.b16 %v375
      %v1404 = vunpack.c.h.b16 %v375
      %v1405 = vunpack.c.l.b16 %v376
      %v1406 = vunpack.c.h.b16 %v376
      %v1407 = vunpack.c.l.b16 %v377
      %v1408 = vunpack.c.h.b16 %v377
      %v1409 = vunpack.c.l.b16 %v378
      %v1410 = vunpack.c.h.b16 %v378
      %v1411 = vunpack.c.l.b16 %v379
      %v1412 = vunpack.c.h.b16 %v379
      %v1413 = vunpack.c.l.b16 %v380
      %v1414 = vunpack.c.h.b16 %v380
      %v1415 = vunpack.c.l.b16 %v381
      %v1416 = vunpack.c.h.b16 %v381
      %v1417 = vunpack.c.l.b16 %v382
      %v1418 = vunpack.c.h.b16 %v382
      %v1419 = vunpack.c.l.b16 %v383
      %v1420 = vunpack.c.h.b16 %v383
      %v1421 = vunpack.c.l.b16 %v384
      %v1422 = vunpack.c.h.b16 %v384
      %v1423 = vunpack.c.l.b16 %v385
      %v1424 = vunpack.c.h.b16 %v385
      %v1425 = vunpack.c.l.b16 %v386
      %v1426 = vunpack.c.h.b16 %v386
      %v1427 = vunpack.c.l.b16 %v387
      %v1428 = vunpack.c.h.b16 %v387
      %v1429 = vunpack.c.l.b16 %v388
      %v1430 = vunpack.c.h.b16 %v388
      %v1431 = vunpack.c.l.b16 %v389
      %v1432 = vunpack.c.h.b16 %v389
      %v1433 = vunpack.c.l.b16 %v390
      %v1434 = vunpack.c.h.b16 %v390
      %v1435 = vunpack.c.l.b16 %v391
      %v1436 = vunpack.c.h.b16 %v391
      %v1437 = vunpack.c.l.b16 %v392
      %v1438 = vunpack.c.h.b16 %v392
      %v1439 = vunpack.c.l.b16 %v393
      %v1440 = vunpack.c.h.b16 %v393
      %v1441 = vunpack.c.l.b16 %v394
      %v1442 = vunpack.c.h.b16 %v394
      %v1443 = vunpack.c.l.b16 %v395
      %v1444 = vunpack.c.h.b16 %v395
      %v1445 = vunpack.c.l.b16 %v396
      %v1446 = vunpack.c.h.b16 %v396
      %v1447 = vunpack.c.l.b16 %v397
      %v1448 = vunpack.c.h.b16 %v397
      %v1449 = vunpack.c.l.b16 %v398
      %v1450 = vunpack.c.h.b16 %v398
      %v1451 = vunpack.c.l.b16 %v399
      %v1452 = vunpack.c.h.b16 %v399
      %v1453 = vunpack.c.l.b16 %v400
      %v1454 = vunpack.c.h.b16 %v400
      %v1455 = vunpack.c.l.b16 %v401
      %v1456 = vunpack.c.h.b16 %v401
      %v1457 = vunpack.c.l.b16 %v402
      %v1458 = vunpack.c.h.b16 %v402
      %v1459 = vunpack.c.l.b16 %v403
      %v1460 = vunpack.c.h.b16 %v403
      %v1461 = vunpack.c.l.b16 %v404
      %v1462 = vunpack.c.h.b16 %v404
      %v1463 = vunpack.c.l.b16 %v405
      %v1464 = vunpack.c.h.b16 %v405
      %v1465 = vunpack.c.l.b16 %v406
      %v1466 = vunpack.c.h.b16 %v406
      %v1467 = vunpack.c.l.b16 %v407
      %v1468 = vunpack.c.h.b16 %v407
      %v1469 = vunpack.c.l.b16 %v408
      %v1470 = vunpack.c.h.b16 %v408
      %v1471 = vunpack.c.l.b16 %v409
      %v1472 = vunpack.c.h.b16 %v409
      %v1473 = vunpack.c.l.b16 %v410
      %v1474 = vunpack.c.h.b16 %v410
      %v1475 = vunpack.c.l.b16 %v411
      %v1476 = vunpack.c.h.b16 %v411
      %v1477 = vunpack.c.l.b16 %v412
      %v1478 = vunpack.c.h.b16 %v412
      %v1479 = vunpack.c.l.b16 %v413
      %v1480 = vunpack.c.h.b16 %v413
      %v1481 = vunpack.c.l.b16 %v414
      %v1482 = vunpack.c.h.b16 %v414
      %v1483 = vunpack.c.l.b16 %v415
      %v1484 = vunpack.c.h.b16 %v415
      %v1485 = vunpack.c.l.b16 %v416
      %v1486 = vunpack.c.h.b16 %v416
      %v1487 = vunpack.c.l.b16 %v417
      %v1488 = vunpack.c.h.b16 %v417
      %v1489 = vunpack.c.l.b16 %v418
      %v1490 = vunpack.c.h.b16 %v418
      %v1491 = vunpack.c.l.b16 %v419
      %v1492 = vunpack.c.h.b16 %v419
      %v1493 = vunpack.c.l.b16 %v420
      %v1494 = vunpack.c.h.b16 %v420
      %v1495 = vunpack.c.l.b16 %v421
      %v1496 = vunpack.c.h.b16 %v421
      %v1497 = vunpack.c.l.b16 %v422
      %v1498 = vunpack.c.h.b16 %v422
      %v1499 = vunpack.c.l.b16 %v423
      %v1500 = vunpack.c.h.b16 %v423
      %v1501 = vunpack.c.l.b16 %v424
      %v1502 = vunpack.c.h.b16 %v424
      %v1503 = vunpack.c.l.b16 %v425
      %v1504 = vunpack.c.h.b16 %v425
      %v1505 = vunpack.c.l.b16 %v426
      %v1506 = vunpack.c.h.b16 %v426
      %v1507 = vunpack.c.l.b16 %v427
      %v1508 = vunpack.c.h.b16 %v427
      %v1509 = vunpack.c.l.b16 %v428
      %v1510 = vunpack.c.h.b16 %v428
      %v1511 = vunpack.c.l.b16 %v429
      %v1512 = vunpack.c.h.b16 %v429
      %v1513 = vunpack.c.l.b16 %v430
      %v1514 = vunpack.c.h.b16 %v430
      %v1515 = vunpack.c.l.b16 %v431
      %v1516 = vunpack.c.h.b16 %v431
      %v1517 = vunpack.c.l.b16 %v432
      %v1518 = vunpack.c.h.b16 %v432
      %v1519 = vunpack.c.l.b16 %v433
      %v1520 = vunpack.c.h.b16 %v433
      %v1521 = vunpack.c.l.b16 %v434
      %v1522 = vunpack.c.h.b16 %v434
      %v1523 = vunpack.c.l.b16 %v435
      %v1524 = vunpack.c.h.b16 %v435
      %v1525 = vunpack.c.l.b16 %v436
      %v1526 = vunpack.c.h.b16 %v436
      %v1527 = vunpack.c.l.b16 %v437
      %v1528 = vunpack.c.h.b16 %v437
      %v1529 = vunpack.c.l.b16 %v438
      %v1530 = vunpack.c.h.b16 %v438
      %v1531 = vunpack.c.l.b16 %v439
      %v1532 = vunpack.c.h.b16 %v439
      %v1533 = vunpack.c.l.b16 %v440
      %v1534 = vunpack.c.h.b16 %v440
      %v1535 = vunpack.c.l.b16 %v441
      %v1536 = vunpack.c.h.b16 %v441
      %v1537 = vunpack.c.l.b16 %v442
      %v1538 = vunpack.c.h.b16 %v442
      %v1539 = vunpack.c.l.b16 %v443
      %v1540 = vunpack.c.h.b16 %v443
      %v1541 = vunpack.c.l.b16 %v444
      %v1542 = vunpack.c.h.b16 %v444
      %v1543 = vunpack.c.l.b16 %v445
      %v1544 = vunpack.c.h.b16 %v445
      %v1545 = vunpack.c.l.b16 %v446
      %v1546 = vunpack.c.h.b16 %v446
      %v1547 = vunpack.c.l.b16 %v447
      %v1548 = vunpack.c.h.b16 %v447
      %v1549 = vunpack.c.l.b16 %v448
      %v1550 = vunpack.c.h.b16 %v448
      %v1551 = vunpack.c.l.b16 %v449
      %v1552 = vunpack.c.h.b16 %v449
      %v1553 = vunpack.c.l.b16 %v450
      %v1554 = vunpack.c.h.b16 %v450
      %v1555 = vunpack.c.l.b16 %v451
      %v1556 = vunpack.c.h.b16 %v451
      %v1557 = vunpack.c.l.b16 %v452
      %v1558 = vunpack.c.h.b16 %v452
      %v1559 = vunpack.c.l.b16 %v453
      %v1560 = vunpack.c.h.b16 %v453
      %v1561 = vunpack.c.l.b16 %v454
      %v1562 = vunpack.c.h.b16 %v454
      %v1563 = vunpack.c.l.b16 %v455
      %v1564 = vunpack.c.h.b16 %v455
      %v1565 = vunpack.c.l.b16 %v456
      %v1566 = vunpack.c.h.b16 %v456
      %v1567 = vunpack.c.l.b16 %v457
      %v1568 = vunpack.c.h.b16 %v457
      %v1569 = vunpack.c.l.b16 %v458
      %v1570 = vunpack.c.h.b16 %v458
      %v1571 = vunpack.c.l.b16 %v459
      %v1572 = vunpack.c.h.b16 %v459
      %v1573 = vunpack.c.l.b16 %v460
      %v1574 = vunpack.c.h.b16 %v460
      %v1575 = vunpack.c.l.b16 %v461
      %v1576 = vunpack.c.h.b16 %v461
      %v1577 = vunpack.c.l.b16 %v462
      %v1578 = vunpack.c.h.b16 %v462
      %v1579 = vunpack.c.l.b16 %v463
      %v1580 = vunpack.c.h.b16 %v463
      %v1581 = vunpack.c.l.b16 %v464
      %v1582 = vunpack.c.h.b16 %v464
      %v1583 = vunpack.c.l.b16 %v465
      %v1584 = vunpack.c.h.b16 %v465
      %v1585 = vunpack.c.l.b16 %v466
      %v1586 = vunpack.c.h.b16 %v466
      %v1587 = vunpack.c.l.b16 %v467
      %v1588 = vunpack.c.h.b16 %v467
      %v1589 = vunpack.c.l.b16 %v468
      %v1590 = vunpack.c.h.b16 %v468
      %v1591 = vunpack.c.l.b16 %v469
      %v1592 = vunpack.c.h.b16 %v469
      %v1593 = vunpack.c.l.b16 %v470
      %v1594 = vunpack.c.h.b16 %v470
      %v1595 = vunpack.c.l.b16 %v471
      %v1596 = vunpack.c.h.b16 %v471
      %v1597 = vunpack.c.l.b16 %v472
      %v1598 = vunpack.c.h.b16 %v472
      %v1599 = vunpack.c.l.b16 %v473
      %v1600 = vunpack.c.h.b16 %v473
      %v1601 = vunpack.c.l.b16 %v474
      %v1602 = vunpack.c.h.b16 %v474
      %v1603 = vunpack.c.l.b16 %v475
      %v1604 = vunpack.c.h.b16 %v475
      %v1605 = vunpack.c.l.b16 %v476
      %v1606 = vunpack.c.h.b16 %v476
      %v1607 = vunpack.c.l.b16 %v477
      %v1608 = vunpack.c.h.b16 %v477
      %v1609 = vunpack.c.l.b16 %v478
      %v1610 = vunpack.c.h.b16 %v478
      %v1611 = vunpack.c.l.b16 %v479
      %v1612 = vunpack.c.h.b16 %v479
      %v1613 = vunpack.c.l.b16 %v480
      %v1614 = vunpack.c.h.b16 %v480
      %v1615 = vunpack.c.l.b16 %v481
      %v1616 = vunpack.c.h.b16 %v481
      %v1617 = vunpack.c.l.b16 %v482
      %v1618 = vunpack.c.h.b16 %v482
      %v1619 = vunpack.c.l.b16 %v483
      %v1620 = vunpack.c.h.b16 %v483
      %v1621 = vunpack.c.l.b16 %v484
      %v1622 = vunpack.c.h.b16 %v484
      %v1623 = vunpack.c.l.b16 %v485
      %v1624 = vunpack.c.h.b16 %v485
      %v1625 = vunpack.c.l.b16 %v486
      %v1626 = vunpack.c.h.b16 %v486
      %v1627 = vunpack.c.l.b16 %v487
      %v1628 = vunpack.c.h.b16 %v487
      %v1629 = vunpack.c.l.b16 %v488
      %v1630 = vunpack.c.h.b16 %v488
      %v1631 = vunpack.c.l.b16 %v489
      %v1632 = vunpack.c.h.b16 %v489
      %v1633 = vunpack.c.l.b16 %v490
      %v1634 = vunpack.c.h.b16 %v490
      %v1635 = vunpack.c.l.b16 %v491
      %v1636 = vunpack.c.h.b16 %v491
      %v1637 = vunpack.c.l.b16 %v492
      %v1638 = vunpack.c.h.b16 %v492
      %v1639 = vunpack.c.l.b16 %v493
      %v1640 = vunpack.c.h.b16 %v493
      %v1641 = vunpack.c.l.b16 %v494
      %v1642 = vunpack.c.h.b16 %v494
      %v1643 = vunpack.c.l.b16 %v495
      %v1644 = vunpack.c.h.b16 %v495
      %v1645 = vunpack.c.l.b16 %v496
      %v1646 = vunpack.c.h.b16 %v496
      %v1647 = vunpack.c.l.b16 %v497
      %v1648 = vunpack.c.h.b16 %v497
      %v1649 = vunpack.c.l.b16 %v498
      %v1650 = vunpack.c.h.b16 %v498
      %v1651 = vunpack.c.l.b16 %v499
      %v1652 = vunpack.c.h.b16 %v499
      %v1653 = vunpack.c.l.b16 %v500
      %v1654 = vunpack.c.h.b16 %v500
      %v1655 = vunpack.c.l.b16 %v501
      %v1656 = vunpack.c.h.b16 %v501
      %v1657 = vunpack.c.l.b16 %v502
      %v1658 = vunpack.c.h.b16 %v502
      %v1659 = vunpack.c.l.b16 %v503
      %v1660 = vunpack.c.h.b16 %v503
      %v1661 = vunpack.c.l.b16 %v504
      %v1662 = vunpack.c.h.b16 %v504
      %v1663 = vunpack.c.l.b16 %v505
      %v1664 = vunpack.c.h.b16 %v505
      %v1665 = vunpack.c.l.b16 %v506
      %v1666 = vunpack.c.h.b16 %v506
      %v1667 = vunpack.c.l.b16 %v507
      %v1668 = vunpack.c.h.b16 %v507
      %v1669 = vunpack.c.l.b16 %v508
      %v1670 = vunpack.c.h.b16 %v508
      %v1671 = vunpack.c.l.b16 %v509
      %v1672 = vunpack.c.h.b16 %v509
      %v1673 = vunpack.c.l.b16 %v510
      %v1674 = vunpack.c.h.b16 %v510
      %v1675 = vunpack.c.l.b16 %v511
      %v1676 = vunpack.c.h.b16 %v511
      %v1677 = vunpack.c.l.b16 %v512
      %v1678 = vunpack.c.h.b16 %v512
      %v1679 = vunpack.c.l.b16 %v513
      %v1680 = vunpack.c.h.b16 %v513
      %v1681 = vunpack.c.l.b16 %v514
      %v1682 = vunpack.c.h.b16 %v514
      %v1683 = vunpack.c.l.b16 %v515
      %v1684 = vunpack.c.h.b16 %v515
      %v1685 = vunpack.c.l.b16 %v516
      %v1686 = vunpack.c.h.b16 %v516
      %v1687 = vunpack.c.l.b16 %v517
      %v1688 = vunpack.c.h.b16 %v517
      %v1689 = vunpack.c.l.b16 %v518
      %v1690 = vunpack.c.h.b16 %v518
      %v1691 = vunpack.c.l.b16 %v519
      %v1692 = vunpack.c.h.b16 %v519
      %v1693 = vunpack.c.l.b16 %v520
      %v1694 = vunpack.c.h.b16 %v520
      %v1695 = vunpack.c.l.b16 %v521
      %v1696 = vunpack.c.h.b16 %v521
      %v1697 = vunpack.c.l.b16 %v522
      %v1698 = vunpack.c.h.b16 %v522
      %v1699 = vunpack.c.l.b16 %v523
      %v1700 = vunpack.c.h.b16 %v523
      %v1701 = vunpack.c.l.b16 %v524
      %v1702 = vunpack.c.h.b16 %v524
      %v1703 = vunpack.c.l.b16 %v525
      %v1704 = vunpack.c.h.b16 %v525
      %v1705 = vunpack.c.l.b16 %v526
      %v1706 = vunpack.c.h.b16 %v526
      %v1707 = vunpack.c.l.b16 %v527
      %v1708 = vunpack.c.h.b16 %v527
      %v1709 = vunpack.c.l.b16 %v528
      %v1710 = vunpack.c.h.b16 %v528
      %v1711 = vunpack.c.l.b16 %v529
      %v1712 = vunpack.c.h.b16 %v529
      %v1713 = vunpack.c.l.b16 %v530
      %v1714 = vunpack.c.h.b16 %v530
      %v1715 = vunpack.c.l.b16 %v531
      %v1716 = vunpack.c.h.b16 %v531
      %v1717 = vunpack.c.l.b16 %v532
      %v1718 = vunpack.c.h.b16 %v532
      %v1719 = vunpack.c.l.b16 %v533
      %v1720 = vunpack.c.h.b16 %v533
      %v1721 = vunpack.c.l.b16 %v534
      %v1722 = vunpack.c.h.b16 %v534
      %v1723 = vunpack.c.l.b16 %v535
      %v1724 = vunpack.c.h.b16 %v535
      %v1725 = vunpack.c.l.b16 %v536
      %v1726 = vunpack.c.h.b16 %v536
      %v1727 = vunpack.c.l.b16 %v537
      %v1728 = vunpack.c.h.b16 %v537
      %v1729 = vunpack.c.l.b16 %v538
      %v1730 = vunpack.c.h.b16 %v538
      %v1731 = vunpack.c.l.b16 %v539
      %v1732 = vunpack.c.h.b16 %v539
      %v1733 = vunpack.c.l.b16 %v540
      %v1734 = vunpack.c.h.b16 %v540
      %v1735 = vunpack.c.l.b16 %v541
      %v1736 = vunpack.c.h.b16 %v541
      %v1737 = vunpack.c.l.b16 %v542
      %v1738 = vunpack.c.h.b16 %v542
      %v1739 = vunpack.c.l.b16 %v543
      %v1740 = vunpack.c.h.b16 %v543
      %v1741 = vunpack.c.l.b16 %v544
      %v1742 = vunpack.c.h.b16 %v544
      %v1743 = vunpack.c.l.b16 %v545
      %v1744 = vunpack.c.h.b16 %v545
      %v1745 = vunpack.c.l.b16 %v546
      %v1746 = vunpack.c.h.b16 %v546
      %v1747 = vunpack.c.l.b16 %v547
      %v1748 = vunpack.c.h.b16 %v547
      %v1749 = vunpack.c.l.b16 %v548
      %v1750 = vunpack.c.h.b16 %v548
      %v1751 = vunpack.c.l.b16 %v549
      %v1752 = vunpack.c.h.b16 %v549
      %v1753 = vunpack.c.l.b16 %v550
      %v1754 = vunpack.c.h.b16 %v550
      %v1755 = vunpack.c.l.b16 %v551
      %v1756 = vunpack.c.h.b16 %v551
      %v1757 = vunpack.c.l.b16 %v552
      %v1758 = vunpack.c.h.b16 %v552
      %v1759 = vunpack.c.l.b16 %v553
      %v1760 = vunpack.c.h.b16 %v553
      %v1761 = vunpack.c.l.b16 %v554
      %v1762 = vunpack.c.h.b16 %v554
      %v1763 = vunpack.c.l.b16 %v555
      %v1764 = vunpack.c.h.b16 %v555
      %v1765 = vunpack.c.l.b16 %v556
      %v1766 = vunpack.c.h.b16 %v556
      %v1767 = vunpack.c.l.b16 %v557
      %v1768 = vunpack.c.h.b16 %v557
      %v1769 = vunpack.c.l.b16 %v558
      %v1770 = vunpack.c.h.b16 %v558
      %v1771 = vunpack.c.l.b16 %v559
      %v1772 = vunpack.c.h.b16 %v559
      %v1773 = vunpack.c.l.b16 %v560
      %v1774 = vunpack.c.h.b16 %v560
      %v1775 = vunpack.c.l.b16 %v561
      %v1776 = vunpack.c.h.b16 %v561
      %v1777 = vunpack.c.l.b16 %v562
      %v1778 = vunpack.c.h.b16 %v562
      %v1779 = vpack.c.b16 %v1023, %v1011
      %v1780 = vpack.c.b16 %v1024, %v1012
      %v1781 = vpack.c.b16 %v1025, %v1013
      %v1782 = vpack.c.b16 %v1026, %v1014
      %v1783 = vpack.c.b16 %v1027, %v1015
      %v1784 = vpack.c.b16 %v1028, %v1016
      %v1785 = vpack.c.b16 %v1029, %v1017
      %v1786 = vpack.c.b16 %v1030, %v1018
      %v1787 = vpack.c.b16 %v1031, %v1019
      %v1788 = vpack.c.b16 %v1032, %v1020
      %v1789 = vpack.c.b16 %v1033, %v1021
      %v1790 = vpack.c.b16 %v1034, %v1022
      %v1791 = vpack.c.b16 %v1047, %v1035
      %v1792 = vpack.c.b16 %v1048, %v1036
      %v1793 = vpack.c.b16 %v1049, %v1037
      %v1794 = vpack.c.b16 %v1050, %v1038
      %v1795 = vpack.c.b16 %v1051, %v1039
      %v1796 = vpack.c.b16 %v1052, %v1040
      %v1797 = vpack.c.b16 %v1053, %v1041
      %v1798 = vpack.c.b16 %v1054, %v1042
      %v1799 = vpack.c.b16 %v1055, %v1043
      %v1800 = vpack.c.b16 %v1056, %v1044
      %v1801 = vpack.c.b16 %v1057, %v1045
      %v1802 = vpack.c.b16 %v1058, %v1046
      %v1803 = vpack.c.b16 %v1071, %v1059
      %v1804 = vpack.c.b16 %v1072, %v1060
      %v1805 = vpack.c.b16 %v1073, %v1061
      %v1806 = vpack.c.b16 %v1074, %v1062
      %v1807 = vpack.c.b16 %v1075, %v1063
      %v1808 = vpack.c.b16 %v1076, %v1064
      %v1809 = vpack.c.b16 %v1077, %v1065
      %v1810 = vpack.c.b16 %v1078, %v1066
      %v1811 = vpack.c.b16 %v1079, %v1067
      %v1812 = vpack.c.b16 %v1080, %v1068
      %v1813 = vpack.c.b16 %v1081, %v1069
      %v1814 = vpack.c.b16 %v1082, %v1070
      %v1815 = vpack.c.b16 %v1095, %v1083
      %v1816 = vpack.c.b16 %v1096, %v1084
      %v1817 = vpack.c.b16 %v1097, %v1085
      %v1818 = vpack.c.b16 %v1098, %v1086
      %v1819 = vpack.c.b16 %v1099, %v1087
      %v1820 = vpack.c.b16 %v1100, %v1088
      %v1821 = vpack.c.b16 %v1101, %v1089
      %v1822 = vpack.c.b16 %v1102, %v1090
      %v1823 = vpack.c.b16 %v1103, %v1091
      %v1824 = vpack.c.b16 %v1104, %v1092
      %v1825 = vpack.c.b16 %v1105, %v1093
      %v1826 = vpack.c.b16 %v1106, %v1094
      %v1827 = vpack.c.b16 %v1119, %v1107
      %v1828 = vpack.c.b16 %v1120, %v1108
      %v1829 = vpack.c.b16 %v1121, %v1109
      %v1830 = vpack.c.b16 %v1122, %v1110
      %v1831 = vpack.c.b16 %v1123, %v1111
      %v1832 = vpack.c.b16 %v1124, %v1112
      %v1833 = vpack.c.b16 %v1125, %v1113
      %v1834 = vpack.c.b16 %v1126, %v1114
      %v1835 = vpack.c.b16 %v1127, %v1115
      %v1836 = vpack.c.b16 %v1128, %v1116
      %v1837 = vpack.c.b16 %v1129, %v1117
      %v1838 = vpack.c.b16 %v1130, %v1118
      %v1839 = vpack.c.b16 %v1143, %v1131
      %v1840 = vpack.c.b16 %v1144, %v1132
      %v1841 = vpack.c.b16 %v1145, %v1133
      %v1842 = vpack.c.b16 %v1146, %v1134
      %v1843 = vpack.c.b16 %v1147, %v1135
      %v1844 = vpack.c.b16 %v1148, %v1136
      %v1845 = vpack.c.b16 %v1149, %v1137
      %v1846 = vpack.c.b16 %v1150, %v1138
      %v1847 = vpack.c.b16 %v1151, %v1139
      %v1848 = vpack.c.b16 %v1152, %v1140
      %v1849 = vpack.c.b16 %v1153, %v1141
      %v1850 = vpack.c.b16 %v1154, %v1142
      %v1851 = vpack.c.b16 %v1167, %v1155
      %v1852 = vpack.c.b16 %v1168, %v1156
      %v1853 = vpack.c.b16 %v1169, %v1157
      %v1854 = vpack.c.b16 %v1170, %v1158
      %v1855 = vpack.c.b16 %v1171, %v1159
      %v1856 = vpack.c.b16 %v1172, %v1160
      %v1857 = vpack.c.b16 %v1173, %v1161
      %v1858 = vpack.c.b16 %v1174, %v1162
      %v1859 = vpack.c.b16 %v1175, %v1163
      %v1860 = vpack.c.b16 %v1176, %v1164
      %v1861 = vpack.c.b16 %v1177, %v1165
      %v1862 = vpack.c.b16 %v1178, %v1166
      %v1863 = vpack.c.b16 %v1191, %v1179
      %v1864 = vpack.c.b16 %v1192, %v1180
      %v1865 = vpack.c.b16 %v1193, %v1181
      %v1866 = vpack.c.b16 %v1194, %v1182
      %v1867 = vpack.c.b16 %v1195, %v1183
      %v1868 = vpack.c.b16 %v1196, %v1184
      %v1869 = vpack.c.b16 %v1197, %v1185
      %v1870 = vpack.c.b16 %v1198, %v1186
      %v1871 = vpack.c.b16 %v1199, %v1187
      %v1872 = vpack.c.b16 %v1200, %v1188
      %v1873 = vpack.c.b16 %v1201, %v1189
      %v1874 = vpack.c.b16 %v1202, %v1190
      %v1875 = vpack.c.b16 %v1215, %v1203
      %v1876 = vpack.c.b16 %v1216, %v1204
      %v1877 = vpack.c.b16 %v1217, %v1205
      %v1878 = vpack.c.b16 %v1218, %v1206
      %v1879 = vpack.c.b16 %v1219, %v1207
      %v1880 = vpack.c.b16 %v1220, %v1208
      %v1881 = vpack.c.b16 %v1221, %v1209
      %v1882 = vpack.c.b16 %v1222, %v1210
      %v1883 = vpack.c.b16 %v1223, %v1211
      %v1884 = vpack.c.b16 %v1224, %v1212
      %v1885 = vpack.c.b16 %v1225, %v1213
      %v1886 = vpack.c.b16 %v1226, %v1214
      %v1887 = vpack.c.b16 %v1239, %v1227
      %v1888 = vpack.c.b16 %v1240, %v1228
      %v1889 = vpack.c.b16 %v1241, %v1229
      %v1890 = vpack.c.b16 %v1242, %v1230
      %v1891 = vpack.c.b16 %v1243, %v1231
      %v1892 = vpack.c.b16 %v1244, %v1232
      %v1893 = vpack.c.b16 %v1245, %v1233
      %v1894 = vpack.c.b16 %v1246, %v1234
      %v1895 = vpack.c.b16 %v1247, %v1235
      %v1896 = vpack.c.b16 %v1248, %v1236
      %v1897 = vpack.c.b16 %v1249, %v1237
      %v1898 = vpack.c.b16 %v1250, %v1238
      %v1899 = vpack.c.b16 %v1263, %v1251
      %v1900 = vpack.c.b16 %v1264, %v1252
      %v1901 = vpack.c.b16 %v1265, %v1253
      %v1902 = vpack.c.b16 %v1266, %v1254
      %v1903 = vpack.c.b16 %v1267, %v1255
      %v1904 = vpack.c.b16 %v1268, %v1256
      %v1905 = vpack.c.b16 %v1269, %v1257
      %v1906 = vpack.c.b16 %v1270, %v1258
      %v1907 = vpack.c.b16 %v1271, %v1259
      %v1908 = vpack.c.b16 %v1272, %v1260
      %v1909 = vpack.c.b16 %v1273, %v1261
      %v1910 = vpack.c.b16 %v1274, %v1262
      %v1911 = vpack.c.b16 %v1287, %v1275
      %v1912 = vpack.c.b16 %v1288, %v1276
      %v1913 = vpack.c.b16 %v1289, %v1277
      %v1914 = vpack.c.b16 %v1290, %v1278
      %v1915 = vpack.c.b16 %v1291, %v1279
      %v1916 = vpack.c.b16 %v1292, %v1280
      %v1917 = vpack.c.b16 %v1293, %v1281
      %v1918 = vpack.c.b16 %v1294, %v1282
      %v1919 = vpack.c.b16 %v1295, %v1283
      %v1920 = vpack.c.b16 %v1296, %v1284
      %v1921 = vpack.c.b16 %v1297, %v1285
      %v1922 = vpack.c.b16 %v1298, %v1286
      %v1923 = vpack.c.b16 %v1311, %v1299
      %v1924 = vpack.c.b16 %v1312, %v1300
      %v1925 = vpack.c.b16 %v1313, %v1301
      %v1926 = vpack.c.b16 %v1314, %v1302
      %v1927 = vpack.c.b16 %v1315, %v1303
      %v1928 = vpack.c.b16 %v1316, %v1304
      %v1929 = vpack.c.b16 %v1317, %v1305
      %v1930 = vpack.c.b16 %v1318, %v1306
      %v1931 = vpack.c.b16 %v1319, %v1307
      %v1932 = vpack.c.b16 %v1320, %v1308
      %v1933 = vpack.c.b16 %v1321, %v1309
      %v1934 = vpack.c.b16 %v1322, %v1310
      %v1935 = vpack.c.b16 %v1335, %v1323
      %v1936 = vpack.c.b16 %v1336, %v1324
      %v1937 = vpack.c.b16 %v1337, %v1325
      %v1938 = vpack.c.b16 %v1338, %v1326
      %v1939 = vpack.c.b16 %v1339, %v1327
      %v1940 = vpack.c.b16 %v1340, %v1328
      %v1941 = vpack.c.b16 %v1341, %v1329
      %v1942 = vpack.c.b16 %v1342, %v1330
      %v1943 = vpack.c.b16 %v1343, %v1331
      %v1944 = vpack.c.b16 %v1344, %v1332
      %v1945 = vpack.c.b16 %v1345, %v1333
      %v1946 = vpack.c.b16 %v1346, %v1334
      %v1947 = vpack.c.b16 %v1359, %v1347
      %v1948 = vpack.c.b16 %v1360, %v1348
      %v1949 = vpack.c.b16 %v1361, %v1349
      %v1950 = vpack.c.b16 %v1362, %v1350
      %v1951 = vpack.c.b16 %v1363, %v1351
      %v1952 = vpack.c.b16 %v1364, %v1352
      %v1953 = vpack.c.b16 %v1365, %v1353
      %v1954 = vpack.c.b16 %v1366, %v1354
      %v1955 = vpack.c.b16 %v1367, %v1355
      %v1956 = vpack.c.b16 %v1368, %v1356
      %v1957 = vpack.c.b16 %v1369, %v1357
      %v1958 = vpack.c.b16 %v1370, %v1358
      %v1959 = vpack.c.b16 %v1383, %v1371
      %v1960 = vpack.c.b16 %v1384, %v1372
      %v1961 = vpack.c.b16 %v1385, %v1373
      %v1962 = vpack.c.b16 %v1386, %v1374
      %v1963 = vpack.c.b16 %v1387, %v1375
      %v1964 = vpack.c.b16 %v1388, %v1376
      %v1965 = vpack.c.b16 %v1389, %v1377
      %v1966 = vpack.c.b16 %v1390, %v1378
      %v1967 = vpack.c.b16 %v1391, %v1379
      %v1968 = vpack.c.b16 %v1392, %v1380
      %v1969 = vpack.c.b16 %v1393, %v1381
      %v1970 = vpack.c.b16 %v1394, %v1382
      %v1971 = vpack.c.b16 %v1407, %v1395
      %v1972 = vpack.c.b16 %v1408, %v1396
      %v1973 = vpack.c.b16 %v1409, %v1397
      %v1974 = vpack.c.b16 %v1410, %v1398
      %v1975 = vpack.c.b16 %v1411, %v1399
      %v1976 = vpack.c.b16 %v1412, %v1400
      %v1977 = vpack.c.b16 %v1413, %v1401
      %v1978 = vpack.c.b16 %v1414, %v1402
      %v1979 = vpack.c.b16 %v1415, %v1403
      %v1980 = vpack.c.b16 %v1416, %v1404
      %v1981 = vpack.c.b16 %v1417, %v1405
      %v1982 = vpack.c.b16 %v1418, %v1406
      %v1983 = vpack.c.b16 %v1431, %v1419
      %v1984 = vpack.c.b16 %v1432, %v1420
      %v1985 = vpack.c.b16 %v1433, %v1421
      %v1986 = vpack.c.b16 %v1434, %v1422
      %v1987 = vpack.c.b16 %v1435, %v1423
      %v1988 = vpack.c.b16 %v1436, %v1424
      %v1989 = vpack.c.b16 %v1437, %v1425
      %v1990 = vpack.c.b16 %v1438, %v1426
      %v1991 = vpack.c.b16 %v1439, %v1427
      %v1992 = vpack.c.b16 %v1440, %v1428
      %v1993 = vpack.c.b16 %v1441, %v1429
      %v1994 = vpack.c.b16 %v1442, %v1430
      %v1995 = vpack.c.b16 %v1455, %v1443
      %v1996 = vpack.c.b16 %v1456, %v1444
      %v1997 = vpack.c.b16 %v1457, %v1445
      %v1998 = vpack.c.b16 %v1458, %v1446
      %v1999 = vpack.c.b16 %v1459, %v1447
      %v2000 = vpack.c.b16 %v1460, %v1448
      %v2001 = vpack.c.b16 %v1461, %v1449
      %v2002 = vpack.c.b16 %v1462, %v1450
      %v2003 = vpack.c.b16 %v1463, %v1451
      %v2004 = vpack.c.b16 %v1464, %v1452
      %v2005 = vpack.c.b16 %v1465, %v1453
      %v2006 = vpack.c.b16 %v1466, %v1454
      %v2007 = vpack.c.b16 %v1479, %v1467
      %v2008 = vpack.c.b16 %v1480, %v1468
      %v2009 = vpack.c.b16 %v1481, %v1469
      %v2010 = vpack.c.b16 %v1482, %v1470
      %v2011 = vpack.c.b16 %v1483, %v1471
      %v2012 = vpack.c.b16 %v1484, %v1472
      %v2013 = vpack.c.b16 %v1485, %v1473
      %v2014 = vpack.c.b16 %v1486, %v1474
      %v2015 = vpack.c.b16 %v1487, %v1475
      %v2016 = vpack.c.b16 %v1488, %v1476
      %v2017 = vpack.c.b16 %v1489, %v1477
      %v2018 = vpack.c.b16 %v1490, %v1478
      %v2019 = vpack.c.b16 %v1503, %v1491
      %v2020 = vpack.c.b16 %v1504, %v1492
      %v2021 = vpack.c.b16 %v1505, %v1493
      %v2022 = vpack.c.b16 %v1506, %v1494
      %v2023 = vpack.c.b16 %v1507, %v1495
      %v2024 = vpack.c.b16 %v1508, %v1496
      %v2025 = vpack.c.b16 %v1509, %v1497
      %v2026 = vpack.c.b16 %v1510, %v1498
      %v2027 = vpack.c.b16 %v1511, %v1499
      %v2028 = vpack.c.b16 %v1512, %v1500
      %v2029 = vpack.c.b16 %v1513, %v1501
      %v2030 = vpack.c.b16 %v1514, %v1502
      %v2031 = vpack.c.b16 %v1527, %v1515
      %v2032 = vpack.c.b16 %v1528, %v1516
      %v2033 = vpack.c.b16 %v1529, %v1517
      %v2034 = vpack.c.b16 %v1530, %v1518
      %v2035 = vpack.c.b16 %v1531, %v1519
      %v2036 = vpack.c.b16 %v1532, %v1520
      %v2037 = vpack.c.b16 %v1533, %v1521
      %v2038 = vpack.c.b16 %v1534, %v1522
      %v2039 = vpack.c.b16 %v1535, %v1523
      %v2040 = vpack.c.b16 %v1536, %v1524
      %v2041 = vpack.c.b16 %v1537, %v1525
      %v2042 = vpack.c.b16 %v1538, %v1526
      %v2043 = vpack.c.b16 %v1551, %v1539
      %v2044 = vpack.c.b16 %v1552, %v1540
      %v2045 = vpack.c.b16 %v1553, %v1541
      %v2046 = vpack.c.b16 %v1554, %v1542
      %v2047 = vpack.c.b16 %v1555, %v1543
      %v2048 = vpack.c.b16 %v1556, %v1544
      %v2049 = vpack.c.b16 %v1557, %v1545
      %v2050 = vpack.c.b16 %v1558, %v1546
      %v2051 = vpack.c.b16 %v1559, %v1547
      %v2052 = vpack.c.b16 %v1560, %v1548
      %v2053 = vpack.c.b16 %v1561, %v1549
      %v2054 = vpack.c.b16 %v1562, %v1550
      %v2055 = vpack.c.b16 %v1575, %v1563
      %v2056 = vpack.c.b16 %v1576, %v1564
      %v2057 = vpack.c.b16 %v1577, %v1565
      %v2058 = vpack.c.b16 %v1578, %v1566
      %v2059 = vpack.c.b16 %v1579, %v1567
      %v2060 = vpack.c.b16 %v1580, %v1568
      %v2061 = vpack.c.b16 %v1581, %v1569
      %v2062 = vpack.c.b16 %v1582, %v1570
      %v2063 = vpack.c.b16 %v1583, %v1571
      %v2064 = vpack.c.b16 %v1584, %v1572
      %v2065 = vpack.c.b16 %v1585, %v1573
      %v2066 = vpack.c.b16 %v1586, %v1574
      %v2067 = vpack.c.b16 %v1599, %v1587
      %v2068 = vpack.c.b16 %v1600, %v1588
      %v2069 = vpack.c.b16 %v1601, %v1589
      %v2070 = vpack.c.b16 %v1602, %v1590
      %v2071 = vpack.c.b16 %v1603, %v1591
      %v2072 = vpack.c.b16 %v1604, %v1592
      %v2073 = vpack.c.b16 %v1605, %v1593
      %v2074 = vpack.c.b16 %v1606, %v1594
      %v2075 = vpack.c.b16 %v1607, %v1595
      %v2076 = vpack.c.b16 %v1608, %v1596
      %v2077 = vpack.c.b16 %v1609, %v1597
      %v2078 = vpack.c.b16 %v1610, %v1598
      %v2079 = vpack.c.b16 %v1623, %v1611
      %v2080 = vpack.c.b16 %v1624, %v1612
      %v2081 = vpack.c.b16 %v1625, %v1613
      %v2082 = vpack.c.b16 %v1626, %v1614
      %v2083 = vpack.c.b16 %v1627, %v1615
      %v2084 = vpack.c.b16 %v1628, %v1616
      %v2085 = vpack.c.b16 %v1629, %v1617
      %v2086 = vpack.c.b16 %v1630, %v1618
      %v2087 = vpack.c.b16 %v1631, %v1619
      %v2088 = vpack.c.b16 %v1632, %v1620
      %v2089 = vpack.c.b16 %v1633, %v1621
      %v2090 = vpack.c.b16 %v1634, %v1622
      %v2091 = vpack.c.b16 %v1647, %v1635
      %v2092 = vpack.c.b16 %v1648, %v1636
      %v2093 = vpack.c.b16 %v1649, %v1637
      %v2094 = vpack.c.b16 %v1650, %v1638
      %v2095 = vpack.c.b16 %v1651, %v1639
      %v2096 = vpack.c.b16 %v1652, %v1640
      %v2097 = vpack.c.b16 %v1653, %v1641
      %v2098 = vpack.c.b16 %v1654, %v1642
      %v2099 = vpack.c.b16 %v1655, %v1643
      %v2100 = vpack.c.b16 %v1656, %v1644
      %v2101 = vpack.c.b16 %v1657, %v1645
      %v2102 = vpack.c.b16 %v1658, %v1646
      %v2103 = vpack.c.b16 %v1671, %v1659
      %v2104 = vpack.c.b16 %v1672, %v1660
      %v2105 = vpack.c.b16 %v1673, %v1661
      %v2106 = vpack.c.b16 %v1674, %v1662
      %v2107 = vpack.c.b16 %v1675, %v1663
      %v2108 = vpack.c.b16 %v1676, %v1664
      %v2109 = vpack.c.b16 %v1677, %v1665
      %v2110 = vpack.c.b16 %v1678, %v1666
      %v2111 = vpack.c.b16 %v1679, %v1667
      %v2112 = vpack.c.b16 %v1680, %v1668
      %v2113 = vpack.c.b16 %v1681, %v1669
      %v2114 = vpack.c.b16 %v1682, %v1670
      %v2115 = vpack.c.b16 %v1695, %v1683
      %v2116 = vpack.c.b16 %v1696, %v1684
      %v2117 = vpack.c.b16 %v1697, %v1685
      %v2118 = vpack.c.b16 %v1698, %v1686
      %v2119 = vpack.c.b16 %v1699, %v1687
      %v2120 = vpack.c.b16 %v1700, %v1688
      %v2121 = vpack.c.b16 %v1701, %v1689
      %v2122 = vpack.c.b16 %v1702, %v1690
      %v2123 = vpack.c.b16 %v1703, %v1691
      %v2124 = vpack.c.b16 %v1704, %v1692
      %v2125 = vpack.c.b16 %v1705, %v1693
      %v2126 = vpack.c.b16 %v1706, %v1694
      %v2127 = vpack.c.b16 %v1719, %v1707
      %v2128 = vpack.c.b16 %v1720, %v1708
      %v2129 = vpack.c.b16 %v1721, %v1709
      %v2130 = vpack.c.b16 %v1722, %v1710
      %v2131 = vpack.c.b16 %v1723, %v1711
      %v2132 = vpack.c.b16 %v1724, %v1712
      %v2133 = vpack.c.b16 %v1725, %v1713
      %v2134 = vpack.c.b16 %v1726, %v1714
      %v2135 = vpack.c.b16 %v1727, %v1715
      %v2136 = vpack.c.b16 %v1728, %v1716
      %v2137 = vpack.c.b16 %v1729, %v1717
      %v2138 = vpack.c.b16 %v1730, %v1718
      %v2139 = vpack.c.b16 %v1743, %v1731
      %v2140 = vpack.c.b16 %v1744, %v1732
      %v2141 = vpack.c.b16 %v1745, %v1733
      %v2142 = vpack.c.b16 %v1746, %v1734
      %v2143 = vpack.c.b16 %v1747, %v1735
      %v2144 = vpack.c.b16 %v1748, %v1736
      %v2145 = vpack.c.b16 %v1749, %v1737
      %v2146 = vpack.c.b16 %v1750, %v1738
      %v2147 = vpack.c.b16 %v1751, %v1739
      %v2148 = vpack.c.b16 %v1752, %v1740
      %v2149 = vpack.c.b16 %v1753, %v1741
      %v2150 = vpack.c.b16 %v1754, %v1742
      %v2151 = vpack.c.b16 %v1767, %v1755
      %v2152 = vpack.c.b16 %v1768, %v1756
      %v2153 = vpack.c.b16 %v1769, %v1757
      %v2154 = vpack.c.b16 %v1770, %v1758
      %v2155 = vpack.c.b16 %v1771, %v1759
      %v2156 = vpack.c.b16 %v1772, %v1760
      %v2157 = vpack.c.b16 %v1773, %v1761
      %v2158 = vpack.c.b16 %v1774, %v1762
      %v2159 = vpack.c.b16 %v1775, %v1763
      %v2160 = vpack.c.b16 %v1776, %v1764
      %v2161 = vpack.c.b16 %v1777, %v1765
      %v2162 = vpack.c.b16 %v1778, %v1766
      %2547 = vmatprep.subr.bf16.mxu0 %v1864
      %2548 = vmatpush1.bf16.msra.mxu0 %v1863
      %2549 = vmatprep.subr.bf16.mxu0 %v1852
      %2550 = vmatpush1.bf16.msra.mxu0 %v1851
      %2551 = vmatprep.subr.bf16.mxu0 %v1840
      %2552 = vmatpush1.bf16.msra.mxu0 %v1839
      %2553 = vmatprep.subr.bf16.mxu0 %v1828
      %2554 = vmatpush1.bf16.msra.mxu0 %v1827
      %2555 = vmatprep.subr.bf16.mxu0 %v1816
      %2556 = vmatpush1.bf16.msra.mxu0 %v1815
      %2557 = vmatprep.subr.bf16.mxu0 %v1804
      %2558 = vmatpush1.bf16.msra.mxu0 %v1803
      %2559 = vmatprep.subr.bf16.mxu0 %v1792
      %2560 = vmatpush1.bf16.msra.mxu0 %v1791
      %2561 = vmatprep.subr.bf16.mxu0 %v1780
      %2562 = vmatpush1.bf16.msra.mxu0 %v1779
      %2563 = vmatprep.subr.bf16.mxu0 %v1960
      %2564 = vmatpush2.bf16.msra.mxu0 %v1959
      %2565 = vmatprep.subr.bf16.mxu0 %v1948
      %2566 = vmatpush2.bf16.msra.mxu0 %v1947
      %2567 = vmatprep.subr.bf16.mxu0 %v1936
      %2568 = vmatpush2.bf16.msra.mxu0 %v1935
      %2569 = vmatprep.subr.bf16.mxu0 %v1924
      %2570 = vmatpush2.bf16.msra.mxu0 %v1923
      %2571 = vmatprep.subr.bf16.mxu0 %v1912
      %2572 = vmatpush2.bf16.msra.mxu0 %v1911
      %2573 = vmatprep.subr.bf16.mxu0 %v1900
      %2574 = vmatpush2.bf16.msra.mxu0 %v1899
      %2575 = vmatprep.subr.bf16.mxu0 %v1888
      %2576 = vmatpush2.bf16.msra.mxu0 %v1887
      %2577 = vmatprep.subr.bf16.mxu0 %v1876
      %2578 = vmatpush2.bf16.msra.mxu0 %v1875
      %2579 = vmatprep.mubr.bf16.mxu0 %v176
      %2580 = vmatmul.mubr.bf16.gmra.mxu0 %v175
      %v2581 = vpop.f32.mrf.mxu0
      %v2582 = vadd.f32 %v570, %v2581
      %v2583 = vpop.f32.mrf.mxu0
      %v2584 = vadd.f32 %v574, %v2583
      %v2585 = vpop.f32.mrf.mxu0
      %v2586 = vpop.f32.mrf.mxu0
      %2587 = vdwg.mxu0
      %2588 = vmatprep.subr.bf16.mxu0 %v2056
      %2589 = vmatpush1.bf16.msra.mxu0 %v2055
      %2590 = vmatprep.subr.bf16.mxu0 %v2044
      %2591 = vmatpush1.bf16.msra.mxu0 %v2043
      %2592 = vmatprep.subr.bf16.mxu0 %v2032
      %2593 = vmatpush1.bf16.msra.mxu0 %v2031
      %2594 = vmatprep.subr.bf16.mxu0 %v2020
      %2595 = vmatpush1.bf16.msra.mxu0 %v2019
      %2596 = vmatprep.subr.bf16.mxu0 %v2008
      %2597 = vmatpush1.bf16.msra.mxu0 %v2007
      %2598 = vmatprep.subr.bf16.mxu0 %v1996
      %2599 = vmatpush1.bf16.msra.mxu0 %v1995
      %2600 = vmatprep.subr.bf16.mxu0 %v1984
      %2601 = vmatpush1.bf16.msra.mxu0 %v1983
      %2602 = vmatprep.subr.bf16.mxu0 %v1972
      %2603 = vmatpush1.bf16.msra.mxu0 %v1971
      %2604 = vmatprep.subr.bf16.mxu0 %v2152
      %2605 = vmatpush2.bf16.msra.mxu0 %v2151
      %2606 = vmatprep.subr.bf16.mxu0 %v2140
      %2607 = vmatpush2.bf16.msra.mxu0 %v2139
      %2608 = vmatprep.subr.bf16.mxu0 %v2128
      %2609 = vmatpush2.bf16.msra.mxu0 %v2127
      %2610 = vmatprep.subr.bf16.mxu0 %v2116
      %2611 = vmatpush2.bf16.msra.mxu0 %v2115
      %2612 = vmatprep.subr.bf16.mxu0 %v2104
      %2613 = vmatpush2.bf16.msra.mxu0 %v2103
      %2614 = vmatprep.subr.bf16.mxu0 %v2092
      %2615 = vmatpush2.bf16.msra.mxu0 %v2091
      %2616 = vmatprep.subr.bf16.mxu0 %v2080
      %2617 = vmatpush2.bf16.msra.mxu0 %v2079
      %2618 = vmatprep.subr.bf16.mxu0 %v2068
      %2619 = vmatpush2.bf16.msra.mxu0 %v2067
      %2620 = vmatprep.mubr.bf16.mxu0 %v178
      %2621 = vmatmul.mubr.bf16.gmra.mxu0 %v177
      %v2622 = vpop.f32.mrf.mxu0
      %v2623 = vadd.f32 %v2582, %v2622
      %v2624 = vpop.f32.mrf.mxu0
      %v2625 = vadd.f32 %v2584, %v2624
      %v2626 = vpop.f32.mrf.mxu0
      %v2627 = vpop.f32.mrf.mxu0
      %2628 = vdwg.mxu0
      %2629 = vmatprep.subr.bf16.mxu0 %v1866
      %2630 = vmatpush1.bf16.msra.mxu0 %v1865
      %2631 = vmatprep.subr.bf16.mxu0 %v1854
      %2632 = vmatpush1.bf16.msra.mxu0 %v1853
      %2633 = vmatprep.subr.bf16.mxu0 %v1842
      %2634 = vmatpush1.bf16.msra.mxu0 %v1841
      %2635 = vmatprep.subr.bf16.mxu0 %v1830
      %2636 = vmatpush1.bf16.msra.mxu0 %v1829
      %2637 = vmatprep.subr.bf16.mxu0 %v1818
      %2638 = vmatpush1.bf16.msra.mxu0 %v1817
      %2639 = vmatprep.subr.bf16.mxu0 %v1806
      %2640 = vmatpush1.bf16.msra.mxu0 %v1805
      %2641 = vmatprep.subr.bf16.mxu0 %v1794
      %2642 = vmatpush1.bf16.msra.mxu0 %v1793
      %2643 = vmatprep.subr.bf16.mxu0 %v1782
      %2644 = vmatpush1.bf16.msra.mxu0 %v1781
      %2645 = vmatprep.subr.bf16.mxu0 %v1962
      %2646 = vmatpush2.bf16.msra.mxu0 %v1961
      %2647 = vmatprep.subr.bf16.mxu0 %v1950
      %2648 = vmatpush2.bf16.msra.mxu0 %v1949
      %2649 = vmatprep.subr.bf16.mxu0 %v1938
      %2650 = vmatpush2.bf16.msra.mxu0 %v1937
      %2651 = vmatprep.subr.bf16.mxu0 %v1926
      %2652 = vmatpush2.bf16.msra.mxu0 %v1925
      %2653 = vmatprep.subr.bf16.mxu0 %v1914
      %2654 = vmatpush2.bf16.msra.mxu0 %v1913
      %2655 = vmatprep.subr.bf16.mxu0 %v1902
      %2656 = vmatpush2.bf16.msra.mxu0 %v1901
      %2657 = vmatprep.subr.bf16.mxu0 %v1890
      %2658 = vmatpush2.bf16.msra.mxu0 %v1889
      %2659 = vmatprep.subr.bf16.mxu0 %v1878
      %2660 = vmatpush2.bf16.msra.mxu0 %v1877
      %2661 = vmatprep.mubr.bf16.mxu0 %v176
      %2662 = vmatmul.mubr.bf16.gmra.mxu0 %v175
      %v2663 = vpop.f32.mrf.mxu0
      %v2664 = vadd.f32 %v578, %v2663
      %v2665 = vpop.f32.mrf.mxu0
      %v2666 = vadd.f32 %v582, %v2665
      %v2667 = vpop.f32.mrf.mxu0
      %v2668 = vpop.f32.mrf.mxu0
      %2669 = vdwg.mxu0
      %2670 = vmatprep.subr.bf16.mxu0 %v2058
      %2671 = vmatpush1.bf16.msra.mxu0 %v2057
      %2672 = vmatprep.subr.bf16.mxu0 %v2046
      %2673 = vmatpush1.bf16.msra.mxu0 %v2045
      %2674 = vmatprep.subr.bf16.mxu0 %v2034
      %2675 = vmatpush1.bf16.msra.mxu0 %v2033
      %2676 = vmatprep.subr.bf16.mxu0 %v2022
      %2677 = vmatpush1.bf16.msra.mxu0 %v2021
      %2678 = vmatprep.subr.bf16.mxu0 %v2010
      %2679 = vmatpush1.bf16.msra.mxu0 %v2009
      %2680 = vmatprep.subr.bf16.mxu0 %v1998
      %2681 = vmatpush1.bf16.msra.mxu0 %v1997
      %2682 = vmatprep.subr.bf16.mxu0 %v1986
      %2683 = vmatpush1.bf16.msra.mxu0 %v1985
      %2684 = vmatprep.subr.bf16.mxu0 %v1974
      %2685 = vmatpush1.bf16.msra.mxu0 %v1973
      %2686 = vmatprep.subr.bf16.mxu0 %v2154
      %2687 = vmatpush2.bf16.msra.mxu0 %v2153
      %2688 = vmatprep.subr.bf16.mxu0 %v2142
      %2689 = vmatpush2.bf16.msra.mxu0 %v2141
      %2690 = vmatprep.subr.bf16.mxu0 %v2130
      %2691 = vmatpush2.bf16.msra.mxu0 %v2129
      %2692 = vmatprep.subr.bf16.mxu0 %v2118
      %2693 = vmatpush2.bf16.msra.mxu0 %v2117
      %2694 = vmatprep.subr.bf16.mxu0 %v2106
      %2695 = vmatpush2.bf16.msra.mxu0 %v2105
      %2696 = vmatprep.subr.bf16.mxu0 %v2094
      %2697 = vmatpush2.bf16.msra.mxu0 %v2093
      %2698 = vmatprep.subr.bf16.mxu0 %v2082
      %2699 = vmatpush2.bf16.msra.mxu0 %v2081
      %2700 = vmatprep.subr.bf16.mxu0 %v2070
      %2701 = vmatpush2.bf16.msra.mxu0 %v2069
      %2702 = vmatprep.mubr.bf16.mxu0 %v178
      %2703 = vmatmul.mubr.bf16.gmra.mxu0 %v177
      %v2704 = vpop.f32.mrf.mxu0
      %v2705 = vadd.f32 %v2664, %v2704
      %v2706 = vpop.f32.mrf.mxu0
      %v2707 = vadd.f32 %v2666, %v2706
      %v2708 = vpop.f32.mrf.mxu0
      %v2709 = vpop.f32.mrf.mxu0
      %2710 = vdwg.mxu0
      %2711 = vmatprep.subr.bf16.mxu0 %v1868
      %2712 = vmatpush1.bf16.msra.mxu0 %v1867
      %2713 = vmatprep.subr.bf16.mxu0 %v1856
      %2714 = vmatpush1.bf16.msra.mxu0 %v1855
      %2715 = vmatprep.subr.bf16.mxu0 %v1844
      %2716 = vmatpush1.bf16.msra.mxu0 %v1843
      %2717 = vmatprep.subr.bf16.mxu0 %v1832
      %2718 = vmatpush1.bf16.msra.mxu0 %v1831
      %2719 = vmatprep.subr.bf16.mxu0 %v1820
      %2720 = vmatpush1.bf16.msra.mxu0 %v1819
      %2721 = vmatprep.subr.bf16.mxu0 %v1808
      %2722 = vmatpush1.bf16.msra.mxu0 %v1807
      %2723 = vmatprep.subr.bf16.mxu0 %v1796
      %2724 = vmatpush1.bf16.msra.mxu0 %v1795
      %2725 = vmatprep.subr.bf16.mxu0 %v1784
      %2726 = vmatpush1.bf16.msra.mxu0 %v1783
      %2727 = vmatprep.subr.bf16.mxu0 %v1964
      %2728 = vmatpush2.bf16.msra.mxu0 %v1963
      %2729 = vmatprep.subr.bf16.mxu0 %v1952
      %2730 = vmatpush2.bf16.msra.mxu0 %v1951
      %2731 = vmatprep.subr.bf16.mxu0 %v1940
      %2732 = vmatpush2.bf16.msra.mxu0 %v1939
      %2733 = vmatprep.subr.bf16.mxu0 %v1928
      %2734 = vmatpush2.bf16.msra.mxu0 %v1927
      %2735 = vmatprep.subr.bf16.mxu0 %v1916
      %2736 = vmatpush2.bf16.msra.mxu0 %v1915
      %2737 = vmatprep.subr.bf16.mxu0 %v1904
      %2738 = vmatpush2.bf16.msra.mxu0 %v1903
      %2739 = vmatprep.subr.bf16.mxu0 %v1892
      %2740 = vmatpush2.bf16.msra.mxu0 %v1891
      %2741 = vmatprep.subr.bf16.mxu0 %v1880
      %2742 = vmatpush2.bf16.msra.mxu0 %v1879
      %2743 = vmatprep.mubr.bf16.mxu0 %v176
      %2744 = vmatmul.mubr.bf16.gmra.mxu0 %v175
      %v2745 = vpop.f32.mrf.mxu0
      %v2746 = vadd.f32 %v586, %v2745
      %v2747 = vpop.f32.mrf.mxu0
      %v2748 = vadd.f32 %v590, %v2747
      %v2749 = vpop.f32.mrf.mxu0
      %v2750 = vpop.f32.mrf.mxu0
      %2751 = vdwg.mxu0
      %2752 = vmatprep.subr.bf16.mxu0 %v2060
      %2753 = vmatpush1.bf16.msra.mxu0 %v2059
      %2754 = vmatprep.subr.bf16.mxu0 %v2048
      %2755 = vmatpush1.bf16.msra.mxu0 %v2047
      %2756 = vmatprep.subr.bf16.mxu0 %v2036
      %2757 = vmatpush1.bf16.msra.mxu0 %v2035
      %2758 = vmatprep.subr.bf16.mxu0 %v2024
      %2759 = vmatpush1.bf16.msra.mxu0 %v2023
      %2760 = vmatprep.subr.bf16.mxu0 %v2012
      %2761 = vmatpush1.bf16.msra.mxu0 %v2011
      %2762 = vmatprep.subr.bf16.mxu0 %v2000
      %2763 = vmatpush1.bf16.msra.mxu0 %v1999
      %2764 = vmatprep.subr.bf16.mxu0 %v1988
      %2765 = vmatpush1.bf16.msra.mxu0 %v1987
      %2766 = vmatprep.subr.bf16.mxu0 %v1976
      %2767 = vmatpush1.bf16.msra.mxu0 %v1975
      %2768 = vmatprep.subr.bf16.mxu0 %v2156
      %2769 = vmatpush2.bf16.msra.mxu0 %v2155
      %2770 = vmatprep.subr.bf16.mxu0 %v2144
      %2771 = vmatpush2.bf16.msra.mxu0 %v2143
      %2772 = vmatprep.subr.bf16.mxu0 %v2132
      %2773 = vmatpush2.bf16.msra.mxu0 %v2131
      %2774 = vmatprep.subr.bf16.mxu0 %v2120
      %2775 = vmatpush2.bf16.msra.mxu0 %v2119
      %2776 = vmatprep.subr.bf16.mxu0 %v2108
      %2777 = vmatpush2.bf16.msra.mxu0 %v2107
      %2778 = vmatprep.subr.bf16.mxu0 %v2096
      %2779 = vmatpush2.bf16.msra.mxu0 %v2095
      %2780 = vmatprep.subr.bf16.mxu0 %v2084
      %2781 = vmatpush2.bf16.msra.mxu0 %v2083
      %2782 = vmatprep.subr.bf16.mxu0 %v2072
      %2783 = vmatpush2.bf16.msra.mxu0 %v2071
      %2784 = vmatprep.mubr.bf16.mxu0 %v178
      %2785 = vmatmul.mubr.bf16.gmra.mxu0 %v177
      %v2786 = vpop.f32.mrf.mxu0
      %v2787 = vadd.f32 %v2746, %v2786
      %v2788 = vpop.f32.mrf.mxu0
      %v2789 = vadd.f32 %v2748, %v2788
      %v2790 = vpop.f32.mrf.mxu0
      %v2791 = vpop.f32.mrf.mxu0
      %2792 = vdwg.mxu0
      %2793 = vmatprep.subr.bf16.mxu0 %v1870
      %2794 = vmatpush1.bf16.msra.mxu0 %v1869
      %2795 = vmatprep.subr.bf16.mxu0 %v1858
      %2796 = vmatpush1.bf16.msra.mxu0 %v1857
      %2797 = vmatprep.subr.bf16.mxu0 %v1846
      %2798 = vmatpush1.bf16.msra.mxu0 %v1845
      %2799 = vmatprep.subr.bf16.mxu0 %v1834
      %2800 = vmatpush1.bf16.msra.mxu0 %v1833
      %2801 = vmatprep.subr.bf16.mxu0 %v1822
      %2802 = vmatpush1.bf16.msra.mxu0 %v1821
      %2803 = vmatprep.subr.bf16.mxu0 %v1810
      %2804 = vmatpush1.bf16.msra.mxu0 %v1809
      %2805 = vmatprep.subr.bf16.mxu0 %v1798
      %2806 = vmatpush1.bf16.msra.mxu0 %v1797
      %2807 = vmatprep.subr.bf16.mxu0 %v1786
      %2808 = vmatpush1.bf16.msra.mxu0 %v1785
      %2809 = vmatprep.subr.bf16.mxu0 %v1966
      %2810 = vmatpush2.bf16.msra.mxu0 %v1965
      %2811 = vmatprep.subr.bf16.mxu0 %v1954
      %2812 = vmatpush2.bf16.msra.mxu0 %v1953
      %2813 = vmatprep.subr.bf16.mxu0 %v1942
      %2814 = vmatpush2.bf16.msra.mxu0 %v1941
      %2815 = vmatprep.subr.bf16.mxu0 %v1930
      %2816 = vmatpush2.bf16.msra.mxu0 %v1929
      %2817 = vmatprep.subr.bf16.mxu0 %v1918
      %2818 = vmatpush2.bf16.msra.mxu0 %v1917
      %2819 = vmatprep.subr.bf16.mxu0 %v1906
      %2820 = vmatpush2.bf16.msra.mxu0 %v1905
      %2821 = vmatprep.subr.bf16.mxu0 %v1894
      %2822 = vmatpush2.bf16.msra.mxu0 %v1893
      %2823 = vmatprep.subr.bf16.mxu0 %v1882
      %2824 = vmatpush2.bf16.msra.mxu0 %v1881
      %2825 = vmatprep.mubr.bf16.mxu0 %v176
      %2826 = vmatmul.mubr.bf16.gmra.mxu0 %v175
      %v2827 = vpop.f32.mrf.mxu0
      %v2828 = vadd.f32 %v594, %v2827
      %v2829 = vpop.f32.mrf.mxu0
      %v2830 = vadd.f32 %v598, %v2829
      %v2831 = vpop.f32.mrf.mxu0
      %v2832 = vpop.f32.mrf.mxu0
      %2833 = vdwg.mxu0
      %2834 = vmatprep.subr.bf16.mxu0 %v2062
      %2835 = vmatpush1.bf16.msra.mxu0 %v2061
      %2836 = vmatprep.subr.bf16.mxu0 %v2050
      %2837 = vmatpush1.bf16.msra.mxu0 %v2049
      %2838 = vmatprep.subr.bf16.mxu0 %v2038
      %2839 = vmatpush1.bf16.msra.mxu0 %v2037
      %2840 = vmatprep.subr.bf16.mxu0 %v2026
      %2841 = vmatpush1.bf16.msra.mxu0 %v2025
      %2842 = vmatprep.subr.bf16.mxu0 %v2014
      %2843 = vmatpush1.bf16.msra.mxu0 %v2013
      %2844 = vmatprep.subr.bf16.mxu0 %v2002
      %2845 = vmatpush1.bf16.msra.mxu0 %v2001
      %2846 = vmatprep.subr.bf16.mxu0 %v1990
      %2847 = vmatpush1.bf16.msra.mxu0 %v1989
      %2848 = vmatprep.subr.bf16.mxu0 %v1978
      %2849 = vmatpush1.bf16.msra.mxu0 %v1977
      %2850 = vmatprep.subr.bf16.mxu0 %v2158
      %2851 = vmatpush2.bf16.msra.mxu0 %v2157
      %2852 = vmatprep.subr.bf16.mxu0 %v2146
      %2853 = vmatpush2.bf16.msra.mxu0 %v2145
      %2854 = vmatprep.subr.bf16.mxu0 %v2134
      %2855 = vmatpush2.bf16.msra.mxu0 %v2133
      %2856 = vmatprep.subr.bf16.mxu0 %v2122
      %2857 = vmatpush2.bf16.msra.mxu0 %v2121
      %2858 = vmatprep.subr.bf16.mxu0 %v2110
      %2859 = vmatpush2.bf16.msra.mxu0 %v2109
      %2860 = vmatprep.subr.bf16.mxu0 %v2098
      %2861 = vmatpush2.bf16.msra.mxu0 %v2097
      %2862 = vmatprep.subr.bf16.mxu0 %v2086
      %2863 = vmatpush2.bf16.msra.mxu0 %v2085
      %2864 = vmatprep.subr.bf16.mxu0 %v2074
      %2865 = vmatpush2.bf16.msra.mxu0 %v2073
      %2866 = vmatprep.mubr.bf16.mxu0 %v178
      %2867 = vmatmul.mubr.bf16.gmra.mxu0 %v177
      %v2868 = vpop.f32.mrf.mxu0
      %v2869 = vadd.f32 %v2828, %v2868
      %v2870 = vpop.f32.mrf.mxu0
      %v2871 = vadd.f32 %v2830, %v2870
      %v2872 = vpop.f32.mrf.mxu0
      %v2873 = vpop.f32.mrf.mxu0
      %2874 = vdwg.mxu0
      %2875 = vmatprep.subr.bf16.mxu0 %v1872
      %2876 = vmatpush1.bf16.msra.mxu0 %v1871
      %2877 = vmatprep.subr.bf16.mxu0 %v1860
      %2878 = vmatpush1.bf16.msra.mxu0 %v1859
      %2879 = vmatprep.subr.bf16.mxu0 %v1848
      %2880 = vmatpush1.bf16.msra.mxu0 %v1847
      %2881 = vmatprep.subr.bf16.mxu0 %v1836
      %2882 = vmatpush1.bf16.msra.mxu0 %v1835
      %2883 = vmatprep.subr.bf16.mxu0 %v1824
      %2884 = vmatpush1.bf16.msra.mxu0 %v1823
      %2885 = vmatprep.subr.bf16.mxu0 %v1812
      %2886 = vmatpush1.bf16.msra.mxu0 %v1811
      %2887 = vmatprep.subr.bf16.mxu0 %v1800
      %2888 = vmatpush1.bf16.msra.mxu0 %v1799
      %2889 = vmatprep.subr.bf16.mxu0 %v1788
      %2890 = vmatpush1.bf16.msra.mxu0 %v1787
      %2891 = vmatprep.subr.bf16.mxu0 %v1968
      %2892 = vmatpush2.bf16.msra.mxu0 %v1967
      %2893 = vmatprep.subr.bf16.mxu0 %v1956
      %2894 = vmatpush2.bf16.msra.mxu0 %v1955
      %2895 = vmatprep.subr.bf16.mxu0 %v1944
      %2896 = vmatpush2.bf16.msra.mxu0 %v1943
      %2897 = vmatprep.subr.bf16.mxu0 %v1932
      %2898 = vmatpush2.bf16.msra.mxu0 %v1931
      %2899 = vmatprep.subr.bf16.mxu0 %v1920
      %2900 = vmatpush2.bf16.msra.mxu0 %v1919
      %2901 = vmatprep.subr.bf16.mxu0 %v1908
      %2902 = vmatpush2.bf16.msra.mxu0 %v1907
      %2903 = vmatprep.subr.bf16.mxu0 %v1896
      %2904 = vmatpush2.bf16.msra.mxu0 %v1895
      %2905 = vmatprep.subr.bf16.mxu0 %v1884
      %2906 = vmatpush2.bf16.msra.mxu0 %v1883
      %2907 = vmatprep.mubr.bf16.mxu0 %v176
      %2908 = vmatmul.mubr.bf16.gmra.mxu0 %v175
      %v2909 = vpop.f32.mrf.mxu0
      %v2910 = vadd.f32 %v602, %v2909
      %v2911 = vpop.f32.mrf.mxu0
      %v2912 = vadd.f32 %v606, %v2911
      %v2913 = vpop.f32.mrf.mxu0
      %v2914 = vpop.f32.mrf.mxu0
      %2915 = vdwg.mxu0
      %2916 = vmatprep.subr.bf16.mxu0 %v2064
      %2917 = vmatpush1.bf16.msra.mxu0 %v2063
      %2918 = vmatprep.subr.bf16.mxu0 %v2052
      %2919 = vmatpush1.bf16.msra.mxu0 %v2051
      %2920 = vmatprep.subr.bf16.mxu0 %v2040
      %2921 = vmatpush1.bf16.msra.mxu0 %v2039
      %2922 = vmatprep.subr.bf16.mxu0 %v2028
      %2923 = vmatpush1.bf16.msra.mxu0 %v2027
      %2924 = vmatprep.subr.bf16.mxu0 %v2016
      %2925 = vmatpush1.bf16.msra.mxu0 %v2015
      %2926 = vmatprep.subr.bf16.mxu0 %v2004
      %2927 = vmatpush1.bf16.msra.mxu0 %v2003
      %2928 = vmatprep.subr.bf16.mxu0 %v1992
      %2929 = vmatpush1.bf16.msra.mxu0 %v1991
      %2930 = vmatprep.subr.bf16.mxu0 %v1980
      %2931 = vmatpush1.bf16.msra.mxu0 %v1979
      %2932 = vmatprep.subr.bf16.mxu0 %v2160
      %2933 = vmatpush2.bf16.msra.mxu0 %v2159
      %2934 = vmatprep.subr.bf16.mxu0 %v2148
      %2935 = vmatpush2.bf16.msra.mxu0 %v2147
      %2936 = vmatprep.subr.bf16.mxu0 %v2136
      %2937 = vmatpush2.bf16.msra.mxu0 %v2135
      %2938 = vmatprep.subr.bf16.mxu0 %v2124
      %2939 = vmatpush2.bf16.msra.mxu0 %v2123
      %2940 = vmatprep.subr.bf16.mxu0 %v2112
      %2941 = vmatpush2.bf16.msra.mxu0 %v2111
      %2942 = vmatprep.subr.bf16.mxu0 %v2100
      %2943 = vmatpush2.bf16.msra.mxu0 %v2099
      %2944 = vmatprep.subr.bf16.mxu0 %v2088
      %2945 = vmatpush2.bf16.msra.mxu0 %v2087
      %2946 = vmatprep.subr.bf16.mxu0 %v2076
      %2947 = vmatpush2.bf16.msra.mxu0 %v2075
      %2948 = vmatprep.mubr.bf16.mxu0 %v178
      %2949 = vmatmul.mubr.bf16.gmra.mxu0 %v177
      %v2950 = vpop.f32.mrf.mxu0
      %v2951 = vadd.f32 %v2910, %v2950
      %v2952 = vpop.f32.mrf.mxu0
      %v2953 = vadd.f32 %v2912, %v2952
      %v2954 = vpop.f32.mrf.mxu0
      %v2955 = vpop.f32.mrf.mxu0
      %2956 = vdwg.mxu0
      %2957 = vmatprep.subr.bf16.mxu0 %v1874
      %2958 = vmatpush1.bf16.msra.mxu0 %v1873
      %2959 = vmatprep.subr.bf16.mxu0 %v1862
      %2960 = vmatpush1.bf16.msra.mxu0 %v1861
      %2961 = vmatprep.subr.bf16.mxu0 %v1850
      %2962 = vmatpush1.bf16.msra.mxu0 %v1849
      %2963 = vmatprep.subr.bf16.mxu0 %v1838
      %2964 = vmatpush1.bf16.msra.mxu0 %v1837
      %2965 = vmatprep.subr.bf16.mxu0 %v1826
      %2966 = vmatpush1.bf16.msra.mxu0 %v1825
      %2967 = vmatprep.subr.bf16.mxu0 %v1814
      %2968 = vmatpush1.bf16.msra.mxu0 %v1813
      %2969 = vmatprep.subr.bf16.mxu0 %v1802
      %2970 = vmatpush1.bf16.msra.mxu0 %v1801
      %2971 = vmatprep.subr.bf16.mxu0 %v1790
      %2972 = vmatpush1.bf16.msra.mxu0 %v1789
      %2973 = vmatprep.subr.bf16.mxu0 %v1970
      %2974 = vmatpush2.bf16.msra.mxu0 %v1969
      %2975 = vmatprep.subr.bf16.mxu0 %v1958
      %2976 = vmatpush2.bf16.msra.mxu0 %v1957
      %2977 = vmatprep.subr.bf16.mxu0 %v1946
      %2978 = vmatpush2.bf16.msra.mxu0 %v1945
      %2979 = vmatprep.subr.bf16.mxu0 %v1934
      %2980 = vmatpush2.bf16.msra.mxu0 %v1933
      %2981 = vmatprep.subr.bf16.mxu0 %v1922
      %2982 = vmatpush2.bf16.msra.mxu0 %v1921
      %2983 = vmatprep.subr.bf16.mxu0 %v1910
      %2984 = vmatpush2.bf16.msra.mxu0 %v1909
      %2985 = vmatprep.subr.bf16.mxu0 %v1898
      %2986 = vmatpush2.bf16.msra.mxu0 %v1897
      %2987 = vmatprep.subr.bf16.mxu0 %v1886
      %2988 = vmatpush2.bf16.msra.mxu0 %v1885
      %2989 = vmatprep.mubr.bf16.mxu0 %v176
      %2990 = vmatmul.mubr.bf16.gmra.mxu0 %v175
      %v2991 = vpop.f32.mrf.mxu0
      %v2992 = vadd.f32 %v610, %v2991
      %v2993 = vpop.f32.mrf.mxu0
      %v2994 = vadd.f32 %v614, %v2993
      %v2995 = vpop.f32.mrf.mxu0
      %v2996 = vpop.f32.mrf.mxu0
      %2997 = vdwg.mxu0
      %2998 = vmatprep.subr.bf16.mxu0 %v2066
      %2999 = vmatpush1.bf16.msra.mxu0 %v2065
      %3000 = vmatprep.subr.bf16.mxu0 %v2054
      %3001 = vmatpush1.bf16.msra.mxu0 %v2053
      %3002 = vmatprep.subr.bf16.mxu0 %v2042
      %3003 = vmatpush1.bf16.msra.mxu0 %v2041
      %3004 = vmatprep.subr.bf16.mxu0 %v2030
      %3005 = vmatpush1.bf16.msra.mxu0 %v2029
      %3006 = vmatprep.subr.bf16.mxu0 %v2018
      %3007 = vmatpush1.bf16.msra.mxu0 %v2017
      %3008 = vmatprep.subr.bf16.mxu0 %v2006
      %3009 = vmatpush1.bf16.msra.mxu0 %v2005
      %3010 = vmatprep.subr.bf16.mxu0 %v1994
      %3011 = vmatpush1.bf16.msra.mxu0 %v1993
      %3012 = vmatprep.subr.bf16.mxu0 %v1982
      %3013 = vmatpush1.bf16.msra.mxu0 %v1981
      %3014 = vmatprep.subr.bf16.mxu0 %v2162
      %3015 = vmatpush2.bf16.msra.mxu0 %v2161
      %3016 = vmatprep.subr.bf16.mxu0 %v2150
      %3017 = vmatpush2.bf16.msra.mxu0 %v2149
      %3018 = vmatprep.subr.bf16.mxu0 %v2138
      %3019 = vmatpush2.bf16.msra.mxu0 %v2137
      %3020 = vmatprep.subr.bf16.mxu0 %v2126
      %3021 = vmatpush2.bf16.msra.mxu0 %v2125
      %3022 = vmatprep.subr.bf16.mxu0 %v2114
      %3023 = vmatpush2.bf16.msra.mxu0 %v2113
      %3024 = vmatprep.subr.bf16.mxu0 %v2102
      %3025 = vmatpush2.bf16.msra.mxu0 %v2101
      %3026 = vmatprep.subr.bf16.mxu0 %v2090
      %3027 = vmatpush2.bf16.msra.mxu0 %v2089
      %3028 = vmatprep.subr.bf16.mxu0 %v2078
      %3029 = vmatpush2.bf16.msra.mxu0 %v2077
      %3030 = vmatprep.mubr.bf16.mxu0 %v178
      %3031 = vmatmul.mubr.bf16.gmra.mxu0 %v177
      %v3032 = vpop.f32.mrf.mxu0
      %v3033 = vadd.f32 %v2992, %v3032
      %v3034 = vpop.f32.mrf.mxu0
      %v3035 = vadd.f32 %v2994, %v3034
      %v3036 = vpop.f32.mrf.mxu0
      %v3037 = vpop.f32.mrf.mxu0
      %3038 = vdwg.mxu0
      %v3039 = vpack.c.bf16 %v2623, %v2623
      %v3040 = vpack.c.bf16 %v2625, %v2625
      %v3041 = vpack.c.bf16 %v2705, %v2705
      %v3042 = vpack.c.bf16 %v2707, %v2707
      %v3043 = vpack.c.bf16 %v2787, %v2787
      %v3044 = vpack.c.bf16 %v2789, %v2789
      %v3045 = vpack.c.bf16 %v2869, %v2869
      %v3046 = vpack.c.bf16 %v2871, %v2871
      %v3047 = vpack.c.bf16 %v2951, %v2951
      %v3048 = vpack.c.bf16 %v2953, %v2953
      %v3049 = vpack.c.bf16 %v3033, %v3033
      %v3050 = vpack.c.bf16 %v3035, %v3035
      %v3063 = vunpack.c.l.b16 %v3039
      %v3064 = vunpack.c.l.b16 %v3040
      %v3065 = vunpack.c.l.b16 %v3041
      %v3066 = vunpack.c.l.b16 %v3042
      %v3067 = vunpack.c.l.b16 %v3043
      %v3068 = vunpack.c.l.b16 %v3044
      %v3069 = vunpack.c.l.b16 %v3045
      %v3070 = vunpack.c.l.b16 %v3046
      %v3071 = vunpack.c.l.b16 %v3047
      %v3072 = vunpack.c.l.b16 %v3048
      %v3073 = vunpack.c.l.b16 %v3049
      %v3074 = vunpack.c.l.b16 %v3050
      %v3075 = vpack.c.b16 %v3064, %v3063
      %v3076 = vpack.c.b16 %v3066, %v3065
      %v3077 = vpack.c.b16 %v3068, %v3067
      %v3078 = vpack.c.b16 %v3070, %v3069
      %v3079 = vpack.c.b16 %v3072, %v3071
      %v3080 = vpack.c.b16 %v3074, %v3073
      %3087 = vst [vmem:[%s170] sm:$0xff] %v3075
      %3088 = vst [vmem:[%s170 + $0x8] sm:$0xff] %v3076
      %3089 = vst [vmem:[%s170 + $0x10] sm:$0xff] %v3077
      %3090 = vst [vmem:[%s170 + $0x18] sm:$0xff] %v3078
      %3091 = vst [vmem:[%s170 + $0x20] sm:$0xff] %v3079
      %3092 = vst [vmem:[%s170 + $0x28] sm:$0xff] %v3080
      %p3093 = scmp.lt.s32.totalorder %s14, 1
      %s3094 = scalar_select %p3093, %s14, 1
      %s3095 = smul.addr %s3094, 12
      %s3096 = smul.addr %s3095, 4
      %s3097 = scalar_lea.vmem %s3, %s3096
      // Predicated region
      $region33: #{bert_forward.26} parent=31 // pred_check
        %p3098 = pneg %p100
      $region34: #{bert_forward.26} parent=31 // pred_check_branch
        %3100 = sbr.rel (%p3098) target = $region36
      $region35: #{bert_forward.26} parent=31 // pred_region
        _
      $region36: #{bert_forward.26} parent=31 // pred_fallthru
        _
    $region32: #{bert_forward.26} parent=5 // pred_fallthru
      _
    %p3101 = scmp.le.s32.totalorder 2, %s9
    // Predicated region
    $region37: #{bert_forward.26} parent=5 // pred_check
      %p3102 = pneg %p3101
    $region38: #{bert_forward.26} parent=5 // pred_check_branch
      %3104 = sbr.rel (%p3102) target = $region40
    $region39: #{bert_forward.26} parent=5 // pred_region
      %s3105 = ssub.s32 %s9, 2
      // Predicated region
      $region41: #{bert_forward.26} parent=39 // pred_check
        %p3106 = pneg %p106
      $region42: #{bert_forward.26} parent=39 // pred_check_branch
        %3108 = sbr.rel (%p3106) target = $region44
      $region43: #{bert_forward.26} parent=39 // pred_region
        %p3109 = scmp.lt.s32.totalorder %s15, 1
        %s3110 = scalar_select %p3109, %s15, 1
        %s3111 = smul.addr %s3110, 12
        %s3112 = smul.addr %s3111, 4
        %s3113 = scalar_lea.vmem %s3, %s3112
      $region44: #{bert_forward.26} parent=39 // pred_fallthru
        _
    $region40: #{bert_forward.26} parent=5 // pred_fallthru
      _
  $region6: #{bert_forward.26} parent=0 // loop_footer
    %s13 = sadd.s32 1, %s9
  $region7: #{bert_forward.26} parent=0 // loop_footer_branch
    %8 = sbr.rel target = $region3
  $region8: #{bert_forward.26} parent=0 // loop_exit
    _

// kernel: bert_forward.29
$region0: #{bert_forward.29}
  #allocation0 [shape = 'u32[]', space=smem, size = 0x4, offset = 0x4, fixed_abs, tag = 'smem constant byte address 0x4 - core index']
  #allocation1 [shape = 'u32[144,128]{1,0:T(1,128)}', space=vmem, size = 0x12000, scoped, tag = 'internal scratch']
  %s0 = inlined_call_operand.vmem [shape: f32[16,512], index: 0, kind: input, shape index: {}]
  %s1 = inlined_call_operand.vmem [shape: bf16[512,1024], index: 1, kind: input, shape index: {}]
  %s2 = inlined_call_operand.vmem [shape: f32[1,1024], index: 2, kind: input, shape index: {}]
  %s3 = inlined_call_operand.vmem [shape: bf16[1024,512], index: 3, kind: input, shape index: {}]
  %s4 = inlined_call_operand.vmem [shape: f32[1,512], index: 4, kind: input, shape index: {}]
  %s5 = inlined_call_operand.vmem [shape: f32[1,512], index: 5, kind: input, shape index: {}]
  %s6 = inlined_call_operand.vmem [shape: f32[1,512], index: 6, kind: input, shape index: {}]
  %s7 = inlined_call_operand.vmem [shape: f32[16,512], index: 7, kind: output, shape index: {}]
  %s8 = sld [smem:[#allocation0]]
  $region61: #{bert_forward.29} parent=0
    _
  %s10 = ssub.s32 1, %s8
  %s11 = scalar_select 0, %s10, %s8
  loop: start=0, step=1, limit=4
  $region2: #{bert_forward.29} parent=0 // loop_pre_header
    _
  $region3: #{bert_forward.29} parent=0 // loop_header
    %s13 = sphi 0, %s17
    %p14 = scmp.ge.s32.totalorder %s13, 4
    %s23 = sphi 0, %s25
    %s26 = sphi 0, %s23
    %s27 = sphi 0, %s26
    %s43 = sphi 0, %s27
    %s47 = sphi 0, %s47
    %s49 = sphi 0, %s47
    %s50 = sphi 0, %s49
    %s64 = sphi 0, %s50
    %s68 = sphi 0, %s68
    %s70 = sphi 0, %s68
    %s71 = sphi 0, %s70
    %s85 = sphi 0, %s71
    %s89 = sphi 0, %s89
    %s91 = sphi 0, %s89
    %s92 = sphi 0, %s91
    %s106 = sphi 0, %s92
    %s110 = sphi 0, %s110
    %s112 = sphi 0, %s110
    %s113 = sphi 0, %s112
    %s127 = sphi 0, %s113
    %s131 = sphi 0, %s131
    %s133 = sphi 0, %s131
    %s134 = sphi 0, %s133
    %s148 = sphi 0, %s134
    %s152 = sphi 0, %s152
    %s154 = sphi 0, %s152
    %s155 = sphi 0, %s154
    %s169 = sphi 0, %s155
    %s175 = sphi 0, %s177
    %s178 = sphi 0, %s175
    %s179 = sphi 0, %s178
    %s195 = sphi 0, %s179
  $region4: #{bert_forward.29} parent=0 // loop_header_branch
    %16 = sbr.rel (%p14) target = $region8
  $region5: #{bert_forward.29} parent=0 // loop_body
    %s18 = ssub.s32 %s13, 1
    %s19 = ssub.s32 %s13, 2
    %s20 = sadd.s32 %s13, 1
    %s21 = ssub.s32 %s13, %s20
    %p22 = scmp.eq.s32.totalorder %s21, 0
    %s24 = sadd.s32 %s23, 1
    %s25 = scalar_select %p22, %s23, %s24
    %p28 = pneg %p22
    %p29 = scmp.eq.s32.totalorder %s13, 1
    %p30 = por %p28, %p29
    %p31 = scmp.ne.s32.totalorder %s23, %s26
    %p32 = scmp.eq.s32.totalorder %s13, 0
    %p33 = por %p31, %p32
    %p34 = scmp.ne.s32.totalorder %s23, %s26
    %p35 = scmp.eq.s32.totalorder %s18, 1
    %p36 = por %p34, %p35
    %p37 = scmp.ne.s32.totalorder %s26, %s27
    %p38 = scmp.eq.s32.totalorder %s18, 0
    %p39 = por %p37, %p38
    %p40 = scmp.ne.s32.totalorder %s26, %s27
    %p41 = scmp.eq.s32.totalorder %s19, 1
    %p42 = por %p40, %p41
    %p44 = scmp.ne.s32.totalorder %s27, %s43
    %p45 = scmp.eq.s32.totalorder %s19, 0
    %p46 = por %p44, %p45
    %s48 = sadd.s32 %s47, 1
    %p51 = scmp.eq.s32.totalorder %s13, 1
    %p52 = scmp.ne.s32.totalorder %s47, %s49
    %p53 = scmp.eq.s32.totalorder %s13, 0
    %p54 = por %p52, %p53
    %p55 = scmp.ne.s32.totalorder %s47, %s49
    %p56 = scmp.eq.s32.totalorder %s18, 1
    %p57 = por %p55, %p56
    %p58 = scmp.ne.s32.totalorder %s49, %s50
    %p59 = scmp.eq.s32.totalorder %s18, 0
    %p60 = por %p58, %p59
    %p61 = scmp.ne.s32.totalorder %s49, %s50
    %p62 = scmp.eq.s32.totalorder %s19, 1
    %p63 = por %p61, %p62
    %p65 = scmp.ne.s32.totalorder %s50, %s64
    %p66 = scmp.eq.s32.totalorder %s19, 0
    %p67 = por %p65, %p66
    %s69 = sadd.s32 %s68, 1
    %p72 = scmp.eq.s32.totalorder %s13, 1
    %p73 = scmp.ne.s32.totalorder %s68, %s70
    %p74 = scmp.eq.s32.totalorder %s13, 0
    %p75 = por %p73, %p74
    %p76 = scmp.ne.s32.totalorder %s68, %s70
    %p77 = scmp.eq.s32.totalorder %s18, 1
    %p78 = por %p76, %p77
    %p79 = scmp.ne.s32.totalorder %s70, %s71
    %p80 = scmp.eq.s32.totalorder %s18, 0
    %p81 = por %p79, %p80
    %p82 = scmp.ne.s32.totalorder %s70, %s71
    %p83 = scmp.eq.s32.totalorder %s19, 1
    %p84 = por %p82, %p83
    %p86 = scmp.ne.s32.totalorder %s71, %s85
    %p87 = scmp.eq.s32.totalorder %s19, 0
    %p88 = por %p86, %p87
    %s90 = sadd.s32 %s89, 1
    %p93 = scmp.eq.s32.totalorder %s13, 1
    %p94 = scmp.ne.s32.totalorder %s89, %s91
    %p95 = scmp.eq.s32.totalorder %s13, 0
    %p96 = por %p94, %p95
    %p97 = scmp.ne.s32.totalorder %s89, %s91
    %p98 = scmp.eq.s32.totalorder %s18, 1
    %p99 = por %p97, %p98
    %p100 = scmp.ne.s32.totalorder %s91, %s92
    %p101 = scmp.eq.s32.totalorder %s18, 0
    %p102 = por %p100, %p101
    %p103 = scmp.ne.s32.totalorder %s91, %s92
    %p104 = scmp.eq.s32.totalorder %s19, 1
    %p105 = por %p103, %p104
    %p107 = scmp.ne.s32.totalorder %s92, %s106
    %p108 = scmp.eq.s32.totalorder %s19, 0
    %p109 = por %p107, %p108
    %s111 = sadd.s32 %s110, 1
    %p114 = scmp.eq.s32.totalorder %s13, 1
    %p115 = scmp.ne.s32.totalorder %s110, %s112
    %p116 = scmp.eq.s32.totalorder %s13, 0
    %p117 = por %p115, %p116
    %p118 = scmp.ne.s32.totalorder %s110, %s112
    %p119 = scmp.eq.s32.totalorder %s18, 1
    %p120 = por %p118, %p119
    %p121 = scmp.ne.s32.totalorder %s112, %s113
    %p122 = scmp.eq.s32.totalorder %s18, 0
    %p123 = por %p121, %p122
    %p124 = scmp.ne.s32.totalorder %s112, %s113
    %p125 = scmp.eq.s32.totalorder %s19, 1
    %p126 = por %p124, %p125
    %p128 = scmp.ne.s32.totalorder %s113, %s127
    %p129 = scmp.eq.s32.totalorder %s19, 0
    %p130 = por %p128, %p129
    %s132 = sadd.s32 %s131, 1
    %p135 = scmp.eq.s32.totalorder %s13, 1
    %p136 = scmp.ne.s32.totalorder %s131, %s133
    %p137 = scmp.eq.s32.totalorder %s13, 0
    %p138 = por %p136, %p137
    %p139 = scmp.ne.s32.totalorder %s131, %s133
    %p140 = scmp.eq.s32.totalorder %s18, 1
    %p141 = por %p139, %p140
    %p142 = scmp.ne.s32.totalorder %s133, %s134
    %p143 = scmp.eq.s32.totalorder %s18, 0
    %p144 = por %p142, %p143
    %p145 = scmp.ne.s32.totalorder %s133, %s134
    %p146 = scmp.eq.s32.totalorder %s19, 1
    %p147 = por %p145, %p146
    %p149 = scmp.ne.s32.totalorder %s134, %s148
    %p150 = scmp.eq.s32.totalorder %s19, 0
    %p151 = por %p149, %p150
    %s153 = sadd.s32 %s152, 1
    %p156 = scmp.eq.s32.totalorder %s13, 1
    %p157 = scmp.ne.s32.totalorder %s152, %s154
    %p158 = scmp.eq.s32.totalorder %s13, 0
    %p159 = por %p157, %p158
    %p160 = scmp.ne.s32.totalorder %s152, %s154
    %p161 = scmp.eq.s32.totalorder %s18, 1
    %p162 = por %p160, %p161
    %p163 = scmp.ne.s32.totalorder %s154, %s155
    %p164 = scmp.eq.s32.totalorder %s18, 0
    %p165 = por %p163, %p164
    %p166 = scmp.ne.s32.totalorder %s154, %s155
    %p167 = scmp.eq.s32.totalorder %s19, 1
    %p168 = por %p166, %p167
    %p170 = scmp.ne.s32.totalorder %s155, %s169
    %p171 = scmp.eq.s32.totalorder %s19, 0
    %p172 = por %p170, %p171
    %s173 = ssub.s32 %s13, %s20
    %p174 = scmp.eq.s32.totalorder %s173, 0
    %s176 = sadd.s32 %s175, 1
    %s177 = scalar_select %p174, %s175, %s176
    %p180 = pneg %p174
    %p181 = scmp.eq.s32.totalorder %s13, 1
    %p182 = por %p180, %p181
    %p183 = scmp.ne.s32.totalorder %s175, %s178
    %p184 = scmp.eq.s32.totalorder %s13, 0
    %p185 = por %p183, %p184
    %p186 = scmp.ne.s32.totalorder %s175, %s178
    %p187 = scmp.eq.s32.totalorder %s18, 1
    %p188 = por %p186, %p187
    %p189 = scmp.ne.s32.totalorder %s178, %s179
    %p190 = scmp.eq.s32.totalorder %s18, 0
    %p191 = por %p189, %p190
    %p192 = scmp.ne.s32.totalorder %s178, %s179
    %p193 = scmp.eq.s32.totalorder %s19, 1
    %p194 = por %p192, %p193
    %p196 = scmp.ne.s32.totalorder %s179, %s195
    %p197 = scmp.eq.s32.totalorder %s19, 0
    %p198 = por %p196, %p197
    %p199 = scmp.le.s32.totalorder 1, %s13
    %p200 = scmp.lt.s32.totalorder %s13, 3
    %p201 = pnand %p199, %p200
    %p202 = pneg %p201
    // Predicated region
    $region9: #{bert_forward.29} parent=5 // pred_check
      _
    $region10: #{bert_forward.29} parent=5 // pred_check_branch
      %204 = sbr.rel (%p201) target = $region12
    $region11: #{bert_forward.29} parent=5 // pred_region
      %s205 = ssub.s32 %s13, 1
      // Predicated region
      $region13: #{bert_forward.29} parent=11 // pred_check
        %p206 = pneg %p60
      $region14: #{bert_forward.29} parent=11 // pred_check_branch
        %208 = sbr.rel (%p206) target = $region16
      $region15: #{bert_forward.29} parent=11 // pred_region
        _
      $region16: #{bert_forward.29} parent=11 // pred_fallthru
        _
      // Predicated region
      $region17: #{bert_forward.29} parent=11 // pred_check
        %p209 = pneg %p81
      $region18: #{bert_forward.29} parent=11 // pred_check_branch
        %211 = sbr.rel (%p209) target = $region20
      $region19: #{bert_forward.29} parent=11 // pred_region
        _
      $region20: #{bert_forward.29} parent=11 // pred_fallthru
        _
      // Predicated region
      $region21: #{bert_forward.29} parent=11 // pred_check
        %p212 = pneg %p102
      $region22: #{bert_forward.29} parent=11 // pred_check_branch
        %214 = sbr.rel (%p212) target = $region24
      $region23: #{bert_forward.29} parent=11 // pred_region
        _
      $region24: #{bert_forward.29} parent=11 // pred_fallthru
        _
      // Predicated region
      $region25: #{bert_forward.29} parent=11 // pred_check
        %p215 = pneg %p123
      $region26: #{bert_forward.29} parent=11 // pred_check_branch
        %217 = sbr.rel (%p215) target = $region28
      $region27: #{bert_forward.29} parent=11 // pred_region
        _
      $region28: #{bert_forward.29} parent=11 // pred_fallthru
        _
      // Predicated region
      $region29: #{bert_forward.29} parent=11 // pred_check
        %p218 = pneg %p144
      $region30: #{bert_forward.29} parent=11 // pred_check_branch
        %220 = sbr.rel (%p218) target = $region32
      $region31: #{bert_forward.29} parent=11 // pred_region
        _
      $region32: #{bert_forward.29} parent=11 // pred_fallthru
        _
      // Predicated region
      $region33: #{bert_forward.29} parent=11 // pred_check
        %p221 = pneg %p165
      $region34: #{bert_forward.29} parent=11 // pred_check_branch
        %223 = sbr.rel (%p221) target = $region36
      $region35: #{bert_forward.29} parent=11 // pred_region
        _
      $region36: #{bert_forward.29} parent=11 // pred_fallthru
        _
    $region12: #{bert_forward.29} parent=5 // pred_fallthru
      _
    %p224 = scmp.lt.s32.totalorder %s13, 2
    // Predicated region
    $region37: #{bert_forward.29} parent=5 // pred_check
      %p225 = pneg %p224
    $region38: #{bert_forward.29} parent=5 // pred_check_branch
      %227 = sbr.rel (%p225) target = $region40
    $region39: #{bert_forward.29} parent=5 // pred_region
      // Predicated region
      $region41: #{bert_forward.29} parent=39 // pred_check
        %p228 = pneg %p33
      $region42: #{bert_forward.29} parent=39 // pred_check_branch
        %230 = sbr.rel (%p228) target = $region44
      $region43: #{bert_forward.29} parent=39 // pred_region
        %p231 = scmp.lt.s32.totalorder %s13, 1
        %s232 = scalar_select %p231, %s13, 1
        %s233 = smul.addr %s232, 4
        %s234 = smul.addr %s233, 8
        %s235 = scalar_lea.vmem %s0, %s234
      $region44: #{bert_forward.29} parent=39 // pred_fallthru
        _
    $region40: #{bert_forward.29} parent=5 // pred_fallthru
      _
    %p236 = scmp.le.s32.totalorder 1, %s13
    %p237 = scmp.lt.s32.totalorder %s13, 3
    %p238 = pnand %p236, %p237
    %p239 = pneg %p238
    // Predicated region
    $region45: #{bert_forward.29} parent=5 // pred_check
      _
    $region46: #{bert_forward.29} parent=5 // pred_check_branch
      %241 = sbr.rel (%p238) target = $region48
    $region47: #{bert_forward.29} parent=5 // pred_region
      %s242 = ssub.s32 %s13, 1
      %p243 = scmp.lt.s32.totalorder %s18, 1
      %s244 = scalar_select %p243, %s18, 1
      %s245 = smul.addr %s244, 4
      %s246 = smul.addr %s245, 8
      %s247 = scalar_lea.vmem %s0, %s246
      %p248 = pneg %p39
      %p249 = pneg %p36
      %p250 = pneg %p60
      %p251 = pneg %p57
      %p252 = pneg %p81
      %p253 = pneg %p78
      %p254 = pneg %p102
      %p255 = pneg %p99
      %p256 = pneg %p123
      %p257 = pneg %p120
      %p258 = pneg %p144
      %p259 = pneg %p141
      %p260 = pneg %p165
      %p261 = pneg %p162
      %p262 = pneg %p191
      %p263 = pneg %p188
      %p264 = scmp.lt.s32.totalorder %s18, 1
      %s265 = scalar_select %p264, %s18, 1
      %s266 = smul.addr %s265, 4
      %s267 = smul.addr %s266, 8
      %s268 = scalar_lea.vmem %s7, %s267
      %p269 = scmp.lt.s32.totalorder %s18, 1
      %s270 = scalar_select %p269, %s18, 1
      %s271 = smul.addr %s270, 4
      %s272 = smul.addr %s271, 8
      %s273 = scalar_lea.vmem %s0, %s272
      %p274 = scmp.lt.s32.totalorder %s18, 1
      %s275 = scalar_select %p274, %s18, 1
      %s276 = smul.addr %s275, 4
      %s277 = smul.addr %s276, 8
      %s278 = scalar_lea.vmem %s7, %s277
      %v279 = vld [vmem:[%s273] sm:$0xff]
      %v280 = vld [vmem:[%s273 + $0x8] sm:$0xff]
      %v281 = vld [vmem:[%s273 + $0x10] sm:$0xff]
      %v282 = vld [vmem:[%s273 + $0x18] sm:$0xff]
      %v283 = vpack.c.bf16 %v279, %v279
      %v284 = vpack.c.bf16 %v280, %v280
      %v285 = vpack.c.bf16 %v281, %v281
      %v286 = vpack.c.bf16 %v282, %v282
      %v287 = vld [vmem:[%s1] sm:$0xff]
      %v288 = vld [vmem:[%s1 + $0x8] sm:$0xff]
      %v289 = vld [vmem:[%s1 + $0x10] sm:$0xff]
      %v290 = vld [vmem:[%s1 + $0x18] sm:$0xff]
      %v291 = vld [vmem:[%s1 + $0x20] sm:$0xff]
      %v292 = vld [vmem:[%s1 + $0x28] sm:$0xff]
      %v293 = vld [vmem:[%s1 + $0x30] sm:$0xff]
      %v294 = vld [vmem:[%s1 + $0x38] sm:$0xff]
      %v295 = vld [vmem:[%s1 + $0x40] sm:$0xff]
      %v296 = vld [vmem:[%s1 + $0x48] sm:$0xff]
      %v297 = vld [vmem:[%s1 + $0x50] sm:$0xff]
      %v298 = vld [vmem:[%s1 + $0x58] sm:$0xff]
      %v299 = vld [vmem:[%s1 + $0x60] sm:$0xff]
      %v300 = vld [vmem:[%s1 + $0x68] sm:$0xff]
      %v301 = vld [vmem:[%s1 + $0x70] sm:$0xff]
      %v302 = vld [vmem:[%s1 + $0x78] sm:$0xff]
      %v303 = vld [vmem:[%s1 + $0x80] sm:$0xff]
      %v304 = vld [vmem:[%s1 + $0x88] sm:$0xff]
      %v305 = vld [vmem:[%s1 + $0x90] sm:$0xff]
      %v306 = vld [vmem:[%s1 + $0x98] sm:$0xff]
      %v307 = vld [vmem:[%s1 + $0xa0] sm:$0xff]
      %v308 = vld [vmem:[%s1 + $0xa8] sm:$0xff]
      %v309 = vld [vmem:[%s1 + $0xb0] sm:$0xff]
      %v310 = vld [vmem:[%s1 + $0xb8] sm:$0xff]
      %v311 = vld [vmem:[%s1 + $0xc0] sm:$0xff]
      %v312 = vld [vmem:[%s1 + $0xc8] sm:$0xff]
      %v313 = vld [vmem:[%s1 + $0xd0] sm:$0xff]
      %v314 = vld [vmem:[%s1 + $0xd8] sm:$0xff]
      %v315 = vld [vmem:[%s1 + $0xe0] sm:$0xff]
      %v316 = vld [vmem:[%s1 + $0xe8] sm:$0xff]
      %v317 = vld [vmem:[%s1 + $0xf0] sm:$0xff]
      %v318 = vld [vmem:[%s1 + $0xf8] sm:$0xff]
      %v319 = vld [vmem:[%s1 + $0x100] sm:$0xff]
      %v320 = vld [vmem:[%s1 + $0x108] sm:$0xff]
      %v321 = vld [vmem:[%s1 + $0x110] sm:$0xff]
      %v322 = vld [vmem:[%s1 + $0x118] sm:$0xff]
      %v323 = vld [vmem:[%s1 + $0x120] sm:$0xff]
      %v324 = vld [vmem:[%s1 + $0x128] sm:$0xff]
      %v325 = vld [vmem:[%s1 + $0x130] sm:$0xff]
      %v326 = vld [vmem:[%s1 + $0x138] sm:$0xff]
      %v327 = vld [vmem:[%s1 + $0x140] sm:$0xff]
      %v328 = vld [vmem:[%s1 + $0x148] sm:$0xff]
      %v329 = vld [vmem:[%s1 + $0x150] sm:$0xff]
      %v330 = vld [vmem:[%s1 + $0x158] sm:$0xff]
      %v331 = vld [vmem:[%s1 + $0x160] sm:$0xff]
      %v332 = vld [vmem:[%s1 + $0x168] sm:$0xff]
      %v333 = vld [vmem:[%s1 + $0x170] sm:$0xff]
      %v334 = vld [vmem:[%s1 + $0x178] sm:$0xff]
      %v335 = vld [vmem:[%s1 + $0x180] sm:$0xff]
      %v336 = vld [vmem:[%s1 + $0x188] sm:$0xff]
      %v337 = vld [vmem:[%s1 + $0x190] sm:$0xff]
      %v338 = vld [vmem:[%s1 + $0x198] sm:$0xff]
      %v339 = vld [vmem:[%s1 + $0x1a0] sm:$0xff]
      %v340 = vld [vmem:[%s1 + $0x1a8] sm:$0xff]
      %v341 = vld [vmem:[%s1 + $0x1b0] sm:$0xff]
      %v342 = vld [vmem:[%s1 + $0x1b8] sm:$0xff]
      %v343 = vld [vmem:[%s1 + $0x1c0] sm:$0xff]
      %v344 = vld [vmem:[%s1 + $0x1c8] sm:$0xff]
      %v345 = vld [vmem:[%s1 + $0x1d0] sm:$0xff]
      %v346 = vld [vmem:[%s1 + $0x1d8] sm:$0xff]
      %v347 = vld [vmem:[%s1 + $0x1e0] sm:$0xff]
      %v348 = vld [vmem:[%s1 + $0x1e8] sm:$0xff]
      %v349 = vld [vmem:[%s1 + $0x1f0] sm:$0xff]
      %v350 = vld [vmem:[%s1 + $0x1f8] sm:$0xff]
      %v351 = vld [vmem:[%s1 + $0x200] sm:$0xff]
      %v352 = vld [vmem:[%s1 + $0x208] sm:$0xff]
      %v353 = vld [vmem:[%s1 + $0x210] sm:$0xff]
      %v354 = vld [vmem:[%s1 + $0x218] sm:$0xff]
      %v355 = vld [vmem:[%s1 + $0x220] sm:$0xff]
      %v356 = vld [vmem:[%s1 + $0x228] sm:$0xff]
      %v357 = vld [vmem:[%s1 + $0x230] sm:$0xff]
      %v358 = vld [vmem:[%s1 + $0x238] sm:$0xff]
      %v359 = vld [vmem:[%s1 + $0x240] sm:$0xff]
      %v360 = vld [vmem:[%s1 + $0x248] sm:$0xff]
      %v361 = vld [vmem:[%s1 + $0x250] sm:$0xff]
      %v362 = vld [vmem:[%s1 + $0x258] sm:$0xff]
      %v363 = vld [vmem:[%s1 + $0x260] sm:$0xff]
      %v364 = vld [vmem:[%s1 + $0x268] sm:$0xff]
      %v365 = vld [vmem:[%s1 + $0x270] sm:$0xff]
      %v366 = vld [vmem:[%s1 + $0x278] sm:$0xff]
      %v367 = vld [vmem:[%s1 + $0x280] sm:$0xff]
      %v368 = vld [vmem:[%s1 + $0x288] sm:$0xff]
      %v369 = vld [vmem:[%s1 + $0x290] sm:$0xff]
      %v370 = vld [vmem:[%s1 + $0x298] sm:$0xff]
      %v371 = vld [vmem:[%s1 + $0x2a0] sm:$0xff]
      %v372 = vld [vmem:[%s1 + $0x2a8] sm:$0xff]
      %v373 = vld [vmem:[%s1 + $0x2b0] sm:$0xff]
      %v374 = vld [vmem:[%s1 + $0x2b8] sm:$0xff]
      %v375 = vld [vmem:[%s1 + $0x2c0] sm:$0xff]
      %v376 = vld [vmem:[%s1 + $0x2c8] sm:$0xff]
      %v377 = vld [vmem:[%s1 + $0x2d0] sm:$0xff]
      %v378 = vld [vmem:[%s1 + $0x2d8] sm:$0xff]
      %v379 = vld [vmem:[%s1 + $0x2e0] sm:$0xff]
      %v380 = vld [vmem:[%s1 + $0x2e8] sm:$0xff]
      %v381 = vld [vmem:[%s1 + $0x2f0] sm:$0xff]
      %v382 = vld [vmem:[%s1 + $0x2f8] sm:$0xff]
      %v383 = vld [vmem:[%s1 + $0x300] sm:$0xff]
      %v384 = vld [vmem:[%s1 + $0x308] sm:$0xff]
      %v385 = vld [vmem:[%s1 + $0x310] sm:$0xff]
      %v386 = vld [vmem:[%s1 + $0x318] sm:$0xff]
      %v387 = vld [vmem:[%s1 + $0x320] sm:$0xff]
      %v388 = vld [vmem:[%s1 + $0x328] sm:$0xff]
      %v389 = vld [vmem:[%s1 + $0x330] sm:$0xff]
      %v390 = vld [vmem:[%s1 + $0x338] sm:$0xff]
      %v391 = vld [vmem:[%s1 + $0x340] sm:$0xff]
      %v392 = vld [vmem:[%s1 + $0x348] sm:$0xff]
      %v393 = vld [vmem:[%s1 + $0x350] sm:$0xff]
      %v394 = vld [vmem:[%s1 + $0x358] sm:$0xff]
      %v395 = vld [vmem:[%s1 + $0x360] sm:$0xff]
      %v396 = vld [vmem:[%s1 + $0x368] sm:$0xff]
      %v397 = vld [vmem:[%s1 + $0x370] sm:$0xff]
      %v398 = vld [vmem:[%s1 + $0x378] sm:$0xff]
      %v399 = vld [vmem:[%s1 + $0x380] sm:$0xff]
      %v400 = vld [vmem:[%s1 + $0x388] sm:$0xff]
      %v401 = vld [vmem:[%s1 + $0x390] sm:$0xff]
      %v402 = vld [vmem:[%s1 + $0x398] sm:$0xff]
      %v403 = vld [vmem:[%s1 + $0x3a0] sm:$0xff]
      %v404 = vld [vmem:[%s1 + $0x3a8] sm:$0xff]
      %v405 = vld [vmem:[%s1 + $0x3b0] sm:$0xff]
      %v406 = vld [vmem:[%s1 + $0x3b8] sm:$0xff]
      %v407 = vld [vmem:[%s1 + $0x3c0] sm:$0xff]
      %v408 = vld [vmem:[%s1 + $0x3c8] sm:$0xff]
      %v409 = vld [vmem:[%s1 + $0x3d0] sm:$0xff]
      %v410 = vld [vmem:[%s1 + $0x3d8] sm:$0xff]
      %v411 = vld [vmem:[%s1 + $0x3e0] sm:$0xff]
      %v412 = vld [vmem:[%s1 + $0x3e8] sm:$0xff]
      %v413 = vld [vmem:[%s1 + $0x3f0] sm:$0xff]
      %v414 = vld [vmem:[%s1 + $0x3f8] sm:$0xff]
      %v415 = vld [vmem:[%s1 + $0x400] sm:$0xff]
      %v416 = vld [vmem:[%s1 + $0x408] sm:$0xff]
      %v417 = vld [vmem:[%s1 + $0x410] sm:$0xff]
      %v418 = vld [vmem:[%s1 + $0x418] sm:$0xff]
      %v419 = vld [vmem:[%s1 + $0x420] sm:$0xff]
      %v420 = vld [vmem:[%s1 + $0x428] sm:$0xff]
      %v421 = vld [vmem:[%s1 + $0x430] sm:$0xff]
      %v422 = vld [vmem:[%s1 + $0x438] sm:$0xff]
      %v423 = vld [vmem:[%s1 + $0x440] sm:$0xff]
      %v424 = vld [vmem:[%s1 + $0x448] sm:$0xff]
      %v425 = vld [vmem:[%s1 + $0x450] sm:$0xff]
      %v426 = vld [vmem:[%s1 + $0x458] sm:$0xff]
      %v427 = vld [vmem:[%s1 + $0x460] sm:$0xff]
      %v428 = vld [vmem:[%s1 + $0x468] sm:$0xff]
      %v429 = vld [vmem:[%s1 + $0x470] sm:$0xff]
      %v430 = vld [vmem:[%s1 + $0x478] sm:$0xff]
      %v431 = vld [vmem:[%s1 + $0x480] sm:$0xff]
      %v432 = vld [vmem:[%s1 + $0x488] sm:$0xff]
      %v433 = vld [vmem:[%s1 + $0x490] sm:$0xff]
      %v434 = vld [vmem:[%s1 + $0x498] sm:$0xff]
      %v435 = vld [vmem:[%s1 + $0x4a0] sm:$0xff]
      %v436 = vld [vmem:[%s1 + $0x4a8] sm:$0xff]
      %v437 = vld [vmem:[%s1 + $0x4b0] sm:$0xff]
      %v438 = vld [vmem:[%s1 + $0x4b8] sm:$0xff]
      %v439 = vld [vmem:[%s1 + $0x4c0] sm:$0xff]
      %v440 = vld [vmem:[%s1 + $0x4c8] sm:$0xff]
      %v441 = vld [vmem:[%s1 + $0x4d0] sm:$0xff]
      %v442 = vld [vmem:[%s1 + $0x4d8] sm:$0xff]
      %v443 = vld [vmem:[%s1 + $0x4e0] sm:$0xff]
      %v444 = vld [vmem:[%s1 + $0x4e8] sm:$0xff]
      %v445 = vld [vmem:[%s1 + $0x4f0] sm:$0xff]
      %v446 = vld [vmem:[%s1 + $0x4f8] sm:$0xff]
      %v447 = vld [vmem:[%s1 + $0x500] sm:$0xff]
      %v448 = vld [vmem:[%s1 + $0x508] sm:$0xff]
      %v449 = vld [vmem:[%s1 + $0x510] sm:$0xff]
      %v450 = vld [vmem:[%s1 + $0x518] sm:$0xff]
      %v451 = vld [vmem:[%s1 + $0x520] sm:$0xff]
      %v452 = vld [vmem:[%s1 + $0x528] sm:$0xff]
      %v453 = vld [vmem:[%s1 + $0x530] sm:$0xff]
      %v454 = vld [vmem:[%s1 + $0x538] sm:$0xff]
      %v455 = vld [vmem:[%s1 + $0x540] sm:$0xff]
      %v456 = vld [vmem:[%s1 + $0x548] sm:$0xff]
      %v457 = vld [vmem:[%s1 + $0x550] sm:$0xff]
      %v458 = vld [vmem:[%s1 + $0x558] sm:$0xff]
      %v459 = vld [vmem:[%s1 + $0x560] sm:$0xff]
      %v460 = vld [vmem:[%s1 + $0x568] sm:$0xff]
      %v461 = vld [vmem:[%s1 + $0x570] sm:$0xff]
      %v462 = vld [vmem:[%s1 + $0x578] sm:$0xff]
      %v463 = vld [vmem:[%s1 + $0x580] sm:$0xff]
      %v464 = vld [vmem:[%s1 + $0x588] sm:$0xff]
      %v465 = vld [vmem:[%s1 + $0x590] sm:$0xff]
      %v466 = vld [vmem:[%s1 + $0x598] sm:$0xff]
      %v467 = vld [vmem:[%s1 + $0x5a0] sm:$0xff]
      %v468 = vld [vmem:[%s1 + $0x5a8] sm:$0xff]
      %v469 = vld [vmem:[%s1 + $0x5b0] sm:$0xff]
      %v470 = vld [vmem:[%s1 + $0x5b8] sm:$0xff]
      %v471 = vld [vmem:[%s1 + $0x5c0] sm:$0xff]
      %v472 = vld [vmem:[%s1 + $0x5c8] sm:$0xff]
      %v473 = vld [vmem:[%s1 + $0x5d0] sm:$0xff]
      %v474 = vld [vmem:[%s1 + $0x5d8] sm:$0xff]
      %v475 = vld [vmem:[%s1 + $0x5e0] sm:$0xff]
      %v476 = vld [vmem:[%s1 + $0x5e8] sm:$0xff]
      %v477 = vld [vmem:[%s1 + $0x5f0] sm:$0xff]
      %v478 = vld [vmem:[%s1 + $0x5f8] sm:$0xff]
      %v479 = vld [vmem:[%s1 + $0x600] sm:$0xff]
      %v480 = vld [vmem:[%s1 + $0x608] sm:$0xff]
      %v481 = vld [vmem:[%s1 + $0x610] sm:$0xff]
      %v482 = vld [vmem:[%s1 + $0x618] sm:$0xff]
      %v483 = vld [vmem:[%s1 + $0x620] sm:$0xff]
      %v484 = vld [vmem:[%s1 + $0x628] sm:$0xff]
      %v485 = vld [vmem:[%s1 + $0x630] sm:$0xff]
      %v486 = vld [vmem:[%s1 + $0x638] sm:$0xff]
      %v487 = vld [vmem:[%s1 + $0x640] sm:$0xff]
      %v488 = vld [vmem:[%s1 + $0x648] sm:$0xff]
      %v489 = vld [vmem:[%s1 + $0x650] sm:$0xff]
      %v490 = vld [vmem:[%s1 + $0x658] sm:$0xff]
      %v491 = vld [vmem:[%s1 + $0x660] sm:$0xff]
      %v492 = vld [vmem:[%s1 + $0x668] sm:$0xff]
      %v493 = vld [vmem:[%s1 + $0x670] sm:$0xff]
      %v494 = vld [vmem:[%s1 + $0x678] sm:$0xff]
      %v495 = vld [vmem:[%s1 + $0x680] sm:$0xff]
      %v496 = vld [vmem:[%s1 + $0x688] sm:$0xff]
      %v497 = vld [vmem:[%s1 + $0x690] sm:$0xff]
      %v498 = vld [vmem:[%s1 + $0x698] sm:$0xff]
      %v499 = vld [vmem:[%s1 + $0x6a0] sm:$0xff]
      %v500 = vld [vmem:[%s1 + $0x6a8] sm:$0xff]
      %v501 = vld [vmem:[%s1 + $0x6b0] sm:$0xff]
      %v502 = vld [vmem:[%s1 + $0x6b8] sm:$0xff]
      %v503 = vld [vmem:[%s1 + $0x6c0] sm:$0xff]
      %v504 = vld [vmem:[%s1 + $0x6c8] sm:$0xff]
      %v505 = vld [vmem:[%s1 + $0x6d0] sm:$0xff]
      %v506 = vld [vmem:[%s1 + $0x6d8] sm:$0xff]
      %v507 = vld [vmem:[%s1 + $0x6e0] sm:$0xff]
      %v508 = vld [vmem:[%s1 + $0x6e8] sm:$0xff]
      %v509 = vld [vmem:[%s1 + $0x6f0] sm:$0xff]
      %v510 = vld [vmem:[%s1 + $0x6f8] sm:$0xff]
      %v511 = vld [vmem:[%s1 + $0x700] sm:$0xff]
      %v512 = vld [vmem:[%s1 + $0x708] sm:$0xff]
      %v513 = vld [vmem:[%s1 + $0x710] sm:$0xff]
      %v514 = vld [vmem:[%s1 + $0x718] sm:$0xff]
      %v515 = vld [vmem:[%s1 + $0x720] sm:$0xff]
      %v516 = vld [vmem:[%s1 + $0x728] sm:$0xff]
      %v517 = vld [vmem:[%s1 + $0x730] sm:$0xff]
      %v518 = vld [vmem:[%s1 + $0x738] sm:$0xff]
      %v519 = vld [vmem:[%s1 + $0x740] sm:$0xff]
      %v520 = vld [vmem:[%s1 + $0x748] sm:$0xff]
      %v521 = vld [vmem:[%s1 + $0x750] sm:$0xff]
      %v522 = vld [vmem:[%s1 + $0x758] sm:$0xff]
      %v523 = vld [vmem:[%s1 + $0x760] sm:$0xff]
      %v524 = vld [vmem:[%s1 + $0x768] sm:$0xff]
      %v525 = vld [vmem:[%s1 + $0x770] sm:$0xff]
      %v526 = vld [vmem:[%s1 + $0x778] sm:$0xff]
      %v527 = vld [vmem:[%s1 + $0x780] sm:$0xff]
      %v528 = vld [vmem:[%s1 + $0x788] sm:$0xff]
      %v529 = vld [vmem:[%s1 + $0x790] sm:$0xff]
      %v530 = vld [vmem:[%s1 + $0x798] sm:$0xff]
      %v531 = vld [vmem:[%s1 + $0x7a0] sm:$0xff]
      %v532 = vld [vmem:[%s1 + $0x7a8] sm:$0xff]
      %v533 = vld [vmem:[%s1 + $0x7b0] sm:$0xff]
      %v534 = vld [vmem:[%s1 + $0x7b8] sm:$0xff]
      %v535 = vld [vmem:[%s1 + $0x7c0] sm:$0xff]
      %v536 = vld [vmem:[%s1 + $0x7c8] sm:$0xff]
      %v537 = vld [vmem:[%s1 + $0x7d0] sm:$0xff]
      %v538 = vld [vmem:[%s1 + $0x7d8] sm:$0xff]
      %v539 = vld [vmem:[%s1 + $0x7e0] sm:$0xff]
      %v540 = vld [vmem:[%s1 + $0x7e8] sm:$0xff]
      %v541 = vld [vmem:[%s1 + $0x7f0] sm:$0xff]
      %v542 = vld [vmem:[%s1 + $0x7f8] sm:$0xff]
      %v543 = vld [vmem:[%s2] sm:$0xff]
      %v545 = vlaneseq
      %v546 = vshrl.u32 %v545, 7
      %v547 = vsub.s32 0, %v546
      %v548 = vrot.slane %v543, %v547
      %v549 = vlaneseq
      %v550 = vshrl.u32 %v549, 7
      %v551 = vsub.s32 1, %v550
      %v552 = vrot.slane %v543, %v551
      %v553 = vlaneseq
      %v554 = vshrl.u32 %v553, 7
      %v555 = vsub.s32 2, %v554
      %v556 = vrot.slane %v543, %v555
      %v557 = vlaneseq
      %v558 = vshrl.u32 %v557, 7
      %v559 = vsub.s32 3, %v558
      %v560 = vrot.slane %v543, %v559
      %v561 = vlaneseq
      %v562 = vshrl.u32 %v561, 7
      %v563 = vsub.s32 4, %v562
      %v564 = vrot.slane %v543, %v563
      %v565 = vlaneseq
      %v566 = vshrl.u32 %v565, 7
      %v567 = vsub.s32 5, %v566
      %v568 = vrot.slane %v543, %v567
      %v569 = vlaneseq
      %v570 = vshrl.u32 %v569, 7
      %v571 = vsub.s32 6, %v570
      %v572 = vrot.slane %v543, %v571
      %v573 = vlaneseq
      %v574 = vshrl.u32 %v573, 7
      %v575 = vsub.s32 7, %v574
      %v576 = vrot.slane %v543, %v575
      %v841 = vunpack.c.l.b16 %v287
      %v842 = vunpack.c.h.b16 %v287
      %v843 = vunpack.c.l.b16 %v288
      %v844 = vunpack.c.h.b16 %v288
      %v845 = vunpack.c.l.b16 %v289
      %v846 = vunpack.c.h.b16 %v289
      %v847 = vunpack.c.l.b16 %v290
      %v848 = vunpack.c.h.b16 %v290
      %v849 = vunpack.c.l.b16 %v291
      %v850 = vunpack.c.h.b16 %v291
      %v851 = vunpack.c.l.b16 %v292
      %v852 = vunpack.c.h.b16 %v292
      %v853 = vunpack.c.l.b16 %v293
      %v854 = vunpack.c.h.b16 %v293
      %v855 = vunpack.c.l.b16 %v294
      %v856 = vunpack.c.h.b16 %v294
      %v857 = vunpack.c.l.b16 %v295
      %v858 = vunpack.c.h.b16 %v295
      %v859 = vunpack.c.l.b16 %v296
      %v860 = vunpack.c.h.b16 %v296
      %v861 = vunpack.c.l.b16 %v297
      %v862 = vunpack.c.h.b16 %v297
      %v863 = vunpack.c.l.b16 %v298
      %v864 = vunpack.c.h.b16 %v298
      %v865 = vunpack.c.l.b16 %v299
      %v866 = vunpack.c.h.b16 %v299
      %v867 = vunpack.c.l.b16 %v300
      %v868 = vunpack.c.h.b16 %v300
      %v869 = vunpack.c.l.b16 %v301
      %v870 = vunpack.c.h.b16 %v301
      %v871 = vunpack.c.l.b16 %v302
      %v872 = vunpack.c.h.b16 %v302
      %v873 = vunpack.c.l.b16 %v303
      %v874 = vunpack.c.h.b16 %v303
      %v875 = vunpack.c.l.b16 %v304
      %v876 = vunpack.c.h.b16 %v304
      %v877 = vunpack.c.l.b16 %v305
      %v878 = vunpack.c.h.b16 %v305
      %v879 = vunpack.c.l.b16 %v306
      %v880 = vunpack.c.h.b16 %v306
      %v881 = vunpack.c.l.b16 %v307
      %v882 = vunpack.c.h.b16 %v307
      %v883 = vunpack.c.l.b16 %v308
      %v884 = vunpack.c.h.b16 %v308
      %v885 = vunpack.c.l.b16 %v309
      %v886 = vunpack.c.h.b16 %v309
      %v887 = vunpack.c.l.b16 %v310
      %v888 = vunpack.c.h.b16 %v310
      %v889 = vunpack.c.l.b16 %v311
      %v890 = vunpack.c.h.b16 %v311
      %v891 = vunpack.c.l.b16 %v312
      %v892 = vunpack.c.h.b16 %v312
      %v893 = vunpack.c.l.b16 %v313
      %v894 = vunpack.c.h.b16 %v313
      %v895 = vunpack.c.l.b16 %v314
      %v896 = vunpack.c.h.b16 %v314
      %v897 = vunpack.c.l.b16 %v315
      %v898 = vunpack.c.h.b16 %v315
      %v899 = vunpack.c.l.b16 %v316
      %v900 = vunpack.c.h.b16 %v316
      %v901 = vunpack.c.l.b16 %v317
      %v902 = vunpack.c.h.b16 %v317
      %v903 = vunpack.c.l.b16 %v318
      %v904 = vunpack.c.h.b16 %v318
      %v905 = vunpack.c.l.b16 %v319
      %v906 = vunpack.c.h.b16 %v319
      %v907 = vunpack.c.l.b16 %v320
      %v908 = vunpack.c.h.b16 %v320
      %v909 = vunpack.c.l.b16 %v321
      %v910 = vunpack.c.h.b16 %v321
      %v911 = vunpack.c.l.b16 %v322
      %v912 = vunpack.c.h.b16 %v322
      %v913 = vunpack.c.l.b16 %v323
      %v914 = vunpack.c.h.b16 %v323
      %v915 = vunpack.c.l.b16 %v324
      %v916 = vunpack.c.h.b16 %v324
      %v917 = vunpack.c.l.b16 %v325
      %v918 = vunpack.c.h.b16 %v325
      %v919 = vunpack.c.l.b16 %v326
      %v920 = vunpack.c.h.b16 %v326
      %v921 = vunpack.c.l.b16 %v327
      %v922 = vunpack.c.h.b16 %v327
      %v923 = vunpack.c.l.b16 %v328
      %v924 = vunpack.c.h.b16 %v328
      %v925 = vunpack.c.l.b16 %v329
      %v926 = vunpack.c.h.b16 %v329
      %v927 = vunpack.c.l.b16 %v330
      %v928 = vunpack.c.h.b16 %v330
      %v929 = vunpack.c.l.b16 %v331
      %v930 = vunpack.c.h.b16 %v331
      %v931 = vunpack.c.l.b16 %v332
      %v932 = vunpack.c.h.b16 %v332
      %v933 = vunpack.c.l.b16 %v333
      %v934 = vunpack.c.h.b16 %v333
      %v935 = vunpack.c.l.b16 %v334
      %v936 = vunpack.c.h.b16 %v334
      %v937 = vunpack.c.l.b16 %v335
      %v938 = vunpack.c.h.b16 %v335
      %v939 = vunpack.c.l.b16 %v336
      %v940 = vunpack.c.h.b16 %v336
      %v941 = vunpack.c.l.b16 %v337
      %v942 = vunpack.c.h.b16 %v337
      %v943 = vunpack.c.l.b16 %v338
      %v944 = vunpack.c.h.b16 %v338
      %v945 = vunpack.c.l.b16 %v339
      %v946 = vunpack.c.h.b16 %v339
      %v947 = vunpack.c.l.b16 %v340
      %v948 = vunpack.c.h.b16 %v340
      %v949 = vunpack.c.l.b16 %v341
      %v950 = vunpack.c.h.b16 %v341
      %v951 = vunpack.c.l.b16 %v342
      %v952 = vunpack.c.h.b16 %v342
      %v953 = vunpack.c.l.b16 %v343
      %v954 = vunpack.c.h.b16 %v343
      %v955 = vunpack.c.l.b16 %v344
      %v956 = vunpack.c.h.b16 %v344
      %v957 = vunpack.c.l.b16 %v345
      %v958 = vunpack.c.h.b16 %v345
      %v959 = vunpack.c.l.b16 %v346
      %v960 = vunpack.c.h.b16 %v346
      %v961 = vunpack.c.l.b16 %v347
      %v962 = vunpack.c.h.b16 %v347
      %v963 = vunpack.c.l.b16 %v348
      %v964 = vunpack.c.h.b16 %v348
      %v965 = vunpack.c.l.b16 %v349
      %v966 = vunpack.c.h.b16 %v349
      %v967 = vunpack.c.l.b16 %v350
      %v968 = vunpack.c.h.b16 %v350
      %v969 = vunpack.c.l.b16 %v351
      %v970 = vunpack.c.h.b16 %v351
      %v971 = vunpack.c.l.b16 %v352
      %v972 = vunpack.c.h.b16 %v352
      %v973 = vunpack.c.l.b16 %v353
      %v974 = vunpack.c.h.b16 %v353
      %v975 = vunpack.c.l.b16 %v354
      %v976 = vunpack.c.h.b16 %v354
      %v977 = vunpack.c.l.b16 %v355
      %v978 = vunpack.c.h.b16 %v355
      %v979 = vunpack.c.l.b16 %v356
      %v980 = vunpack.c.h.b16 %v356
      %v981 = vunpack.c.l.b16 %v357
      %v982 = vunpack.c.h.b16 %v357
      %v983 = vunpack.c.l.b16 %v358
      %v984 = vunpack.c.h.b16 %v358
      %v985 = vunpack.c.l.b16 %v359
      %v986 = vunpack.c.h.b16 %v359
      %v987 = vunpack.c.l.b16 %v360
      %v988 = vunpack.c.h.b16 %v360
      %v989 = vunpack.c.l.b16 %v361
      %v990 = vunpack.c.h.b16 %v361
      %v991 = vunpack.c.l.b16 %v362
      %v992 = vunpack.c.h.b16 %v362
      %v993 = vunpack.c.l.b16 %v363
      %v994 = vunpack.c.h.b16 %v363
      %v995 = vunpack.c.l.b16 %v364
      %v996 = vunpack.c.h.b16 %v364
      %v997 = vunpack.c.l.b16 %v365
      %v998 = vunpack.c.h.b16 %v365
      %v999 = vunpack.c.l.b16 %v366
      %v1000 = vunpack.c.h.b16 %v366
      %v1001 = vunpack.c.l.b16 %v367
      %v1002 = vunpack.c.h.b16 %v367
      %v1003 = vunpack.c.l.b16 %v368
      %v1004 = vunpack.c.h.b16 %v368
      %v1005 = vunpack.c.l.b16 %v369
      %v1006 = vunpack.c.h.b16 %v369
      %v1007 = vunpack.c.l.b16 %v370
      %v1008 = vunpack.c.h.b16 %v370
      %v1009 = vunpack.c.l.b16 %v371
      %v1010 = vunpack.c.h.b16 %v371
      %v1011 = vunpack.c.l.b16 %v372
      %v1012 = vunpack.c.h.b16 %v372
      %v1013 = vunpack.c.l.b16 %v373
      %v1014 = vunpack.c.h.b16 %v373
      %v1015 = vunpack.c.l.b16 %v374
      %v1016 = vunpack.c.h.b16 %v374
      %v1017 = vunpack.c.l.b16 %v375
      %v1018 = vunpack.c.h.b16 %v375
      %v1019 = vunpack.c.l.b16 %v376
      %v1020 = vunpack.c.h.b16 %v376
      %v1021 = vunpack.c.l.b16 %v377
      %v1022 = vunpack.c.h.b16 %v377
      %v1023 = vunpack.c.l.b16 %v378
      %v1024 = vunpack.c.h.b16 %v378
      %v1025 = vunpack.c.l.b16 %v379
      %v1026 = vunpack.c.h.b16 %v379
      %v1027 = vunpack.c.l.b16 %v380
      %v1028 = vunpack.c.h.b16 %v380
      %v1029 = vunpack.c.l.b16 %v381
      %v1030 = vunpack.c.h.b16 %v381
      %v1031 = vunpack.c.l.b16 %v382
      %v1032 = vunpack.c.h.b16 %v382
      %v1033 = vunpack.c.l.b16 %v383
      %v1034 = vunpack.c.h.b16 %v383
      %v1035 = vunpack.c.l.b16 %v384
      %v1036 = vunpack.c.h.b16 %v384
      %v1037 = vunpack.c.l.b16 %v385
      %v1038 = vunpack.c.h.b16 %v385
      %v1039 = vunpack.c.l.b16 %v386
      %v1040 = vunpack.c.h.b16 %v386
      %v1041 = vunpack.c.l.b16 %v387
      %v1042 = vunpack.c.h.b16 %v387
      %v1043 = vunpack.c.l.b16 %v388
      %v1044 = vunpack.c.h.b16 %v388
      %v1045 = vunpack.c.l.b16 %v389
      %v1046 = vunpack.c.h.b16 %v389
      %v1047 = vunpack.c.l.b16 %v390
      %v1048 = vunpack.c.h.b16 %v390
      %v1049 = vunpack.c.l.b16 %v391
      %v1050 = vunpack.c.h.b16 %v391
      %v1051 = vunpack.c.l.b16 %v392
      %v1052 = vunpack.c.h.b16 %v392
      %v1053 = vunpack.c.l.b16 %v393
      %v1054 = vunpack.c.h.b16 %v393
      %v1055 = vunpack.c.l.b16 %v394
      %v1056 = vunpack.c.h.b16 %v394
      %v1057 = vunpack.c.l.b16 %v395
      %v1058 = vunpack.c.h.b16 %v395
      %v1059 = vunpack.c.l.b16 %v396
      %v1060 = vunpack.c.h.b16 %v396
      %v1061 = vunpack.c.l.b16 %v397
      %v1062 = vunpack.c.h.b16 %v397
      %v1063 = vunpack.c.l.b16 %v398
      %v1064 = vunpack.c.h.b16 %v398
      %v1065 = vunpack.c.l.b16 %v399
      %v1066 = vunpack.c.h.b16 %v399
      %v1067 = vunpack.c.l.b16 %v400
      %v1068 = vunpack.c.h.b16 %v400
      %v1069 = vunpack.c.l.b16 %v401
      %v1070 = vunpack.c.h.b16 %v401
      %v1071 = vunpack.c.l.b16 %v402
      %v1072 = vunpack.c.h.b16 %v402
      %v1073 = vunpack.c.l.b16 %v403
      %v1074 = vunpack.c.h.b16 %v403
      %v1075 = vunpack.c.l.b16 %v404
      %v1076 = vunpack.c.h.b16 %v404
      %v1077 = vunpack.c.l.b16 %v405
      %v1078 = vunpack.c.h.b16 %v405
      %v1079 = vunpack.c.l.b16 %v406
      %v1080 = vunpack.c.h.b16 %v406
      %v1081 = vunpack.c.l.b16 %v407
      %v1082 = vunpack.c.h.b16 %v407
      %v1083 = vunpack.c.l.b16 %v408
      %v1084 = vunpack.c.h.b16 %v408
      %v1085 = vunpack.c.l.b16 %v409
      %v1086 = vunpack.c.h.b16 %v409
      %v1087 = vunpack.c.l.b16 %v410
      %v1088 = vunpack.c.h.b16 %v410
      %v1089 = vunpack.c.l.b16 %v411
      %v1090 = vunpack.c.h.b16 %v411
      %v1091 = vunpack.c.l.b16 %v412
      %v1092 = vunpack.c.h.b16 %v412
      %v1093 = vunpack.c.l.b16 %v413
      %v1094 = vunpack.c.h.b16 %v413
      %v1095 = vunpack.c.l.b16 %v414
      %v1096 = vunpack.c.h.b16 %v414
      %v1097 = vunpack.c.l.b16 %v415
      %v1098 = vunpack.c.h.b16 %v415
      %v1099 = vunpack.c.l.b16 %v416
      %v1100 = vunpack.c.h.b16 %v416
      %v1101 = vunpack.c.l.b16 %v417
      %v1102 = vunpack.c.h.b16 %v417
      %v1103 = vunpack.c.l.b16 %v418
      %v1104 = vunpack.c.h.b16 %v418
      %v1105 = vunpack.c.l.b16 %v419
      %v1106 = vunpack.c.h.b16 %v419
      %v1107 = vunpack.c.l.b16 %v420
      %v1108 = vunpack.c.h.b16 %v420
      %v1109 = vunpack.c.l.b16 %v421
      %v1110 = vunpack.c.h.b16 %v421
      %v1111 = vunpack.c.l.b16 %v422
      %v1112 = vunpack.c.h.b16 %v422
      %v1113 = vunpack.c.l.b16 %v423
      %v1114 = vunpack.c.h.b16 %v423
      %v1115 = vunpack.c.l.b16 %v424
      %v1116 = vunpack.c.h.b16 %v424
      %v1117 = vunpack.c.l.b16 %v425
      %v1118 = vunpack.c.h.b16 %v425
      %v1119 = vunpack.c.l.b16 %v426
      %v1120 = vunpack.c.h.b16 %v426
      %v1121 = vunpack.c.l.b16 %v427
      %v1122 = vunpack.c.h.b16 %v427
      %v1123 = vunpack.c.l.b16 %v428
      %v1124 = vunpack.c.h.b16 %v428
      %v1125 = vunpack.c.l.b16 %v429
      %v1126 = vunpack.c.h.b16 %v429
      %v1127 = vunpack.c.l.b16 %v430
      %v1128 = vunpack.c.h.b16 %v430
      %v1129 = vunpack.c.l.b16 %v431
      %v1130 = vunpack.c.h.b16 %v431
      %v1131 = vunpack.c.l.b16 %v432
      %v1132 = vunpack.c.h.b16 %v432
      %v1133 = vunpack.c.l.b16 %v433
      %v1134 = vunpack.c.h.b16 %v433
      %v1135 = vunpack.c.l.b16 %v434
      %v1136 = vunpack.c.h.b16 %v434
      %v1137 = vunpack.c.l.b16 %v435
      %v1138 = vunpack.c.h.b16 %v435
      %v1139 = vunpack.c.l.b16 %v436
      %v1140 = vunpack.c.h.b16 %v436
      %v1141 = vunpack.c.l.b16 %v437
      %v1142 = vunpack.c.h.b16 %v437
      %v1143 = vunpack.c.l.b16 %v438
      %v1144 = vunpack.c.h.b16 %v438
      %v1145 = vunpack.c.l.b16 %v439
      %v1146 = vunpack.c.h.b16 %v439
      %v1147 = vunpack.c.l.b16 %v440
      %v1148 = vunpack.c.h.b16 %v440
      %v1149 = vunpack.c.l.b16 %v441
      %v1150 = vunpack.c.h.b16 %v441
      %v1151 = vunpack.c.l.b16 %v442
      %v1152 = vunpack.c.h.b16 %v442
      %v1153 = vunpack.c.l.b16 %v443
      %v1154 = vunpack.c.h.b16 %v443
      %v1155 = vunpack.c.l.b16 %v444
      %v1156 = vunpack.c.h.b16 %v444
      %v1157 = vunpack.c.l.b16 %v445
      %v1158 = vunpack.c.h.b16 %v445
      %v1159 = vunpack.c.l.b16 %v446
      %v1160 = vunpack.c.h.b16 %v446
      %v1161 = vunpack.c.l.b16 %v447
      %v1162 = vunpack.c.h.b16 %v447
      %v1163 = vunpack.c.l.b16 %v448
      %v1164 = vunpack.c.h.b16 %v448
      %v1165 = vunpack.c.l.b16 %v449
      %v1166 = vunpack.c.h.b16 %v449
      %v1167 = vunpack.c.l.b16 %v450
      %v1168 = vunpack.c.h.b16 %v450
      %v1169 = vunpack.c.l.b16 %v451
      %v1170 = vunpack.c.h.b16 %v451
      %v1171 = vunpack.c.l.b16 %v452
      %v1172 = vunpack.c.h.b16 %v452
      %v1173 = vunpack.c.l.b16 %v453
      %v1174 = vunpack.c.h.b16 %v453
      %v1175 = vunpack.c.l.b16 %v454
      %v1176 = vunpack.c.h.b16 %v454
      %v1177 = vunpack.c.l.b16 %v455
      %v1178 = vunpack.c.h.b16 %v455
      %v1179 = vunpack.c.l.b16 %v456
      %v1180 = vunpack.c.h.b16 %v456
      %v1181 = vunpack.c.l.b16 %v457
      %v1182 = vunpack.c.h.b16 %v457
      %v1183 = vunpack.c.l.b16 %v458
      %v1184 = vunpack.c.h.b16 %v458
      %v1185 = vunpack.c.l.b16 %v459
      %v1186 = vunpack.c.h.b16 %v459
      %v1187 = vunpack.c.l.b16 %v460
      %v1188 = vunpack.c.h.b16 %v460
      %v1189 = vunpack.c.l.b16 %v461
      %v1190 = vunpack.c.h.b16 %v461
      %v1191 = vunpack.c.l.b16 %v462
      %v1192 = vunpack.c.h.b16 %v462
      %v1193 = vunpack.c.l.b16 %v463
      %v1194 = vunpack.c.h.b16 %v463
      %v1195 = vunpack.c.l.b16 %v464
      %v1196 = vunpack.c.h.b16 %v464
      %v1197 = vunpack.c.l.b16 %v465
      %v1198 = vunpack.c.h.b16 %v465
      %v1199 = vunpack.c.l.b16 %v466
      %v1200 = vunpack.c.h.b16 %v466
      %v1201 = vunpack.c.l.b16 %v467
      %v1202 = vunpack.c.h.b16 %v467
      %v1203 = vunpack.c.l.b16 %v468
      %v1204 = vunpack.c.h.b16 %v468
      %v1205 = vunpack.c.l.b16 %v469
      %v1206 = vunpack.c.h.b16 %v469
      %v1207 = vunpack.c.l.b16 %v470
      %v1208 = vunpack.c.h.b16 %v470
      %v1209 = vunpack.c.l.b16 %v471
      %v1210 = vunpack.c.h.b16 %v471
      %v1211 = vunpack.c.l.b16 %v472
      %v1212 = vunpack.c.h.b16 %v472
      %v1213 = vunpack.c.l.b16 %v473
      %v1214 = vunpack.c.h.b16 %v473
      %v1215 = vunpack.c.l.b16 %v474
      %v1216 = vunpack.c.h.b16 %v474
      %v1217 = vunpack.c.l.b16 %v475
      %v1218 = vunpack.c.h.b16 %v475
      %v1219 = vunpack.c.l.b16 %v476
      %v1220 = vunpack.c.h.b16 %v476
      %v1221 = vunpack.c.l.b16 %v477
      %v1222 = vunpack.c.h.b16 %v477
      %v1223 = vunpack.c.l.b16 %v478
      %v1224 = vunpack.c.h.b16 %v478
      %v1225 = vunpack.c.l.b16 %v479
      %v1226 = vunpack.c.h.b16 %v479
      %v1227 = vunpack.c.l.b16 %v480
      %v1228 = vunpack.c.h.b16 %v480
      %v1229 = vunpack.c.l.b16 %v481
      %v1230 = vunpack.c.h.b16 %v481
      %v1231 = vunpack.c.l.b16 %v482
      %v1232 = vunpack.c.h.b16 %v482
      %v1233 = vunpack.c.l.b16 %v483
      %v1234 = vunpack.c.h.b16 %v483
      %v1235 = vunpack.c.l.b16 %v484
      %v1236 = vunpack.c.h.b16 %v484
      %v1237 = vunpack.c.l.b16 %v485
      %v1238 = vunpack.c.h.b16 %v485
      %v1239 = vunpack.c.l.b16 %v486
      %v1240 = vunpack.c.h.b16 %v486
      %v1241 = vunpack.c.l.b16 %v487
      %v1242 = vunpack.c.h.b16 %v487
      %v1243 = vunpack.c.l.b16 %v488
      %v1244 = vunpack.c.h.b16 %v488
      %v1245 = vunpack.c.l.b16 %v489
      %v1246 = vunpack.c.h.b16 %v489
      %v1247 = vunpack.c.l.b16 %v490
      %v1248 = vunpack.c.h.b16 %v490
      %v1249 = vunpack.c.l.b16 %v491
      %v1250 = vunpack.c.h.b16 %v491
      %v1251 = vunpack.c.l.b16 %v492
      %v1252 = vunpack.c.h.b16 %v492
      %v1253 = vunpack.c.l.b16 %v493
      %v1254 = vunpack.c.h.b16 %v493
      %v1255 = vunpack.c.l.b16 %v494
      %v1256 = vunpack.c.h.b16 %v494
      %v1257 = vunpack.c.l.b16 %v495
      %v1258 = vunpack.c.h.b16 %v495
      %v1259 = vunpack.c.l.b16 %v496
      %v1260 = vunpack.c.h.b16 %v496
      %v1261 = vunpack.c.l.b16 %v497
      %v1262 = vunpack.c.h.b16 %v497
      %v1263 = vunpack.c.l.b16 %v498
      %v1264 = vunpack.c.h.b16 %v498
      %v1265 = vunpack.c.l.b16 %v499
      %v1266 = vunpack.c.h.b16 %v499
      %v1267 = vunpack.c.l.b16 %v500
      %v1268 = vunpack.c.h.b16 %v500
      %v1269 = vunpack.c.l.b16 %v501
      %v1270 = vunpack.c.h.b16 %v501
      %v1271 = vunpack.c.l.b16 %v502
      %v1272 = vunpack.c.h.b16 %v502
      %v1273 = vunpack.c.l.b16 %v503
      %v1274 = vunpack.c.h.b16 %v503
      %v1275 = vunpack.c.l.b16 %v504
      %v1276 = vunpack.c.h.b16 %v504
      %v1277 = vunpack.c.l.b16 %v505
      %v1278 = vunpack.c.h.b16 %v505
      %v1279 = vunpack.c.l.b16 %v506
      %v1280 = vunpack.c.h.b16 %v506
      %v1281 = vunpack.c.l.b16 %v507
      %v1282 = vunpack.c.h.b16 %v507
      %v1283 = vunpack.c.l.b16 %v508
      %v1284 = vunpack.c.h.b16 %v508
      %v1285 = vunpack.c.l.b16 %v509
      %v1286 = vunpack.c.h.b16 %v509
      %v1287 = vunpack.c.l.b16 %v510
      %v1288 = vunpack.c.h.b16 %v510
      %v1289 = vunpack.c.l.b16 %v511
      %v1290 = vunpack.c.h.b16 %v511
      %v1291 = vunpack.c.l.b16 %v512
      %v1292 = vunpack.c.h.b16 %v512
      %v1293 = vunpack.c.l.b16 %v513
      %v1294 = vunpack.c.h.b16 %v513
      %v1295 = vunpack.c.l.b16 %v514
      %v1296 = vunpack.c.h.b16 %v514
      %v1297 = vunpack.c.l.b16 %v515
      %v1298 = vunpack.c.h.b16 %v515
      %v1299 = vunpack.c.l.b16 %v516
      %v1300 = vunpack.c.h.b16 %v516
      %v1301 = vunpack.c.l.b16 %v517
      %v1302 = vunpack.c.h.b16 %v517
      %v1303 = vunpack.c.l.b16 %v518
      %v1304 = vunpack.c.h.b16 %v518
      %v1305 = vunpack.c.l.b16 %v519
      %v1306 = vunpack.c.h.b16 %v519
      %v1307 = vunpack.c.l.b16 %v520
      %v1308 = vunpack.c.h.b16 %v520
      %v1309 = vunpack.c.l.b16 %v521
      %v1310 = vunpack.c.h.b16 %v521
      %v1311 = vunpack.c.l.b16 %v522
      %v1312 = vunpack.c.h.b16 %v522
      %v1313 = vunpack.c.l.b16 %v523
      %v1314 = vunpack.c.h.b16 %v523
      %v1315 = vunpack.c.l.b16 %v524
      %v1316 = vunpack.c.h.b16 %v524
      %v1317 = vunpack.c.l.b16 %v525
      %v1318 = vunpack.c.h.b16 %v525
      %v1319 = vunpack.c.l.b16 %v526
      %v1320 = vunpack.c.h.b16 %v526
      %v1321 = vunpack.c.l.b16 %v527
      %v1322 = vunpack.c.h.b16 %v527
      %v1323 = vunpack.c.l.b16 %v528
      %v1324 = vunpack.c.h.b16 %v528
      %v1325 = vunpack.c.l.b16 %v529
      %v1326 = vunpack.c.h.b16 %v529
      %v1327 = vunpack.c.l.b16 %v530
      %v1328 = vunpack.c.h.b16 %v530
      %v1329 = vunpack.c.l.b16 %v531
      %v1330 = vunpack.c.h.b16 %v531
      %v1331 = vunpack.c.l.b16 %v532
      %v1332 = vunpack.c.h.b16 %v532
      %v1333 = vunpack.c.l.b16 %v533
      %v1334 = vunpack.c.h.b16 %v533
      %v1335 = vunpack.c.l.b16 %v534
      %v1336 = vunpack.c.h.b16 %v534
      %v1337 = vunpack.c.l.b16 %v535
      %v1338 = vunpack.c.h.b16 %v535
      %v1339 = vunpack.c.l.b16 %v536
      %v1340 = vunpack.c.h.b16 %v536
      %v1341 = vunpack.c.l.b16 %v537
      %v1342 = vunpack.c.h.b16 %v537
      %v1343 = vunpack.c.l.b16 %v538
      %v1344 = vunpack.c.h.b16 %v538
      %v1345 = vunpack.c.l.b16 %v539
      %v1346 = vunpack.c.h.b16 %v539
      %v1347 = vunpack.c.l.b16 %v540
      %v1348 = vunpack.c.h.b16 %v540
      %v1349 = vunpack.c.l.b16 %v541
      %v1350 = vunpack.c.h.b16 %v541
      %v1351 = vunpack.c.l.b16 %v542
      %v1352 = vunpack.c.h.b16 %v542
      %v1353 = vpack.c.b16 %v849, %v841
      %v1354 = vpack.c.b16 %v850, %v842
      %v1355 = vpack.c.b16 %v851, %v843
      %v1356 = vpack.c.b16 %v852, %v844
      %v1357 = vpack.c.b16 %v853, %v845
      %v1358 = vpack.c.b16 %v854, %v846
      %v1359 = vpack.c.b16 %v855, %v847
      %v1360 = vpack.c.b16 %v856, %v848
      %v1361 = vpack.c.b16 %v865, %v857
      %v1362 = vpack.c.b16 %v866, %v858
      %v1363 = vpack.c.b16 %v867, %v859
      %v1364 = vpack.c.b16 %v868, %v860
      %v1365 = vpack.c.b16 %v869, %v861
      %v1366 = vpack.c.b16 %v870, %v862
      %v1367 = vpack.c.b16 %v871, %v863
      %v1368 = vpack.c.b16 %v872, %v864
      %v1369 = vpack.c.b16 %v881, %v873
      %v1370 = vpack.c.b16 %v882, %v874
      %v1371 = vpack.c.b16 %v883, %v875
      %v1372 = vpack.c.b16 %v884, %v876
      %v1373 = vpack.c.b16 %v885, %v877
      %v1374 = vpack.c.b16 %v886, %v878
      %v1375 = vpack.c.b16 %v887, %v879
      %v1376 = vpack.c.b16 %v888, %v880
      %v1377 = vpack.c.b16 %v897, %v889
      %v1378 = vpack.c.b16 %v898, %v890
      %v1379 = vpack.c.b16 %v899, %v891
      %v1380 = vpack.c.b16 %v900, %v892
      %v1381 = vpack.c.b16 %v901, %v893
      %v1382 = vpack.c.b16 %v902, %v894
      %v1383 = vpack.c.b16 %v903, %v895
      %v1384 = vpack.c.b16 %v904, %v896
      %v1385 = vpack.c.b16 %v913, %v905
      %v1386 = vpack.c.b16 %v914, %v906
      %v1387 = vpack.c.b16 %v915, %v907
      %v1388 = vpack.c.b16 %v916, %v908
      %v1389 = vpack.c.b16 %v917, %v909
      %v1390 = vpack.c.b16 %v918, %v910
      %v1391 = vpack.c.b16 %v919, %v911
      %v1392 = vpack.c.b16 %v920, %v912
      %v1393 = vpack.c.b16 %v929, %v921
      %v1394 = vpack.c.b16 %v930, %v922
      %v1395 = vpack.c.b16 %v931, %v923
      %v1396 = vpack.c.b16 %v932, %v924
      %v1397 = vpack.c.b16 %v933, %v925
      %v1398 = vpack.c.b16 %v934, %v926
      %v1399 = vpack.c.b16 %v935, %v927
      %v1400 = vpack.c.b16 %v936, %v928
      %v1401 = vpack.c.b16 %v945, %v937
      %v1402 = vpack.c.b16 %v946, %v938
      %v1403 = vpack.c.b16 %v947, %v939
      %v1404 = vpack.c.b16 %v948, %v940
      %v1405 = vpack.c.b16 %v949, %v941
      %v1406 = vpack.c.b16 %v950, %v942
      %v1407 = vpack.c.b16 %v951, %v943
      %v1408 = vpack.c.b16 %v952, %v944
      %v1409 = vpack.c.b16 %v961, %v953
      %v1410 = vpack.c.b16 %v962, %v954
      %v1411 = vpack.c.b16 %v963, %v955
      %v1412 = vpack.c.b16 %v964, %v956
      %v1413 = vpack.c.b16 %v965, %v957
      %v1414 = vpack.c.b16 %v966, %v958
      %v1415 = vpack.c.b16 %v967, %v959
      %v1416 = vpack.c.b16 %v968, %v960
      %v1417 = vpack.c.b16 %v977, %v969
      %v1418 = vpack.c.b16 %v978, %v970
      %v1419 = vpack.c.b16 %v979, %v971
      %v1420 = vpack.c.b16 %v980, %v972
      %v1421 = vpack.c.b16 %v981, %v973
      %v1422 = vpack.c.b16 %v982, %v974
      %v1423 = vpack.c.b16 %v983, %v975
      %v1424 = vpack.c.b16 %v984, %v976
      %v1425 = vpack.c.b16 %v993, %v985
      %v1426 = vpack.c.b16 %v994, %v986
      %v1427 = vpack.c.b16 %v995, %v987
      %v1428 = vpack.c.b16 %v996, %v988
      %v1429 = vpack.c.b16 %v997, %v989
      %v1430 = vpack.c.b16 %v998, %v990
      %v1431 = vpack.c.b16 %v999, %v991
      %v1432 = vpack.c.b16 %v1000, %v992
      %v1433 = vpack.c.b16 %v1009, %v1001
      %v1434 = vpack.c.b16 %v1010, %v1002
      %v1435 = vpack.c.b16 %v1011, %v1003
      %v1436 = vpack.c.b16 %v1012, %v1004
      %v1437 = vpack.c.b16 %v1013, %v1005
      %v1438 = vpack.c.b16 %v1014, %v1006
      %v1439 = vpack.c.b16 %v1015, %v1007
      %v1440 = vpack.c.b16 %v1016, %v1008
      %v1441 = vpack.c.b16 %v1025, %v1017
      %v1442 = vpack.c.b16 %v1026, %v1018
      %v1443 = vpack.c.b16 %v1027, %v1019
      %v1444 = vpack.c.b16 %v1028, %v1020
      %v1445 = vpack.c.b16 %v1029, %v1021
      %v1446 = vpack.c.b16 %v1030, %v1022
      %v1447 = vpack.c.b16 %v1031, %v1023
      %v1448 = vpack.c.b16 %v1032, %v1024
      %v1449 = vpack.c.b16 %v1041, %v1033
      %v1450 = vpack.c.b16 %v1042, %v1034
      %v1451 = vpack.c.b16 %v1043, %v1035
      %v1452 = vpack.c.b16 %v1044, %v1036
      %v1453 = vpack.c.b16 %v1045, %v1037
      %v1454 = vpack.c.b16 %v1046, %v1038
      %v1455 = vpack.c.b16 %v1047, %v1039
      %v1456 = vpack.c.b16 %v1048, %v1040
      %v1457 = vpack.c.b16 %v1057, %v1049
      %v1458 = vpack.c.b16 %v1058, %v1050
      %v1459 = vpack.c.b16 %v1059, %v1051
      %v1460 = vpack.c.b16 %v1060, %v1052
      %v1461 = vpack.c.b16 %v1061, %v1053
      %v1462 = vpack.c.b16 %v1062, %v1054
      %v1463 = vpack.c.b16 %v1063, %v1055
      %v1464 = vpack.c.b16 %v1064, %v1056
      %v1465 = vpack.c.b16 %v1073, %v1065
      %v1466 = vpack.c.b16 %v1074, %v1066
      %v1467 = vpack.c.b16 %v1075, %v1067
      %v1468 = vpack.c.b16 %v1076, %v1068
      %v1469 = vpack.c.b16 %v1077, %v1069
      %v1470 = vpack.c.b16 %v1078, %v1070
      %v1471 = vpack.c.b16 %v1079, %v1071
      %v1472 = vpack.c.b16 %v1080, %v1072
      %v1473 = vpack.c.b16 %v1089, %v1081
      %v1474 = vpack.c.b16 %v1090, %v1082
      %v1475 = vpack.c.b16 %v1091, %v1083
      %v1476 = vpack.c.b16 %v1092, %v1084
      %v1477 = vpack.c.b16 %v1093, %v1085
      %v1478 = vpack.c.b16 %v1094, %v1086
      %v1479 = vpack.c.b16 %v1095, %v1087
      %v1480 = vpack.c.b16 %v1096, %v1088
      %v1481 = vpack.c.b16 %v1105, %v1097
      %v1482 = vpack.c.b16 %v1106, %v1098
      %v1483 = vpack.c.b16 %v1107, %v1099
      %v1484 = vpack.c.b16 %v1108, %v1100
      %v1485 = vpack.c.b16 %v1109, %v1101
      %v1486 = vpack.c.b16 %v1110, %v1102
      %v1487 = vpack.c.b16 %v1111, %v1103
      %v1488 = vpack.c.b16 %v1112, %v1104
      %v1489 = vpack.c.b16 %v1121, %v1113
      %v1490 = vpack.c.b16 %v1122, %v1114
      %v1491 = vpack.c.b16 %v1123, %v1115
      %v1492 = vpack.c.b16 %v1124, %v1116
      %v1493 = vpack.c.b16 %v1125, %v1117
      %v1494 = vpack.c.b16 %v1126, %v1118
      %v1495 = vpack.c.b16 %v1127, %v1119
      %v1496 = vpack.c.b16 %v1128, %v1120
      %v1497 = vpack.c.b16 %v1137, %v1129
      %v1498 = vpack.c.b16 %v1138, %v1130
      %v1499 = vpack.c.b16 %v1139, %v1131
      %v1500 = vpack.c.b16 %v1140, %v1132
      %v1501 = vpack.c.b16 %v1141, %v1133
      %v1502 = vpack.c.b16 %v1142, %v1134
      %v1503 = vpack.c.b16 %v1143, %v1135
      %v1504 = vpack.c.b16 %v1144, %v1136
      %v1505 = vpack.c.b16 %v1153, %v1145
      %v1506 = vpack.c.b16 %v1154, %v1146
      %v1507 = vpack.c.b16 %v1155, %v1147
      %v1508 = vpack.c.b16 %v1156, %v1148
      %v1509 = vpack.c.b16 %v1157, %v1149
      %v1510 = vpack.c.b16 %v1158, %v1150
      %v1511 = vpack.c.b16 %v1159, %v1151
      %v1512 = vpack.c.b16 %v1160, %v1152
      %v1513 = vpack.c.b16 %v1169, %v1161
      %v1514 = vpack.c.b16 %v1170, %v1162
      %v1515 = vpack.c.b16 %v1171, %v1163
      %v1516 = vpack.c.b16 %v1172, %v1164
      %v1517 = vpack.c.b16 %v1173, %v1165
      %v1518 = vpack.c.b16 %v1174, %v1166
      %v1519 = vpack.c.b16 %v1175, %v1167
      %v1520 = vpack.c.b16 %v1176, %v1168
      %v1521 = vpack.c.b16 %v1185, %v1177
      %v1522 = vpack.c.b16 %v1186, %v1178
      %v1523 = vpack.c.b16 %v1187, %v1179
      %v1524 = vpack.c.b16 %v1188, %v1180
      %v1525 = vpack.c.b16 %v1189, %v1181
      %v1526 = vpack.c.b16 %v1190, %v1182
      %v1527 = vpack.c.b16 %v1191, %v1183
      %v1528 = vpack.c.b16 %v1192, %v1184
      %v1529 = vpack.c.b16 %v1201, %v1193
      %v1530 = vpack.c.b16 %v1202, %v1194
      %v1531 = vpack.c.b16 %v1203, %v1195
      %v1532 = vpack.c.b16 %v1204, %v1196
      %v1533 = vpack.c.b16 %v1205, %v1197
      %v1534 = vpack.c.b16 %v1206, %v1198
      %v1535 = vpack.c.b16 %v1207, %v1199
      %v1536 = vpack.c.b16 %v1208, %v1200
      %v1537 = vpack.c.b16 %v1217, %v1209
      %v1538 = vpack.c.b16 %v1218, %v1210
      %v1539 = vpack.c.b16 %v1219, %v1211
      %v1540 = vpack.c.b16 %v1220, %v1212
      %v1541 = vpack.c.b16 %v1221, %v1213
      %v1542 = vpack.c.b16 %v1222, %v1214
      %v1543 = vpack.c.b16 %v1223, %v1215
      %v1544 = vpack.c.b16 %v1224, %v1216
      %v1545 = vpack.c.b16 %v1233, %v1225
      %v1546 = vpack.c.b16 %v1234, %v1226
      %v1547 = vpack.c.b16 %v1235, %v1227
      %v1548 = vpack.c.b16 %v1236, %v1228
      %v1549 = vpack.c.b16 %v1237, %v1229
      %v1550 = vpack.c.b16 %v1238, %v1230
      %v1551 = vpack.c.b16 %v1239, %v1231
      %v1552 = vpack.c.b16 %v1240, %v1232
      %v1553 = vpack.c.b16 %v1249, %v1241
      %v1554 = vpack.c.b16 %v1250, %v1242
      %v1555 = vpack.c.b16 %v1251, %v1243
      %v1556 = vpack.c.b16 %v1252, %v1244
      %v1557 = vpack.c.b16 %v1253, %v1245
      %v1558 = vpack.c.b16 %v1254, %v1246
      %v1559 = vpack.c.b16 %v1255, %v1247
      %v1560 = vpack.c.b16 %v1256, %v1248
      %v1561 = vpack.c.b16 %v1265, %v1257
      %v1562 = vpack.c.b16 %v1266, %v1258
      %v1563 = vpack.c.b16 %v1267, %v1259
      %v1564 = vpack.c.b16 %v1268, %v1260
      %v1565 = vpack.c.b16 %v1269, %v1261
      %v1566 = vpack.c.b16 %v1270, %v1262
      %v1567 = vpack.c.b16 %v1271, %v1263
      %v1568 = vpack.c.b16 %v1272, %v1264
      %v1569 = vpack.c.b16 %v1281, %v1273
      %v1570 = vpack.c.b16 %v1282, %v1274
      %v1571 = vpack.c.b16 %v1283, %v1275
      %v1572 = vpack.c.b16 %v1284, %v1276
      %v1573 = vpack.c.b16 %v1285, %v1277
      %v1574 = vpack.c.b16 %v1286, %v1278
      %v1575 = vpack.c.b16 %v1287, %v1279
      %v1576 = vpack.c.b16 %v1288, %v1280
      %v1577 = vpack.c.b16 %v1297, %v1289
      %v1578 = vpack.c.b16 %v1298, %v1290
      %v1579 = vpack.c.b16 %v1299, %v1291
      %v1580 = vpack.c.b16 %v1300, %v1292
      %v1581 = vpack.c.b16 %v1301, %v1293
      %v1582 = vpack.c.b16 %v1302, %v1294
      %v1583 = vpack.c.b16 %v1303, %v1295
      %v1584 = vpack.c.b16 %v1304, %v1296
      %v1585 = vpack.c.b16 %v1313, %v1305
      %v1586 = vpack.c.b16 %v1314, %v1306
      %v1587 = vpack.c.b16 %v1315, %v1307
      %v1588 = vpack.c.b16 %v1316, %v1308
      %v1589 = vpack.c.b16 %v1317, %v1309
      %v1590 = vpack.c.b16 %v1318, %v1310
      %v1591 = vpack.c.b16 %v1319, %v1311
      %v1592 = vpack.c.b16 %v1320, %v1312
      %v1593 = vpack.c.b16 %v1329, %v1321
      %v1594 = vpack.c.b16 %v1330, %v1322
      %v1595 = vpack.c.b16 %v1331, %v1323
      %v1596 = vpack.c.b16 %v1332, %v1324
      %v1597 = vpack.c.b16 %v1333, %v1325
      %v1598 = vpack.c.b16 %v1334, %v1326
      %v1599 = vpack.c.b16 %v1335, %v1327
      %v1600 = vpack.c.b16 %v1336, %v1328
      %v1601 = vpack.c.b16 %v1345, %v1337
      %v1602 = vpack.c.b16 %v1346, %v1338
      %v1603 = vpack.c.b16 %v1347, %v1339
      %v1604 = vpack.c.b16 %v1348, %v1340
      %v1605 = vpack.c.b16 %v1349, %v1341
      %v1606 = vpack.c.b16 %v1350, %v1342
      %v1607 = vpack.c.b16 %v1351, %v1343
      %v1608 = vpack.c.b16 %v1352, %v1344
      %1865 = vmatprep.subr.bf16.mxu0 %v1410
      %1866 = vmatpush1.bf16.msra.mxu0 %v1409
      %1867 = vmatprep.subr.bf16.mxu0 %v1402
      %1868 = vmatpush1.bf16.msra.mxu0 %v1401
      %1869 = vmatprep.subr.bf16.mxu0 %v1394
      %1870 = vmatpush1.bf16.msra.mxu0 %v1393
      %1871 = vmatprep.subr.bf16.mxu0 %v1386
      %1872 = vmatpush1.bf16.msra.mxu0 %v1385
      %1873 = vmatprep.subr.bf16.mxu0 %v1378
      %1874 = vmatpush1.bf16.msra.mxu0 %v1377
      %1875 = vmatprep.subr.bf16.mxu0 %v1370
      %1876 = vmatpush1.bf16.msra.mxu0 %v1369
      %1877 = vmatprep.subr.bf16.mxu0 %v1362
      %1878 = vmatpush1.bf16.msra.mxu0 %v1361
      %1879 = vmatprep.subr.bf16.mxu0 %v1354
      %1880 = vmatpush1.bf16.msra.mxu0 %v1353
      %1881 = vmatprep.subr.bf16.mxu0 %v1474
      %1882 = vmatpush2.bf16.msra.mxu0 %v1473
      %1883 = vmatprep.subr.bf16.mxu0 %v1466
      %1884 = vmatpush2.bf16.msra.mxu0 %v1465
      %1885 = vmatprep.subr.bf16.mxu0 %v1458
      %1886 = vmatpush2.bf16.msra.mxu0 %v1457
      %1887 = vmatprep.subr.bf16.mxu0 %v1450
      %1888 = vmatpush2.bf16.msra.mxu0 %v1449
      %1889 = vmatprep.subr.bf16.mxu0 %v1442
      %1890 = vmatpush2.bf16.msra.mxu0 %v1441
      %1891 = vmatprep.subr.bf16.mxu0 %v1434
      %1892 = vmatpush2.bf16.msra.mxu0 %v1433
      %1893 = vmatprep.subr.bf16.mxu0 %v1426
      %1894 = vmatpush2.bf16.msra.mxu0 %v1425
      %1895 = vmatprep.subr.bf16.mxu0 %v1418
      %1896 = vmatpush2.bf16.msra.mxu0 %v1417
      %1897 = vmatprep.mubr.bf16.mxu0 %v284
      %1898 = vmatmul.mubr.bf16.gmra.mxu0 %v283
      %v1899 = vpop.f32.mrf.mxu0
      %v1900 = vadd.f32 %v548, %v1899
      %v1901 = vpop.f32.mrf.mxu0
      %v1902 = vadd.f32 %v552, %v1901
      %v1903 = vpop.f32.mrf.mxu0
      %v1904 = vpop.f32.mrf.mxu0
      %1905 = vdwg.mxu0
      %1906 = vmatprep.subr.bf16.mxu0 %v1538
      %1907 = vmatpush1.bf16.msra.mxu0 %v1537
      %1908 = vmatprep.subr.bf16.mxu0 %v1530
      %1909 = vmatpush1.bf16.msra.mxu0 %v1529
      %1910 = vmatprep.subr.bf16.mxu0 %v1522
      %1911 = vmatpush1.bf16.msra.mxu0 %v1521
      %1912 = vmatprep.subr.bf16.mxu0 %v1514
      %1913 = vmatpush1.bf16.msra.mxu0 %v1513
      %1914 = vmatprep.subr.bf16.mxu0 %v1506
      %1915 = vmatpush1.bf16.msra.mxu0 %v1505
      %1916 = vmatprep.subr.bf16.mxu0 %v1498
      %1917 = vmatpush1.bf16.msra.mxu0 %v1497
      %1918 = vmatprep.subr.bf16.mxu0 %v1490
      %1919 = vmatpush1.bf16.msra.mxu0 %v1489
      %1920 = vmatprep.subr.bf16.mxu0 %v1482
      %1921 = vmatpush1.bf16.msra.mxu0 %v1481
      %1922 = vmatprep.subr.bf16.mxu0 %v1602
      %1923 = vmatpush2.bf16.msra.mxu0 %v1601
      %1924 = vmatprep.subr.bf16.mxu0 %v1594
      %1925 = vmatpush2.bf16.msra.mxu0 %v1593
      %1926 = vmatprep.subr.bf16.mxu0 %v1586
      %1927 = vmatpush2.bf16.msra.mxu0 %v1585
      %1928 = vmatprep.subr.bf16.mxu0 %v1578
      %1929 = vmatpush2.bf16.msra.mxu0 %v1577
      %1930 = vmatprep.subr.bf16.mxu0 %v1570
      %1931 = vmatpush2.bf16.msra.mxu0 %v1569
      %1932 = vmatprep.subr.bf16.mxu0 %v1562
      %1933 = vmatpush2.bf16.msra.mxu0 %v1561
      %1934 = vmatprep.subr.bf16.mxu0 %v1554
      %1935 = vmatpush2.bf16.msra.mxu0 %v1553
      %1936 = vmatprep.subr.bf16.mxu0 %v1546
      %1937 = vmatpush2.bf16.msra.mxu0 %v1545
      %1938 = vmatprep.mubr.bf16.mxu0 %v286
      %1939 = vmatmul.mubr.bf16.gmra.mxu0 %v285
      %v1940 = vpop.f32.mrf.mxu0
      %v1941 = vadd.f32 %v1900, %v1940
      %v1942 = vpop.f32.mrf.mxu0
      %v1943 = vadd.f32 %v1902, %v1942
      %v1944 = vpop.f32.mrf.mxu0
      %v1945 = vpop.f32.mrf.mxu0
      %1946 = vdwg.mxu0
      %1947 = vmatprep.subr.bf16.mxu0 %v1412
      %1948 = vmatpush1.bf16.msra.mxu0 %v1411
      %1949 = vmatprep.subr.bf16.mxu0 %v1404
      %1950 = vmatpush1.bf16.msra.mxu0 %v1403
      %1951 = vmatprep.subr.bf16.mxu0 %v1396
      %1952 = vmatpush1.bf16.msra.mxu0 %v1395
      %1953 = vmatprep.subr.bf16.mxu0 %v1388
      %1954 = vmatpush1.bf16.msra.mxu0 %v1387
      %1955 = vmatprep.subr.bf16.mxu0 %v1380
      %1956 = vmatpush1.bf16.msra.mxu0 %v1379
      %1957 = vmatprep.subr.bf16.mxu0 %v1372
      %1958 = vmatpush1.bf16.msra.mxu0 %v1371
      %1959 = vmatprep.subr.bf16.mxu0 %v1364
      %1960 = vmatpush1.bf16.msra.mxu0 %v1363
      %1961 = vmatprep.subr.bf16.mxu0 %v1356
      %1962 = vmatpush1.bf16.msra.mxu0 %v1355
      %1963 = vmatprep.subr.bf16.mxu0 %v1476
      %1964 = vmatpush2.bf16.msra.mxu0 %v1475
      %1965 = vmatprep.subr.bf16.mxu0 %v1468
      %1966 = vmatpush2.bf16.msra.mxu0 %v1467
      %1967 = vmatprep.subr.bf16.mxu0 %v1460
      %1968 = vmatpush2.bf16.msra.mxu0 %v1459
      %1969 = vmatprep.subr.bf16.mxu0 %v1452
      %1970 = vmatpush2.bf16.msra.mxu0 %v1451
      %1971 = vmatprep.subr.bf16.mxu0 %v1444
      %1972 = vmatpush2.bf16.msra.mxu0 %v1443
      %1973 = vmatprep.subr.bf16.mxu0 %v1436
      %1974 = vmatpush2.bf16.msra.mxu0 %v1435
      %1975 = vmatprep.subr.bf16.mxu0 %v1428
      %1976 = vmatpush2.bf16.msra.mxu0 %v1427
      %1977 = vmatprep.subr.bf16.mxu0 %v1420
      %1978 = vmatpush2.bf16.msra.mxu0 %v1419
      %1979 = vmatprep.mubr.bf16.mxu0 %v284
      %1980 = vmatmul.mubr.bf16.gmra.mxu0 %v283
      %v1981 = vpop.f32.mrf.mxu0
      %v1982 = vadd.f32 %v556, %v1981
      %v1983 = vpop.f32.mrf.mxu0
      %v1984 = vadd.f32 %v560, %v1983
      %v1985 = vpop.f32.mrf.mxu0
      %v1986 = vpop.f32.mrf.mxu0
      %1987 = vdwg.mxu0
      %1988 = vmatprep.subr.bf16.mxu0 %v1540
      %1989 = vmatpush1.bf16.msra.mxu0 %v1539
      %1990 = vmatprep.subr.bf16.mxu0 %v1532
      %1991 = vmatpush1.bf16.msra.mxu0 %v1531
      %1992 = vmatprep.subr.bf16.mxu0 %v1524
      %1993 = vmatpush1.bf16.msra.mxu0 %v1523
      %1994 = vmatprep.subr.bf16.mxu0 %v1516
      %1995 = vmatpush1.bf16.msra.mxu0 %v1515
      %1996 = vmatprep.subr.bf16.mxu0 %v1508
      %1997 = vmatpush1.bf16.msra.mxu0 %v1507
      %1998 = vmatprep.subr.bf16.mxu0 %v1500
      %1999 = vmatpush1.bf16.msra.mxu0 %v1499
      %2000 = vmatprep.subr.bf16.mxu0 %v1492
      %2001 = vmatpush1.bf16.msra.mxu0 %v1491
      %2002 = vmatprep.subr.bf16.mxu0 %v1484
      %2003 = vmatpush1.bf16.msra.mxu0 %v1483
      %2004 = vmatprep.subr.bf16.mxu0 %v1604
      %2005 = vmatpush2.bf16.msra.mxu0 %v1603
      %2006 = vmatprep.subr.bf16.mxu0 %v1596
      %2007 = vmatpush2.bf16.msra.mxu0 %v1595
      %2008 = vmatprep.subr.bf16.mxu0 %v1588
      %2009 = vmatpush2.bf16.msra.mxu0 %v1587
      %2010 = vmatprep.subr.bf16.mxu0 %v1580
      %2011 = vmatpush2.bf16.msra.mxu0 %v1579
      %2012 = vmatprep.subr.bf16.mxu0 %v1572
      %2013 = vmatpush2.bf16.msra.mxu0 %v1571
      %2014 = vmatprep.subr.bf16.mxu0 %v1564
      %2015 = vmatpush2.bf16.msra.mxu0 %v1563
      %2016 = vmatprep.subr.bf16.mxu0 %v1556
      %2017 = vmatpush2.bf16.msra.mxu0 %v1555
      %2018 = vmatprep.subr.bf16.mxu0 %v1548
      %2019 = vmatpush2.bf16.msra.mxu0 %v1547
      %2020 = vmatprep.mubr.bf16.mxu0 %v286
      %2021 = vmatmul.mubr.bf16.gmra.mxu0 %v285
      %v2022 = vpop.f32.mrf.mxu0
      %v2023 = vadd.f32 %v1982, %v2022
      %v2024 = vpop.f32.mrf.mxu0
      %v2025 = vadd.f32 %v1984, %v2024
      %v2026 = vpop.f32.mrf.mxu0
      %v2027 = vpop.f32.mrf.mxu0
      %2028 = vdwg.mxu0
      %2029 = vmatprep.subr.bf16.mxu0 %v1414
      %2030 = vmatpush1.bf16.msra.mxu0 %v1413
      %2031 = vmatprep.subr.bf16.mxu0 %v1406
      %2032 = vmatpush1.bf16.msra.mxu0 %v1405
      %2033 = vmatprep.subr.bf16.mxu0 %v1398
      %2034 = vmatpush1.bf16.msra.mxu0 %v1397
      %2035 = vmatprep.subr.bf16.mxu0 %v1390
      %2036 = vmatpush1.bf16.msra.mxu0 %v1389
      %2037 = vmatprep.subr.bf16.mxu0 %v1382
      %2038 = vmatpush1.bf16.msra.mxu0 %v1381
      %2039 = vmatprep.subr.bf16.mxu0 %v1374
      %2040 = vmatpush1.bf16.msra.mxu0 %v1373
      %2041 = vmatprep.subr.bf16.mxu0 %v1366
      %2042 = vmatpush1.bf16.msra.mxu0 %v1365
      %2043 = vmatprep.subr.bf16.mxu0 %v1358
      %2044 = vmatpush1.bf16.msra.mxu0 %v1357
      %2045 = vmatprep.subr.bf16.mxu0 %v1478
      %2046 = vmatpush2.bf16.msra.mxu0 %v1477
      %2047 = vmatprep.subr.bf16.mxu0 %v1470
      %2048 = vmatpush2.bf16.msra.mxu0 %v1469
      %2049 = vmatprep.subr.bf16.mxu0 %v1462
      %2050 = vmatpush2.bf16.msra.mxu0 %v1461
      %2051 = vmatprep.subr.bf16.mxu0 %v1454
      %2052 = vmatpush2.bf16.msra.mxu0 %v1453
      %2053 = vmatprep.subr.bf16.mxu0 %v1446
      %2054 = vmatpush2.bf16.msra.mxu0 %v1445
      %2055 = vmatprep.subr.bf16.mxu0 %v1438
      %2056 = vmatpush2.bf16.msra.mxu0 %v1437
      %2057 = vmatprep.subr.bf16.mxu0 %v1430
      %2058 = vmatpush2.bf16.msra.mxu0 %v1429
      %2059 = vmatprep.subr.bf16.mxu0 %v1422
      %2060 = vmatpush2.bf16.msra.mxu0 %v1421
      %2061 = vmatprep.mubr.bf16.mxu0 %v284
      %2062 = vmatmul.mubr.bf16.gmra.mxu0 %v283
      %v2063 = vpop.f32.mrf.mxu0
      %v2064 = vadd.f32 %v564, %v2063
      %v2065 = vpop.f32.mrf.mxu0
      %v2066 = vadd.f32 %v568, %v2065
      %v2067 = vpop.f32.mrf.mxu0
      %v2068 = vpop.f32.mrf.mxu0
      %2069 = vdwg.mxu0
      %2070 = vmatprep.subr.bf16.mxu0 %v1542
      %2071 = vmatpush1.bf16.msra.mxu0 %v1541
      %2072 = vmatprep.subr.bf16.mxu0 %v1534
      %2073 = vmatpush1.bf16.msra.mxu0 %v1533
      %2074 = vmatprep.subr.bf16.mxu0 %v1526
      %2075 = vmatpush1.bf16.msra.mxu0 %v1525
      %2076 = vmatprep.subr.bf16.mxu0 %v1518
      %2077 = vmatpush1.bf16.msra.mxu0 %v1517
      %2078 = vmatprep.subr.bf16.mxu0 %v1510
      %2079 = vmatpush1.bf16.msra.mxu0 %v1509
      %2080 = vmatprep.subr.bf16.mxu0 %v1502
      %2081 = vmatpush1.bf16.msra.mxu0 %v1501
      %2082 = vmatprep.subr.bf16.mxu0 %v1494
      %2083 = vmatpush1.bf16.msra.mxu0 %v1493
      %2084 = vmatprep.subr.bf16.mxu0 %v1486
      %2085 = vmatpush1.bf16.msra.mxu0 %v1485
      %2086 = vmatprep.subr.bf16.mxu0 %v1606
      %2087 = vmatpush2.bf16.msra.mxu0 %v1605
      %2088 = vmatprep.subr.bf16.mxu0 %v1598
      %2089 = vmatpush2.bf16.msra.mxu0 %v1597
      %2090 = vmatprep.subr.bf16.mxu0 %v1590
      %2091 = vmatpush2.bf16.msra.mxu0 %v1589
      %2092 = vmatprep.subr.bf16.mxu0 %v1582
      %2093 = vmatpush2.bf16.msra.mxu0 %v1581
      %2094 = vmatprep.subr.bf16.mxu0 %v1574
      %2095 = vmatpush2.bf16.msra.mxu0 %v1573
      %2096 = vmatprep.subr.bf16.mxu0 %v1566
      %2097 = vmatpush2.bf16.msra.mxu0 %v1565
      %2098 = vmatprep.subr.bf16.mxu0 %v1558
      %2099 = vmatpush2.bf16.msra.mxu0 %v1557
      %2100 = vmatprep.subr.bf16.mxu0 %v1550
      %2101 = vmatpush2.bf16.msra.mxu0 %v1549
      %2102 = vmatprep.mubr.bf16.mxu0 %v286
      %2103 = vmatmul.mubr.bf16.gmra.mxu0 %v285
      %v2104 = vpop.f32.mrf.mxu0
      %v2105 = vadd.f32 %v2064, %v2104
      %v2106 = vpop.f32.mrf.mxu0
      %v2107 = vadd.f32 %v2066, %v2106
      %v2108 = vpop.f32.mrf.mxu0
      %v2109 = vpop.f32.mrf.mxu0
      %2110 = vdwg.mxu0
      %2111 = vmatprep.subr.bf16.mxu0 %v1416
      %2112 = vmatpush1.bf16.msra.mxu0 %v1415
      %2113 = vmatprep.subr.bf16.mxu0 %v1408
      %2114 = vmatpush1.bf16.msra.mxu0 %v1407
      %2115 = vmatprep.subr.bf16.mxu0 %v1400
      %2116 = vmatpush1.bf16.msra.mxu0 %v1399
      %2117 = vmatprep.subr.bf16.mxu0 %v1392
      %2118 = vmatpush1.bf16.msra.mxu0 %v1391
      %2119 = vmatprep.subr.bf16.mxu0 %v1384
      %2120 = vmatpush1.bf16.msra.mxu0 %v1383
      %2121 = vmatprep.subr.bf16.mxu0 %v1376
      %2122 = vmatpush1.bf16.msra.mxu0 %v1375
      %2123 = vmatprep.subr.bf16.mxu0 %v1368
      %2124 = vmatpush1.bf16.msra.mxu0 %v1367
      %2125 = vmatprep.subr.bf16.mxu0 %v1360
      %2126 = vmatpush1.bf16.msra.mxu0 %v1359
      %2127 = vmatprep.subr.bf16.mxu0 %v1480
      %2128 = vmatpush2.bf16.msra.mxu0 %v1479
      %2129 = vmatprep.subr.bf16.mxu0 %v1472
      %2130 = vmatpush2.bf16.msra.mxu0 %v1471
      %2131 = vmatprep.subr.bf16.mxu0 %v1464
      %2132 = vmatpush2.bf16.msra.mxu0 %v1463
      %2133 = vmatprep.subr.bf16.mxu0 %v1456
      %2134 = vmatpush2.bf16.msra.mxu0 %v1455
      %2135 = vmatprep.subr.bf16.mxu0 %v1448
      %2136 = vmatpush2.bf16.msra.mxu0 %v1447
      %2137 = vmatprep.subr.bf16.mxu0 %v1440
      %2138 = vmatpush2.bf16.msra.mxu0 %v1439
      %2139 = vmatprep.subr.bf16.mxu0 %v1432
      %2140 = vmatpush2.bf16.msra.mxu0 %v1431
      %2141 = vmatprep.subr.bf16.mxu0 %v1424
      %2142 = vmatpush2.bf16.msra.mxu0 %v1423
      %2143 = vmatprep.mubr.bf16.mxu0 %v284
      %2144 = vmatmul.mubr.bf16.gmra.mxu0 %v283
      %v2145 = vpop.f32.mrf.mxu0
      %v2146 = vadd.f32 %v572, %v2145
      %v2147 = vpop.f32.mrf.mxu0
      %v2148 = vadd.f32 %v576, %v2147
      %v2149 = vpop.f32.mrf.mxu0
      %v2150 = vpop.f32.mrf.mxu0
      %2151 = vdwg.mxu0
      %2152 = vmatprep.subr.bf16.mxu0 %v1544
      %2153 = vmatpush1.bf16.msra.mxu0 %v1543
      %2154 = vmatprep.subr.bf16.mxu0 %v1536
      %2155 = vmatpush1.bf16.msra.mxu0 %v1535
      %2156 = vmatprep.subr.bf16.mxu0 %v1528
      %2157 = vmatpush1.bf16.msra.mxu0 %v1527
      %2158 = vmatprep.subr.bf16.mxu0 %v1520
      %2159 = vmatpush1.bf16.msra.mxu0 %v1519
      %2160 = vmatprep.subr.bf16.mxu0 %v1512
      %2161 = vmatpush1.bf16.msra.mxu0 %v1511
      %2162 = vmatprep.subr.bf16.mxu0 %v1504
      %2163 = vmatpush1.bf16.msra.mxu0 %v1503
      %2164 = vmatprep.subr.bf16.mxu0 %v1496
      %2165 = vmatpush1.bf16.msra.mxu0 %v1495
      %2166 = vmatprep.subr.bf16.mxu0 %v1488
      %2167 = vmatpush1.bf16.msra.mxu0 %v1487
      %2168 = vmatprep.subr.bf16.mxu0 %v1608
      %2169 = vmatpush2.bf16.msra.mxu0 %v1607
      %2170 = vmatprep.subr.bf16.mxu0 %v1600
      %2171 = vmatpush2.bf16.msra.mxu0 %v1599
      %2172 = vmatprep.subr.bf16.mxu0 %v1592
      %2173 = vmatpush2.bf16.msra.mxu0 %v1591
      %2174 = vmatprep.subr.bf16.mxu0 %v1584
      %2175 = vmatpush2.bf16.msra.mxu0 %v1583
      %2176 = vmatprep.subr.bf16.mxu0 %v1576
      %2177 = vmatpush2.bf16.msra.mxu0 %v1575
      %2178 = vmatprep.subr.bf16.mxu0 %v1568
      %2179 = vmatpush2.bf16.msra.mxu0 %v1567
      %2180 = vmatprep.subr.bf16.mxu0 %v1560
      %2181 = vmatpush2.bf16.msra.mxu0 %v1559
      %2182 = vmatprep.subr.bf16.mxu0 %v1552
      %2183 = vmatpush2.bf16.msra.mxu0 %v1551
      %2184 = vmatprep.mubr.bf16.mxu0 %v286
      %2185 = vmatmul.mubr.bf16.gmra.mxu0 %v285
      %v2186 = vpop.f32.mrf.mxu0
      %v2187 = vadd.f32 %v2146, %v2186
      %v2188 = vpop.f32.mrf.mxu0
      %v2189 = vadd.f32 %v2148, %v2188
      %v2190 = vpop.f32.mrf.mxu0
      %v2191 = vpop.f32.mrf.mxu0
      %2192 = vdwg.mxu0
      %v2193 = vmul.f32 %v1941, 0.5
      %v2194 = vmul.f32 %v1943, 0.5
      %v2195 = vmul.f32 %v2023, 0.5
      %v2196 = vmul.f32 %v2025, 0.5
      %v2197 = vmul.f32 %v2105, 0.5
      %v2198 = vmul.f32 %v2107, 0.5
      %v2199 = vmul.f32 %v2187, 0.5
      %v2200 = vmul.f32 %v2189, 0.5
      %v2201 = vmul.f32 %v1941, 0.70710677
      %v2202 = vmul.f32 %v1943, 0.70710677
      %v2203 = vmul.f32 %v2023, 0.70710677
      %v2204 = vmul.f32 %v2025, 0.70710677
      %v2205 = vmul.f32 %v2105, 0.70710677
      %v2206 = vmul.f32 %v2107, 0.70710677
      %v2207 = vmul.f32 %v2187, 0.70710677
      %v2208 = vmul.f32 %v2189, 0.70710677
      %v2209 = verf.f32.pop %v2201
      %v2210 = verf.f32.pop %v2202
      %v2211 = verf.f32.pop %v2203
      %v2212 = verf.f32.pop %v2204
      %v2213 = verf.f32.pop %v2205
      %v2214 = verf.f32.pop %v2206
      %v2215 = verf.f32.pop %v2207
      %v2216 = verf.f32.pop %v2208
      %v2217 = vadd.f32 %v2209, 1.0
      %v2218 = vadd.f32 %v2210, 1.0
      %v2219 = vadd.f32 %v2211, 1.0
      %v2220 = vadd.f32 %v2212, 1.0
      %v2221 = vadd.f32 %v2213, 1.0
      %v2222 = vadd.f32 %v2214, 1.0
      %v2223 = vadd.f32 %v2215, 1.0
      %v2224 = vadd.f32 %v2216, 1.0
      %v2225 = vmul.f32 %v2193, %v2217
      %v2226 = vmul.f32 %v2194, %v2218
      %v2227 = vmul.f32 %v2195, %v2219
      %v2228 = vmul.f32 %v2196, %v2220
      %v2229 = vmul.f32 %v2197, %v2221
      %v2230 = vmul.f32 %v2198, %v2222
      %v2231 = vmul.f32 %v2199, %v2223
      %v2232 = vmul.f32 %v2200, %v2224
      %v2233 = vpack.c.bf16 %v2225, %v2225
      %v2234 = vpack.c.bf16 %v2226, %v2226
      %v2235 = vpack.c.bf16 %v2227, %v2227
      %v2236 = vpack.c.bf16 %v2228, %v2228
      %v2237 = vpack.c.bf16 %v2229, %v2229
      %v2238 = vpack.c.bf16 %v2230, %v2230
      %v2239 = vpack.c.bf16 %v2231, %v2231
      %v2240 = vpack.c.bf16 %v2232, %v2232
      %v2241 = vld [vmem:[%s3] sm:$0xff]
      %v2242 = vld [vmem:[%s3 + $0x8] sm:$0xff]
      %v2243 = vld [vmem:[%s3 + $0x10] sm:$0xff]
      %v2244 = vld [vmem:[%s3 + $0x18] sm:$0xff]
      %v2245 = vld [vmem:[%s3 + $0x20] sm:$0xff]
      %v2246 = vld [vmem:[%s3 + $0x28] sm:$0xff]
      %v2247 = vld [vmem:[%s3 + $0x30] sm:$0xff]
      %v2248 = vld [vmem:[%s3 + $0x38] sm:$0xff]
      %v2249 = vld [vmem:[%s3 + $0x40] sm:$0xff]
      %v2250 = vld [vmem:[%s3 + $0x48] sm:$0xff]
      %v2251 = vld [vmem:[%s3 + $0x50] sm:$0xff]
      %v2252 = vld [vmem:[%s3 + $0x58] sm:$0xff]
      %v2253 = vld [vmem:[%s3 + $0x60] sm:$0xff]
      %v2254 = vld [vmem:[%s3 + $0x68] sm:$0xff]
      %v2255 = vld [vmem:[%s3 + $0x70] sm:$0xff]
      %v2256 = vld [vmem:[%s3 + $0x78] sm:$0xff]
      %v2257 = vld [vmem:[%s3 + $0x80] sm:$0xff]
      %v2258 = vld [vmem:[%s3 + $0x88] sm:$0xff]
      %v2259 = vld [vmem:[%s3 + $0x90] sm:$0xff]
      %v2260 = vld [vmem:[%s3 + $0x98] sm:$0xff]
      %v2261 = vld [vmem:[%s3 + $0xa0] sm:$0xff]
      %v2262 = vld [vmem:[%s3 + $0xa8] sm:$0xff]
      %v2263 = vld [vmem:[%s3 + $0xb0] sm:$0xff]
      %v2264 = vld [vmem:[%s3 + $0xb8] sm:$0xff]
      %v2265 = vld [vmem:[%s3 + $0xc0] sm:$0xff]
      %v2266 = vld [vmem:[%s3 + $0xc8] sm:$0xff]
      %v2267 = vld [vmem:[%s3 + $0xd0] sm:$0xff]
      %v2268 = vld [vmem:[%s3 + $0xd8] sm:$0xff]
      %v2269 = vld [vmem:[%s3 + $0xe0] sm:$0xff]
      %v2270 = vld [vmem:[%s3 + $0xe8] sm:$0xff]
      %v2271 = vld [vmem:[%s3 + $0xf0] sm:$0xff]
      %v2272 = vld [vmem:[%s3 + $0xf8] sm:$0xff]
      %v2273 = vld [vmem:[%s3 + $0x100] sm:$0xff]
      %v2274 = vld [vmem:[%s3 + $0x108] sm:$0xff]
      %v2275 = vld [vmem:[%s3 + $0x110] sm:$0xff]
      %v2276 = vld [vmem:[%s3 + $0x118] sm:$0xff]
      %v2277 = vld [vmem:[%s3 + $0x120] sm:$0xff]
      %v2278 = vld [vmem:[%s3 + $0x128] sm:$0xff]
      %v2279 = vld [vmem:[%s3 + $0x130] sm:$0xff]
      %v2280 = vld [vmem:[%s3 + $0x138] sm:$0xff]
      %v2281 = vld [vmem:[%s3 + $0x140] sm:$0xff]
      %v2282 = vld [vmem:[%s3 + $0x148] sm:$0xff]
      %v2283 = vld [vmem:[%s3 + $0x150] sm:$0xff]
      %v2284 = vld [vmem:[%s3 + $0x158] sm:$0xff]
      %v2285 = vld [vmem:[%s3 + $0x160] sm:$0xff]
      %v2286 = vld [vmem:[%s3 + $0x168] sm:$0xff]
      %v2287 = vld [vmem:[%s3 + $0x170] sm:$0xff]
      %v2288 = vld [vmem:[%s3 + $0x178] sm:$0xff]
      %v2289 = vld [vmem:[%s3 + $0x180] sm:$0xff]
      %v2290 = vld [vmem:[%s3 + $0x188] sm:$0xff]
      %v2291 = vld [vmem:[%s3 + $0x190] sm:$0xff]
      %v2292 = vld [vmem:[%s3 + $0x198] sm:$0xff]
      %v2293 = vld [vmem:[%s3 + $0x1a0] sm:$0xff]
      %v2294 = vld [vmem:[%s3 + $0x1a8] sm:$0xff]
      %v2295 = vld [vmem:[%s3 + $0x1b0] sm:$0xff]
      %v2296 = vld [vmem:[%s3 + $0x1b8] sm:$0xff]
      %v2297 = vld [vmem:[%s3 + $0x1c0] sm:$0xff]
      %v2298 = vld [vmem:[%s3 + $0x1c8] sm:$0xff]
      %v2299 = vld [vmem:[%s3 + $0x1d0] sm:$0xff]
      %v2300 = vld [vmem:[%s3 + $0x1d8] sm:$0xff]
      %v2301 = vld [vmem:[%s3 + $0x1e0] sm:$0xff]
      %v2302 = vld [vmem:[%s3 + $0x1e8] sm:$0xff]
      %v2303 = vld [vmem:[%s3 + $0x1f0] sm:$0xff]
      %v2304 = vld [vmem:[%s3 + $0x1f8] sm:$0xff]
      %v2305 = vld [vmem:[%s3 + $0x200] sm:$0xff]
      %v2306 = vld [vmem:[%s3 + $0x208] sm:$0xff]
      %v2307 = vld [vmem:[%s3 + $0x210] sm:$0xff]
      %v2308 = vld [vmem:[%s3 + $0x218] sm:$0xff]
      %v2309 = vld [vmem:[%s3 + $0x220] sm:$0xff]
      %v2310 = vld [vmem:[%s3 + $0x228] sm:$0xff]
      %v2311 = vld [vmem:[%s3 + $0x230] sm:$0xff]
      %v2312 = vld [vmem:[%s3 + $0x238] sm:$0xff]
      %v2313 = vld [vmem:[%s3 + $0x240] sm:$0xff]
      %v2314 = vld [vmem:[%s3 + $0x248] sm:$0xff]
      %v2315 = vld [vmem:[%s3 + $0x250] sm:$0xff]
      %v2316 = vld [vmem:[%s3 + $0x258] sm:$0xff]
      %v2317 = vld [vmem:[%s3 + $0x260] sm:$0xff]
      %v2318 = vld [vmem:[%s3 + $0x268] sm:$0xff]
      %v2319 = vld [vmem:[%s3 + $0x270] sm:$0xff]
      %v2320 = vld [vmem:[%s3 + $0x278] sm:$0xff]
      %v2321 = vld [vmem:[%s3 + $0x280] sm:$0xff]
      %v2322 = vld [vmem:[%s3 + $0x288] sm:$0xff]
      %v2323 = vld [vmem:[%s3 + $0x290] sm:$0xff]
      %v2324 = vld [vmem:[%s3 + $0x298] sm:$0xff]
      %v2325 = vld [vmem:[%s3 + $0x2a0] sm:$0xff]
      %v2326 = vld [vmem:[%s3 + $0x2a8] sm:$0xff]
      %v2327 = vld [vmem:[%s3 + $0x2b0] sm:$0xff]
      %v2328 = vld [vmem:[%s3 + $0x2b8] sm:$0xff]
      %v2329 = vld [vmem:[%s3 + $0x2c0] sm:$0xff]
      %v2330 = vld [vmem:[%s3 + $0x2c8] sm:$0xff]
      %v2331 = vld [vmem:[%s3 + $0x2d0] sm:$0xff]
      %v2332 = vld [vmem:[%s3 + $0x2d8] sm:$0xff]
      %v2333 = vld [vmem:[%s3 + $0x2e0] sm:$0xff]
      %v2334 = vld [vmem:[%s3 + $0x2e8] sm:$0xff]
      %v2335 = vld [vmem:[%s3 + $0x2f0] sm:$0xff]
      %v2336 = vld [vmem:[%s3 + $0x2f8] sm:$0xff]
      %v2337 = vld [vmem:[%s3 + $0x300] sm:$0xff]
      %v2338 = vld [vmem:[%s3 + $0x308] sm:$0xff]
      %v2339 = vld [vmem:[%s3 + $0x310] sm:$0xff]
      %v2340 = vld [vmem:[%s3 + $0x318] sm:$0xff]
      %v2341 = vld [vmem:[%s3 + $0x320] sm:$0xff]
      %v2342 = vld [vmem:[%s3 + $0x328] sm:$0xff]
      %v2343 = vld [vmem:[%s3 + $0x330] sm:$0xff]
      %v2344 = vld [vmem:[%s3 + $0x338] sm:$0xff]
      %v2345 = vld [vmem:[%s3 + $0x340] sm:$0xff]
      %v2346 = vld [vmem:[%s3 + $0x348] sm:$0xff]
      %v2347 = vld [vmem:[%s3 + $0x350] sm:$0xff]
      %v2348 = vld [vmem:[%s3 + $0x358] sm:$0xff]
      %v2349 = vld [vmem:[%s3 + $0x360] sm:$0xff]
      %v2350 = vld [vmem:[%s3 + $0x368] sm:$0xff]
      %v2351 = vld [vmem:[%s3 + $0x370] sm:$0xff]
      %v2352 = vld [vmem:[%s3 + $0x378] sm:$0xff]
      %v2353 = vld [vmem:[%s3 + $0x380] sm:$0xff]
      %v2354 = vld [vmem:[%s3 + $0x388] sm:$0xff]
      %v2355 = vld [vmem:[%s3 + $0x390] sm:$0xff]
      %v2356 = vld [vmem:[%s3 + $0x398] sm:$0xff]
      %v2357 = vld [vmem:[%s3 + $0x3a0] sm:$0xff]
      %v2358 = vld [vmem:[%s3 + $0x3a8] sm:$0xff]
      %v2359 = vld [vmem:[%s3 + $0x3b0] sm:$0xff]
      %v2360 = vld [vmem:[%s3 + $0x3b8] sm:$0xff]
      %v2361 = vld [vmem:[%s3 + $0x3c0] sm:$0xff]
      %v2362 = vld [vmem:[%s3 + $0x3c8] sm:$0xff]
      %v2363 = vld [vmem:[%s3 + $0x3d0] sm:$0xff]
      %v2364 = vld [vmem:[%s3 + $0x3d8] sm:$0xff]
      %v2365 = vld [vmem:[%s3 + $0x3e0] sm:$0xff]
      %v2366 = vld [vmem:[%s3 + $0x3e8] sm:$0xff]
      %v2367 = vld [vmem:[%s3 + $0x3f0] sm:$0xff]
      %v2368 = vld [vmem:[%s3 + $0x3f8] sm:$0xff]
      %v2369 = vld [vmem:[%s3 + $0x400] sm:$0xff]
      %v2370 = vld [vmem:[%s3 + $0x408] sm:$0xff]
      %v2371 = vld [vmem:[%s3 + $0x410] sm:$0xff]
      %v2372 = vld [vmem:[%s3 + $0x418] sm:$0xff]
      %v2373 = vld [vmem:[%s3 + $0x420] sm:$0xff]
      %v2374 = vld [vmem:[%s3 + $0x428] sm:$0xff]
      %v2375 = vld [vmem:[%s3 + $0x430] sm:$0xff]
      %v2376 = vld [vmem:[%s3 + $0x438] sm:$0xff]
      %v2377 = vld [vmem:[%s3 + $0x440] sm:$0xff]
      %v2378 = vld [vmem:[%s3 + $0x448] sm:$0xff]
      %v2379 = vld [vmem:[%s3 + $0x450] sm:$0xff]
      %v2380 = vld [vmem:[%s3 + $0x458] sm:$0xff]
      %v2381 = vld [vmem:[%s3 + $0x460] sm:$0xff]
      %v2382 = vld [vmem:[%s3 + $0x468] sm:$0xff]
      %v2383 = vld [vmem:[%s3 + $0x470] sm:$0xff]
      %v2384 = vld [vmem:[%s3 + $0x478] sm:$0xff]
      %v2385 = vld [vmem:[%s3 + $0x480] sm:$0xff]
      %v2386 = vld [vmem:[%s3 + $0x488] sm:$0xff]
      %v2387 = vld [vmem:[%s3 + $0x490] sm:$0xff]
      %v2388 = vld [vmem:[%s3 + $0x498] sm:$0xff]
      %v2389 = vld [vmem:[%s3 + $0x4a0] sm:$0xff]
      %v2390 = vld [vmem:[%s3 + $0x4a8] sm:$0xff]
      %v2391 = vld [vmem:[%s3 + $0x4b0] sm:$0xff]
      %v2392 = vld [vmem:[%s3 + $0x4b8] sm:$0xff]
      %v2393 = vld [vmem:[%s3 + $0x4c0] sm:$0xff]
      %v2394 = vld [vmem:[%s3 + $0x4c8] sm:$0xff]
      %v2395 = vld [vmem:[%s3 + $0x4d0] sm:$0xff]
      %v2396 = vld [vmem:[%s3 + $0x4d8] sm:$0xff]
      %v2397 = vld [vmem:[%s3 + $0x4e0] sm:$0xff]
      %v2398 = vld [vmem:[%s3 + $0x4e8] sm:$0xff]
      %v2399 = vld [vmem:[%s3 + $0x4f0] sm:$0xff]
      %v2400 = vld [vmem:[%s3 + $0x4f8] sm:$0xff]
      %v2401 = vld [vmem:[%s3 + $0x500] sm:$0xff]
      %v2402 = vld [vmem:[%s3 + $0x508] sm:$0xff]
      %v2403 = vld [vmem:[%s3 + $0x510] sm:$0xff]
      %v2404 = vld [vmem:[%s3 + $0x518] sm:$0xff]
      %v2405 = vld [vmem:[%s3 + $0x520] sm:$0xff]
      %v2406 = vld [vmem:[%s3 + $0x528] sm:$0xff]
      %v2407 = vld [vmem:[%s3 + $0x530] sm:$0xff]
      %v2408 = vld [vmem:[%s3 + $0x538] sm:$0xff]
      %v2409 = vld [vmem:[%s3 + $0x540] sm:$0xff]
      %v2410 = vld [vmem:[%s3 + $0x548] sm:$0xff]
      %v2411 = vld [vmem:[%s3 + $0x550] sm:$0xff]
      %v2412 = vld [vmem:[%s3 + $0x558] sm:$0xff]
      %v2413 = vld [vmem:[%s3 + $0x560] sm:$0xff]
      %v2414 = vld [vmem:[%s3 + $0x568] sm:$0xff]
      %v2415 = vld [vmem:[%s3 + $0x570] sm:$0xff]
      %v2416 = vld [vmem:[%s3 + $0x578] sm:$0xff]
      %v2417 = vld [vmem:[%s3 + $0x580] sm:$0xff]
      %v2418 = vld [vmem:[%s3 + $0x588] sm:$0xff]
      %v2419 = vld [vmem:[%s3 + $0x590] sm:$0xff]
      %v2420 = vld [vmem:[%s3 + $0x598] sm:$0xff]
      %v2421 = vld [vmem:[%s3 + $0x5a0] sm:$0xff]
      %v2422 = vld [vmem:[%s3 + $0x5a8] sm:$0xff]
      %v2423 = vld [vmem:[%s3 + $0x5b0] sm:$0xff]
      %v2424 = vld [vmem:[%s3 + $0x5b8] sm:$0xff]
      %v2425 = vld [vmem:[%s3 + $0x5c0] sm:$0xff]
      %v2426 = vld [vmem:[%s3 + $0x5c8] sm:$0xff]
      %v2427 = vld [vmem:[%s3 + $0x5d0] sm:$0xff]
      %v2428 = vld [vmem:[%s3 + $0x5d8] sm:$0xff]
      %v2429 = vld [vmem:[%s3 + $0x5e0] sm:$0xff]
      %v2430 = vld [vmem:[%s3 + $0x5e8] sm:$0xff]
      %v2431 = vld [vmem:[%s3 + $0x5f0] sm:$0xff]
      %v2432 = vld [vmem:[%s3 + $0x5f8] sm:$0xff]
      %v2433 = vld [vmem:[%s3 + $0x600] sm:$0xff]
      %v2434 = vld [vmem:[%s3 + $0x608] sm:$0xff]
      %v2435 = vld [vmem:[%s3 + $0x610] sm:$0xff]
      %v2436 = vld [vmem:[%s3 + $0x618] sm:$0xff]
      %v2437 = vld [vmem:[%s3 + $0x620] sm:$0xff]
      %v2438 = vld [vmem:[%s3 + $0x628] sm:$0xff]
      %v2439 = vld [vmem:[%s3 + $0x630] sm:$0xff]
      %v2440 = vld [vmem:[%s3 + $0x638] sm:$0xff]
      %v2441 = vld [vmem:[%s3 + $0x640] sm:$0xff]
      %v2442 = vld [vmem:[%s3 + $0x648] sm:$0xff]
      %v2443 = vld [vmem:[%s3 + $0x650] sm:$0xff]
      %v2444 = vld [vmem:[%s3 + $0x658] sm:$0xff]
      %v2445 = vld [vmem:[%s3 + $0x660] sm:$0xff]
      %v2446 = vld [vmem:[%s3 + $0x668] sm:$0xff]
      %v2447 = vld [vmem:[%s3 + $0x670] sm:$0xff]
      %v2448 = vld [vmem:[%s3 + $0x678] sm:$0xff]
      %v2449 = vld [vmem:[%s3 + $0x680] sm:$0xff]
      %v2450 = vld [vmem:[%s3 + $0x688] sm:$0xff]
      %v2451 = vld [vmem:[%s3 + $0x690] sm:$0xff]
      %v2452 = vld [vmem:[%s3 + $0x698] sm:$0xff]
      %v2453 = vld [vmem:[%s3 + $0x6a0] sm:$0xff]
      %v2454 = vld [vmem:[%s3 + $0x6a8] sm:$0xff]
      %v2455 = vld [vmem:[%s3 + $0x6b0] sm:$0xff]
      %v2456 = vld [vmem:[%s3 + $0x6b8] sm:$0xff]
      %v2457 = vld [vmem:[%s3 + $0x6c0] sm:$0xff]
      %v2458 = vld [vmem:[%s3 + $0x6c8] sm:$0xff]
      %v2459 = vld [vmem:[%s3 + $0x6d0] sm:$0xff]
      %v2460 = vld [vmem:[%s3 + $0x6d8] sm:$0xff]
      %v2461 = vld [vmem:[%s3 + $0x6e0] sm:$0xff]
      %v2462 = vld [vmem:[%s3 + $0x6e8] sm:$0xff]
      %v2463 = vld [vmem:[%s3 + $0x6f0] sm:$0xff]
      %v2464 = vld [vmem:[%s3 + $0x6f8] sm:$0xff]
      %v2465 = vld [vmem:[%s3 + $0x700] sm:$0xff]
      %v2466 = vld [vmem:[%s3 + $0x708] sm:$0xff]
      %v2467 = vld [vmem:[%s3 + $0x710] sm:$0xff]
      %v2468 = vld [vmem:[%s3 + $0x718] sm:$0xff]
      %v2469 = vld [vmem:[%s3 + $0x720] sm:$0xff]
      %v2470 = vld [vmem:[%s3 + $0x728] sm:$0xff]
      %v2471 = vld [vmem:[%s3 + $0x730] sm:$0xff]
      %v2472 = vld [vmem:[%s3 + $0x738] sm:$0xff]
      %v2473 = vld [vmem:[%s3 + $0x740] sm:$0xff]
      %v2474 = vld [vmem:[%s3 + $0x748] sm:$0xff]
      %v2475 = vld [vmem:[%s3 + $0x750] sm:$0xff]
      %v2476 = vld [vmem:[%s3 + $0x758] sm:$0xff]
      %v2477 = vld [vmem:[%s3 + $0x760] sm:$0xff]
      %v2478 = vld [vmem:[%s3 + $0x768] sm:$0xff]
      %v2479 = vld [vmem:[%s3 + $0x770] sm:$0xff]
      %v2480 = vld [vmem:[%s3 + $0x778] sm:$0xff]
      %v2481 = vld [vmem:[%s3 + $0x780] sm:$0xff]
      %v2482 = vld [vmem:[%s3 + $0x788] sm:$0xff]
      %v2483 = vld [vmem:[%s3 + $0x790] sm:$0xff]
      %v2484 = vld [vmem:[%s3 + $0x798] sm:$0xff]
      %v2485 = vld [vmem:[%s3 + $0x7a0] sm:$0xff]
      %v2486 = vld [vmem:[%s3 + $0x7a8] sm:$0xff]
      %v2487 = vld [vmem:[%s3 + $0x7b0] sm:$0xff]
      %v2488 = vld [vmem:[%s3 + $0x7b8] sm:$0xff]
      %v2489 = vld [vmem:[%s3 + $0x7c0] sm:$0xff]
      %v2490 = vld [vmem:[%s3 + $0x7c8] sm:$0xff]
      %v2491 = vld [vmem:[%s3 + $0x7d0] sm:$0xff]
      %v2492 = vld [vmem:[%s3 + $0x7d8] sm:$0xff]
      %v2493 = vld [vmem:[%s3 + $0x7e0] sm:$0xff]
      %v2494 = vld [vmem:[%s3 + $0x7e8] sm:$0xff]
      %v2495 = vld [vmem:[%s3 + $0x7f0] sm:$0xff]
      %v2496 = vld [vmem:[%s3 + $0x7f8] sm:$0xff]
      %v2497 = vld [vmem:[%s4] sm:$0xf]
      %v2499 = vlaneseq
      %v2500 = vshrl.u32 %v2499, 7
      %v2501 = vsub.s32 0, %v2500
      %v2502 = vrot.slane %v2497, %v2501
      %v2503 = vlaneseq
      %v2504 = vshrl.u32 %v2503, 7
      %v2505 = vsub.s32 1, %v2504
      %v2506 = vrot.slane %v2497, %v2505
      %v2507 = vlaneseq
      %v2508 = vshrl.u32 %v2507, 7
      %v2509 = vsub.s32 2, %v2508
      %v2510 = vrot.slane %v2497, %v2509
      %v2511 = vlaneseq
      %v2512 = vshrl.u32 %v2511, 7
      %v2513 = vsub.s32 3, %v2512
      %v2514 = vrot.slane %v2497, %v2513
      %v2775 = vunpack.c.l.b16 %v2241
      %v2776 = vunpack.c.h.b16 %v2241
      %v2777 = vunpack.c.l.b16 %v2242
      %v2778 = vunpack.c.h.b16 %v2242
      %v2779 = vunpack.c.l.b16 %v2243
      %v2780 = vunpack.c.h.b16 %v2243
      %v2781 = vunpack.c.l.b16 %v2244
      %v2782 = vunpack.c.h.b16 %v2244
      %v2783 = vunpack.c.l.b16 %v2245
      %v2784 = vunpack.c.h.b16 %v2245
      %v2785 = vunpack.c.l.b16 %v2246
      %v2786 = vunpack.c.h.b16 %v2246
      %v2787 = vunpack.c.l.b16 %v2247
      %v2788 = vunpack.c.h.b16 %v2247
      %v2789 = vunpack.c.l.b16 %v2248
      %v2790 = vunpack.c.h.b16 %v2248
      %v2791 = vunpack.c.l.b16 %v2249
      %v2792 = vunpack.c.h.b16 %v2249
      %v2793 = vunpack.c.l.b16 %v2250
      %v2794 = vunpack.c.h.b16 %v2250
      %v2795 = vunpack.c.l.b16 %v2251
      %v2796 = vunpack.c.h.b16 %v2251
      %v2797 = vunpack.c.l.b16 %v2252
      %v2798 = vunpack.c.h.b16 %v2252
      %v2799 = vunpack.c.l.b16 %v2253
      %v2800 = vunpack.c.h.b16 %v2253
      %v2801 = vunpack.c.l.b16 %v2254
      %v2802 = vunpack.c.h.b16 %v2254
      %v2803 = vunpack.c.l.b16 %v2255
      %v2804 = vunpack.c.h.b16 %v2255
      %v2805 = vunpack.c.l.b16 %v2256
      %v2806 = vunpack.c.h.b16 %v2256
      %v2807 = vunpack.c.l.b16 %v2257
      %v2808 = vunpack.c.h.b16 %v2257
      %v2809 = vunpack.c.l.b16 %v2258
      %v2810 = vunpack.c.h.b16 %v2258
      %v2811 = vunpack.c.l.b16 %v2259
      %v2812 = vunpack.c.h.b16 %v2259
      %v2813 = vunpack.c.l.b16 %v2260
      %v2814 = vunpack.c.h.b16 %v2260
      %v2815 = vunpack.c.l.b16 %v2261
      %v2816 = vunpack.c.h.b16 %v2261
      %v2817 = vunpack.c.l.b16 %v2262
      %v2818 = vunpack.c.h.b16 %v2262
      %v2819 = vunpack.c.l.b16 %v2263
      %v2820 = vunpack.c.h.b16 %v2263
      %v2821 = vunpack.c.l.b16 %v2264
      %v2822 = vunpack.c.h.b16 %v2264
      %v2823 = vunpack.c.l.b16 %v2265
      %v2824 = vunpack.c.h.b16 %v2265
      %v2825 = vunpack.c.l.b16 %v2266
      %v2826 = vunpack.c.h.b16 %v2266
      %v2827 = vunpack.c.l.b16 %v2267
      %v2828 = vunpack.c.h.b16 %v2267
      %v2829 = vunpack.c.l.b16 %v2268
      %v2830 = vunpack.c.h.b16 %v2268
      %v2831 = vunpack.c.l.b16 %v2269
      %v2832 = vunpack.c.h.b16 %v2269
      %v2833 = vunpack.c.l.b16 %v2270
      %v2834 = vunpack.c.h.b16 %v2270
      %v2835 = vunpack.c.l.b16 %v2271
      %v2836 = vunpack.c.h.b16 %v2271
      %v2837 = vunpack.c.l.b16 %v2272
      %v2838 = vunpack.c.h.b16 %v2272
      %v2839 = vunpack.c.l.b16 %v2273
      %v2840 = vunpack.c.h.b16 %v2273
      %v2841 = vunpack.c.l.b16 %v2274
      %v2842 = vunpack.c.h.b16 %v2274
      %v2843 = vunpack.c.l.b16 %v2275
      %v2844 = vunpack.c.h.b16 %v2275
      %v2845 = vunpack.c.l.b16 %v2276
      %v2846 = vunpack.c.h.b16 %v2276
      %v2847 = vunpack.c.l.b16 %v2277
      %v2848 = vunpack.c.h.b16 %v2277
      %v2849 = vunpack.c.l.b16 %v2278
      %v2850 = vunpack.c.h.b16 %v2278
      %v2851 = vunpack.c.l.b16 %v2279
      %v2852 = vunpack.c.h.b16 %v2279
      %v2853 = vunpack.c.l.b16 %v2280
      %v2854 = vunpack.c.h.b16 %v2280
      %v2855 = vunpack.c.l.b16 %v2281
      %v2856 = vunpack.c.h.b16 %v2281
      %v2857 = vunpack.c.l.b16 %v2282
      %v2858 = vunpack.c.h.b16 %v2282
      %v2859 = vunpack.c.l.b16 %v2283
      %v2860 = vunpack.c.h.b16 %v2283
      %v2861 = vunpack.c.l.b16 %v2284
      %v2862 = vunpack.c.h.b16 %v2284
      %v2863 = vunpack.c.l.b16 %v2285
      %v2864 = vunpack.c.h.b16 %v2285
      %v2865 = vunpack.c.l.b16 %v2286
      %v2866 = vunpack.c.h.b16 %v2286
      %v2867 = vunpack.c.l.b16 %v2287
      %v2868 = vunpack.c.h.b16 %v2287
      %v2869 = vunpack.c.l.b16 %v2288
      %v2870 = vunpack.c.h.b16 %v2288
      %v2871 = vunpack.c.l.b16 %v2289
      %v2872 = vunpack.c.h.b16 %v2289
      %v2873 = vunpack.c.l.b16 %v2290
      %v2874 = vunpack.c.h.b16 %v2290
      %v2875 = vunpack.c.l.b16 %v2291
      %v2876 = vunpack.c.h.b16 %v2291
      %v2877 = vunpack.c.l.b16 %v2292
      %v2878 = vunpack.c.h.b16 %v2292
      %v2879 = vunpack.c.l.b16 %v2293
      %v2880 = vunpack.c.h.b16 %v2293
      %v2881 = vunpack.c.l.b16 %v2294
      %v2882 = vunpack.c.h.b16 %v2294
      %v2883 = vunpack.c.l.b16 %v2295
      %v2884 = vunpack.c.h.b16 %v2295
      %v2885 = vunpack.c.l.b16 %v2296
      %v2886 = vunpack.c.h.b16 %v2296
      %v2887 = vunpack.c.l.b16 %v2297
      %v2888 = vunpack.c.h.b16 %v2297
      %v2889 = vunpack.c.l.b16 %v2298
      %v2890 = vunpack.c.h.b16 %v2298
      %v2891 = vunpack.c.l.b16 %v2299
      %v2892 = vunpack.c.h.b16 %v2299
      %v2893 = vunpack.c.l.b16 %v2300
      %v2894 = vunpack.c.h.b16 %v2300
      %v2895 = vunpack.c.l.b16 %v2301
      %v2896 = vunpack.c.h.b16 %v2301
      %v2897 = vunpack.c.l.b16 %v2302
      %v2898 = vunpack.c.h.b16 %v2302
      %v2899 = vunpack.c.l.b16 %v2303
      %v2900 = vunpack.c.h.b16 %v2303
      %v2901 = vunpack.c.l.b16 %v2304
      %v2902 = vunpack.c.h.b16 %v2304
      %v2903 = vunpack.c.l.b16 %v2305
      %v2904 = vunpack.c.h.b16 %v2305
      %v2905 = vunpack.c.l.b16 %v2306
      %v2906 = vunpack.c.h.b16 %v2306
      %v2907 = vunpack.c.l.b16 %v2307
      %v2908 = vunpack.c.h.b16 %v2307
      %v2909 = vunpack.c.l.b16 %v2308
      %v2910 = vunpack.c.h.b16 %v2308
      %v2911 = vunpack.c.l.b16 %v2309
      %v2912 = vunpack.c.h.b16 %v2309
      %v2913 = vunpack.c.l.b16 %v2310
      %v2914 = vunpack.c.h.b16 %v2310
      %v2915 = vunpack.c.l.b16 %v2311
      %v2916 = vunpack.c.h.b16 %v2311
      %v2917 = vunpack.c.l.b16 %v2312
      %v2918 = vunpack.c.h.b16 %v2312
      %v2919 = vunpack.c.l.b16 %v2313
      %v2920 = vunpack.c.h.b16 %v2313
      %v2921 = vunpack.c.l.b16 %v2314
      %v2922 = vunpack.c.h.b16 %v2314
      %v2923 = vunpack.c.l.b16 %v2315
      %v2924 = vunpack.c.h.b16 %v2315
      %v2925 = vunpack.c.l.b16 %v2316
      %v2926 = vunpack.c.h.b16 %v2316
      %v2927 = vunpack.c.l.b16 %v2317
      %v2928 = vunpack.c.h.b16 %v2317
      %v2929 = vunpack.c.l.b16 %v2318
      %v2930 = vunpack.c.h.b16 %v2318
      %v2931 = vunpack.c.l.b16 %v2319
      %v2932 = vunpack.c.h.b16 %v2319
      %v2933 = vunpack.c.l.b16 %v2320
      %v2934 = vunpack.c.h.b16 %v2320
      %v2935 = vunpack.c.l.b16 %v2321
      %v2936 = vunpack.c.h.b16 %v2321
      %v2937 = vunpack.c.l.b16 %v2322
      %v2938 = vunpack.c.h.b16 %v2322
      %v2939 = vunpack.c.l.b16 %v2323
      %v2940 = vunpack.c.h.b16 %v2323
      %v2941 = vunpack.c.l.b16 %v2324
      %v2942 = vunpack.c.h.b16 %v2324
      %v2943 = vunpack.c.l.b16 %v2325
      %v2944 = vunpack.c.h.b16 %v2325
      %v2945 = vunpack.c.l.b16 %v2326
      %v2946 = vunpack.c.h.b16 %v2326
      %v2947 = vunpack.c.l.b16 %v2327
      %v2948 = vunpack.c.h.b16 %v2327
      %v2949 = vunpack.c.l.b16 %v2328
      %v2950 = vunpack.c.h.b16 %v2328
      %v2951 = vunpack.c.l.b16 %v2329
      %v2952 = vunpack.c.h.b16 %v2329
      %v2953 = vunpack.c.l.b16 %v2330
      %v2954 = vunpack.c.h.b16 %v2330
      %v2955 = vunpack.c.l.b16 %v2331
      %v2956 = vunpack.c.h.b16 %v2331
      %v2957 = vunpack.c.l.b16 %v2332
      %v2958 = vunpack.c.h.b16 %v2332
      %v2959 = vunpack.c.l.b16 %v2333
      %v2960 = vunpack.c.h.b16 %v2333
      %v2961 = vunpack.c.l.b16 %v2334
      %v2962 = vunpack.c.h.b16 %v2334
      %v2963 = vunpack.c.l.b16 %v2335
      %v2964 = vunpack.c.h.b16 %v2335
      %v2965 = vunpack.c.l.b16 %v2336
      %v2966 = vunpack.c.h.b16 %v2336
      %v2967 = vunpack.c.l.b16 %v2337
      %v2968 = vunpack.c.h.b16 %v2337
      %v2969 = vunpack.c.l.b16 %v2338
      %v2970 = vunpack.c.h.b16 %v2338
      %v2971 = vunpack.c.l.b16 %v2339
      %v2972 = vunpack.c.h.b16 %v2339
      %v2973 = vunpack.c.l.b16 %v2340
      %v2974 = vunpack.c.h.b16 %v2340
      %v2975 = vunpack.c.l.b16 %v2341
      %v2976 = vunpack.c.h.b16 %v2341
      %v2977 = vunpack.c.l.b16 %v2342
      %v2978 = vunpack.c.h.b16 %v2342
      %v2979 = vunpack.c.l.b16 %v2343
      %v2980 = vunpack.c.h.b16 %v2343
      %v2981 = vunpack.c.l.b16 %v2344
      %v2982 = vunpack.c.h.b16 %v2344
      %v2983 = vunpack.c.l.b16 %v2345
      %v2984 = vunpack.c.h.b16 %v2345
      %v2985 = vunpack.c.l.b16 %v2346
      %v2986 = vunpack.c.h.b16 %v2346
      %v2987 = vunpack.c.l.b16 %v2347
      %v2988 = vunpack.c.h.b16 %v2347
      %v2989 = vunpack.c.l.b16 %v2348
      %v2990 = vunpack.c.h.b16 %v2348
      %v2991 = vunpack.c.l.b16 %v2349
      %v2992 = vunpack.c.h.b16 %v2349
      %v2993 = vunpack.c.l.b16 %v2350
      %v2994 = vunpack.c.h.b16 %v2350
      %v2995 = vunpack.c.l.b16 %v2351
      %v2996 = vunpack.c.h.b16 %v2351
      %v2997 = vunpack.c.l.b16 %v2352
      %v2998 = vunpack.c.h.b16 %v2352
      %v2999 = vunpack.c.l.b16 %v2353
      %v3000 = vunpack.c.h.b16 %v2353
      %v3001 = vunpack.c.l.b16 %v2354
      %v3002 = vunpack.c.h.b16 %v2354
      %v3003 = vunpack.c.l.b16 %v2355
      %v3004 = vunpack.c.h.b16 %v2355
      %v3005 = vunpack.c.l.b16 %v2356
      %v3006 = vunpack.c.h.b16 %v2356
      %v3007 = vunpack.c.l.b16 %v2357
      %v3008 = vunpack.c.h.b16 %v2357
      %v3009 = vunpack.c.l.b16 %v2358
      %v3010 = vunpack.c.h.b16 %v2358
      %v3011 = vunpack.c.l.b16 %v2359
      %v3012 = vunpack.c.h.b16 %v2359
      %v3013 = vunpack.c.l.b16 %v2360
      %v3014 = vunpack.c.h.b16 %v2360
      %v3015 = vunpack.c.l.b16 %v2361
      %v3016 = vunpack.c.h.b16 %v2361
      %v3017 = vunpack.c.l.b16 %v2362
      %v3018 = vunpack.c.h.b16 %v2362
      %v3019 = vunpack.c.l.b16 %v2363
      %v3020 = vunpack.c.h.b16 %v2363
      %v3021 = vunpack.c.l.b16 %v2364
      %v3022 = vunpack.c.h.b16 %v2364
      %v3023 = vunpack.c.l.b16 %v2365
      %v3024 = vunpack.c.h.b16 %v2365
      %v3025 = vunpack.c.l.b16 %v2366
      %v3026 = vunpack.c.h.b16 %v2366
      %v3027 = vunpack.c.l.b16 %v2367
      %v3028 = vunpack.c.h.b16 %v2367
      %v3029 = vunpack.c.l.b16 %v2368
      %v3030 = vunpack.c.h.b16 %v2368
      %v3031 = vunpack.c.l.b16 %v2369
      %v3032 = vunpack.c.h.b16 %v2369
      %v3033 = vunpack.c.l.b16 %v2370
      %v3034 = vunpack.c.h.b16 %v2370
      %v3035 = vunpack.c.l.b16 %v2371
      %v3036 = vunpack.c.h.b16 %v2371
      %v3037 = vunpack.c.l.b16 %v2372
      %v3038 = vunpack.c.h.b16 %v2372
      %v3039 = vunpack.c.l.b16 %v2373
      %v3040 = vunpack.c.h.b16 %v2373
      %v3041 = vunpack.c.l.b16 %v2374
      %v3042 = vunpack.c.h.b16 %v2374
      %v3043 = vunpack.c.l.b16 %v2375
      %v3044 = vunpack.c.h.b16 %v2375
      %v3045 = vunpack.c.l.b16 %v2376
      %v3046 = vunpack.c.h.b16 %v2376
      %v3047 = vunpack.c.l.b16 %v2377
      %v3048 = vunpack.c.h.b16 %v2377
      %v3049 = vunpack.c.l.b16 %v2378
      %v3050 = vunpack.c.h.b16 %v2378
      %v3051 = vunpack.c.l.b16 %v2379
      %v3052 = vunpack.c.h.b16 %v2379
      %v3053 = vunpack.c.l.b16 %v2380
      %v3054 = vunpack.c.h.b16 %v2380
      %v3055 = vunpack.c.l.b16 %v2381
      %v3056 = vunpack.c.h.b16 %v2381
      %v3057 = vunpack.c.l.b16 %v2382
      %v3058 = vunpack.c.h.b16 %v2382
      %v3059 = vunpack.c.l.b16 %v2383
      %v3060 = vunpack.c.h.b16 %v2383
      %v3061 = vunpack.c.l.b16 %v2384
      %v3062 = vunpack.c.h.b16 %v2384
      %v3063 = vunpack.c.l.b16 %v2385
      %v3064 = vunpack.c.h.b16 %v2385
      %v3065 = vunpack.c.l.b16 %v2386
      %v3066 = vunpack.c.h.b16 %v2386
      %v3067 = vunpack.c.l.b16 %v2387
      %v3068 = vunpack.c.h.b16 %v2387
      %v3069 = vunpack.c.l.b16 %v2388
      %v3070 = vunpack.c.h.b16 %v2388
      %v3071 = vunpack.c.l.b16 %v2389
      %v3072 = vunpack.c.h.b16 %v2389
      %v3073 = vunpack.c.l.b16 %v2390
      %v3074 = vunpack.c.h.b16 %v2390
      %v3075 = vunpack.c.l.b16 %v2391
      %v3076 = vunpack.c.h.b16 %v2391
      %v3077 = vunpack.c.l.b16 %v2392
      %v3078 = vunpack.c.h.b16 %v2392
      %v3079 = vunpack.c.l.b16 %v2393
      %v3080 = vunpack.c.h.b16 %v2393
      %v3081 = vunpack.c.l.b16 %v2394
      %v3082 = vunpack.c.h.b16 %v2394
      %v3083 = vunpack.c.l.b16 %v2395
      %v3084 = vunpack.c.h.b16 %v2395
      %v3085 = vunpack.c.l.b16 %v2396
      %v3086 = vunpack.c.h.b16 %v2396
      %v3087 = vunpack.c.l.b16 %v2397
      %v3088 = vunpack.c.h.b16 %v2397
      %v3089 = vunpack.c.l.b16 %v2398
      %v3090 = vunpack.c.h.b16 %v2398
      %v3091 = vunpack.c.l.b16 %v2399
      %v3092 = vunpack.c.h.b16 %v2399
      %v3093 = vunpack.c.l.b16 %v2400
      %v3094 = vunpack.c.h.b16 %v2400
      %v3095 = vunpack.c.l.b16 %v2401
      %v3096 = vunpack.c.h.b16 %v2401
      %v3097 = vunpack.c.l.b16 %v2402
      %v3098 = vunpack.c.h.b16 %v2402
      %v3099 = vunpack.c.l.b16 %v2403
      %v3100 = vunpack.c.h.b16 %v2403
      %v3101 = vunpack.c.l.b16 %v2404
      %v3102 = vunpack.c.h.b16 %v2404
      %v3103 = vunpack.c.l.b16 %v2405
      %v3104 = vunpack.c.h.b16 %v2405
      %v3105 = vunpack.c.l.b16 %v2406
      %v3106 = vunpack.c.h.b16 %v2406
      %v3107 = vunpack.c.l.b16 %v2407
      %v3108 = vunpack.c.h.b16 %v2407
      %v3109 = vunpack.c.l.b16 %v2408
      %v3110 = vunpack.c.h.b16 %v2408
      %v3111 = vunpack.c.l.b16 %v2409
      %v3112 = vunpack.c.h.b16 %v2409
      %v3113 = vunpack.c.l.b16 %v2410
      %v3114 = vunpack.c.h.b16 %v2410
      %v3115 = vunpack.c.l.b16 %v2411
      %v3116 = vunpack.c.h.b16 %v2411
      %v3117 = vunpack.c.l.b16 %v2412
      %v3118 = vunpack.c.h.b16 %v2412
      %v3119 = vunpack.c.l.b16 %v2413
      %v3120 = vunpack.c.h.b16 %v2413
      %v3121 = vunpack.c.l.b16 %v2414
      %v3122 = vunpack.c.h.b16 %v2414
      %v3123 = vunpack.c.l.b16 %v2415
      %v3124 = vunpack.c.h.b16 %v2415
      %v3125 = vunpack.c.l.b16 %v2416
      %v3126 = vunpack.c.h.b16 %v2416
      %v3127 = vunpack.c.l.b16 %v2417
      %v3128 = vunpack.c.h.b16 %v2417
      %v3129 = vunpack.c.l.b16 %v2418
      %v3130 = vunpack.c.h.b16 %v2418
      %v3131 = vunpack.c.l.b16 %v2419
      %v3132 = vunpack.c.h.b16 %v2419
      %v3133 = vunpack.c.l.b16 %v2420
      %v3134 = vunpack.c.h.b16 %v2420
      %v3135 = vunpack.c.l.b16 %v2421
      %v3136 = vunpack.c.h.b16 %v2421
      %v3137 = vunpack.c.l.b16 %v2422
      %v3138 = vunpack.c.h.b16 %v2422
      %v3139 = vunpack.c.l.b16 %v2423
      %v3140 = vunpack.c.h.b16 %v2423
      %v3141 = vunpack.c.l.b16 %v2424
      %v3142 = vunpack.c.h.b16 %v2424
      %v3143 = vunpack.c.l.b16 %v2425
      %v3144 = vunpack.c.h.b16 %v2425
      %v3145 = vunpack.c.l.b16 %v2426
      %v3146 = vunpack.c.h.b16 %v2426
      %v3147 = vunpack.c.l.b16 %v2427
      %v3148 = vunpack.c.h.b16 %v2427
      %v3149 = vunpack.c.l.b16 %v2428
      %v3150 = vunpack.c.h.b16 %v2428
      %v3151 = vunpack.c.l.b16 %v2429
      %v3152 = vunpack.c.h.b16 %v2429
      %v3153 = vunpack.c.l.b16 %v2430
      %v3154 = vunpack.c.h.b16 %v2430
      %v3155 = vunpack.c.l.b16 %v2431
      %v3156 = vunpack.c.h.b16 %v2431
      %v3157 = vunpack.c.l.b16 %v2432
      %v3158 = vunpack.c.h.b16 %v2432
      %v3159 = vunpack.c.l.b16 %v2433
      %v3160 = vunpack.c.h.b16 %v2433
      %v3161 = vunpack.c.l.b16 %v2434
      %v3162 = vunpack.c.h.b16 %v2434
      %v3163 = vunpack.c.l.b16 %v2435
      %v3164 = vunpack.c.h.b16 %v2435
      %v3165 = vunpack.c.l.b16 %v2436
      %v3166 = vunpack.c.h.b16 %v2436
      %v3167 = vunpack.c.l.b16 %v2437
      %v3168 = vunpack.c.h.b16 %v2437
      %v3169 = vunpack.c.l.b16 %v2438
      %v3170 = vunpack.c.h.b16 %v2438
      %v3171 = vunpack.c.l.b16 %v2439
      %v3172 = vunpack.c.h.b16 %v2439
      %v3173 = vunpack.c.l.b16 %v2440
      %v3174 = vunpack.c.h.b16 %v2440
      %v3175 = vunpack.c.l.b16 %v2441
      %v3176 = vunpack.c.h.b16 %v2441
      %v3177 = vunpack.c.l.b16 %v2442
      %v3178 = vunpack.c.h.b16 %v2442
      %v3179 = vunpack.c.l.b16 %v2443
      %v3180 = vunpack.c.h.b16 %v2443
      %v3181 = vunpack.c.l.b16 %v2444
      %v3182 = vunpack.c.h.b16 %v2444
      %v3183 = vunpack.c.l.b16 %v2445
      %v3184 = vunpack.c.h.b16 %v2445
      %v3185 = vunpack.c.l.b16 %v2446
      %v3186 = vunpack.c.h.b16 %v2446
      %v3187 = vunpack.c.l.b16 %v2447
      %v3188 = vunpack.c.h.b16 %v2447
      %v3189 = vunpack.c.l.b16 %v2448
      %v3190 = vunpack.c.h.b16 %v2448
      %v3191 = vunpack.c.l.b16 %v2449
      %v3192 = vunpack.c.h.b16 %v2449
      %v3193 = vunpack.c.l.b16 %v2450
      %v3194 = vunpack.c.h.b16 %v2450
      %v3195 = vunpack.c.l.b16 %v2451
      %v3196 = vunpack.c.h.b16 %v2451
      %v3197 = vunpack.c.l.b16 %v2452
      %v3198 = vunpack.c.h.b16 %v2452
      %v3199 = vunpack.c.l.b16 %v2453
      %v3200 = vunpack.c.h.b16 %v2453
      %v3201 = vunpack.c.l.b16 %v2454
      %v3202 = vunpack.c.h.b16 %v2454
      %v3203 = vunpack.c.l.b16 %v2455
      %v3204 = vunpack.c.h.b16 %v2455
      %v3205 = vunpack.c.l.b16 %v2456
      %v3206 = vunpack.c.h.b16 %v2456
      %v3207 = vunpack.c.l.b16 %v2457
      %v3208 = vunpack.c.h.b16 %v2457
      %v3209 = vunpack.c.l.b16 %v2458
      %v3210 = vunpack.c.h.b16 %v2458
      %v3211 = vunpack.c.l.b16 %v2459
      %v3212 = vunpack.c.h.b16 %v2459
      %v3213 = vunpack.c.l.b16 %v2460
      %v3214 = vunpack.c.h.b16 %v2460
      %v3215 = vunpack.c.l.b16 %v2461
      %v3216 = vunpack.c.h.b16 %v2461
      %v3217 = vunpack.c.l.b16 %v2462
      %v3218 = vunpack.c.h.b16 %v2462
      %v3219 = vunpack.c.l.b16 %v2463
      %v3220 = vunpack.c.h.b16 %v2463
      %v3221 = vunpack.c.l.b16 %v2464
      %v3222 = vunpack.c.h.b16 %v2464
      %v3223 = vunpack.c.l.b16 %v2465
      %v3224 = vunpack.c.h.b16 %v2465
      %v3225 = vunpack.c.l.b16 %v2466
      %v3226 = vunpack.c.h.b16 %v2466
      %v3227 = vunpack.c.l.b16 %v2467
      %v3228 = vunpack.c.h.b16 %v2467
      %v3229 = vunpack.c.l.b16 %v2468
      %v3230 = vunpack.c.h.b16 %v2468
      %v3231 = vunpack.c.l.b16 %v2469
      %v3232 = vunpack.c.h.b16 %v2469
      %v3233 = vunpack.c.l.b16 %v2470
      %v3234 = vunpack.c.h.b16 %v2470
      %v3235 = vunpack.c.l.b16 %v2471
      %v3236 = vunpack.c.h.b16 %v2471
      %v3237 = vunpack.c.l.b16 %v2472
      %v3238 = vunpack.c.h.b16 %v2472
      %v3239 = vunpack.c.l.b16 %v2473
      %v3240 = vunpack.c.h.b16 %v2473
      %v3241 = vunpack.c.l.b16 %v2474
      %v3242 = vunpack.c.h.b16 %v2474
      %v3243 = vunpack.c.l.b16 %v2475
      %v3244 = vunpack.c.h.b16 %v2475
      %v3245 = vunpack.c.l.b16 %v2476
      %v3246 = vunpack.c.h.b16 %v2476
      %v3247 = vunpack.c.l.b16 %v2477
      %v3248 = vunpack.c.h.b16 %v2477
      %v3249 = vunpack.c.l.b16 %v2478
      %v3250 = vunpack.c.h.b16 %v2478
      %v3251 = vunpack.c.l.b16 %v2479
      %v3252 = vunpack.c.h.b16 %v2479
      %v3253 = vunpack.c.l.b16 %v2480
      %v3254 = vunpack.c.h.b16 %v2480
      %v3255 = vunpack.c.l.b16 %v2481
      %v3256 = vunpack.c.h.b16 %v2481
      %v3257 = vunpack.c.l.b16 %v2482
      %v3258 = vunpack.c.h.b16 %v2482
      %v3259 = vunpack.c.l.b16 %v2483
      %v3260 = vunpack.c.h.b16 %v2483
      %v3261 = vunpack.c.l.b16 %v2484
      %v3262 = vunpack.c.h.b16 %v2484
      %v3263 = vunpack.c.l.b16 %v2485
      %v3264 = vunpack.c.h.b16 %v2485
      %v3265 = vunpack.c.l.b16 %v2486
      %v3266 = vunpack.c.h.b16 %v2486
      %v3267 = vunpack.c.l.b16 %v2487
      %v3268 = vunpack.c.h.b16 %v2487
      %v3269 = vunpack.c.l.b16 %v2488
      %v3270 = vunpack.c.h.b16 %v2488
      %v3271 = vunpack.c.l.b16 %v2489
      %v3272 = vunpack.c.h.b16 %v2489
      %v3273 = vunpack.c.l.b16 %v2490
      %v3274 = vunpack.c.h.b16 %v2490
      %v3275 = vunpack.c.l.b16 %v2491
      %v3276 = vunpack.c.h.b16 %v2491
      %v3277 = vunpack.c.l.b16 %v2492
      %v3278 = vunpack.c.h.b16 %v2492
      %v3279 = vunpack.c.l.b16 %v2493
      %v3280 = vunpack.c.h.b16 %v2493
      %v3281 = vunpack.c.l.b16 %v2494
      %v3282 = vunpack.c.h.b16 %v2494
      %v3283 = vunpack.c.l.b16 %v2495
      %v3284 = vunpack.c.h.b16 %v2495
      %v3285 = vunpack.c.l.b16 %v2496
      %v3286 = vunpack.c.h.b16 %v2496
      %v3287 = vpack.c.b16 %v2779, %v2775
      %v3288 = vpack.c.b16 %v2780, %v2776
      %v3289 = vpack.c.b16 %v2781, %v2777
      %v3290 = vpack.c.b16 %v2782, %v2778
      %v3291 = vpack.c.b16 %v2787, %v2783
      %v3292 = vpack.c.b16 %v2788, %v2784
      %v3293 = vpack.c.b16 %v2789, %v2785
      %v3294 = vpack.c.b16 %v2790, %v2786
      %v3295 = vpack.c.b16 %v2795, %v2791
      %v3296 = vpack.c.b16 %v2796, %v2792
      %v3297 = vpack.c.b16 %v2797, %v2793
      %v3298 = vpack.c.b16 %v2798, %v2794
      %v3299 = vpack.c.b16 %v2803, %v2799
      %v3300 = vpack.c.b16 %v2804, %v2800
      %v3301 = vpack.c.b16 %v2805, %v2801
      %v3302 = vpack.c.b16 %v2806, %v2802
      %v3303 = vpack.c.b16 %v2811, %v2807
      %v3304 = vpack.c.b16 %v2812, %v2808
      %v3305 = vpack.c.b16 %v2813, %v2809
      %v3306 = vpack.c.b16 %v2814, %v2810
      %v3307 = vpack.c.b16 %v2819, %v2815
      %v3308 = vpack.c.b16 %v2820, %v2816
      %v3309 = vpack.c.b16 %v2821, %v2817
      %v3310 = vpack.c.b16 %v2822, %v2818
      %v3311 = vpack.c.b16 %v2827, %v2823
      %v3312 = vpack.c.b16 %v2828, %v2824
      %v3313 = vpack.c.b16 %v2829, %v2825
      %v3314 = vpack.c.b16 %v2830, %v2826
      %v3315 = vpack.c.b16 %v2835, %v2831
      %v3316 = vpack.c.b16 %v2836, %v2832
      %v3317 = vpack.c.b16 %v2837, %v2833
      %v3318 = vpack.c.b16 %v2838, %v2834
      %v3319 = vpack.c.b16 %v2843, %v2839
      %v3320 = vpack.c.b16 %v2844, %v2840
      %v3321 = vpack.c.b16 %v2845, %v2841
      %v3322 = vpack.c.b16 %v2846, %v2842
      %v3323 = vpack.c.b16 %v2851, %v2847
      %v3324 = vpack.c.b16 %v2852, %v2848
      %v3325 = vpack.c.b16 %v2853, %v2849
      %v3326 = vpack.c.b16 %v2854, %v2850
      %v3327 = vpack.c.b16 %v2859, %v2855
      %v3328 = vpack.c.b16 %v2860, %v2856
      %v3329 = vpack.c.b16 %v2861, %v2857
      %v3330 = vpack.c.b16 %v2862, %v2858
      %v3331 = vpack.c.b16 %v2867, %v2863
      %v3332 = vpack.c.b16 %v2868, %v2864
      %v3333 = vpack.c.b16 %v2869, %v2865
      %v3334 = vpack.c.b16 %v2870, %v2866
      %v3335 = vpack.c.b16 %v2875, %v2871
      %v3336 = vpack.c.b16 %v2876, %v2872
      %v3337 = vpack.c.b16 %v2877, %v2873
      %v3338 = vpack.c.b16 %v2878, %v2874
      %v3339 = vpack.c.b16 %v2883, %v2879
      %v3340 = vpack.c.b16 %v2884, %v2880
      %v3341 = vpack.c.b16 %v2885, %v2881
      %v3342 = vpack.c.b16 %v2886, %v2882
      %v3343 = vpack.c.b16 %v2891, %v2887
      %v3344 = vpack.c.b16 %v2892, %v2888
      %v3345 = vpack.c.b16 %v2893, %v2889
      %v3346 = vpack.c.b16 %v2894, %v2890
      %v3347 = vpack.c.b16 %v2899, %v2895
      %v3348 = vpack.c.b16 %v2900, %v2896
      %v3349 = vpack.c.b16 %v2901, %v2897
      %v3350 = vpack.c.b16 %v2902, %v2898
      %v3351 = vpack.c.b16 %v2907, %v2903
      %v3352 = vpack.c.b16 %v2908, %v2904
      %v3353 = vpack.c.b16 %v2909, %v2905
      %v3354 = vpack.c.b16 %v2910, %v2906
      %v3355 = vpack.c.b16 %v2915, %v2911
      %v3356 = vpack.c.b16 %v2916, %v2912
      %v3357 = vpack.c.b16 %v2917, %v2913
      %v3358 = vpack.c.b16 %v2918, %v2914
      %v3359 = vpack.c.b16 %v2923, %v2919
      %v3360 = vpack.c.b16 %v2924, %v2920
      %v3361 = vpack.c.b16 %v2925, %v2921
      %v3362 = vpack.c.b16 %v2926, %v2922
      %v3363 = vpack.c.b16 %v2931, %v2927
      %v3364 = vpack.c.b16 %v2932, %v2928
      %v3365 = vpack.c.b16 %v2933, %v2929
      %v3366 = vpack.c.b16 %v2934, %v2930
      %v3367 = vpack.c.b16 %v2939, %v2935
      %v3368 = vpack.c.b16 %v2940, %v2936
      %v3369 = vpack.c.b16 %v2941, %v2937
      %v3370 = vpack.c.b16 %v2942, %v2938
      %v3371 = vpack.c.b16 %v2947, %v2943
      %v3372 = vpack.c.b16 %v2948, %v2944
      %v3373 = vpack.c.b16 %v2949, %v2945
      %v3374 = vpack.c.b16 %v2950, %v2946
      %v3375 = vpack.c.b16 %v2955, %v2951
      %v3376 = vpack.c.b16 %v2956, %v2952
      %v3377 = vpack.c.b16 %v2957, %v2953
      %v3378 = vpack.c.b16 %v2958, %v2954
      %v3379 = vpack.c.b16 %v2963, %v2959
      %v3380 = vpack.c.b16 %v2964, %v2960
      %v3381 = vpack.c.b16 %v2965, %v2961
      %v3382 = vpack.c.b16 %v2966, %v2962
      %v3383 = vpack.c.b16 %v2971, %v2967
      %v3384 = vpack.c.b16 %v2972, %v2968
      %v3385 = vpack.c.b16 %v2973, %v2969
      %v3386 = vpack.c.b16 %v2974, %v2970
      %v3387 = vpack.c.b16 %v2979, %v2975
      %v3388 = vpack.c.b16 %v2980, %v2976
      %v3389 = vpack.c.b16 %v2981, %v2977
      %v3390 = vpack.c.b16 %v2982, %v2978
      %v3391 = vpack.c.b16 %v2987, %v2983
      %v3392 = vpack.c.b16 %v2988, %v2984
      %v3393 = vpack.c.b16 %v2989, %v2985
      %v3394 = vpack.c.b16 %v2990, %v2986
      %v3395 = vpack.c.b16 %v2995, %v2991
      %v3396 = vpack.c.b16 %v2996, %v2992
      %v3397 = vpack.c.b16 %v2997, %v2993
      %v3398 = vpack.c.b16 %v2998, %v2994
      %v3399 = vpack.c.b16 %v3003, %v2999
      %v3400 = vpack.c.b16 %v3004, %v3000
      %v3401 = vpack.c.b16 %v3005, %v3001
      %v3402 = vpack.c.b16 %v3006, %v3002
      %v3403 = vpack.c.b16 %v3011, %v3007
      %v3404 = vpack.c.b16 %v3012, %v3008
      %v3405 = vpack.c.b16 %v3013, %v3009
      %v3406 = vpack.c.b16 %v3014, %v3010
      %v3407 = vpack.c.b16 %v3019, %v3015
      %v3408 = vpack.c.b16 %v3020, %v3016
      %v3409 = vpack.c.b16 %v3021, %v3017
      %v3410 = vpack.c.b16 %v3022, %v3018
      %v3411 = vpack.c.b16 %v3027, %v3023
      %v3412 = vpack.c.b16 %v3028, %v3024
      %v3413 = vpack.c.b16 %v3029, %v3025
      %v3414 = vpack.c.b16 %v3030, %v3026
      %v3415 = vpack.c.b16 %v3035, %v3031
      %v3416 = vpack.c.b16 %v3036, %v3032
      %v3417 = vpack.c.b16 %v3037, %v3033
      %v3418 = vpack.c.b16 %v3038, %v3034
      %v3419 = vpack.c.b16 %v3043, %v3039
      %v3420 = vpack.c.b16 %v3044, %v3040
      %v3421 = vpack.c.b16 %v3045, %v3041
      %v3422 = vpack.c.b16 %v3046, %v3042
      %v3423 = vpack.c.b16 %v3051, %v3047
      %v3424 = vpack.c.b16 %v3052, %v3048
      %v3425 = vpack.c.b16 %v3053, %v3049
      %v3426 = vpack.c.b16 %v3054, %v3050
      %v3427 = vpack.c.b16 %v3059, %v3055
      %v3428 = vpack.c.b16 %v3060, %v3056
      %v3429 = vpack.c.b16 %v3061, %v3057
      %v3430 = vpack.c.b16 %v3062, %v3058
      %v3431 = vpack.c.b16 %v3067, %v3063
      %v3432 = vpack.c.b16 %v3068, %v3064
      %v3433 = vpack.c.b16 %v3069, %v3065
      %v3434 = vpack.c.b16 %v3070, %v3066
      %v3435 = vpack.c.b16 %v3075, %v3071
      %v3436 = vpack.c.b16 %v3076, %v3072
      %v3437 = vpack.c.b16 %v3077, %v3073
      %v3438 = vpack.c.b16 %v3078, %v3074
      %v3439 = vpack.c.b16 %v3083, %v3079
      %v3440 = vpack.c.b16 %v3084, %v3080
      %v3441 = vpack.c.b16 %v3085, %v3081
      %v3442 = vpack.c.b16 %v3086, %v3082
      %v3443 = vpack.c.b16 %v3091, %v3087
      %v3444 = vpack.c.b16 %v3092, %v3088
      %v3445 = vpack.c.b16 %v3093, %v3089
      %v3446 = vpack.c.b16 %v3094, %v3090
      %v3447 = vpack.c.b16 %v3099, %v3095
      %v3448 = vpack.c.b16 %v3100, %v3096
      %v3449 = vpack.c.b16 %v3101, %v3097
      %v3450 = vpack.c.b16 %v3102, %v3098
      %v3451 = vpack.c.b16 %v3107, %v3103
      %v3452 = vpack.c.b16 %v3108, %v3104
      %v3453 = vpack.c.b16 %v3109, %v3105
      %v3454 = vpack.c.b16 %v3110, %v3106
      %v3455 = vpack.c.b16 %v3115, %v3111
      %v3456 = vpack.c.b16 %v3116, %v3112
      %v3457 = vpack.c.b16 %v3117, %v3113
      %v3458 = vpack.c.b16 %v3118, %v3114
      %v3459 = vpack.c.b16 %v3123, %v3119
      %v3460 = vpack.c.b16 %v3124, %v3120
      %v3461 = vpack.c.b16 %v3125, %v3121
      %v3462 = vpack.c.b16 %v3126, %v3122
      %v3463 = vpack.c.b16 %v3131, %v3127
      %v3464 = vpack.c.b16 %v3132, %v3128
      %v3465 = vpack.c.b16 %v3133, %v3129
      %v3466 = vpack.c.b16 %v3134, %v3130
      %v3467 = vpack.c.b16 %v3139, %v3135
      %v3468 = vpack.c.b16 %v3140, %v3136
      %v3469 = vpack.c.b16 %v3141, %v3137
      %v3470 = vpack.c.b16 %v3142, %v3138
      %v3471 = vpack.c.b16 %v3147, %v3143
      %v3472 = vpack.c.b16 %v3148, %v3144
      %v3473 = vpack.c.b16 %v3149, %v3145
      %v3474 = vpack.c.b16 %v3150, %v3146
      %v3475 = vpack.c.b16 %v3155, %v3151
      %v3476 = vpack.c.b16 %v3156, %v3152
      %v3477 = vpack.c.b16 %v3157, %v3153
      %v3478 = vpack.c.b16 %v3158, %v3154
      %v3479 = vpack.c.b16 %v3163, %v3159
      %v3480 = vpack.c.b16 %v3164, %v3160
      %v3481 = vpack.c.b16 %v3165, %v3161
      %v3482 = vpack.c.b16 %v3166, %v3162
      %v3483 = vpack.c.b16 %v3171, %v3167
      %v3484 = vpack.c.b16 %v3172, %v3168
      %v3485 = vpack.c.b16 %v3173, %v3169
      %v3486 = vpack.c.b16 %v3174, %v3170
      %v3487 = vpack.c.b16 %v3179, %v3175
      %v3488 = vpack.c.b16 %v3180, %v3176
      %v3489 = vpack.c.b16 %v3181, %v3177
      %v3490 = vpack.c.b16 %v3182, %v3178
      %v3491 = vpack.c.b16 %v3187, %v3183
      %v3492 = vpack.c.b16 %v3188, %v3184
      %v3493 = vpack.c.b16 %v3189, %v3185
      %v3494 = vpack.c.b16 %v3190, %v3186
      %v3495 = vpack.c.b16 %v3195, %v3191
      %v3496 = vpack.c.b16 %v3196, %v3192
      %v3497 = vpack.c.b16 %v3197, %v3193
      %v3498 = vpack.c.b16 %v3198, %v3194
      %v3499 = vpack.c.b16 %v3203, %v3199
      %v3500 = vpack.c.b16 %v3204, %v3200
      %v3501 = vpack.c.b16 %v3205, %v3201
      %v3502 = vpack.c.b16 %v3206, %v3202
      %v3503 = vpack.c.b16 %v3211, %v3207
      %v3504 = vpack.c.b16 %v3212, %v3208
      %v3505 = vpack.c.b16 %v3213, %v3209
      %v3506 = vpack.c.b16 %v3214, %v3210
      %v3507 = vpack.c.b16 %v3219, %v3215
      %v3508 = vpack.c.b16 %v3220, %v3216
      %v3509 = vpack.c.b16 %v3221, %v3217
      %v3510 = vpack.c.b16 %v3222, %v3218
      %v3511 = vpack.c.b16 %v3227, %v3223
      %v3512 = vpack.c.b16 %v3228, %v3224
      %v3513 = vpack.c.b16 %v3229, %v3225
      %v3514 = vpack.c.b16 %v3230, %v3226
      %v3515 = vpack.c.b16 %v3235, %v3231
      %v3516 = vpack.c.b16 %v3236, %v3232
      %v3517 = vpack.c.b16 %v3237, %v3233
      %v3518 = vpack.c.b16 %v3238, %v3234
      %v3519 = vpack.c.b16 %v3243, %v3239
      %v3520 = vpack.c.b16 %v3244, %v3240
      %v3521 = vpack.c.b16 %v3245, %v3241
      %v3522 = vpack.c.b16 %v3246, %v3242
      %v3523 = vpack.c.b16 %v3251, %v3247
      %v3524 = vpack.c.b16 %v3252, %v3248
      %v3525 = vpack.c.b16 %v3253, %v3249
      %v3526 = vpack.c.b16 %v3254, %v3250
      %v3527 = vpack.c.b16 %v3259, %v3255
      %v3528 = vpack.c.b16 %v3260, %v3256
      %v3529 = vpack.c.b16 %v3261, %v3257
      %v3530 = vpack.c.b16 %v3262, %v3258
      %v3531 = vpack.c.b16 %v3267, %v3263
      %v3532 = vpack.c.b16 %v3268, %v3264
      %v3533 = vpack.c.b16 %v3269, %v3265
      %v3534 = vpack.c.b16 %v3270, %v3266
      %v3535 = vpack.c.b16 %v3275, %v3271
      %v3536 = vpack.c.b16 %v3276, %v3272
      %v3537 = vpack.c.b16 %v3277, %v3273
      %v3538 = vpack.c.b16 %v3278, %v3274
      %v3539 = vpack.c.b16 %v3283, %v3279
      %v3540 = vpack.c.b16 %v3284, %v3280
      %v3541 = vpack.c.b16 %v3285, %v3281
      %v3542 = vpack.c.b16 %v3286, %v3282
      %3799 = vmatprep.subr.bf16.mxu0 %v3316
      %3800 = vmatpush1.bf16.msra.mxu0 %v3315
      %3801 = vmatprep.subr.bf16.mxu0 %v3312
      %3802 = vmatpush1.bf16.msra.mxu0 %v3311
      %3803 = vmatprep.subr.bf16.mxu0 %v3308
      %3804 = vmatpush1.bf16.msra.mxu0 %v3307
      %3805 = vmatprep.subr.bf16.mxu0 %v3304
      %3806 = vmatpush1.bf16.msra.mxu0 %v3303
      %3807 = vmatprep.subr.bf16.mxu0 %v3300
      %3808 = vmatpush1.bf16.msra.mxu0 %v3299
      %3809 = vmatprep.subr.bf16.mxu0 %v3296
      %3810 = vmatpush1.bf16.msra.mxu0 %v3295
      %3811 = vmatprep.subr.bf16.mxu0 %v3292
      %3812 = vmatpush1.bf16.msra.mxu0 %v3291
      %3813 = vmatprep.subr.bf16.mxu0 %v3288
      %3814 = vmatpush1.bf16.msra.mxu0 %v3287
      %3815 = vmatprep.subr.bf16.mxu0 %v3348
      %3816 = vmatpush2.bf16.msra.mxu0 %v3347
      %3817 = vmatprep.subr.bf16.mxu0 %v3344
      %3818 = vmatpush2.bf16.msra.mxu0 %v3343
      %3819 = vmatprep.subr.bf16.mxu0 %v3340
      %3820 = vmatpush2.bf16.msra.mxu0 %v3339
      %3821 = vmatprep.subr.bf16.mxu0 %v3336
      %3822 = vmatpush2.bf16.msra.mxu0 %v3335
      %3823 = vmatprep.subr.bf16.mxu0 %v3332
      %3824 = vmatpush2.bf16.msra.mxu0 %v3331
      %3825 = vmatprep.subr.bf16.mxu0 %v3328
      %3826 = vmatpush2.bf16.msra.mxu0 %v3327
      %3827 = vmatprep.subr.bf16.mxu0 %v3324
      %3828 = vmatpush2.bf16.msra.mxu0 %v3323
      %3829 = vmatprep.subr.bf16.mxu0 %v3320
      %3830 = vmatpush2.bf16.msra.mxu0 %v3319
      %3831 = vmatprep.mubr.bf16.mxu0 %v2234
      %3832 = vmatmul.mubr.bf16.gmra.mxu0 %v2233
      %v3833 = vpop.f32.mrf.mxu0
      %v3834 = vadd.f32 %v2502, %v3833
      %v3835 = vpop.f32.mrf.mxu0
      %v3836 = vadd.f32 %v2506, %v3835
      %v3837 = vpop.f32.mrf.mxu0
      %v3838 = vpop.f32.mrf.mxu0
      %3839 = vdwg.mxu0
      %3840 = vmatprep.subr.bf16.mxu0 %v3380
      %3841 = vmatpush1.bf16.msra.mxu0 %v3379
      %3842 = vmatprep.subr.bf16.mxu0 %v3376
      %3843 = vmatpush1.bf16.msra.mxu0 %v3375
      %3844 = vmatprep.subr.bf16.mxu0 %v3372
      %3845 = vmatpush1.bf16.msra.mxu0 %v3371
      %3846 = vmatprep.subr.bf16.mxu0 %v3368
      %3847 = vmatpush1.bf16.msra.mxu0 %v3367
      %3848 = vmatprep.subr.bf16.mxu0 %v3364
      %3849 = vmatpush1.bf16.msra.mxu0 %v3363
      %3850 = vmatprep.subr.bf16.mxu0 %v3360
      %3851 = vmatpush1.bf16.msra.mxu0 %v3359
      %3852 = vmatprep.subr.bf16.mxu0 %v3356
      %3853 = vmatpush1.bf16.msra.mxu0 %v3355
      %3854 = vmatprep.subr.bf16.mxu0 %v3352
      %3855 = vmatpush1.bf16.msra.mxu0 %v3351
      %3856 = vmatprep.subr.bf16.mxu0 %v3412
      %3857 = vmatpush2.bf16.msra.mxu0 %v3411
      %3858 = vmatprep.subr.bf16.mxu0 %v3408
      %3859 = vmatpush2.bf16.msra.mxu0 %v3407
      %3860 = vmatprep.subr.bf16.mxu0 %v3404
      %3861 = vmatpush2.bf16.msra.mxu0 %v3403
      %3862 = vmatprep.subr.bf16.mxu0 %v3400
      %3863 = vmatpush2.bf16.msra.mxu0 %v3399
      %3864 = vmatprep.subr.bf16.mxu0 %v3396
      %3865 = vmatpush2.bf16.msra.mxu0 %v3395
      %3866 = vmatprep.subr.bf16.mxu0 %v3392
      %3867 = vmatpush2.bf16.msra.mxu0 %v3391
      %3868 = vmatprep.subr.bf16.mxu0 %v3388
      %3869 = vmatpush2.bf16.msra.mxu0 %v3387
      %3870 = vmatprep.subr.bf16.mxu0 %v3384
      %3871 = vmatpush2.bf16.msra.mxu0 %v3383
      %3872 = vmatprep.mubr.bf16.mxu0 %v2236
      %3873 = vmatmul.mubr.bf16.gmra.mxu0 %v2235
      %v3874 = vpop.f32.mrf.mxu0
      %v3875 = vadd.f32 %v3834, %v3874
      %v3876 = vpop.f32.mrf.mxu0
      %v3877 = vadd.f32 %v3836, %v3876
      %v3878 = vpop.f32.mrf.mxu0
      %v3879 = vpop.f32.mrf.mxu0
      %3880 = vdwg.mxu0
      %3881 = vmatprep.subr.bf16.mxu0 %v3444
      %3882 = vmatpush1.bf16.msra.mxu0 %v3443
      %3883 = vmatprep.subr.bf16.mxu0 %v3440
      %3884 = vmatpush1.bf16.msra.mxu0 %v3439
      %3885 = vmatprep.subr.bf16.mxu0 %v3436
      %3886 = vmatpush1.bf16.msra.mxu0 %v3435
      %3887 = vmatprep.subr.bf16.mxu0 %v3432
      %3888 = vmatpush1.bf16.msra.mxu0 %v3431
      %3889 = vmatprep.subr.bf16.mxu0 %v3428
      %3890 = vmatpush1.bf16.msra.mxu0 %v3427
      %3891 = vmatprep.subr.bf16.mxu0 %v3424
      %3892 = vmatpush1.bf16.msra.mxu0 %v3423
      %3893 = vmatprep.subr.bf16.mxu0 %v3420
      %3894 = vmatpush1.bf16.msra.mxu0 %v3419
      %3895 = vmatprep.subr.bf16.mxu0 %v3416
      %3896 = vmatpush1.bf16.msra.mxu0 %v3415
      %3897 = vmatprep.subr.bf16.mxu0 %v3476
      %3898 = vmatpush2.bf16.msra.mxu0 %v3475
      %3899 = vmatprep.subr.bf16.mxu0 %v3472
      %3900 = vmatpush2.bf16.msra.mxu0 %v3471
      %3901 = vmatprep.subr.bf16.mxu0 %v3468
      %3902 = vmatpush2.bf16.msra.mxu0 %v3467
      %3903 = vmatprep.subr.bf16.mxu0 %v3464
      %3904 = vmatpush2.bf16.msra.mxu0 %v3463
      %3905 = vmatprep.subr.bf16.mxu0 %v3460
      %3906 = vmatpush2.bf16.msra.mxu0 %v3459
      %3907 = vmatprep.subr.bf16.mxu0 %v3456
      %3908 = vmatpush2.bf16.msra.mxu0 %v3455
      %3909 = vmatprep.subr.bf16.mxu0 %v3452
      %3910 = vmatpush2.bf16.msra.mxu0 %v3451
      %3911 = vmatprep.subr.bf16.mxu0 %v3448
      %3912 = vmatpush2.bf16.msra.mxu0 %v3447
      %3913 = vmatprep.mubr.bf16.mxu0 %v2238
      %3914 = vmatmul.mubr.bf16.gmra.mxu0 %v2237
      %v3915 = vpop.f32.mrf.mxu0
      %v3916 = vadd.f32 %v3875, %v3915
      %v3917 = vpop.f32.mrf.mxu0
      %v3918 = vadd.f32 %v3877, %v3917
      %v3919 = vpop.f32.mrf.mxu0
      %v3920 = vpop.f32.mrf.mxu0
      %3921 = vdwg.mxu0
      %3922 = vmatprep.subr.bf16.mxu0 %v3508
      %3923 = vmatpush1.bf16.msra.mxu0 %v3507
      %3924 = vmatprep.subr.bf16.mxu0 %v3504
      %3925 = vmatpush1.bf16.msra.mxu0 %v3503
      %3926 = vmatprep.subr.bf16.mxu0 %v3500
      %3927 = vmatpush1.bf16.msra.mxu0 %v3499
      %3928 = vmatprep.subr.bf16.mxu0 %v3496
      %3929 = vmatpush1.bf16.msra.mxu0 %v3495
      %3930 = vmatprep.subr.bf16.mxu0 %v3492
      %3931 = vmatpush1.bf16.msra.mxu0 %v3491
      %3932 = vmatprep.subr.bf16.mxu0 %v3488
      %3933 = vmatpush1.bf16.msra.mxu0 %v3487
      %3934 = vmatprep.subr.bf16.mxu0 %v3484
      %3935 = vmatpush1.bf16.msra.mxu0 %v3483
      %3936 = vmatprep.subr.bf16.mxu0 %v3480
      %3937 = vmatpush1.bf16.msra.mxu0 %v3479
      %3938 = vmatprep.subr.bf16.mxu0 %v3540
      %3939 = vmatpush2.bf16.msra.mxu0 %v3539
      %3940 = vmatprep.subr.bf16.mxu0 %v3536
      %3941 = vmatpush2.bf16.msra.mxu0 %v3535
      %3942 = vmatprep.subr.bf16.mxu0 %v3532
      %3943 = vmatpush2.bf16.msra.mxu0 %v3531
      %3944 = vmatprep.subr.bf16.mxu0 %v3528
      %3945 = vmatpush2.bf16.msra.mxu0 %v3527
      %3946 = vmatprep.subr.bf16.mxu0 %v3524
      %3947 = vmatpush2.bf16.msra.mxu0 %v3523
      %3948 = vmatprep.subr.bf16.mxu0 %v3520
      %3949 = vmatpush2.bf16.msra.mxu0 %v3519
      %3950 = vmatprep.subr.bf16.mxu0 %v3516
      %3951 = vmatpush2.bf16.msra.mxu0 %v3515
      %3952 = vmatprep.subr.bf16.mxu0 %v3512
      %3953 = vmatpush2.bf16.msra.mxu0 %v3511
      %3954 = vmatprep.mubr.bf16.mxu0 %v2240
      %3955 = vmatmul.mubr.bf16.gmra.mxu0 %v2239
      %v3956 = vpop.f32.mrf.mxu0
      %v3957 = vadd.f32 %v3916, %v3956
      %v3958 = vpop.f32.mrf.mxu0
      %v3959 = vadd.f32 %v3918, %v3958
      %v3960 = vpop.f32.mrf.mxu0
      %v3961 = vpop.f32.mrf.mxu0
      %3962 = vdwg.mxu0
      %3963 = vmatprep.subr.bf16.mxu0 %v3318
      %3964 = vmatpush1.bf16.msra.mxu0 %v3317
      %3965 = vmatprep.subr.bf16.mxu0 %v3314
      %3966 = vmatpush1.bf16.msra.mxu0 %v3313
      %3967 = vmatprep.subr.bf16.mxu0 %v3310
      %3968 = vmatpush1.bf16.msra.mxu0 %v3309
      %3969 = vmatprep.subr.bf16.mxu0 %v3306
      %3970 = vmatpush1.bf16.msra.mxu0 %v3305
      %3971 = vmatprep.subr.bf16.mxu0 %v3302
      %3972 = vmatpush1.bf16.msra.mxu0 %v3301
      %3973 = vmatprep.subr.bf16.mxu0 %v3298
      %3974 = vmatpush1.bf16.msra.mxu0 %v3297
      %3975 = vmatprep.subr.bf16.mxu0 %v3294
      %3976 = vmatpush1.bf16.msra.mxu0 %v3293
      %3977 = vmatprep.subr.bf16.mxu0 %v3290
      %3978 = vmatpush1.bf16.msra.mxu0 %v3289
      %3979 = vmatprep.subr.bf16.mxu0 %v3350
      %3980 = vmatpush2.bf16.msra.mxu0 %v3349
      %3981 = vmatprep.subr.bf16.mxu0 %v3346
      %3982 = vmatpush2.bf16.msra.mxu0 %v3345
      %3983 = vmatprep.subr.bf16.mxu0 %v3342
      %3984 = vmatpush2.bf16.msra.mxu0 %v3341
      %3985 = vmatprep.subr.bf16.mxu0 %v3338
      %3986 = vmatpush2.bf16.msra.mxu0 %v3337
      %3987 = vmatprep.subr.bf16.mxu0 %v3334
      %3988 = vmatpush2.bf16.msra.mxu0 %v3333
      %3989 = vmatprep.subr.bf16.mxu0 %v3330
      %3990 = vmatpush2.bf16.msra.mxu0 %v3329
      %3991 = vmatprep.subr.bf16.mxu0 %v3326
      %3992 = vmatpush2.bf16.msra.mxu0 %v3325
      %3993 = vmatprep.subr.bf16.mxu0 %v3322
      %3994 = vmatpush2.bf16.msra.mxu0 %v3321
      %3995 = vmatprep.mubr.bf16.mxu0 %v2234
      %3996 = vmatmul.mubr.bf16.gmra.mxu0 %v2233
      %v3997 = vpop.f32.mrf.mxu0
      %v3998 = vadd.f32 %v2510, %v3997
      %v3999 = vpop.f32.mrf.mxu0
      %v4000 = vadd.f32 %v2514, %v3999
      %v4001 = vpop.f32.mrf.mxu0
      %v4002 = vpop.f32.mrf.mxu0
      %4003 = vdwg.mxu0
      %4004 = vmatprep.subr.bf16.mxu0 %v3382
      %4005 = vmatpush1.bf16.msra.mxu0 %v3381
      %4006 = vmatprep.subr.bf16.mxu0 %v3378
      %4007 = vmatpush1.bf16.msra.mxu0 %v3377
      %4008 = vmatprep.subr.bf16.mxu0 %v3374
      %4009 = vmatpush1.bf16.msra.mxu0 %v3373
      %4010 = vmatprep.subr.bf16.mxu0 %v3370
      %4011 = vmatpush1.bf16.msra.mxu0 %v3369
      %4012 = vmatprep.subr.bf16.mxu0 %v3366
      %4013 = vmatpush1.bf16.msra.mxu0 %v3365
      %4014 = vmatprep.subr.bf16.mxu0 %v3362
      %4015 = vmatpush1.bf16.msra.mxu0 %v3361
      %4016 = vmatprep.subr.bf16.mxu0 %v3358
      %4017 = vmatpush1.bf16.msra.mxu0 %v3357
      %4018 = vmatprep.subr.bf16.mxu0 %v3354
      %4019 = vmatpush1.bf16.msra.mxu0 %v3353
      %4020 = vmatprep.subr.bf16.mxu0 %v3414
      %4021 = vmatpush2.bf16.msra.mxu0 %v3413
      %4022 = vmatprep.subr.bf16.mxu0 %v3410
      %4023 = vmatpush2.bf16.msra.mxu0 %v3409
      %4024 = vmatprep.subr.bf16.mxu0 %v3406
      %4025 = vmatpush2.bf16.msra.mxu0 %v3405
      %4026 = vmatprep.subr.bf16.mxu0 %v3402
      %4027 = vmatpush2.bf16.msra.mxu0 %v3401
      %4028 = vmatprep.subr.bf16.mxu0 %v3398
      %4029 = vmatpush2.bf16.msra.mxu0 %v3397
      %4030 = vmatprep.subr.bf16.mxu0 %v3394
      %4031 = vmatpush2.bf16.msra.mxu0 %v3393
      %4032 = vmatprep.subr.bf16.mxu0 %v3390
      %4033 = vmatpush2.bf16.msra.mxu0 %v3389
      %4034 = vmatprep.subr.bf16.mxu0 %v3386
      %4035 = vmatpush2.bf16.msra.mxu0 %v3385
      %4036 = vmatprep.mubr.bf16.mxu0 %v2236
      %4037 = vmatmul.mubr.bf16.gmra.mxu0 %v2235
      %v4038 = vpop.f32.mrf.mxu0
      %v4039 = vadd.f32 %v3998, %v4038
      %v4040 = vpop.f32.mrf.mxu0
      %v4041 = vadd.f32 %v4000, %v4040
      %v4042 = vpop.f32.mrf.mxu0
      %v4043 = vpop.f32.mrf.mxu0
      %4044 = vdwg.mxu0
      %4045 = vmatprep.subr.bf16.mxu0 %v3446
      %4046 = vmatpush1.bf16.msra.mxu0 %v3445
      %4047 = vmatprep.subr.bf16.mxu0 %v3442
      %4048 = vmatpush1.bf16.msra.mxu0 %v3441
      %4049 = vmatprep.subr.bf16.mxu0 %v3438
      %4050 = vmatpush1.bf16.msra.mxu0 %v3437
      %4051 = vmatprep.subr.bf16.mxu0 %v3434
      %4052 = vmatpush1.bf16.msra.mxu0 %v3433
      %4053 = vmatprep.subr.bf16.mxu0 %v3430
      %4054 = vmatpush1.bf16.msra.mxu0 %v3429
      %4055 = vmatprep.subr.bf16.mxu0 %v3426
      %4056 = vmatpush1.bf16.msra.mxu0 %v3425
      %4057 = vmatprep.subr.bf16.mxu0 %v3422
      %4058 = vmatpush1.bf16.msra.mxu0 %v3421
      %4059 = vmatprep.subr.bf16.mxu0 %v3418
      %4060 = vmatpush1.bf16.msra.mxu0 %v3417
      %4061 = vmatprep.subr.bf16.mxu0 %v3478
      %4062 = vmatpush2.bf16.msra.mxu0 %v3477
      %4063 = vmatprep.subr.bf16.mxu0 %v3474
      %4064 = vmatpush2.bf16.msra.mxu0 %v3473
      %4065 = vmatprep.subr.bf16.mxu0 %v3470
      %4066 = vmatpush2.bf16.msra.mxu0 %v3469
      %4067 = vmatprep.subr.bf16.mxu0 %v3466
      %4068 = vmatpush2.bf16.msra.mxu0 %v3465
      %4069 = vmatprep.subr.bf16.mxu0 %v3462
      %4070 = vmatpush2.bf16.msra.mxu0 %v3461
      %4071 = vmatprep.subr.bf16.mxu0 %v3458
      %4072 = vmatpush2.bf16.msra.mxu0 %v3457
      %4073 = vmatprep.subr.bf16.mxu0 %v3454
      %4074 = vmatpush2.bf16.msra.mxu0 %v3453
      %4075 = vmatprep.subr.bf16.mxu0 %v3450
      %4076 = vmatpush2.bf16.msra.mxu0 %v3449
      %4077 = vmatprep.mubr.bf16.mxu0 %v2238
      %4078 = vmatmul.mubr.bf16.gmra.mxu0 %v2237
      %v4079 = vpop.f32.mrf.mxu0
      %v4080 = vadd.f32 %v4039, %v4079
      %v4081 = vpop.f32.mrf.mxu0
      %v4082 = vadd.f32 %v4041, %v4081
      %v4083 = vpop.f32.mrf.mxu0
      %v4084 = vpop.f32.mrf.mxu0
      %4085 = vdwg.mxu0
      %4086 = vmatprep.subr.bf16.mxu0 %v3510
      %4087 = vmatpush1.bf16.msra.mxu0 %v3509
      %4088 = vmatprep.subr.bf16.mxu0 %v3506
      %4089 = vmatpush1.bf16.msra.mxu0 %v3505
      %4090 = vmatprep.subr.bf16.mxu0 %v3502
      %4091 = vmatpush1.bf16.msra.mxu0 %v3501
      %4092 = vmatprep.subr.bf16.mxu0 %v3498
      %4093 = vmatpush1.bf16.msra.mxu0 %v3497
      %4094 = vmatprep.subr.bf16.mxu0 %v3494
      %4095 = vmatpush1.bf16.msra.mxu0 %v3493
      %4096 = vmatprep.subr.bf16.mxu0 %v3490
      %4097 = vmatpush1.bf16.msra.mxu0 %v3489
      %4098 = vmatprep.subr.bf16.mxu0 %v3486
      %4099 = vmatpush1.bf16.msra.mxu0 %v3485
      %4100 = vmatprep.subr.bf16.mxu0 %v3482
      %4101 = vmatpush1.bf16.msra.mxu0 %v3481
      %4102 = vmatprep.subr.bf16.mxu0 %v3542
      %4103 = vmatpush2.bf16.msra.mxu0 %v3541
      %4104 = vmatprep.subr.bf16.mxu0 %v3538
      %4105 = vmatpush2.bf16.msra.mxu0 %v3537
      %4106 = vmatprep.subr.bf16.mxu0 %v3534
      %4107 = vmatpush2.bf16.msra.mxu0 %v3533
      %4108 = vmatprep.subr.bf16.mxu0 %v3530
      %4109 = vmatpush2.bf16.msra.mxu0 %v3529
      %4110 = vmatprep.subr.bf16.mxu0 %v3526
      %4111 = vmatpush2.bf16.msra.mxu0 %v3525
      %4112 = vmatprep.subr.bf16.mxu0 %v3522
      %4113 = vmatpush2.bf16.msra.mxu0 %v3521
      %4114 = vmatprep.subr.bf16.mxu0 %v3518
      %4115 = vmatpush2.bf16.msra.mxu0 %v3517
      %4116 = vmatprep.subr.bf16.mxu0 %v3514
      %4117 = vmatpush2.bf16.msra.mxu0 %v3513
      %4118 = vmatprep.mubr.bf16.mxu0 %v2240
      %4119 = vmatmul.mubr.bf16.gmra.mxu0 %v2239
      %v4120 = vpop.f32.mrf.mxu0
      %v4121 = vadd.f32 %v4080, %v4120
      %v4122 = vpop.f32.mrf.mxu0
      %v4123 = vadd.f32 %v4082, %v4122
      %v4124 = vpop.f32.mrf.mxu0
      %v4125 = vpop.f32.mrf.mxu0
      %4126 = vdwg.mxu0
      %v4127 = vadd.f32 %v3957, %v279
      %v4128 = vadd.f32 %v3959, %v280
      %v4129 = vadd.f32 %v4121, %v281
      %v4130 = vadd.f32 %v4123, %v282
      %v4131 = vadd.f32 %v4127, %v4128
      %v4132 = vadd.f32 %v4131, %v4129
      %v4133 = vadd.f32 %v4132, %v4130
      %4134 = vadd.xlane.f32.xlu0 %v4133
      %v4135 = vpop.xlane.xlu0 %4134
      %v4136 = vrcp.pop 512.0
      %v4137 = vmul.f32 %v4135, %v4136
      %v4138 = vsub.f32 %v4127, %v4137
      %v4139 = vsub.f32 %v4128, %v4137
      %v4140 = vsub.f32 %v4129, %v4137
      %v4141 = vsub.f32 %v4130, %v4137
      %v4142 = vmul.f32 %v4138, %v4138
      %v4143 = vmul.f32 %v4139, %v4139
      %v4144 = vmul.f32 %v4140, %v4140
      %v4145 = vmul.f32 %v4141, %v4141
      %v4146 = vadd.f32 %v4142, %v4143
      %v4147 = vadd.f32 %v4146, %v4144
      %v4148 = vadd.f32 %v4147, %v4145
      %4149 = vadd.xlane.f32.xlu0 %v4148
      %v4150 = vpop.xlane.xlu0 %4149
      %v4151 = vmul.f32 %v4150, %v4136
      %v4152 = vadd.f32 %v4151, 1e-12
      %v4153 = vrsqrt.pop %v4152
      %v4154 = vmul.f32 %v4138, %v4153
      %v4155 = vmul.f32 %v4139, %v4153
      %v4156 = vmul.f32 %v4140, %v4153
      %v4157 = vmul.f32 %v4141, %v4153
      %v4158 = vld [vmem:[%s5] sm:$0xf]
      %v4160 = vlaneseq
      %v4161 = vshrl.u32 %v4160, 7
      %v4162 = vsub.s32 0, %v4161
      %v4163 = vrot.slane %v4158, %v4162
      %v4164 = vlaneseq
      %v4165 = vshrl.u32 %v4164, 7
      %v4166 = vsub.s32 1, %v4165
      %v4167 = vrot.slane %v4158, %v4166
      %v4168 = vlaneseq
      %v4169 = vshrl.u32 %v4168, 7
      %v4170 = vsub.s32 2, %v4169
      %v4171 = vrot.slane %v4158, %v4170
      %v4172 = vlaneseq
      %v4173 = vshrl.u32 %v4172, 7
      %v4174 = vsub.s32 3, %v4173
      %v4175 = vrot.slane %v4158, %v4174
      %v4180 = vmul.f32 %v4154, %v4163
      %v4181 = vmul.f32 %v4155, %v4167
      %v4182 = vmul.f32 %v4156, %v4171
      %v4183 = vmul.f32 %v4157, %v4175
      %v4184 = vld [vmem:[%s6] sm:$0xf]
      %v4186 = vlaneseq
      %v4187 = vshrl.u32 %v4186, 7
      %v4188 = vsub.s32 0, %v4187
      %v4189 = vrot.slane %v4184, %v4188
      %v4190 = vlaneseq
      %v4191 = vshrl.u32 %v4190, 7
      %v4192 = vsub.s32 1, %v4191
      %v4193 = vrot.slane %v4184, %v4192
      %v4194 = vlaneseq
      %v4195 = vshrl.u32 %v4194, 7
      %v4196 = vsub.s32 2, %v4195
      %v4197 = vrot.slane %v4184, %v4196
      %v4198 = vlaneseq
      %v4199 = vshrl.u32 %v4198, 7
      %v4200 = vsub.s32 3, %v4199
      %v4201 = vrot.slane %v4184, %v4200
      %v4206 = vadd.f32 %v4180, %v4189
      %v4207 = vadd.f32 %v4181, %v4193
      %v4208 = vadd.f32 %v4182, %v4197
      %v4209 = vadd.f32 %v4183, %v4201
      %4210 = vst [vmem:[%s278] sm:$0xff] %v4206
      %4211 = vst [vmem:[%s278 + $0x8] sm:$0xff] %v4207
      %4212 = vst [vmem:[%s278 + $0x10] sm:$0xff] %v4208
      %4213 = vst [vmem:[%s278 + $0x18] sm:$0xff] %v4209
      %p4214 = scmp.lt.s32.totalorder %s18, 1
      %s4215 = scalar_select %p4214, %s18, 1
      %s4216 = smul.addr %s4215, 4
      %s4217 = smul.addr %s4216, 8
      %s4218 = scalar_lea.vmem %s7, %s4217
      // Predicated region
      $region49: #{bert_forward.29} parent=47 // pred_check
        %p4219 = pneg %p188
      $region50: #{bert_forward.29} parent=47 // pred_check_branch
        %4221 = sbr.rel (%p4219) target = $region52
      $region51: #{bert_forward.29} parent=47 // pred_region
        _
      $region52: #{bert_forward.29} parent=47 // pred_fallthru
        _
    $region48: #{bert_forward.29} parent=5 // pred_fallthru
      _
    %p4222 = scmp.le.s32.totalorder 2, %s13
    // Predicated region
    $region53: #{bert_forward.29} parent=5 // pred_check
      %p4223 = pneg %p4222
    $region54: #{bert_forward.29} parent=5 // pred_check_branch
      %4225 = sbr.rel (%p4223) target = $region56
    $region55: #{bert_forward.29} parent=5 // pred_region
      %s4226 = ssub.s32 %s13, 2
      // Predicated region
      $region57: #{bert_forward.29} parent=55 // pred_check
        %p4227 = pneg %p194
      $region58: #{bert_forward.29} parent=55 // pred_check_branch
        %4229 = sbr.rel (%p4227) target = $region60
      $region59: #{bert_forward.29} parent=55 // pred_region
        %p4230 = scmp.lt.s32.totalorder %s19, 1
        %s4231 = scalar_select %p4230, %s19, 1
        %s4232 = smul.addr %s4231, 4
        %s4233 = smul.addr %s4232, 8
        %s4234 = scalar_lea.vmem %s7, %s4233
      $region60: #{bert_forward.29} parent=55 // pred_fallthru
        _
    $region56: #{bert_forward.29} parent=5 // pred_fallthru
      _
  $region6: #{bert_forward.29} parent=0 // loop_footer
    %s17 = sadd.s32 1, %s13
  $region7: #{bert_forward.29} parent=0 // loop_footer_branch
    %12 = sbr.rel target = $region3
  $region8: #{bert_forward.29} parent=0 // loop_exit
    _

</llo_original>
